<compile_context>
chip_gen: v6e
topology: v6e:2x2x1
jax: 0.10.0
libtpu: 0.0.40
codegen_flags: <defaults>
</compile_context>

<pallas_src>
import numpy as np
import jax
import jax.numpy as jnp
from jax import lax
from jax.experimental import pallas as pl
from jax.experimental.pallas import tpu as pltpu

FRAMES = 3            # conv-1 input channels
IMG = 7               # 7x7 spatial map (Linear(980,...) = 20*7*7)
P = IMG * IMG         # 49 pixels
C1 = 16               # conv1 out channels
C2 = 20               # conv2 out channels
FEAT = 256            # Linear(980, 256) output / GRU input size
HID = 128             # rnn_hidden_size
K_LIN = C2 * P        # 980
VMEM_LIMIT = 32 * 1024 * 1024


def _cdiv(a, b):
    return -(-a // b)


def _round_up(n, m):
    return _cdiv(n, m) * m


# --------------------------------------------------------------------------------
# Fused non-recurrent kernel: per-pixel 1x1 convs + Linear(980,256)+ReLU + GRU
# input projection, batched over all T*N samples ("parallel" grid over sample
# blocks).  Conv intermediates never leave VMEM.
# --------------------------------------------------------------------------------
def _net_kernel(x_ref, w1_ref, b1_ref, w2_ref, b2_ref, w3_ref, b3_ref,
                wih_ref, bih_ref, gi_ref, lin_scr):
    tm = x_ref.shape[1]                                      # samples in this block
    # (P, TM, 3) -> (P*TM, 3): leading-dim merge, minor dim unchanged (cheap).
    x = x_ref[...].reshape(P * tm, FRAMES)                   # bf16
    h1 = jnp.dot(x, w1_ref[...], preferred_element_type=jnp.float32) + b1_ref[...]
    h1 = jnp.maximum(h1, 0.0)
    h2 = jnp.dot(h1.astype(jnp.bfloat16), w2_ref[...],
                 preferred_element_type=jnp.float32) + b2_ref[...]
    h2 = jnp.maximum(h2, 0.0)                                # (P*TM, 20) f32

    # Bridge (pixel, sample) x channel  ->  sample x (pixel*channel) entirely in
    # VMEM: 49 statically-sliced copies into the Linear-input scratch.  Every one
    # of the 980 columns is overwritten each grid step, so no init is needed.
    for p in range(P):                                       # unrolled at trace time
        lin_scr[:, p * C2:(p + 1) * C2] = h2[p * tm:(p + 1) * tm, :]

    feat = jnp.dot(lin_scr[...].astype(jnp.bfloat16), w3_ref[...],
                   preferred_element_type=jnp.float32) + b3_ref[...]
    feat = jnp.maximum(feat, 0.0)                            # (TM, 256) f32
    gi_ref[...] = jnp.dot(feat.astype(jnp.bfloat16), wih_ref[...],
                          preferred_element_type=jnp.float32) + bih_ref[...]


# --------------------------------------------------------------------------------
# GRU recurrence only: TB timesteps per grid step ("arbitrary" grid), hidden state
# carried across grid steps in VMEM scratch.  Gate math stays f32.
# --------------------------------------------------------------------------------
def _gru_kernel(gi_ref, mask_ref, h0_ref, whh_ref, bhh_ref, seq_ref, h_scr):
    @pl.when(pl.program_id(0) == 0)
    def _():
        h_scr[...] = h0_ref[...]

    tb = gi_ref.shape[0]                 # static time-block size
    H = HID
    whh = whh_ref[...]                   # (H, 3H) bf16 — hoisted out of the loop
    bhh = bhh_ref[...]                   # (1, 3H) f32
    # TODO(synk): stage W_hh in the MXU once per time block (matmul_push_rhs /
    # matmul_acc_lhs) instead of re-pushing it every unrolled step.

    def step(i, h):
        h_prev = h * mask_ref[i]                                       # (N,H)*(N,1)
        gh = jnp.dot(h_prev.astype(jnp.bfloat16), whh,
                     preferred_element_type=jnp.float32) + bhh
        gi = gi_ref[i]                                                 # (N, 3H) f32
        r = jax.nn.sigmoid(gi[:, 0:H] + gh[:, 0:H])
        z = jax.nn.sigmoid(gi[:, H:2 * H] + gh[:, H:2 * H])
        n = jnp.tanh(gi[:, 2 * H:3 * H] + r * gh[:, 2 * H:3 * H])
        h_new = (1.0 - z) * n + z * h_prev
        seq_ref[i] = h_new
        return h_new

    h_scr[...] = lax.fori_loop(0, tb, step, h_scr[...], unroll=True)


def agent_forward(params, x_nchw, rnn_hidden_state, mask):
    """Mirrors Agent.forward(x, rnn_hidden_state, mask) -> (x, rnn_hidden_state)."""
    B = x_nchw.shape[0]
    N, H = rnn_hidden_state.shape
    assert B % N == 0 and H == HID
    T = B // N
    f32, bf16 = jnp.float32, jnp.bfloat16

    # ---------------- weight prep (tiny, once per call) ----------------
    w1t = params["w1"].T.astype(bf16)                                  # (3, 16)
    b1r = params["b1"][None, :].astype(f32)
    w2t = params["w2"].T.astype(bf16)                                  # (16, 20)
    b2r = params["b2"][None, :].astype(f32)
    # Linear(980,256): permute its K axis from the NCHW-flatten order (c*49+p) to
    # the (pixel, channel) order (p*20+c) produced by the fused conv kernel.
    w3p = params["w3"].reshape(FEAT, C2, P).transpose(0, 2, 1).reshape(FEAT, K_LIN)
    w3t = w3p.T.astype(bf16)                                           # (980, 256)
    b3r = params["b3"][None, :].astype(f32)
    wiht = params["wih"].T.astype(bf16)                                # (256, 3H)
    bihr = params["bih"][None, :].astype(f32)
    whht = params["whh"].T.astype(bf16)                                # (H, 3H)
    bhhr = params["bhh"][None, :].astype(f32)

    # -------- sample-block tiling: cdiv + pad, >=2 blocks when B allows --------
    TM = min(256, max(16, _round_up(_cdiv(B, 2), 16)))
    nblk = _cdiv(B, TM)
    B_pad = nblk * TM

    # -------- input relayout: cast to bf16 first, then (pixel, sample, chan) --------
    xp = x_nchw.astype(bf16).reshape(B, FRAMES, P).transpose(2, 0, 1)  # (49, B, 3)
    if B_pad != B:
        xp = jnp.pad(xp, ((0, 0), (0, B_pad - B), (0, 0)))

    gi = pl.pallas_call(
        _net_kernel,
        out_shape=jax.ShapeDtypeStruct((B_pad, 3 * HID), f32),
        grid_spec=pltpu.PrefetchScalarGridSpec(
            num_scalar_prefetch=0,
            grid=(nblk,),
            in_specs=[pl.BlockSpec((P, TM, FRAMES), lambda i: (0, i, 0)),
                      pl.BlockSpec((FRAMES, C1), lambda i: (0, 0)),
                      pl.BlockSpec((1, C1), lambda i: (0, 0)),
                      pl.BlockSpec((C1, C2), lambda i: (0, 0)),
                      pl.BlockSpec((1, C2), lambda i: (0, 0)),
                      pl.BlockSpec((K_LIN, FEAT), lambda i: (0, 0)),
                      pl.BlockSpec((1, FEAT), lambda i: (0, 0)),
                      pl.BlockSpec((FEAT, 3 * HID), lambda i: (0, 0)),
                      pl.BlockSpec((1, 3 * HID), lambda i: (0, 0))],
            out_specs=pl.BlockSpec((TM, 3 * HID), lambda i: (i, 0)),
            scratch_shapes=[pltpu.VMEM((TM, K_LIN), f32)],
        ),
        compiler_params=pltpu.CompilerParams(
            dimension_semantics=("parallel",), vmem_limit_bytes=VMEM_LIMIT),
    )(xp, w1t, b1r, w2t, b2r, w3t, b3r, wiht, bihr)
    gi = gi[:B]

    # --------------- sequential GRU recurrence (time-blocked) ---------------
    N_pad = _round_up(N, 8)            # sublane-dense env dimension
    TB = min(8, T)
    T_pad = _round_up(T, TB)

    gi_t = gi.reshape(T, N, 3 * HID)
    mk = mask.astype(f32).reshape(T, N, 1)
    h0 = rnn_hidden_state.astype(f32)
    if N_pad != N:
        gi_t = jnp.pad(gi_t, ((0, 0), (0, N_pad - N), (0, 0)))
        mk = jnp.pad(mk, ((0, 0), (0, N_pad - N), (0, 0)))
        h0 = jnp.pad(h0, ((0, N_pad - N), (0, 0)))
    if T_pad != T:
        gi_t = jnp.pad(gi_t, ((0, T_pad - T), (0, 0), (0, 0)))
        mk = jnp.pad(mk, ((0, T_pad - T), (0, 0), (0, 0)))

    seq = pl.pallas_call(
        _gru_kernel,
        out_shape=jax.ShapeDtypeStruct((T_pad, N_pad, HID), f32),
        grid_spec=pltpu.PrefetchScalarGridSpec(
            num_scalar_prefetch=0,
            grid=(T_pad // TB,),
            in_specs=[pl.BlockSpec((TB, N_pad, 3 * HID), lambda i: (i, 0, 0)),
                      pl.BlockSpec((TB, N_pad, 1), lambda i: (i, 0, 0)),
                      pl.BlockSpec((N_pad, HID), lambda i: (0, 0)),
                      pl.BlockSpec((HID, 3 * HID), lambda i: (0, 0)),
                      pl.BlockSpec((1, 3 * HID), lambda i: (0, 0))],
            out_specs=pl.BlockSpec((TB, N_pad, HID), lambda i: (i, 0, 0)),
            scratch_shapes=[pltpu.VMEM((N_pad, HID), f32)],
        ),
        compiler_params=pltpu.CompilerParams(
            dimension_semantics=("arbitrary",),        # true recurrence over time
            vmem_limit_bytes=VMEM_LIMIT),
    )(gi_t, mk, h0, whht, bhhr)

    seq = seq[:T, :N, :]
    # Final hidden state is simply the last timestep of the sequence output.
    return seq.reshape(T * N, HID), seq[-1]


def init_params(key):
    """Deterministic synthetic init mirroring layer_init / GRU init of the module."""
    ortho = jax.nn.initializers.orthogonal
    ks = jax.random.split(key, 5)
    return dict(
        w1=ortho(np.sqrt(2))(ks[0], (C1, FRAMES), jnp.float32),      # Conv2d(3,16,1)
        b1=jnp.zeros((C1,), jnp.float32),
        w2=ortho(np.sqrt(2))(ks[1], (C2, C1), jnp.float32),          # Conv2d(16,20,1)
        b2=jnp.zeros((C2,), jnp.float32),
        w3=ortho(np.sqrt(2))(ks[2], (FEAT, K_LIN), jnp.float32),     # Linear(980,256)
        b3=jnp.zeros((FEAT,), jnp.float32),
        wih=ortho(np.sqrt(2))(ks[3], (3 * HID, FEAT), jnp.float32),  # GRU weight_ih
        whh=ortho(np.sqrt(2))(ks[4], (3 * HID, HID), jnp.float32),   # GRU weight_hh
        bih=jnp.zeros((3 * HID,), jnp.float32),
        bhh=jnp.zeros((3 * HID,), jnp.float32),
    )
    # TODO(synk): actor/critic heads + Categorical sampling (get_action/get_value)
    # are outside forward() and not implemented here.


def reference_forward(params, x, h0, mask):
    """Pure-JAX f32 reference replicating the PyTorch forward (NCHW, GRUCell r/z/n)."""
    B = x.shape[0]
    N, H = h0.shape
    T = B // N

    def network(xb):                                   # xb: (N, 3, 7, 7)
        a = jnp.einsum("nchw,kc->nkhw", xb, params["w1"]) + params["b1"][None, :, None, None]
        a = jax.nn.relu(a)
        a = jnp.einsum("nkhw,ok->nohw", a, params["w2"]) + params["b2"][None, :, None, None]
        a = jax.nn.relu(a)
        a = a.reshape(a.shape[0], -1)                  # NCHW flatten -> (N, 980)
        return jax.nn.relu(a @ params["w3"].T + params["b3"])

    def gru(xt, h):
        gi = xt @ params["wih"].T + params["bih"]
        gh = h @ params["whh"].T + params["bhh"]
        r = jax.nn.sigmoid(gi[:, :H] + gh[:, :H])
        z = jax.nn.sigmoid(gi[:, H:2 * H] + gh[:, H:2 * H])
        n = jnp.tanh(gi[:, 2 * H:] + r * gh[:, 2 * H:])
        return (1.0 - z) * n + z * h

    xs = x.reshape(T, N, *x.shape[1:])
    ms = mask.reshape(T, N, 1)
    h = h0
    outs = []
    for t in range(T):
        h = gru(network(xs[t]), h * ms[t])
        outs.append(h)
    return jnp.stack(outs, 0).reshape(T * N, H), h


if __name__ == "__main__":
    key = jax.random.PRNGKey(0)
    pkey, xkey, mkey, hkey = jax.random.split(key, 4)
    params = init_params(pkey)

    T, N = 8, 4                                        # 8 rollout steps, 4 envs
    x = jax.random.uniform(xkey, (T * N, FRAMES, IMG, IMG), jnp.float32, 0.0, 0.5)
    mask = (jax.random.uniform(mkey, (T * N, 1)) > 0.2).astype(jnp.float32)
    h0 = 0.1 * jax.random.normal(hkey, (N, HID), jnp.float32)

    fwd = jax.jit(agent_forward)
    seq, h_fin = fwd(params, x, h0, mask)
    jax.block_until_ready((seq, h_fin))

    ref_seq, ref_h = reference_forward(params, x, h0, mask)
    err_seq = float(jnp.max(jnp.abs(seq - ref_seq)))
    err_h = float(jnp.max(jnp.abs(h_fin - ref_h)))
    # Tolerance accounts for bf16 matmul operands (f32 accumulate) vs f32 reference.
    assert err_seq < 1e-1 and err_h < 1e-1, f"max abs err seq={err_seq:.4f} h={err_h:.4f}"
    print("KERNEL_OK")
</pallas_src>

<mosaic_0001>
module attributes {stable_mosaic.version = 11 : i64} {
  func.func @_net_kernel(%arg0: i32, %arg1: memref<49x16x3xbf16, #tpu.memory_space<vmem>>, %arg2: memref<3x16xbf16, #tpu.memory_space<vmem>>, %arg3: memref<1x16xf32, #tpu.memory_space<vmem>>, %arg4: memref<16x20xbf16, #tpu.memory_space<vmem>>, %arg5: memref<1x20xf32, #tpu.memory_space<vmem>>, %arg6: memref<980x256xbf16, #tpu.memory_space<vmem>>, %arg7: memref<1x256xf32, #tpu.memory_space<vmem>>, %arg8: memref<256x384xbf16, #tpu.memory_space<vmem>>, %arg9: memref<1x384xf32, #tpu.memory_space<vmem>>, %arg10: memref<16x384xf32, #tpu.memory_space<vmem>>, %arg11: memref<16x980xf32, #tpu.memory_space<vmem>>) attributes {dimension_semantics = [#tpu.dimension_semantics<parallel>], iteration_bounds = array<i64: 2>, scalar_prefetch = 0 : i64, scratch_operands = 1 : i64, tpu.core_type = #tpu.core_type<tc>, window_params = [{transform_indices = @transform_0, window_bounds = array<i64: 49, 16, 3>}, {pipeline_mode = #tpu.pipeline_mode<synchronous>, transform_indices = @transform_1, window_bounds = array<i64: 3, 16>}, {pipeline_mode = #tpu.pipeline_mode<synchronous>, transform_indices = @transform_2, window_bounds = array<i64: 1, 16>}, {pipeline_mode = #tpu.pipeline_mode<synchronous>, transform_indices = @transform_3, window_bounds = array<i64: 16, 20>}, {pipeline_mode = #tpu.pipeline_mode<synchronous>, transform_indices = @transform_4, window_bounds = array<i64: 1, 20>}, {pipeline_mode = #tpu.pipeline_mode<synchronous>, transform_indices = @transform_5, window_bounds = array<i64: 980, 256>}, {pipeline_mode = #tpu.pipeline_mode<synchronous>, transform_indices = @transform_6, window_bounds = array<i64: 1, 256>}, {pipeline_mode = #tpu.pipeline_mode<synchronous>, transform_indices = @transform_7, window_bounds = array<i64: 256, 384>}, {pipeline_mode = #tpu.pipeline_mode<synchronous>, transform_indices = @transform_8, window_bounds = array<i64: 1, 384>}, {transform_indices = @transform_9, window_bounds = array<i64: 16, 384>}]} {
    %c0 = arith.constant 0 : index
    %c0_0 = arith.constant 0 : index
    %c0_1 = arith.constant 0 : index
    %0 = vector.load %arg1[%c0, %c0_0, %c0_1] : memref<49x16x3xbf16, #tpu.memory_space<vmem>>, vector<49x16x3xbf16>
    %1 = vector.shape_cast %0 : vector<49x16x3xbf16> to vector<784x3xbf16>
    %c0_2 = arith.constant 0 : index
    %c0_3 = arith.constant 0 : index
    %2 = vector.load %arg2[%c0_2, %c0_3] : memref<3x16xbf16, #tpu.memory_space<vmem>>, vector<3x16xbf16>
    %cst = arith.constant dense<0.000000e+00> : vector<784x16xf32>
    %3 = tpu.matmul %1, %2, %cst {dimension_numbers = #tpu.dot_dimension_numbers<[1], [0], [0], [1], [0, 0, 1, 1], [], []>} : vector<784x3xbf16>, vector<3x16xbf16>, vector<784x16xf32> -> vector<784x16xf32>
    %c0_4 = arith.constant 0 : index
    %c0_5 = arith.constant 0 : index
    %4 = vector.load %arg3[%c0_4, %c0_5] : memref<1x16xf32, #tpu.memory_space<vmem>>, vector<1x16xf32>
    %5 = vector.broadcast %4 : vector<1x16xf32> to vector<784x16xf32>
    %6 = arith.addf %3, %5 : vector<784x16xf32>
    %cst_6 = arith.constant 0.000000e+00 : f32
    %7 = vector.broadcast %cst_6 : f32 to vector<784x16xf32>
    %8 = arith.maximumf %6, %7 : vector<784x16xf32>
    %9 = arith.truncf %8 : vector<784x16xf32> to vector<784x16xbf16>
    %c0_7 = arith.constant 0 : index
    %c0_8 = arith.constant 0 : index
    %10 = vector.load %arg4[%c0_7, %c0_8] : memref<16x20xbf16, #tpu.memory_space<vmem>>, vector<16x20xbf16>
    %cst_9 = arith.constant dense<0.000000e+00> : vector<784x20xf32>
    %11 = tpu.matmul %9, %10, %cst_9 {dimension_numbers = #tpu.dot_dimension_numbers<[1], [0], [0], [1], [0, 0, 1, 1], [], []>} : vector<784x16xbf16>, vector<16x20xbf16>, vector<784x20xf32> -> vector<784x20xf32>
    %c0_10 = arith.constant 0 : index
    %c0_11 = arith.constant 0 : index
    %12 = vector.load %arg5[%c0_10, %c0_11] : memref<1x20xf32, #tpu.memory_space<vmem>>, vector<1x20xf32>
    %13 = vector.broadcast %12 : vector<1x20xf32> to vector<784x20xf32>
    %14 = arith.addf %11, %13 : vector<784x20xf32>
    %cst_12 = arith.constant 0.000000e+00 : f32
    %15 = vector.broadcast %cst_12 : f32 to vector<784x20xf32>
    %16 = arith.maximumf %14, %15 : vector<784x20xf32>
    %17 = vector.extract_strided_slice %16 {offsets = [0, 0], sizes = [16, 20], strides = [1, 1]} : vector<784x20xf32> to vector<16x20xf32>
    %c0_13 = arith.constant 0 : index
    %c0_14 = arith.constant 0 : index
    %18 = vector.load %arg11[%c0_13, %c0_14] : memref<16x980xf32, #tpu.memory_space<vmem>>, vector<16x20xf32>
    tpu.vector_store %arg11[%c0_13, %c0_14], %17 {strides = array<i32>} : memref<16x980xf32, #tpu.memory_space<vmem>>, vector<16x20xf32>,
    %19 = vector.extract_strided_slice %16 {offsets = [16, 0], sizes = [16, 20], strides = [1, 1]} : vector<784x20xf32> to vector<16x20xf32>
    %c0_15 = arith.constant 0 : index
    %c20 = arith.constant 20 : index
    %20 = vector.load %arg11[%c0_15, %c20] : memref<16x980xf32, #tpu.memory_space<vmem>>, vector<16x20xf32>
    tpu.vector_store %arg11[%c0_15, %c20], %19 {strides = array<i32>} : memref<16x980xf32, #tpu.memory_space<vmem>>, vector<16x20xf32>,
    %21 = vector.extract_strided_slice %16 {offsets = [32, 0], sizes = [16, 20], strides = [1, 1]} : vector<784x20xf32> to vector<16x20xf32>
    %c0_16 = arith.constant 0 : index
    %c40 = arith.constant 40 : index
    %22 = vector.load %arg11[%c0_16, %c40] : memref<16x980xf32, #tpu.memory_space<vmem>>, vector<16x20xf32>
    tpu.vector_store %arg11[%c0_16, %c40], %21 {strides = array<i32>} : memref<16x980xf32, #tpu.memory_space<vmem>>, vector<16x20xf32>,
    %23 = vector.extract_strided_slice %16 {offsets = [48, 0], sizes = [16, 20], strides = [1, 1]} : vector<784x20xf32> to vector<16x20xf32>
    %c0_17 = arith.constant 0 : index
    %c60 = arith.constant 60 : index
    %24 = vector.load %arg11[%c0_17, %c60] : memref<16x980xf32, #tpu.memory_space<vmem>>, vector<16x20xf32>
    tpu.vector_store %arg11[%c0_17, %c60], %23 {strides = array<i32>} : memref<16x980xf32, #tpu.memory_space<vmem>>, vector<16x20xf32>,
    %25 = vector.extract_strided_slice %16 {offsets = [64, 0], sizes = [16, 20], strides = [1, 1]} : vector<784x20xf32> to vector<16x20xf32>
    %c0_18 = arith.constant 0 : index
    %c80 = arith.constant 80 : index
    %26 = vector.load %arg11[%c0_18, %c80] : memref<16x980xf32, #tpu.memory_space<vmem>>, vector<16x20xf32>
    tpu.vector_store %arg11[%c0_18, %c80], %25 {strides = array<i32>} : memref<16x980xf32, #tpu.memory_space<vmem>>, vector<16x20xf32>,
    %27 = vector.extract_strided_slice %16 {offsets = [80, 0], sizes = [16, 20], strides = [1, 1]} : vector<784x20xf32> to vector<16x20xf32>
    %c0_19 = arith.constant 0 : index
    %c100 = arith.constant 100 : index
    %28 = vector.load %arg11[%c0_19, %c100] : memref<16x980xf32, #tpu.memory_space<vmem>>, vector<16x20xf32>
    tpu.vector_store %arg11[%c0_19, %c100], %27 {strides = array<i32>} : memref<16x980xf32, #tpu.memory_space<vmem>>, vector<16x20xf32>,
    %29 = vector.extract_strided_slice %16 {offsets = [96, 0], sizes = [16, 20], strides = [1, 1]} : vector<784x20xf32> to vector<16x20xf32>
    %c0_20 = arith.constant 0 : index
    %c120 = arith.constant 120 : index
    %30 = vector.load %arg11[%c0_20, %c120] : memref<16x980xf32, #tpu.memory_space<vmem>>, vector<16x20xf32>
    tpu.vector_store %arg11[%c0_20, %c120], %29 {strides = array<i32>} : memref<16x980xf32, #tpu.memory_space<vmem>>, vector<16x20xf32>,
    %31 = vector.extract_strided_slice %16 {offsets = [112, 0], sizes = [16, 20], strides = [1, 1]} : vector<784x20xf32> to vector<16x20xf32>
    %c0_21 = arith.constant 0 : index
    %c140 = arith.constant 140 : index
    %32 = vector.load %arg11[%c0_21, %c140] : memref<16x980xf32, #tpu.memory_space<vmem>>, vector<16x20xf32>
    tpu.vector_store %arg11[%c0_21, %c140], %31 {strides = array<i32>} : memref<16x980xf32, #tpu.memory_space<vmem>>, vector<16x20xf32>,
    %33 = vector.extract_strided_slice %16 {offsets = [128, 0], sizes = [16, 20], strides = [1, 1]} : vector<784x20xf32> to vector<16x20xf32>
    %c0_22 = arith.constant 0 : index
    %c160 = arith.constant 160 : index
    %34 = vector.load %arg11[%c0_22, %c160] : memref<16x980xf32, #tpu.memory_space<vmem>>, vector<16x20xf32>
    tpu.vector_store %arg11[%c0_22, %c160], %33 {strides = array<i32>} : memref<16x980xf32, #tpu.memory_space<vmem>>, vector<16x20xf32>,
    %35 = vector.extract_strided_slice %16 {offsets = [144, 0], sizes = [16, 20], strides = [1, 1]} : vector<784x20xf32> to vector<16x20xf32>
    %c0_23 = arith.constant 0 : index
    %c180 = arith.constant 180 : index
    %36 = vector.load %arg11[%c0_23, %c180] : memref<16x980xf32, #tpu.memory_space<vmem>>, vector<16x20xf32>
    tpu.vector_store %arg11[%c0_23, %c180], %35 {strides = array<i32>} : memref<16x980xf32, #tpu.memory_space<vmem>>, vector<16x20xf32>,
    %37 = vector.extract_strided_slice %16 {offsets = [160, 0], sizes = [16, 20], strides = [1, 1]} : vector<784x20xf32> to vector<16x20xf32>
    %c0_24 = arith.constant 0 : index
    %c200 = arith.constant 200 : index
    %38 = vector.load %arg11[%c0_24, %c200] : memref<16x980xf32, #tpu.memory_space<vmem>>, vector<16x20xf32>
    tpu.vector_store %arg11[%c0_24, %c200], %37 {strides = array<i32>} : memref<16x980xf32, #tpu.memory_space<vmem>>, vector<16x20xf32>,
    %39 = vector.extract_strided_slice %16 {offsets = [176, 0], sizes = [16, 20], strides = [1, 1]} : vector<784x20xf32> to vector<16x20xf32>
    %c0_25 = arith.constant 0 : index
    %c220 = arith.constant 220 : index
    %40 = vector.load %arg11[%c0_25, %c220] : memref<16x980xf32, #tpu.memory_space<vmem>>, vector<16x20xf32>
    tpu.vector_store %arg11[%c0_25, %c220], %39 {strides = array<i32>} : memref<16x980xf32, #tpu.memory_space<vmem>>, vector<16x20xf32>,
    %41 = vector.extract_strided_slice %16 {offsets = [192, 0], sizes = [16, 20], strides = [1, 1]} : vector<784x20xf32> to vector<16x20xf32>
    %c0_26 = arith.constant 0 : index
    %c240 = arith.constant 240 : index
    %42 = vector.load %arg11[%c0_26, %c240] : memref<16x980xf32, #tpu.memory_space<vmem>>, vector<16x20xf32>
    tpu.vector_store %arg11[%c0_26, %c240], %41 {strides = array<i32>} : memref<16x980xf32, #tpu.memory_space<vmem>>, vector<16x20xf32>,
    %43 = vector.extract_strided_slice %16 {offsets = [208, 0], sizes = [16, 20], strides = [1, 1]} : vector<784x20xf32> to vector<16x20xf32>
    %c0_27 = arith.constant 0 : index
    %c260 = arith.constant 260 : index
    %44 = vector.load %arg11[%c0_27, %c260] : memref<16x980xf32, #tpu.memory_space<vmem>>, vector<16x20xf32>
    tpu.vector_store %arg11[%c0_27, %c260], %43 {strides = array<i32>} : memref<16x980xf32, #tpu.memory_space<vmem>>, vector<16x20xf32>,
    %45 = vector.extract_strided_slice %16 {offsets = [224, 0], sizes = [16, 20], strides = [1, 1]} : vector<784x20xf32> to vector<16x20xf32>
    %c0_28 = arith.constant 0 : index
    %c280 = arith.constant 280 : index
    %46 = vector.load %arg11[%c0_28, %c280] : memref<16x980xf32, #tpu.memory_space<vmem>>, vector<16x20xf32>
    tpu.vector_store %arg11[%c0_28, %c280], %45 {strides = array<i32>} : memref<16x980xf32, #tpu.memory_space<vmem>>, vector<16x20xf32>,
    %47 = vector.extract_strided_slice %16 {offsets = [240, 0], sizes = [16, 20], strides = [1, 1]} : vector<784x20xf32> to vector<16x20xf32>
    %c0_29 = arith.constant 0 : index
    %c300 = arith.constant 300 : index
    %48 = vector.load %arg11[%c0_29, %c300] : memref<16x980xf32, #tpu.memory_space<vmem>>, vector<16x20xf32>
    tpu.vector_store %arg11[%c0_29, %c300], %47 {strides = array<i32>} : memref<16x980xf32, #tpu.memory_space<vmem>>, vector<16x20xf32>,
    %49 = vector.extract_strided_slice %16 {offsets = [256, 0], sizes = [16, 20], strides = [1, 1]} : vector<784x20xf32> to vector<16x20xf32>
    %c0_30 = arith.constant 0 : index
    %c320 = arith.constant 320 : index
    %50 = vector.load %arg11[%c0_30, %c320] : memref<16x980xf32, #tpu.memory_space<vmem>>, vector<16x20xf32>
    tpu.vector_store %arg11[%c0_30, %c320], %49 {strides = array<i32>} : memref<16x980xf32, #tpu.memory_space<vmem>>, vector<16x20xf32>,
    %51 = vector.extract_strided_slice %16 {offsets = [272, 0], sizes = [16, 20], strides = [1, 1]} : vector<784x20xf32> to vector<16x20xf32>
    %c0_31 = arith.constant 0 : index
    %c340 = arith.constant 340 : index
    %52 = vector.load %arg11[%c0_31, %c340] : memref<16x980xf32, #tpu.memory_space<vmem>>, vector<16x20xf32>
    tpu.vector_store %arg11[%c0_31, %c340], %51 {strides = array<i32>} : memref<16x980xf32, #tpu.memory_space<vmem>>, vector<16x20xf32>,
    %53 = vector.extract_strided_slice %16 {offsets = [288, 0], sizes = [16, 20], strides = [1, 1]} : vector<784x20xf32> to vector<16x20xf32>
    %c0_32 = arith.constant 0 : index
    %c360 = arith.constant 360 : index
    %54 = vector.load %arg11[%c0_32, %c360] : memref<16x980xf32, #tpu.memory_space<vmem>>, vector<16x20xf32>
    tpu.vector_store %arg11[%c0_32, %c360], %53 {strides = array<i32>} : memref<16x980xf32, #tpu.memory_space<vmem>>, vector<16x20xf32>,
    %55 = vector.extract_strided_slice %16 {offsets = [304, 0], sizes = [16, 20], strides = [1, 1]} : vector<784x20xf32> to vector<16x20xf32>
    %c0_33 = arith.constant 0 : index
    %c380 = arith.constant 380 : index
    %56 = vector.load %arg11[%c0_33, %c380] : memref<16x980xf32, #tpu.memory_space<vmem>>, vector<16x20xf32>
    tpu.vector_store %arg11[%c0_33, %c380], %55 {strides = array<i32>} : memref<16x980xf32, #tpu.memory_space<vmem>>, vector<16x20xf32>,
    %57 = vector.extract_strided_slice %16 {offsets = [320, 0], sizes = [16, 20], strides = [1, 1]} : vector<784x20xf32> to vector<16x20xf32>
    %c0_34 = arith.constant 0 : index
    %c400 = arith.constant 400 : index
    %58 = vector.load %arg11[%c0_34, %c400] : memref<16x980xf32, #tpu.memory_space<vmem>>, vector<16x20xf32>
    tpu.vector_store %arg11[%c0_34, %c400], %57 {strides = array<i32>} : memref<16x980xf32, #tpu.memory_space<vmem>>, vector<16x20xf32>,
    %59 = vector.extract_strided_slice %16 {offsets = [336, 0], sizes = [16, 20], strides = [1, 1]} : vector<784x20xf32> to vector<16x20xf32>
    %c0_35 = arith.constant 0 : index
    %c420 = arith.constant 420 : index
    %60 = vector.load %arg11[%c0_35, %c420] : memref<16x980xf32, #tpu.memory_space<vmem>>, vector<16x20xf32>
    tpu.vector_store %arg11[%c0_35, %c420], %59 {strides = array<i32>} : memref<16x980xf32, #tpu.memory_space<vmem>>, vector<16x20xf32>,
    %61 = vector.extract_strided_slice %16 {offsets = [352, 0], sizes = [16, 20], strides = [1, 1]} : vector<784x20xf32> to vector<16x20xf32>
    %c0_36 = arith.constant 0 : index
    %c440 = arith.constant 440 : index
    %62 = vector.load %arg11[%c0_36, %c440] : memref<16x980xf32, #tpu.memory_space<vmem>>, vector<16x20xf32>
    tpu.vector_store %arg11[%c0_36, %c440], %61 {strides = array<i32>} : memref<16x980xf32, #tpu.memory_space<vmem>>, vector<16x20xf32>,
    %63 = vector.extract_strided_slice %16 {offsets = [368, 0], sizes = [16, 20], strides = [1, 1]} : vector<784x20xf32> to vector<16x20xf32>
    %c0_37 = arith.constant 0 : index
    %c460 = arith.constant 460 : index
    %64 = vector.load %arg11[%c0_37, %c460] : memref<16x980xf32, #tpu.memory_space<vmem>>, vector<16x20xf32>
    tpu.vector_store %arg11[%c0_37, %c460], %63 {strides = array<i32>} : memref<16x980xf32, #tpu.memory_space<vmem>>, vector<16x20xf32>,
    %65 = vector.extract_strided_slice %16 {offsets = [384, 0], sizes = [16, 20], strides = [1, 1]} : vector<784x20xf32> to vector<16x20xf32>
    %c0_38 = arith.constant 0 : index
    %c480 = arith.constant 480 : index
    %66 = vector.load %arg11[%c0_38, %c480] : memref<16x980xf32, #tpu.memory_space<vmem>>, vector<16x20xf32>
    tpu.vector_store %arg11[%c0_38, %c480], %65 {strides = array<i32>} : memref<16x980xf32, #tpu.memory_space<vmem>>, vector<16x20xf32>,
    %67 = vector.extract_strided_slice %16 {offsets = [400, 0], sizes = [16, 20], strides = [1, 1]} : vector<784x20xf32> to vector<16x20xf32>
    %c0_39 = arith.constant 0 : index
    %c500 = arith.constant 500 : index
    %68 = vector.load %arg11[%c0_39, %c500] : memref<16x980xf32, #tpu.memory_space<vmem>>, vector<16x20xf32>
    tpu.vector_store %arg11[%c0_39, %c500], %67 {strides = array<i32>} : memref<16x980xf32, #tpu.memory_space<vmem>>, vector<16x20xf32>,
    %69 = vector.extract_strided_slice %16 {offsets = [416, 0], sizes = [16, 20], strides = [1, 1]} : vector<784x20xf32> to vector<16x20xf32>
    %c0_40 = arith.constant 0 : index
    %c520 = arith.constant 520 : index
    %70 = vector.load %arg11[%c0_40, %c520] : memref<16x980xf32, #tpu.memory_space<vmem>>, vector<16x20xf32>
    tpu.vector_store %arg11[%c0_40, %c520], %69 {strides = array<i32>} : memref<16x980xf32, #tpu.memory_space<vmem>>, vector<16x20xf32>,
    %71 = vector.extract_strided_slice %16 {offsets = [432, 0], sizes = [16, 20], strides = [1, 1]} : vector<784x20xf32> to vector<16x20xf32>
    %c0_41 = arith.constant 0 : index
    %c540 = arith.constant 540 : index
    %72 = vector.load %arg11[%c0_41, %c540] : memref<16x980xf32, #tpu.memory_space<vmem>>, vector<16x20xf32>
    tpu.vector_store %arg11[%c0_41, %c540], %71 {strides = array<i32>} : memref<16x980xf32, #tpu.memory_space<vmem>>, vector<16x20xf32>,
    %73 = vector.extract_strided_slice %16 {offsets = [448, 0], sizes = [16, 20], strides = [1, 1]} : vector<784x20xf32> to vector<16x20xf32>
    %c0_42 = arith.constant 0 : index
    %c560 = arith.constant 560 : index
    %74 = vector.load %arg11[%c0_42, %c560] : memref<16x980xf32, #tpu.memory_space<vmem>>, vector<16x20xf32>
    tpu.vector_store %arg11[%c0_42, %c560], %73 {strides = array<i32>} : memref<16x980xf32, #tpu.memory_space<vmem>>, vector<16x20xf32>,
    %75 = vector.extract_strided_slice %16 {offsets = [464, 0], sizes = [16, 20], strides = [1, 1]} : vector<784x20xf32> to vector<16x20xf32>
    %c0_43 = arith.constant 0 : index
    %c580 = arith.constant 580 : index
    %76 = vector.load %arg11[%c0_43, %c580] : memref<16x980xf32, #tpu.memory_space<vmem>>, vector<16x20xf32>
    tpu.vector_store %arg11[%c0_43, %c580], %75 {strides = array<i32>} : memref<16x980xf32, #tpu.memory_space<vmem>>, vector<16x20xf32>,
    %77 = vector.extract_strided_slice %16 {offsets = [480, 0], sizes = [16, 20], strides = [1, 1]} : vector<784x20xf32> to vector<16x20xf32>
    %c0_44 = arith.constant 0 : index
    %c600 = arith.constant 600 : index
    %78 = vector.load %arg11[%c0_44, %c600] : memref<16x980xf32, #tpu.memory_space<vmem>>, vector<16x20xf32>
    tpu.vector_store %arg11[%c0_44, %c600], %77 {strides = array<i32>} : memref<16x980xf32, #tpu.memory_space<vmem>>, vector<16x20xf32>,
    %79 = vector.extract_strided_slice %16 {offsets = [496, 0], sizes = [16, 20], strides = [1, 1]} : vector<784x20xf32> to vector<16x20xf32>
    %c0_45 = arith.constant 0 : index
    %c620 = arith.constant 620 : index
    %80 = vector.load %arg11[%c0_45, %c620] : memref<16x980xf32, #tpu.memory_space<vmem>>, vector<16x20xf32>
    tpu.vector_store %arg11[%c0_45, %c620], %79 {strides = array<i32>} : memref<16x980xf32, #tpu.memory_space<vmem>>, vector<16x20xf32>,
    %81 = vector.extract_strided_slice %16 {offsets = [512, 0], sizes = [16, 20], strides = [1, 1]} : vector<784x20xf32> to vector<16x20xf32>
    %c0_46 = arith.constant 0 : index
    %c640 = arith.constant 640 : index
    %82 = vector.load %arg11[%c0_46, %c640] : memref<16x980xf32, #tpu.memory_space<vmem>>, vector<16x20xf32>
    tpu.vector_store %arg11[%c0_46, %c640], %81 {strides = array<i32>} : memref<16x980xf32, #tpu.memory_space<vmem>>, vector<16x20xf32>,
    %83 = vector.extract_strided_slice %16 {offsets = [528, 0], sizes = [16, 20], strides = [1, 1]} : vector<784x20xf32> to vector<16x20xf32>
    %c0_47 = arith.constant 0 : index
    %c660 = arith.constant 660 : index
    %84 = vector.load %arg11[%c0_47, %c660] : memref<16x980xf32, #tpu.memory_space<vmem>>, vector<16x20xf32>
    tpu.vector_store %arg11[%c0_47, %c660], %83 {strides = array<i32>} : memref<16x980xf32, #tpu.memory_space<vmem>>, vector<16x20xf32>,
    %85 = vector.extract_strided_slice %16 {offsets = [544, 0], sizes = [16, 20], strides = [1, 1]} : vector<784x20xf32> to vector<16x20xf32>
    %c0_48 = arith.constant 0 : index
    %c680 = arith.constant 680 : index
    %86 = vector.load %arg11[%c0_48, %c680] : memref<16x980xf32, #tpu.memory_space<vmem>>, vector<16x20xf32>
    tpu.vector_store %arg11[%c0_48, %c680], %85 {strides = array<i32>} : memref<16x980xf32, #tpu.memory_space<vmem>>, vector<16x20xf32>,
    %87 = vector.extract_strided_slice %16 {offsets = [560, 0], sizes = [16, 20], strides = [1, 1]} : vector<784x20xf32> to vector<16x20xf32>
    %c0_49 = arith.constant 0 : index
    %c700 = arith.constant 700 : index
    %88 = vector.load %arg11[%c0_49, %c700] : memref<16x980xf32, #tpu.memory_space<vmem>>, vector<16x20xf32>
    tpu.vector_store %arg11[%c0_49, %c700], %87 {strides = array<i32>} : memref<16x980xf32, #tpu.memory_space<vmem>>, vector<16x20xf32>,
    %89 = vector.extract_strided_slice %16 {offsets = [576, 0], sizes = [16, 20], strides = [1, 1]} : vector<784x20xf32> to vector<16x20xf32>
    %c0_50 = arith.constant 0 : index
    %c720 = arith.constant 720 : index
    %90 = vector.load %arg11[%c0_50, %c720] : memref<16x980xf32, #tpu.memory_space<vmem>>, vector<16x20xf32>
    tpu.vector_store %arg11[%c0_50, %c720], %89 {strides = array<i32>} : memref<16x980xf32, #tpu.memory_space<vmem>>, vector<16x20xf32>,
    %91 = vector.extract_strided_slice %16 {offsets = [592, 0], sizes = [16, 20], strides = [1, 1]} : vector<784x20xf32> to vector<16x20xf32>
    %c0_51 = arith.constant 0 : index
    %c740 = arith.constant 740 : index
    %92 = vector.load %arg11[%c0_51, %c740] : memref<16x980xf32, #tpu.memory_space<vmem>>, vector<16x20xf32>
    tpu.vector_store %arg11[%c0_51, %c740], %91 {strides = array<i32>} : memref<16x980xf32, #tpu.memory_space<vmem>>, vector<16x20xf32>,
    %93 = vector.extract_strided_slice %16 {offsets = [608, 0], sizes = [16, 20], strides = [1, 1]} : vector<784x20xf32> to vector<16x20xf32>
    %c0_52 = arith.constant 0 : index
    %c760 = arith.constant 760 : index
    %94 = vector.load %arg11[%c0_52, %c760] : memref<16x980xf32, #tpu.memory_space<vmem>>, vector<16x20xf32>
    tpu.vector_store %arg11[%c0_52, %c760], %93 {strides = array<i32>} : memref<16x980xf32, #tpu.memory_space<vmem>>, vector<16x20xf32>,
    %95 = vector.extract_strided_slice %16 {offsets = [624, 0], sizes = [16, 20], strides = [1, 1]} : vector<784x20xf32> to vector<16x20xf32>
    %c0_53 = arith.constant 0 : index
    %c780 = arith.constant 780 : index
    %96 = vector.load %arg11[%c0_53, %c780] : memref<16x980xf32, #tpu.memory_space<vmem>>, vector<16x20xf32>
    tpu.vector_store %arg11[%c0_53, %c780], %95 {strides = array<i32>} : memref<16x980xf32, #tpu.memory_space<vmem>>, vector<16x20xf32>,
    %97 = vector.extract_strided_slice %16 {offsets = [640, 0], sizes = [16, 20], strides = [1, 1]} : vector<784x20xf32> to vector<16x20xf32>
    %c0_54 = arith.constant 0 : index
    %c800 = arith.constant 800 : index
    %98 = vector.load %arg11[%c0_54, %c800] : memref<16x980xf32, #tpu.memory_space<vmem>>, vector<16x20xf32>
    tpu.vector_store %arg11[%c0_54, %c800], %97 {strides = array<i32>} : memref<16x980xf32, #tpu.memory_space<vmem>>, vector<16x20xf32>,
    %99 = vector.extract_strided_slice %16 {offsets = [656, 0], sizes = [16, 20], strides = [1, 1]} : vector<784x20xf32> to vector<16x20xf32>
    %c0_55 = arith.constant 0 : index
    %c820 = arith.constant 820 : index
    %100 = vector.load %arg11[%c0_55, %c820] : memref<16x980xf32, #tpu.memory_space<vmem>>, vector<16x20xf32>
    tpu.vector_store %arg11[%c0_55, %c820], %99 {strides = array<i32>} : memref<16x980xf32, #tpu.memory_space<vmem>>, vector<16x20xf32>,
    %101 = vector.extract_strided_slice %16 {offsets = [672, 0], sizes = [16, 20], strides = [1, 1]} : vector<784x20xf32> to vector<16x20xf32>
    %c0_56 = arith.constant 0 : index
    %c840 = arith.constant 840 : index
    %102 = vector.load %arg11[%c0_56, %c840] : memref<16x980xf32, #tpu.memory_space<vmem>>, vector<16x20xf32>
    tpu.vector_store %arg11[%c0_56, %c840], %101 {strides = array<i32>} : memref<16x980xf32, #tpu.memory_space<vmem>>, vector<16x20xf32>,
    %103 = vector.extract_strided_slice %16 {offsets = [688, 0], sizes = [16, 20], strides = [1, 1]} : vector<784x20xf32> to vector<16x20xf32>
    %c0_57 = arith.constant 0 : index
    %c860 = arith.constant 860 : index
    %104 = vector.load %arg11[%c0_57, %c860] : memref<16x980xf32, #tpu.memory_space<vmem>>, vector<16x20xf32>
    tpu.vector_store %arg11[%c0_57, %c860], %103 {strides = array<i32>} : memref<16x980xf32, #tpu.memory_space<vmem>>, vector<16x20xf32>,
    %105 = vector.extract_strided_slice %16 {offsets = [704, 0], sizes = [16, 20], strides = [1, 1]} : vector<784x20xf32> to vector<16x20xf32>
    %c0_58 = arith.constant 0 : index
    %c880 = arith.constant 880 : index
    %106 = vector.load %arg11[%c0_58, %c880] : memref<16x980xf32, #tpu.memory_space<vmem>>, vector<16x20xf32>
    tpu.vector_store %arg11[%c0_58, %c880], %105 {strides = array<i32>} : memref<16x980xf32, #tpu.memory_space<vmem>>, vector<16x20xf32>,
    %107 = vector.extract_strided_slice %16 {offsets = [720, 0], sizes = [16, 20], strides = [1, 1]} : vector<784x20xf32> to vector<16x20xf32>
    %c0_59 = arith.constant 0 : index
    %c900 = arith.constant 900 : index
    %108 = vector.load %arg11[%c0_59, %c900] : memref<16x980xf32, #tpu.memory_space<vmem>>, vector<16x20xf32>
    tpu.vector_store %arg11[%c0_59, %c900], %107 {strides = array<i32>} : memref<16x980xf32, #tpu.memory_space<vmem>>, vector<16x20xf32>,
    %109 = vector.extract_strided_slice %16 {offsets = [736, 0], sizes = [16, 20], strides = [1, 1]} : vector<784x20xf32> to vector<16x20xf32>
    %c0_60 = arith.constant 0 : index
    %c920 = arith.constant 920 : index
    %110 = vector.load %arg11[%c0_60, %c920] : memref<16x980xf32, #tpu.memory_space<vmem>>, vector<16x20xf32>
    tpu.vector_store %arg11[%c0_60, %c920], %109 {strides = array<i32>} : memref<16x980xf32, #tpu.memory_space<vmem>>, vector<16x20xf32>,
    %111 = vector.extract_strided_slice %16 {offsets = [752, 0], sizes = [16, 20], strides = [1, 1]} : vector<784x20xf32> to vector<16x20xf32>
    %c0_61 = arith.constant 0 : index
    %c940 = arith.constant 940 : index
    %112 = vector.load %arg11[%c0_61, %c940] : memref<16x980xf32, #tpu.memory_space<vmem>>, vector<16x20xf32>
    tpu.vector_store %arg11[%c0_61, %c940], %111 {strides = array<i32>} : memref<16x980xf32, #tpu.memory_space<vmem>>, vector<16x20xf32>,
    %113 = vector.extract_strided_slice %16 {offsets = [768, 0], sizes = [16, 20], strides = [1, 1]} : vector<784x20xf32> to vector<16x20xf32>
    %c0_62 = arith.constant 0 : index
    %c960 = arith.constant 960 : index
    %114 = vector.load %arg11[%c0_62, %c960] : memref<16x980xf32, #tpu.memory_space<vmem>>, vector<16x20xf32>
    tpu.vector_store %arg11[%c0_62, %c960], %113 {strides = array<i32>} : memref<16x980xf32, #tpu.memory_space<vmem>>, vector<16x20xf32>,
    %c0_63 = arith.constant 0 : index
    %c0_64 = arith.constant 0 : index
    %115 = vector.load %arg11[%c0_63, %c0_64] : memref<16x980xf32, #tpu.memory_space<vmem>>, vector<16x980xf32>
    %116 = arith.truncf %115 : vector<16x980xf32> to vector<16x980xbf16>
    %c0_65 = arith.constant 0 : index
    %c0_66 = arith.constant 0 : index
    %117 = vector.load %arg6[%c0_65, %c0_66] : memref<980x256xbf16, #tpu.memory_space<vmem>>, vector<980x256xbf16>
    %cst_67 = arith.constant dense<0.000000e+00> : vector<16x256xf32>
    %118 = tpu.matmul %116, %117, %cst_67 {dimension_numbers = #tpu.dot_dimension_numbers<[1], [0], [0], [1], [0, 0, 1, 1], [], []>} : vector<16x980xbf16>, vector<980x256xbf16>, vector<16x256xf32> -> vector<16x256xf32>
    %c0_68 = arith.constant 0 : index
    %c0_69 = arith.constant 0 : index
    %119 = vector.load %arg7[%c0_68, %c0_69] : memref<1x256xf32, #tpu.memory_space<vmem>>, vector<1x256xf32>
    %120 = vector.broadcast %119 : vector<1x256xf32> to vector<16x256xf32>
    %121 = arith.addf %118, %120 : vector<16x256xf32>
    %cst_70 = arith.constant 0.000000e+00 : f32
    %122 = vector.broadcast %cst_70 : f32 to vector<16x256xf32>
    %123 = arith.maximumf %121, %122 : vector<16x256xf32>
    %124 = arith.truncf %123 : vector<16x256xf32> to vector<16x256xbf16>
    %c0_71 = arith.constant 0 : index
    %c0_72 = arith.constant 0 : index
    %125 = vector.load %arg8[%c0_71, %c0_72] : memref<256x384xbf16, #tpu.memory_space<vmem>>, vector<256x384xbf16>
    %cst_73 = arith.constant dense<0.000000e+00> : vector<16x384xf32>
    %126 = tpu.matmul %124, %125, %cst_73 {dimension_numbers = #tpu.dot_dimension_numbers<[1], [0], [0], [1], [0, 0, 1, 1], [], []>} : vector<16x256xbf16>, vector<256x384xbf16>, vector<16x384xf32> -> vector<16x384xf32>
    %c0_74 = arith.constant 0 : index
    %c0_75 = arith.constant 0 : index
    %127 = vector.load %arg9[%c0_74, %c0_75] : memref<1x384xf32, #tpu.memory_space<vmem>>, vector<1x384xf32>
    %128 = vector.broadcast %127 : vector<1x384xf32> to vector<16x384xf32>
    %129 = arith.addf %126, %128 : vector<16x384xf32>
    %c0_76 = arith.constant 0 : index
    %c0_77 = arith.constant 0 : index
    %130 = vector.load %arg10[%c0_76, %c0_77] : memref<16x384xf32, #tpu.memory_space<vmem>>, vector<16x384xf32>
    tpu.vector_store %arg10[%c0_76, %c0_77], %129 {strides = array<i32>} : memref<16x384xf32, #tpu.memory_space<vmem>>, vector<16x384xf32>,
    return
  }
  func.func @transform_0(%arg0: i32) -> (i32, i32, i32) {
    %c0_i32 = arith.constant 0 : i32
    %c0_i32_0 = arith.constant 0 : i32
    %c0_i32_1 = arith.constant 0 : i32
    return %c0_i32, %arg0, %c0_i32_0 : i32, i32, i32
  }
  func.func @transform_1(%arg0: i32) -> (i32, i32) {
    %c0_i32 = arith.constant 0 : i32
    %c0_i32_0 = arith.constant 0 : i32
    %c0_i32_1 = arith.constant 0 : i32
    return %c0_i32, %c0_i32_0 : i32, i32
  }
  func.func @transform_2(%arg0: i32) -> (i32, i32) {
    %c0_i32 = arith.constant 0 : i32
    %c0_i32_0 = arith.constant 0 : i32
    %c0_i32_1 = arith.constant 0 : i32
    return %c0_i32, %c0_i32_0 : i32, i32
  }
  func.func @transform_3(%arg0: i32) -> (i32, i32) {
    %c0_i32 = arith.constant 0 : i32
    %c0_i32_0 = arith.constant 0 : i32
    %c0_i32_1 = arith.constant 0 : i32
    return %c0_i32, %c0_i32_0 : i32, i32
  }
  func.func @transform_4(%arg0: i32) -> (i32, i32) {
    %c0_i32 = arith.constant 0 : i32
    %c0_i32_0 = arith.constant 0 : i32
    %c0_i32_1 = arith.constant 0 : i32
    return %c0_i32, %c0_i32_0 : i32, i32
  }
  func.func @transform_5(%arg0: i32) -> (i32, i32) {
    %c0_i32 = arith.constant 0 : i32
    %c0_i32_0 = arith.constant 0 : i32
    %c0_i32_1 = arith.constant 0 : i32
    return %c0_i32, %c0_i32_0 : i32, i32
  }
  func.func @transform_6(%arg0: i32) -> (i32, i32) {
    %c0_i32 = arith.constant 0 : i32
    %c0_i32_0 = arith.constant 0 : i32
    %c0_i32_1 = arith.constant 0 : i32
    return %c0_i32, %c0_i32_0 : i32, i32
  }
  func.func @transform_7(%arg0: i32) -> (i32, i32) {
    %c0_i32 = arith.constant 0 : i32
    %c0_i32_0 = arith.constant 0 : i32
    %c0_i32_1 = arith.constant 0 : i32
    return %c0_i32, %c0_i32_0 : i32, i32
  }
  func.func @transform_8(%arg0: i32) -> (i32, i32) {
    %c0_i32 = arith.constant 0 : i32
    %c0_i32_0 = arith.constant 0 : i32
    %c0_i32_1 = arith.constant 0 : i32
    return %c0_i32, %c0_i32_0 : i32, i32
  }
  func.func @transform_9(%arg0: i32) -> (i32, i32) {
    %c0_i32 = arith.constant 0 : i32
    %c0_i32_0 = arith.constant 0 : i32
    return %arg0, %c0_i32 : i32, i32
  }
}

module attributes {stable_mosaic.version = 11 : i64} {
  func.func @_gru_kernel(%arg0: i32, %arg1: memref<8x8x384xf32, #tpu.memory_space<vmem>>, %arg2: memref<8x8x1xf32, #tpu.memory_space<vmem>>, %arg3: memref<8x128xf32, #tpu.memory_space<vmem>>, %arg4: memref<128x384xbf16, #tpu.memory_space<vmem>>, %arg5: memref<1x384xf32, #tpu.memory_space<vmem>>, %arg6: memref<8x8x128xf32, #tpu.memory_space<vmem>>, %arg7: memref<8x128xf32, #tpu.memory_space<vmem>>) attributes {dimension_semantics = [#tpu.dimension_semantics<arbitrary>], iteration_bounds = array<i64: 1>, scalar_prefetch = 0 : i64, scratch_operands = 1 : i64, tpu.core_type = #tpu.core_type<tc>, window_params = [{transform_indices = @transform_0, window_bounds = array<i64: 8, 8, 384>}, {transform_indices = @transform_1, window_bounds = array<i64: 8, 8, 1>}, {pipeline_mode = #tpu.pipeline_mode<synchronous>, transform_indices = @transform_2, window_bounds = array<i64: 8, 128>}, {pipeline_mode = #tpu.pipeline_mode<synchronous>, transform_indices = @transform_3, window_bounds = array<i64: 128, 384>}, {pipeline_mode = #tpu.pipeline_mode<synchronous>, transform_indices = @transform_4, window_bounds = array<i64: 1, 384>}, {transform_indices = @transform_5, window_bounds = array<i64: 8, 8, 128>}]} {
    %c0_i32 = arith.constant 0 : i32
    %0 = arith.cmpi eq, %arg0, %c0_i32 : i32
    %1 = arith.extui %0 : i1 to i32
    %c0_i32_0 = arith.constant 0 : i32
    %2 = arith.cmpi ne, %1, %c0_i32_0 : i32
    scf.if %2 {
      %c0_88 = arith.constant 0 : index
      %c0_89 = arith.constant 0 : index
      %343 = vector.load %arg3[%c0_88, %c0_89] : memref<8x128xf32, #tpu.memory_space<vmem>>, vector<8x128xf32>
      %c0_90 = arith.constant 0 : index
      %c0_91 = arith.constant 0 : index
      %344 = vector.load %arg7[%c0_90, %c0_91] : memref<8x128xf32, #tpu.memory_space<vmem>>, vector<8x128xf32>
      tpu.vector_store %arg7[%c0_90, %c0_91], %343 {strides = array<i32>} : memref<8x128xf32, #tpu.memory_space<vmem>>, vector<8x128xf32>,
    } else {
    }
    %c0 = arith.constant 0 : index
    %c0_1 = arith.constant 0 : index
    %3 = vector.load %arg4[%c0, %c0_1] : memref<128x384xbf16, #tpu.memory_space<vmem>>, vector<128x384xbf16>
    %c0_2 = arith.constant 0 : index
    %c0_3 = arith.constant 0 : index
    %4 = vector.load %arg5[%c0_2, %c0_3] : memref<1x384xf32, #tpu.memory_space<vmem>>, vector<1x384xf32>
    %c0_4 = arith.constant 0 : index
    %c0_5 = arith.constant 0 : index
    %5 = vector.load %arg7[%c0_4, %c0_5] : memref<8x128xf32, #tpu.memory_space<vmem>>, vector<8x128xf32>
    %c0_i32_6 = arith.constant 0 : i32
    %6 = arith.index_cast %c0_i32_6 : i32 to index
    %c0_7 = arith.constant 0 : index
    %c0_8 = arith.constant 0 : index
    %7 = vector.load %arg2[%6, %c0_7, %c0_8] : memref<8x8x1xf32, #tpu.memory_space<vmem>>, vector<1x8x1xf32>
    %8 = vector.shape_cast %7 : vector<1x8x1xf32> to vector<8x1xf32>
    %9 = vector.broadcast %8 : vector<8x1xf32> to vector<8x128xf32>
    %10 = arith.mulf %5, %9 : vector<8x128xf32>
    %11 = arith.truncf %10 : vector<8x128xf32> to vector<8x128xbf16>
    %cst = arith.constant dense<0.000000e+00> : vector<8x384xf32>
    %12 = tpu.matmul %11, %3, %cst {dimension_numbers = #tpu.dot_dimension_numbers<[1], [0], [0], [1], [0, 0, 1, 1], [], []>} : vector<8x128xbf16>, vector<128x384xbf16>, vector<8x384xf32> -> vector<8x384xf32>
    %13 = vector.broadcast %4 : vector<1x384xf32> to vector<8x384xf32>
    %14 = arith.addf %12, %13 : vector<8x384xf32>
    %15 = arith.index_cast %c0_i32_6 : i32 to index
    %c0_9 = arith.constant 0 : index
    %c0_10 = arith.constant 0 : index
    %16 = vector.load %arg1[%15, %c0_9, %c0_10] : memref<8x8x384xf32, #tpu.memory_space<vmem>>, vector<1x8x384xf32>
    %17 = vector.shape_cast %16 : vector<1x8x384xf32> to vector<8x384xf32>
    %18 = vector.extract_strided_slice %17 {offsets = [0, 0], sizes = [8, 128], strides = [1, 1]} : vector<8x384xf32> to vector<8x128xf32>
    %19 = vector.extract_strided_slice %14 {offsets = [0, 0], sizes = [8, 128], strides = [1, 1]} : vector<8x384xf32> to vector<8x128xf32>
    %20 = arith.addf %18, %19 : vector<8x128xf32>
    %21 = arith.negf %20 : vector<8x128xf32>
    %22 = math.exp %21 : vector<8x128xf32>
    %cst_11 = arith.constant 1.000000e+00 : f32
    %23 = vector.broadcast %cst_11 : f32 to vector<8x128xf32>
    %24 = arith.addf %23, %22 : vector<8x128xf32>
    %25 = arith.divf %23, %24 : vector<8x128xf32>
    %26 = vector.extract_strided_slice %17 {offsets = [0, 128], sizes = [8, 128], strides = [1, 1]} : vector<8x384xf32> to vector<8x128xf32>
    %27 = vector.extract_strided_slice %14 {offsets = [0, 128], sizes = [8, 128], strides = [1, 1]} : vector<8x384xf32> to vector<8x128xf32>
    %28 = arith.addf %26, %27 : vector<8x128xf32>
    %29 = arith.negf %28 : vector<8x128xf32>
    %30 = math.exp %29 : vector<8x128xf32>
    %cst_12 = arith.constant 1.000000e+00 : f32
    %31 = vector.broadcast %cst_12 : f32 to vector<8x128xf32>
    %32 = arith.addf %31, %30 : vector<8x128xf32>
    %33 = arith.divf %31, %32 : vector<8x128xf32>
    %34 = vector.extract_strided_slice %17 {offsets = [0, 256], sizes = [8, 128], strides = [1, 1]} : vector<8x384xf32> to vector<8x128xf32>
    %35 = vector.extract_strided_slice %14 {offsets = [0, 256], sizes = [8, 128], strides = [1, 1]} : vector<8x384xf32> to vector<8x128xf32>
    %36 = arith.mulf %25, %35 : vector<8x128xf32>
    %37 = arith.addf %34, %36 : vector<8x128xf32>
    %38 = math.tanh %37 : vector<8x128xf32>
    %cst_13 = arith.constant 1.000000e+00 : f32
    %39 = vector.broadcast %cst_13 : f32 to vector<8x128xf32>
    %40 = arith.subf %39, %33 : vector<8x128xf32>
    %41 = arith.mulf %40, %38 : vector<8x128xf32>
    %42 = arith.mulf %33, %10 : vector<8x128xf32>
    %43 = arith.addf %41, %42 : vector<8x128xf32>
    %44 = arith.index_cast %c0_i32_6 : i32 to index
    %c0_14 = arith.constant 0 : index
    %c0_15 = arith.constant 0 : index
    %45 = vector.load %arg6[%44, %c0_14, %c0_15] : memref<8x8x128xf32, #tpu.memory_space<vmem>>, vector<1x8x128xf32>
    %46 = vector.shape_cast %45 : vector<1x8x128xf32> to vector<8x128xf32>
    %47 = vector.shape_cast %43 : vector<8x128xf32> to vector<1x8x128xf32>
    tpu.vector_store %arg6[%44, %c0_14, %c0_15], %47 {strides = array<i32>} : memref<8x8x128xf32, #tpu.memory_space<vmem>>, vector<1x8x128xf32>,
    %c1_i32 = arith.constant 1 : i32
    %48 = arith.index_cast %c1_i32 : i32 to index
    %c0_16 = arith.constant 0 : index
    %c0_17 = arith.constant 0 : index
    %49 = vector.load %arg2[%48, %c0_16, %c0_17] : memref<8x8x1xf32, #tpu.memory_space<vmem>>, vector<1x8x1xf32>
    %50 = vector.shape_cast %49 : vector<1x8x1xf32> to vector<8x1xf32>
    %51 = vector.broadcast %50 : vector<8x1xf32> to vector<8x128xf32>
    %52 = arith.mulf %43, %51 : vector<8x128xf32>
    %53 = arith.truncf %52 : vector<8x128xf32> to vector<8x128xbf16>
    %cst_18 = arith.constant dense<0.000000e+00> : vector<8x384xf32>
    %54 = tpu.matmul %53, %3, %cst_18 {dimension_numbers = #tpu.dot_dimension_numbers<[1], [0], [0], [1], [0, 0, 1, 1], [], []>} : vector<8x128xbf16>, vector<128x384xbf16>, vector<8x384xf32> -> vector<8x384xf32>
    %55 = vector.broadcast %4 : vector<1x384xf32> to vector<8x384xf32>
    %56 = arith.addf %54, %55 : vector<8x384xf32>
    %57 = arith.index_cast %c1_i32 : i32 to index
    %c0_19 = arith.constant 0 : index
    %c0_20 = arith.constant 0 : index
    %58 = vector.load %arg1[%57, %c0_19, %c0_20] : memref<8x8x384xf32, #tpu.memory_space<vmem>>, vector<1x8x384xf32>
    %59 = vector.shape_cast %58 : vector<1x8x384xf32> to vector<8x384xf32>
    %60 = vector.extract_strided_slice %59 {offsets = [0, 0], sizes = [8, 128], strides = [1, 1]} : vector<8x384xf32> to vector<8x128xf32>
    %61 = vector.extract_strided_slice %56 {offsets = [0, 0], sizes = [8, 128], strides = [1, 1]} : vector<8x384xf32> to vector<8x128xf32>
    %62 = arith.addf %60, %61 : vector<8x128xf32>
    %63 = arith.negf %62 : vector<8x128xf32>
    %64 = math.exp %63 : vector<8x128xf32>
    %cst_21 = arith.constant 1.000000e+00 : f32
    %65 = vector.broadcast %cst_21 : f32 to vector<8x128xf32>
    %66 = arith.addf %65, %64 : vector<8x128xf32>
    %67 = arith.divf %65, %66 : vector<8x128xf32>
    %68 = vector.extract_strided_slice %59 {offsets = [0, 128], sizes = [8, 128], strides = [1, 1]} : vector<8x384xf32> to vector<8x128xf32>
    %69 = vector.extract_strided_slice %56 {offsets = [0, 128], sizes = [8, 128], strides = [1, 1]} : vector<8x384xf32> to vector<8x128xf32>
    %70 = arith.addf %68, %69 : vector<8x128xf32>
    %71 = arith.negf %70 : vector<8x128xf32>
    %72 = math.exp %71 : vector<8x128xf32>
    %cst_22 = arith.constant 1.000000e+00 : f32
    %73 = vector.broadcast %cst_22 : f32 to vector<8x128xf32>
    %74 = arith.addf %73, %72 : vector<8x128xf32>
    %75 = arith.divf %73, %74 : vector<8x128xf32>
    %76 = vector.extract_strided_slice %59 {offsets = [0, 256], sizes = [8, 128], strides = [1, 1]} : vector<8x384xf32> to vector<8x128xf32>
    %77 = vector.extract_strided_slice %56 {offsets = [0, 256], sizes = [8, 128], strides = [1, 1]} : vector<8x384xf32> to vector<8x128xf32>
    %78 = arith.mulf %67, %77 : vector<8x128xf32>
    %79 = arith.addf %76, %78 : vector<8x128xf32>
    %80 = math.tanh %79 : vector<8x128xf32>
    %cst_23 = arith.constant 1.000000e+00 : f32
    %81 = vector.broadcast %cst_23 : f32 to vector<8x128xf32>
    %82 = arith.subf %81, %75 : vector<8x128xf32>
    %83 = arith.mulf %82, %80 : vector<8x128xf32>
    %84 = arith.mulf %75, %52 : vector<8x128xf32>
    %85 = arith.addf %83, %84 : vector<8x128xf32>
    %86 = arith.index_cast %c1_i32 : i32 to index
    %c0_24 = arith.constant 0 : index
    %c0_25 = arith.constant 0 : index
    %87 = vector.load %arg6[%86, %c0_24, %c0_25] : memref<8x8x128xf32, #tpu.memory_space<vmem>>, vector<1x8x128xf32>
    %88 = vector.shape_cast %87 : vector<1x8x128xf32> to vector<8x128xf32>
    %89 = vector.shape_cast %85 : vector<8x128xf32> to vector<1x8x128xf32>
    tpu.vector_store %arg6[%86, %c0_24, %c0_25], %89 {strides = array<i32>} : memref<8x8x128xf32, #tpu.memory_space<vmem>>, vector<1x8x128xf32>,
    %c2_i32 = arith.constant 2 : i32
    %90 = arith.index_cast %c2_i32 : i32 to index
    %c0_26 = arith.constant 0 : index
    %c0_27 = arith.constant 0 : index
    %91 = vector.load %arg2[%90, %c0_26, %c0_27] : memref<8x8x1xf32, #tpu.memory_space<vmem>>, vector<1x8x1xf32>
    %92 = vector.shape_cast %91 : vector<1x8x1xf32> to vector<8x1xf32>
    %93 = vector.broadcast %92 : vector<8x1xf32> to vector<8x128xf32>
    %94 = arith.mulf %85, %93 : vector<8x128xf32>
    %95 = arith.truncf %94 : vector<8x128xf32> to vector<8x128xbf16>
    %cst_28 = arith.constant dense<0.000000e+00> : vector<8x384xf32>
    %96 = tpu.matmul %95, %3, %cst_28 {dimension_numbers = #tpu.dot_dimension_numbers<[1], [0], [0], [1], [0, 0, 1, 1], [], []>} : vector<8x128xbf16>, vector<128x384xbf16>, vector<8x384xf32> -> vector<8x384xf32>
    %97 = vector.broadcast %4 : vector<1x384xf32> to vector<8x384xf32>
    %98 = arith.addf %96, %97 : vector<8x384xf32>
    %99 = arith.index_cast %c2_i32 : i32 to index
    %c0_29 = arith.constant 0 : index
    %c0_30 = arith.constant 0 : index
    %100 = vector.load %arg1[%99, %c0_29, %c0_30] : memref<8x8x384xf32, #tpu.memory_space<vmem>>, vector<1x8x384xf32>
    %101 = vector.shape_cast %100 : vector<1x8x384xf32> to vector<8x384xf32>
    %102 = vector.extract_strided_slice %101 {offsets = [0, 0], sizes = [8, 128], strides = [1, 1]} : vector<8x384xf32> to vector<8x128xf32>
    %103 = vector.extract_strided_slice %98 {offsets = [0, 0], sizes = [8, 128], strides = [1, 1]} : vector<8x384xf32> to vector<8x128xf32>
    %104 = arith.addf %102, %103 : vector<8x128xf32>
    %105 = arith.negf %104 : vector<8x128xf32>
    %106 = math.exp %105 : vector<8x128xf32>
    %cst_31 = arith.constant 1.000000e+00 : f32
    %107 = vector.broadcast %cst_31 : f32 to vector<8x128xf32>
    %108 = arith.addf %107, %106 : vector<8x128xf32>
    %109 = arith.divf %107, %108 : vector<8x128xf32>
    %110 = vector.extract_strided_slice %101 {offsets = [0, 128], sizes = [8, 128], strides = [1, 1]} : vector<8x384xf32> to vector<8x128xf32>
    %111 = vector.extract_strided_slice %98 {offsets = [0, 128], sizes = [8, 128], strides = [1, 1]} : vector<8x384xf32> to vector<8x128xf32>
    %112 = arith.addf %110, %111 : vector<8x128xf32>
    %113 = arith.negf %112 : vector<8x128xf32>
    %114 = math.exp %113 : vector<8x128xf32>
    %cst_32 = arith.constant 1.000000e+00 : f32
    %115 = vector.broadcast %cst_32 : f32 to vector<8x128xf32>
    %116 = arith.addf %115, %114 : vector<8x128xf32>
    %117 = arith.divf %115, %116 : vector<8x128xf32>
    %118 = vector.extract_strided_slice %101 {offsets = [0, 256], sizes = [8, 128], strides = [1, 1]} : vector<8x384xf32> to vector<8x128xf32>
    %119 = vector.extract_strided_slice %98 {offsets = [0, 256], sizes = [8, 128], strides = [1, 1]} : vector<8x384xf32> to vector<8x128xf32>
    %120 = arith.mulf %109, %119 : vector<8x128xf32>
    %121 = arith.addf %118, %120 : vector<8x128xf32>
    %122 = math.tanh %121 : vector<8x128xf32>
    %cst_33 = arith.constant 1.000000e+00 : f32
    %123 = vector.broadcast %cst_33 : f32 to vector<8x128xf32>
    %124 = arith.subf %123, %117 : vector<8x128xf32>
    %125 = arith.mulf %124, %122 : vector<8x128xf32>
    %126 = arith.mulf %117, %94 : vector<8x128xf32>
    %127 = arith.addf %125, %126 : vector<8x128xf32>
    %128 = arith.index_cast %c2_i32 : i32 to index
    %c0_34 = arith.constant 0 : index
    %c0_35 = arith.constant 0 : index
    %129 = vector.load %arg6[%128, %c0_34, %c0_35] : memref<8x8x128xf32, #tpu.memory_space<vmem>>, vector<1x8x128xf32>
    %130 = vector.shape_cast %129 : vector<1x8x128xf32> to vector<8x128xf32>
    %131 = vector.shape_cast %127 : vector<8x128xf32> to vector<1x8x128xf32>
    tpu.vector_store %arg6[%128, %c0_34, %c0_35], %131 {strides = array<i32>} : memref<8x8x128xf32, #tpu.memory_space<vmem>>, vector<1x8x128xf32>,
    %c3_i32 = arith.constant 3 : i32
    %132 = arith.index_cast %c3_i32 : i32 to index
    %c0_36 = arith.constant 0 : index
    %c0_37 = arith.constant 0 : index
    %133 = vector.load %arg2[%132, %c0_36, %c0_37] : memref<8x8x1xf32, #tpu.memory_space<vmem>>, vector<1x8x1xf32>
    %134 = vector.shape_cast %133 : vector<1x8x1xf32> to vector<8x1xf32>
    %135 = vector.broadcast %134 : vector<8x1xf32> to vector<8x128xf32>
    %136 = arith.mulf %127, %135 : vector<8x128xf32>
    %137 = arith.truncf %136 : vector<8x128xf32> to vector<8x128xbf16>
    %cst_38 = arith.constant dense<0.000000e+00> : vector<8x384xf32>
    %138 = tpu.matmul %137, %3, %cst_38 {dimension_numbers = #tpu.dot_dimension_numbers<[1], [0], [0], [1], [0, 0, 1, 1], [], []>} : vector<8x128xbf16>, vector<128x384xbf16>, vector<8x384xf32> -> vector<8x384xf32>
    %139 = vector.broadcast %4 : vector<1x384xf32> to vector<8x384xf32>
    %140 = arith.addf %138, %139 : vector<8x384xf32>
    %141 = arith.index_cast %c3_i32 : i32 to index
    %c0_39 = arith.constant 0 : index
    %c0_40 = arith.constant 0 : index
    %142 = vector.load %arg1[%141, %c0_39, %c0_40] : memref<8x8x384xf32, #tpu.memory_space<vmem>>, vector<1x8x384xf32>
    %143 = vector.shape_cast %142 : vector<1x8x384xf32> to vector<8x384xf32>
    %144 = vector.extract_strided_slice %143 {offsets = [0, 0], sizes = [8, 128], strides = [1, 1]} : vector<8x384xf32> to vector<8x128xf32>
    %145 = vector.extract_strided_slice %140 {offsets = [0, 0], sizes = [8, 128], strides = [1, 1]} : vector<8x384xf32> to vector<8x128xf32>
    %146 = arith.addf %144, %145 : vector<8x128xf32>
    %147 = arith.negf %146 : vector<8x128xf32>
    %148 = math.exp %147 : vector<8x128xf32>
    %cst_41 = arith.constant 1.000000e+00 : f32
    %149 = vector.broadcast %cst_41 : f32 to vector<8x128xf32>
    %150 = arith.addf %149, %148 : vector<8x128xf32>
    %151 = arith.divf %149, %150 : vector<8x128xf32>
    %152 = vector.extract_strided_slice %143 {offsets = [0, 128], sizes = [8, 128], strides = [1, 1]} : vector<8x384xf32> to vector<8x128xf32>
    %153 = vector.extract_strided_slice %140 {offsets = [0, 128], sizes = [8, 128], strides = [1, 1]} : vector<8x384xf32> to vector<8x128xf32>
    %154 = arith.addf %152, %153 : vector<8x128xf32>
    %155 = arith.negf %154 : vector<8x128xf32>
    %156 = math.exp %155 : vector<8x128xf32>
    %cst_42 = arith.constant 1.000000e+00 : f32
    %157 = vector.broadcast %cst_42 : f32 to vector<8x128xf32>
    %158 = arith.addf %157, %156 : vector<8x128xf32>
    %159 = arith.divf %157, %158 : vector<8x128xf32>
    %160 = vector.extract_strided_slice %143 {offsets = [0, 256], sizes = [8, 128], strides = [1, 1]} : vector<8x384xf32> to vector<8x128xf32>
    %161 = vector.extract_strided_slice %140 {offsets = [0, 256], sizes = [8, 128], strides = [1, 1]} : vector<8x384xf32> to vector<8x128xf32>
    %162 = arith.mulf %151, %161 : vector<8x128xf32>
    %163 = arith.addf %160, %162 : vector<8x128xf32>
    %164 = math.tanh %163 : vector<8x128xf32>
    %cst_43 = arith.constant 1.000000e+00 : f32
    %165 = vector.broadcast %cst_43 : f32 to vector<8x128xf32>
    %166 = arith.subf %165, %159 : vector<8x128xf32>
    %167 = arith.mulf %166, %164 : vector<8x128xf32>
    %168 = arith.mulf %159, %136 : vector<8x128xf32>
    %169 = arith.addf %167, %168 : vector<8x128xf32>
    %170 = arith.index_cast %c3_i32 : i32 to index
    %c0_44 = arith.constant 0 : index
    %c0_45 = arith.constant 0 : index
    %171 = vector.load %arg6[%170, %c0_44, %c0_45] : memref<8x8x128xf32, #tpu.memory_space<vmem>>, vector<1x8x128xf32>
    %172 = vector.shape_cast %171 : vector<1x8x128xf32> to vector<8x128xf32>
    %173 = vector.shape_cast %169 : vector<8x128xf32> to vector<1x8x128xf32>
    tpu.vector_store %arg6[%170, %c0_44, %c0_45], %173 {strides = array<i32>} : memref<8x8x128xf32, #tpu.memory_space<vmem>>, vector<1x8x128xf32>,
    %c4_i32 = arith.constant 4 : i32
    %174 = arith.index_cast %c4_i32 : i32 to index
    %c0_46 = arith.constant 0 : index
    %c0_47 = arith.constant 0 : index
    %175 = vector.load %arg2[%174, %c0_46, %c0_47] : memref<8x8x1xf32, #tpu.memory_space<vmem>>, vector<1x8x1xf32>
    %176 = vector.shape_cast %175 : vector<1x8x1xf32> to vector<8x1xf32>
    %177 = vector.broadcast %176 : vector<8x1xf32> to vector<8x128xf32>
    %178 = arith.mulf %169, %177 : vector<8x128xf32>
    %179 = arith.truncf %178 : vector<8x128xf32> to vector<8x128xbf16>
    %cst_48 = arith.constant dense<0.000000e+00> : vector<8x384xf32>
    %180 = tpu.matmul %179, %3, %cst_48 {dimension_numbers = #tpu.dot_dimension_numbers<[1], [0], [0], [1], [0, 0, 1, 1], [], []>} : vector<8x128xbf16>, vector<128x384xbf16>, vector<8x384xf32> -> vector<8x384xf32>
    %181 = vector.broadcast %4 : vector<1x384xf32> to vector<8x384xf32>
    %182 = arith.addf %180, %181 : vector<8x384xf32>
    %183 = arith.index_cast %c4_i32 : i32 to index
    %c0_49 = arith.constant 0 : index
    %c0_50 = arith.constant 0 : index
    %184 = vector.load %arg1[%183, %c0_49, %c0_50] : memref<8x8x384xf32, #tpu.memory_space<vmem>>, vector<1x8x384xf32>
    %185 = vector.shape_cast %184 : vector<1x8x384xf32> to vector<8x384xf32>
    %186 = vector.extract_strided_slice %185 {offsets = [0, 0], sizes = [8, 128], strides = [1, 1]} : vector<8x384xf32> to vector<8x128xf32>
    %187 = vector.extract_strided_slice %182 {offsets = [0, 0], sizes = [8, 128], strides = [1, 1]} : vector<8x384xf32> to vector<8x128xf32>
    %188 = arith.addf %186, %187 : vector<8x128xf32>
    %189 = arith.negf %188 : vector<8x128xf32>
    %190 = math.exp %189 : vector<8x128xf32>
    %cst_51 = arith.constant 1.000000e+00 : f32
    %191 = vector.broadcast %cst_51 : f32 to vector<8x128xf32>
    %192 = arith.addf %191, %190 : vector<8x128xf32>
    %193 = arith.divf %191, %192 : vector<8x128xf32>
    %194 = vector.extract_strided_slice %185 {offsets = [0, 128], sizes = [8, 128], strides = [1, 1]} : vector<8x384xf32> to vector<8x128xf32>
    %195 = vector.extract_strided_slice %182 {offsets = [0, 128], sizes = [8, 128], strides = [1, 1]} : vector<8x384xf32> to vector<8x128xf32>
    %196 = arith.addf %194, %195 : vector<8x128xf32>
    %197 = arith.negf %196 : vector<8x128xf32>
    %198 = math.exp %197 : vector<8x128xf32>
    %cst_52 = arith.constant 1.000000e+00 : f32
    %199 = vector.broadcast %cst_52 : f32 to vector<8x128xf32>
    %200 = arith.addf %199, %198 : vector<8x128xf32>
    %201 = arith.divf %199, %200 : vector<8x128xf32>
    %202 = vector.extract_strided_slice %185 {offsets = [0, 256], sizes = [8, 128], strides = [1, 1]} : vector<8x384xf32> to vector<8x128xf32>
    %203 = vector.extract_strided_slice %182 {offsets = [0, 256], sizes = [8, 128], strides = [1, 1]} : vector<8x384xf32> to vector<8x128xf32>
    %204 = arith.mulf %193, %203 : vector<8x128xf32>
    %205 = arith.addf %202, %204 : vector<8x128xf32>
    %206 = math.tanh %205 : vector<8x128xf32>
    %cst_53 = arith.constant 1.000000e+00 : f32
    %207 = vector.broadcast %cst_53 : f32 to vector<8x128xf32>
    %208 = arith.subf %207, %201 : vector<8x128xf32>
    %209 = arith.mulf %208, %206 : vector<8x128xf32>
    %210 = arith.mulf %201, %178 : vector<8x128xf32>
    %211 = arith.addf %209, %210 : vector<8x128xf32>
    %212 = arith.index_cast %c4_i32 : i32 to index
    %c0_54 = arith.constant 0 : index
    %c0_55 = arith.constant 0 : index
    %213 = vector.load %arg6[%212, %c0_54, %c0_55] : memref<8x8x128xf32, #tpu.memory_space<vmem>>, vector<1x8x128xf32>
    %214 = vector.shape_cast %213 : vector<1x8x128xf32> to vector<8x128xf32>
    %215 = vector.shape_cast %211 : vector<8x128xf32> to vector<1x8x128xf32>
    tpu.vector_store %arg6[%212, %c0_54, %c0_55], %215 {strides = array<i32>} : memref<8x8x128xf32, #tpu.memory_space<vmem>>, vector<1x8x128xf32>,
    %c5_i32 = arith.constant 5 : i32
    %216 = arith.index_cast %c5_i32 : i32 to index
    %c0_56 = arith.constant 0 : index
    %c0_57 = arith.constant 0 : index
    %217 = vector.load %arg2[%216, %c0_56, %c0_57] : memref<8x8x1xf32, #tpu.memory_space<vmem>>, vector<1x8x1xf32>
    %218 = vector.shape_cast %217 : vector<1x8x1xf32> to vector<8x1xf32>
    %219 = vector.broadcast %218 : vector<8x1xf32> to vector<8x128xf32>
    %220 = arith.mulf %211, %219 : vector<8x128xf32>
    %221 = arith.truncf %220 : vector<8x128xf32> to vector<8x128xbf16>
    %cst_58 = arith.constant dense<0.000000e+00> : vector<8x384xf32>
    %222 = tpu.matmul %221, %3, %cst_58 {dimension_numbers = #tpu.dot_dimension_numbers<[1], [0], [0], [1], [0, 0, 1, 1], [], []>} : vector<8x128xbf16>, vector<128x384xbf16>, vector<8x384xf32> -> vector<8x384xf32>
    %223 = vector.broadcast %4 : vector<1x384xf32> to vector<8x384xf32>
    %224 = arith.addf %222, %223 : vector<8x384xf32>
    %225 = arith.index_cast %c5_i32 : i32 to index
    %c0_59 = arith.constant 0 : index
    %c0_60 = arith.constant 0 : index
    %226 = vector.load %arg1[%225, %c0_59, %c0_60] : memref<8x8x384xf32, #tpu.memory_space<vmem>>, vector<1x8x384xf32>
    %227 = vector.shape_cast %226 : vector<1x8x384xf32> to vector<8x384xf32>
    %228 = vector.extract_strided_slice %227 {offsets = [0, 0], sizes = [8, 128], strides = [1, 1]} : vector<8x384xf32> to vector<8x128xf32>
    %229 = vector.extract_strided_slice %224 {offsets = [0, 0], sizes = [8, 128], strides = [1, 1]} : vector<8x384xf32> to vector<8x128xf32>
    %230 = arith.addf %228, %229 : vector<8x128xf32>
    %231 = arith.negf %230 : vector<8x128xf32>
    %232 = math.exp %231 : vector<8x128xf32>
    %cst_61 = arith.constant 1.000000e+00 : f32
    %233 = vector.broadcast %cst_61 : f32 to vector<8x128xf32>
    %234 = arith.addf %233, %232 : vector<8x128xf32>
    %235 = arith.divf %233, %234 : vector<8x128xf32>
    %236 = vector.extract_strided_slice %227 {offsets = [0, 128], sizes = [8, 128], strides = [1, 1]} : vector<8x384xf32> to vector<8x128xf32>
    %237 = vector.extract_strided_slice %224 {offsets = [0, 128], sizes = [8, 128], strides = [1, 1]} : vector<8x384xf32> to vector<8x128xf32>
    %238 = arith.addf %236, %237 : vector<8x128xf32>
    %239 = arith.negf %238 : vector<8x128xf32>
    %240 = math.exp %239 : vector<8x128xf32>
    %cst_62 = arith.constant 1.000000e+00 : f32
    %241 = vector.broadcast %cst_62 : f32 to vector<8x128xf32>
    %242 = arith.addf %241, %240 : vector<8x128xf32>
    %243 = arith.divf %241, %242 : vector<8x128xf32>
    %244 = vector.extract_strided_slice %227 {offsets = [0, 256], sizes = [8, 128], strides = [1, 1]} : vector<8x384xf32> to vector<8x128xf32>
    %245 = vector.extract_strided_slice %224 {offsets = [0, 256], sizes = [8, 128], strides = [1, 1]} : vector<8x384xf32> to vector<8x128xf32>
    %246 = arith.mulf %235, %245 : vector<8x128xf32>
    %247 = arith.addf %244, %246 : vector<8x128xf32>
    %248 = math.tanh %247 : vector<8x128xf32>
    %cst_63 = arith.constant 1.000000e+00 : f32
    %249 = vector.broadcast %cst_63 : f32 to vector<8x128xf32>
    %250 = arith.subf %249, %243 : vector<8x128xf32>
    %251 = arith.mulf %250, %248 : vector<8x128xf32>
    %252 = arith.mulf %243, %220 : vector<8x128xf32>
    %253 = arith.addf %251, %252 : vector<8x128xf32>
    %254 = arith.index_cast %c5_i32 : i32 to index
    %c0_64 = arith.constant 0 : index
    %c0_65 = arith.constant 0 : index
    %255 = vector.load %arg6[%254, %c0_64, %c0_65] : memref<8x8x128xf32, #tpu.memory_space<vmem>>, vector<1x8x128xf32>
    %256 = vector.shape_cast %255 : vector<1x8x128xf32> to vector<8x128xf32>
    %257 = vector.shape_cast %253 : vector<8x128xf32> to vector<1x8x128xf32>
    tpu.vector_store %arg6[%254, %c0_64, %c0_65], %257 {strides = array<i32>} : memref<8x8x128xf32, #tpu.memory_space<vmem>>, vector<1x8x128xf32>,
    %c6_i32 = arith.constant 6 : i32
    %258 = arith.index_cast %c6_i32 : i32 to index
    %c0_66 = arith.constant 0 : index
    %c0_67 = arith.constant 0 : index
    %259 = vector.load %arg2[%258, %c0_66, %c0_67] : memref<8x8x1xf32, #tpu.memory_space<vmem>>, vector<1x8x1xf32>
    %260 = vector.shape_cast %259 : vector<1x8x1xf32> to vector<8x1xf32>
    %261 = vector.broadcast %260 : vector<8x1xf32> to vector<8x128xf32>
    %262 = arith.mulf %253, %261 : vector<8x128xf32>
    %263 = arith.truncf %262 : vector<8x128xf32> to vector<8x128xbf16>
    %cst_68 = arith.constant dense<0.000000e+00> : vector<8x384xf32>
    %264 = tpu.matmul %263, %3, %cst_68 {dimension_numbers = #tpu.dot_dimension_numbers<[1], [0], [0], [1], [0, 0, 1, 1], [], []>} : vector<8x128xbf16>, vector<128x384xbf16>, vector<8x384xf32> -> vector<8x384xf32>
    %265 = vector.broadcast %4 : vector<1x384xf32> to vector<8x384xf32>
    %266 = arith.addf %264, %265 : vector<8x384xf32>
    %267 = arith.index_cast %c6_i32 : i32 to index
    %c0_69 = arith.constant 0 : index
    %c0_70 = arith.constant 0 : index
    %268 = vector.load %arg1[%267, %c0_69, %c0_70] : memref<8x8x384xf32, #tpu.memory_space<vmem>>, vector<1x8x384xf32>
    %269 = vector.shape_cast %268 : vector<1x8x384xf32> to vector<8x384xf32>
    %270 = vector.extract_strided_slice %269 {offsets = [0, 0], sizes = [8, 128], strides = [1, 1]} : vector<8x384xf32> to vector<8x128xf32>
    %271 = vector.extract_strided_slice %266 {offsets = [0, 0], sizes = [8, 128], strides = [1, 1]} : vector<8x384xf32> to vector<8x128xf32>
    %272 = arith.addf %270, %271 : vector<8x128xf32>
    %273 = arith.negf %272 : vector<8x128xf32>
    %274 = math.exp %273 : vector<8x128xf32>
    %cst_71 = arith.constant 1.000000e+00 : f32
    %275 = vector.broadcast %cst_71 : f32 to vector<8x128xf32>
    %276 = arith.addf %275, %274 : vector<8x128xf32>
    %277 = arith.divf %275, %276 : vector<8x128xf32>
    %278 = vector.extract_strided_slice %269 {offsets = [0, 128], sizes = [8, 128], strides = [1, 1]} : vector<8x384xf32> to vector<8x128xf32>
    %279 = vector.extract_strided_slice %266 {offsets = [0, 128], sizes = [8, 128], strides = [1, 1]} : vector<8x384xf32> to vector<8x128xf32>
    %280 = arith.addf %278, %279 : vector<8x128xf32>
    %281 = arith.negf %280 : vector<8x128xf32>
    %282 = math.exp %281 : vector<8x128xf32>
    %cst_72 = arith.constant 1.000000e+00 : f32
    %283 = vector.broadcast %cst_72 : f32 to vector<8x128xf32>
    %284 = arith.addf %283, %282 : vector<8x128xf32>
    %285 = arith.divf %283, %284 : vector<8x128xf32>
    %286 = vector.extract_strided_slice %269 {offsets = [0, 256], sizes = [8, 128], strides = [1, 1]} : vector<8x384xf32> to vector<8x128xf32>
    %287 = vector.extract_strided_slice %266 {offsets = [0, 256], sizes = [8, 128], strides = [1, 1]} : vector<8x384xf32> to vector<8x128xf32>
    %288 = arith.mulf %277, %287 : vector<8x128xf32>
    %289 = arith.addf %286, %288 : vector<8x128xf32>
    %290 = math.tanh %289 : vector<8x128xf32>
    %cst_73 = arith.constant 1.000000e+00 : f32
    %291 = vector.broadcast %cst_73 : f32 to vector<8x128xf32>
    %292 = arith.subf %291, %285 : vector<8x128xf32>
    %293 = arith.mulf %292, %290 : vector<8x128xf32>
    %294 = arith.mulf %285, %262 : vector<8x128xf32>
    %295 = arith.addf %293, %294 : vector<8x128xf32>
    %296 = arith.index_cast %c6_i32 : i32 to index
    %c0_74 = arith.constant 0 : index
    %c0_75 = arith.constant 0 : index
    %297 = vector.load %arg6[%296, %c0_74, %c0_75] : memref<8x8x128xf32, #tpu.memory_space<vmem>>, vector<1x8x128xf32>
    %298 = vector.shape_cast %297 : vector<1x8x128xf32> to vector<8x128xf32>
    %299 = vector.shape_cast %295 : vector<8x128xf32> to vector<1x8x128xf32>
    tpu.vector_store %arg6[%296, %c0_74, %c0_75], %299 {strides = array<i32>} : memref<8x8x128xf32, #tpu.memory_space<vmem>>, vector<1x8x128xf32>,
    %c7_i32 = arith.constant 7 : i32
    %300 = arith.index_cast %c7_i32 : i32 to index
    %c0_76 = arith.constant 0 : index
    %c0_77 = arith.constant 0 : index
    %301 = vector.load %arg2[%300, %c0_76, %c0_77] : memref<8x8x1xf32, #tpu.memory_space<vmem>>, vector<1x8x1xf32>
    %302 = vector.shape_cast %301 : vector<1x8x1xf32> to vector<8x1xf32>
    %303 = vector.broadcast %302 : vector<8x1xf32> to vector<8x128xf32>
    %304 = arith.mulf %295, %303 : vector<8x128xf32>
    %305 = arith.truncf %304 : vector<8x128xf32> to vector<8x128xbf16>
    %cst_78 = arith.constant dense<0.000000e+00> : vector<8x384xf32>
    %306 = tpu.matmul %305, %3, %cst_78 {dimension_numbers = #tpu.dot_dimension_numbers<[1], [0], [0], [1], [0, 0, 1, 1], [], []>} : vector<8x128xbf16>, vector<128x384xbf16>, vector<8x384xf32> -> vector<8x384xf32>
    %307 = vector.broadcast %4 : vector<1x384xf32> to vector<8x384xf32>
    %308 = arith.addf %306, %307 : vector<8x384xf32>
    %309 = arith.index_cast %c7_i32 : i32 to index
    %c0_79 = arith.constant 0 : index
    %c0_80 = arith.constant 0 : index
    %310 = vector.load %arg1[%309, %c0_79, %c0_80] : memref<8x8x384xf32, #tpu.memory_space<vmem>>, vector<1x8x384xf32>
    %311 = vector.shape_cast %310 : vector<1x8x384xf32> to vector<8x384xf32>
    %312 = vector.extract_strided_slice %311 {offsets = [0, 0], sizes = [8, 128], strides = [1, 1]} : vector<8x384xf32> to vector<8x128xf32>
    %313 = vector.extract_strided_slice %308 {offsets = [0, 0], sizes = [8, 128], strides = [1, 1]} : vector<8x384xf32> to vector<8x128xf32>
    %314 = arith.addf %312, %313 : vector<8x128xf32>
    %315 = arith.negf %314 : vector<8x128xf32>
    %316 = math.exp %315 : vector<8x128xf32>
    %cst_81 = arith.constant 1.000000e+00 : f32
    %317 = vector.broadcast %cst_81 : f32 to vector<8x128xf32>
    %318 = arith.addf %317, %316 : vector<8x128xf32>
    %319 = arith.divf %317, %318 : vector<8x128xf32>
    %320 = vector.extract_strided_slice %311 {offsets = [0, 128], sizes = [8, 128], strides = [1, 1]} : vector<8x384xf32> to vector<8x128xf32>
    %321 = vector.extract_strided_slice %308 {offsets = [0, 128], sizes = [8, 128], strides = [1, 1]} : vector<8x384xf32> to vector<8x128xf32>
    %322 = arith.addf %320, %321 : vector<8x128xf32>
    %323 = arith.negf %322 : vector<8x128xf32>
    %324 = math.exp %323 : vector<8x128xf32>
    %cst_82 = arith.constant 1.000000e+00 : f32
    %325 = vector.broadcast %cst_82 : f32 to vector<8x128xf32>
    %326 = arith.addf %325, %324 : vector<8x128xf32>
    %327 = arith.divf %325, %326 : vector<8x128xf32>
    %328 = vector.extract_strided_slice %311 {offsets = [0, 256], sizes = [8, 128], strides = [1, 1]} : vector<8x384xf32> to vector<8x128xf32>
    %329 = vector.extract_strided_slice %308 {offsets = [0, 256], sizes = [8, 128], strides = [1, 1]} : vector<8x384xf32> to vector<8x128xf32>
    %330 = arith.mulf %319, %329 : vector<8x128xf32>
    %331 = arith.addf %328, %330 : vector<8x128xf32>
    %332 = math.tanh %331 : vector<8x128xf32>
    %cst_83 = arith.constant 1.000000e+00 : f32
    %333 = vector.broadcast %cst_83 : f32 to vector<8x128xf32>
    %334 = arith.subf %333, %327 : vector<8x128xf32>
    %335 = arith.mulf %334, %332 : vector<8x128xf32>
    %336 = arith.mulf %327, %304 : vector<8x128xf32>
    %337 = arith.addf %335, %336 : vector<8x128xf32>
    %338 = arith.index_cast %c7_i32 : i32 to index
    %c0_84 = arith.constant 0 : index
    %c0_85 = arith.constant 0 : index
    %339 = vector.load %arg6[%338, %c0_84, %c0_85] : memref<8x8x128xf32, #tpu.memory_space<vmem>>, vector<1x8x128xf32>
    %340 = vector.shape_cast %339 : vector<1x8x128xf32> to vector<8x128xf32>
    %341 = vector.shape_cast %337 : vector<8x128xf32> to vector<1x8x128xf32>
    tpu.vector_store %arg6[%338, %c0_84, %c0_85], %341 {strides = array<i32>} : memref<8x8x128xf32, #tpu.memory_space<vmem>>, vector<1x8x128xf32>,
    %c8_i32 = arith.constant 8 : i32
    %c0_86 = arith.constant 0 : index
    %c0_87 = arith.constant 0 : index
    %342 = vector.load %arg7[%c0_86, %c0_87] : memref<8x128xf32, #tpu.memory_space<vmem>>, vector<8x128xf32>
    tpu.vector_store %arg7[%c0_86, %c0_87], %337 {strides = array<i32>} : memref<8x128xf32, #tpu.memory_space<vmem>>, vector<8x128xf32>,
    return
  }
  func.func @transform_0(%arg0: i32) -> (i32, i32, i32) {
    %c0_i32 = arith.constant 0 : i32
    %c0_i32_0 = arith.constant 0 : i32
    %c0_i32_1 = arith.constant 0 : i32
    return %arg0, %c0_i32, %c0_i32_0 : i32, i32, i32
  }
  func.func @transform_1(%arg0: i32) -> (i32, i32, i32) {
    %c0_i32 = arith.constant 0 : i32
    %c0_i32_0 = arith.constant 0 : i32
    %c0_i32_1 = arith.constant 0 : i32
    return %arg0, %c0_i32, %c0_i32_0 : i32, i32, i32
  }
  func.func @transform_2(%arg0: i32) -> (i32, i32) {
    %c0_i32 = arith.constant 0 : i32
    %c0_i32_0 = arith.constant 0 : i32
    %c0_i32_1 = arith.constant 0 : i32
    return %c0_i32, %c0_i32_0 : i32, i32
  }
  func.func @transform_3(%arg0: i32) -> (i32, i32) {
    %c0_i32 = arith.constant 0 : i32
    %c0_i32_0 = arith.constant 0 : i32
    %c0_i32_1 = arith.constant 0 : i32
    return %c0_i32, %c0_i32_0 : i32, i32
  }
  func.func @transform_4(%arg0: i32) -> (i32, i32) {
    %c0_i32 = arith.constant 0 : i32
    %c0_i32_0 = arith.constant 0 : i32
    %c0_i32_1 = arith.constant 0 : i32
    return %c0_i32, %c0_i32_0 : i32, i32
  }
  func.func @transform_5(%arg0: i32) -> (i32, i32, i32) {
    %c0_i32 = arith.constant 0 : i32
    %c0_i32_0 = arith.constant 0 : i32
    %c0_i32_1 = arith.constant 0 : i32
    return %arg0, %c0_i32, %c0_i32_0 : i32, i32, i32
  }
}

</mosaic_0001>

<llo_original>
// kernel: agent_forward.3
$region0: #{agent_forward.3}
  #allocation0 [shape = 'u32[]', space=smem, size = 0x4, offset = 0x4, fixed_abs, tag = 'smem constant byte address 0x4 - core index']
  #allocation1 [shape = 'u32[144,128]{1,0:T(1,128)}', space=vmem, size = 0x12000, scoped, tag = 'internal scratch']
  #allocation2 [shape = 'f32[8,128]{1,0:T(8,128)}', space=vmem, size = 0x1000, scoped, tag = 'scratch operand']
  %s0 = inlined_call_operand.vmem [shape: f32[8,8,384], index: 0, kind: input, shape index: {}]
  %s1 = inlined_call_operand.vmem [shape: f32[8,8,1], index: 1, kind: input, shape index: {}]
  %s2 = inlined_call_operand.vmem [shape: f32[8,128], index: 2, kind: input, shape index: {}]
  %s3 = inlined_call_operand.vmem [shape: bf16[128,384], index: 3, kind: input, shape index: {}]
  %s4 = inlined_call_operand.vmem [shape: f32[1,384], index: 4, kind: input, shape index: {}]
  %s5 = inlined_call_operand.vmem [shape: f32[8,8,128], index: 5, kind: output, shape index: {}]
  %s6 = sld [smem:[#allocation0]]
  $region34: #{agent_forward.3} parent=0
    _
  %s8 = ssub.s32 1, %s6
  %s9 = scalar_select 0, %s8, %s6
  // Predicated region
  $region2: #{agent_forward.3} parent=0 // pred_check
    _
  $region3: #{agent_forward.3} parent=0 // pred_check_branch
    %11 = sbr.rel (0) target = $region5
  $region4: #{agent_forward.3} parent=0 // pred_region
    _
  $region5: #{agent_forward.3} parent=0 // pred_fallthru
    _
  // Predicated region
  $region6: #{agent_forward.3} parent=0 // pred_check
    _
  $region7: #{agent_forward.3} parent=0 // pred_check_branch
    %13 = sbr.rel (0) target = $region9
  $region8: #{agent_forward.3} parent=0 // pred_region
    _
  $region9: #{agent_forward.3} parent=0 // pred_fallthru
    _
  // Predicated region
  $region10: #{agent_forward.3} parent=0 // pred_check
    _
  $region11: #{agent_forward.3} parent=0 // pred_check_branch
    %15 = sbr.rel (0) target = $region13
  $region12: #{agent_forward.3} parent=0 // pred_region
    _
  $region13: #{agent_forward.3} parent=0 // pred_fallthru
    _
  // Predicated region
  $region14: #{agent_forward.3} parent=0 // pred_check
    _
  $region15: #{agent_forward.3} parent=0 // pred_check_branch
    %17 = sbr.rel (0) target = $region17
  $region16: #{agent_forward.3} parent=0 // pred_region
    _
  $region17: #{agent_forward.3} parent=0 // pred_fallthru
    _
  // Predicated region
  $region18: #{agent_forward.3} parent=0 // pred_check
    _
  $region19: #{agent_forward.3} parent=0 // pred_check_branch
    %19 = sbr.rel (0) target = $region21
  $region20: #{agent_forward.3} parent=0 // pred_region
    _
  $region21: #{agent_forward.3} parent=0 // pred_fallthru
    _
  %p21 = scmp.eq.s32.totalorder 0, 0
  // Predicated region
  $region22: #{agent_forward.3} parent=0 // pred_check
    %p22 = pneg %p21
  $region23: #{agent_forward.3} parent=0 // pred_check_branch
    %24 = sbr.rel (%p22) target = $region25
  $region24: #{agent_forward.3} parent=0 // pred_region
    %v25 = vld [vmem:[%s2] sm:$0xff]
    %26 = vst [vmem:[#allocation2] sm:$0xff] %v25
  $region25: #{agent_forward.3} parent=0 // pred_fallthru
    _
  %v27 = vld [vmem:[%s3] sm:$0xff]
  %v28 = vld [vmem:[%s3 + $0x8] sm:$0xf]
  %v29 = vld [vmem:[%s3 + $0xc] sm:$0xff]
  %v30 = vld [vmem:[%s3 + $0x14] sm:$0xf]
  %v31 = vld [vmem:[%s3 + $0x18] sm:$0xff]
  %v32 = vld [vmem:[%s3 + $0x20] sm:$0xf]
  %v33 = vld [vmem:[%s3 + $0x24] sm:$0xff]
  %v34 = vld [vmem:[%s3 + $0x2c] sm:$0xf]
  %v35 = vld [vmem:[%s3 + $0x30] sm:$0xff]
  %v36 = vld [vmem:[%s3 + $0x38] sm:$0xf]
  %v37 = vld [vmem:[%s3 + $0x3c] sm:$0xff]
  %v38 = vld [vmem:[%s3 + $0x44] sm:$0xf]
  %v39 = vld [vmem:[%s3 + $0x48] sm:$0xff]
  %v40 = vld [vmem:[%s3 + $0x50] sm:$0xf]
  %v41 = vld [vmem:[%s3 + $0x54] sm:$0xff]
  %v42 = vld [vmem:[%s3 + $0x5c] sm:$0xf]
  %v43 = vld [vmem:[%s3 + $0x60] sm:$0xff]
  %v44 = vld [vmem:[%s3 + $0x68] sm:$0xf]
  %v45 = vld [vmem:[%s3 + $0x6c] sm:$0xff]
  %v46 = vld [vmem:[%s3 + $0x74] sm:$0xf]
  %v47 = vld [vmem:[%s3 + $0x78] sm:$0xff]
  %v48 = vld [vmem:[%s3 + $0x80] sm:$0xf]
  %v49 = vld [vmem:[%s3 + $0x84] sm:$0xff]
  %v50 = vld [vmem:[%s3 + $0x8c] sm:$0xf]
  %v51 = vld [vmem:[%s3 + $0x90] sm:$0xff]
  %v52 = vld [vmem:[%s3 + $0x98] sm:$0xf]
  %v53 = vld [vmem:[%s3 + $0x9c] sm:$0xff]
  %v54 = vld [vmem:[%s3 + $0xa4] sm:$0xf]
  %v55 = vld [vmem:[%s3 + $0xa8] sm:$0xff]
  %v56 = vld [vmem:[%s3 + $0xb0] sm:$0xf]
  %v57 = vld [vmem:[%s3 + $0xb4] sm:$0xff]
  %v58 = vld [vmem:[%s3 + $0xbc] sm:$0xf]
  %v59 = vld [vmem:[%s4] sm:$0x7]
  %v60 = vld [vmem:[#allocation2] sm:$0xff]
  %v61 = vld [vmem:[%s1] sm:$0xff]
  %63 = vset.pattern.permute.xlu0 0
  %64 = vperm.xlu0 %63, %v61
  %v65 = vpop.permute.xlu0 %64
  %v67 = vmul.f32 %v60, %v65
  %v68 = vpack.c.bf16 %v67, %v67
  %v70 = vlaneseq
  %v71 = vshrl.u32 %v70, 7
  %v72 = vsub.s32 0, %v71
  %v73 = vrot.slane %v59, %v72
  %v74 = vlaneseq
  %v75 = vshrl.u32 %v74, 7
  %v76 = vsub.s32 1, %v75
  %v77 = vrot.slane %v59, %v76
  %v78 = vlaneseq
  %v79 = vshrl.u32 %v78, 7
  %v80 = vsub.s32 2, %v79
  %v81 = vrot.slane %v59, %v80
  %v117 = vunpack.c.l.b16 %v27
  %v118 = vunpack.c.h.b16 %v27
  %v119 = vunpack.c.l.b16 %v28
  %v120 = vunpack.c.l.b16 %v29
  %v121 = vunpack.c.h.b16 %v29
  %v122 = vunpack.c.l.b16 %v30
  %v123 = vunpack.c.l.b16 %v31
  %v124 = vunpack.c.h.b16 %v31
  %v125 = vunpack.c.l.b16 %v32
  %v126 = vunpack.c.l.b16 %v33
  %v127 = vunpack.c.h.b16 %v33
  %v128 = vunpack.c.l.b16 %v34
  %v129 = vunpack.c.l.b16 %v35
  %v130 = vunpack.c.h.b16 %v35
  %v131 = vunpack.c.l.b16 %v36
  %v132 = vunpack.c.l.b16 %v37
  %v133 = vunpack.c.h.b16 %v37
  %v134 = vunpack.c.l.b16 %v38
  %v135 = vunpack.c.l.b16 %v39
  %v136 = vunpack.c.h.b16 %v39
  %v137 = vunpack.c.l.b16 %v40
  %v138 = vunpack.c.l.b16 %v41
  %v139 = vunpack.c.h.b16 %v41
  %v140 = vunpack.c.l.b16 %v42
  %v141 = vunpack.c.l.b16 %v43
  %v142 = vunpack.c.h.b16 %v43
  %v143 = vunpack.c.l.b16 %v44
  %v144 = vunpack.c.l.b16 %v45
  %v145 = vunpack.c.h.b16 %v45
  %v146 = vunpack.c.l.b16 %v46
  %v147 = vunpack.c.l.b16 %v47
  %v148 = vunpack.c.h.b16 %v47
  %v149 = vunpack.c.l.b16 %v48
  %v150 = vunpack.c.l.b16 %v49
  %v151 = vunpack.c.h.b16 %v49
  %v152 = vunpack.c.l.b16 %v50
  %v153 = vunpack.c.l.b16 %v51
  %v154 = vunpack.c.h.b16 %v51
  %v155 = vunpack.c.l.b16 %v52
  %v156 = vunpack.c.l.b16 %v53
  %v157 = vunpack.c.h.b16 %v53
  %v158 = vunpack.c.l.b16 %v54
  %v159 = vunpack.c.l.b16 %v55
  %v160 = vunpack.c.h.b16 %v55
  %v161 = vunpack.c.l.b16 %v56
  %v162 = vunpack.c.l.b16 %v57
  %v163 = vunpack.c.h.b16 %v57
  %v164 = vunpack.c.l.b16 %v58
  %v165 = vpack.c.b16 %v120, %v117
  %v166 = vpack.c.b16 %v121, %v118
  %v167 = vpack.c.b16 %v122, %v119
  %v168 = vpack.c.b16 %v126, %v123
  %v169 = vpack.c.b16 %v127, %v124
  %v170 = vpack.c.b16 %v128, %v125
  %v171 = vpack.c.b16 %v132, %v129
  %v172 = vpack.c.b16 %v133, %v130
  %v173 = vpack.c.b16 %v134, %v131
  %v174 = vpack.c.b16 %v138, %v135
  %v175 = vpack.c.b16 %v139, %v136
  %v176 = vpack.c.b16 %v140, %v137
  %v177 = vpack.c.b16 %v144, %v141
  %v178 = vpack.c.b16 %v145, %v142
  %v179 = vpack.c.b16 %v146, %v143
  %v180 = vpack.c.b16 %v150, %v147
  %v181 = vpack.c.b16 %v151, %v148
  %v182 = vpack.c.b16 %v152, %v149
  %v183 = vpack.c.b16 %v156, %v153
  %v184 = vpack.c.b16 %v157, %v154
  %v185 = vpack.c.b16 %v158, %v155
  %v186 = vpack.c.b16 %v162, %v159
  %v187 = vpack.c.b16 %v163, %v160
  %v188 = vpack.c.b16 %v164, %v161
  %213 = vmatprep.subr.bf16.mxu0 %v187
  %214 = vmatpush1.bf16.msra.mxu0 %v186
  %215 = vmatprep.subr.bf16.mxu0 %v184
  %216 = vmatpush1.bf16.msra.mxu0 %v183
  %217 = vmatprep.subr.bf16.mxu0 %v181
  %218 = vmatpush1.bf16.msra.mxu0 %v180
  %219 = vmatprep.subr.bf16.mxu0 %v178
  %220 = vmatpush1.bf16.msra.mxu0 %v177
  %221 = vmatprep.subr.bf16.mxu0 %v175
  %222 = vmatpush1.bf16.msra.mxu0 %v174
  %223 = vmatprep.subr.bf16.mxu0 %v172
  %224 = vmatpush1.bf16.msra.mxu0 %v171
  %225 = vmatprep.subr.bf16.mxu0 %v169
  %226 = vmatpush1.bf16.msra.mxu0 %v168
  %227 = vmatprep.subr.bf16.mxu0 %v166
  %228 = vmatpush1.bf16.msra.mxu0 %v165
  %229 = vmatprep.subr.bf16.mxu0 0
  %230 = vmatpush2.bf16.msra.mxu0 0
  %231 = vmatprep.subr.bf16.mxu0 0
  %232 = vmatpush2.bf16.msra.mxu0 0
  %233 = vmatprep.subr.bf16.mxu0 0
  %234 = vmatpush2.bf16.msra.mxu0 0
  %235 = vmatprep.subr.bf16.mxu0 0
  %236 = vmatpush2.bf16.msra.mxu0 0
  %237 = vmatprep.subr.bf16.mxu0 0
  %238 = vmatpush2.bf16.msra.mxu0 0
  %239 = vmatprep.subr.bf16.mxu0 0
  %240 = vmatpush2.bf16.msra.mxu0 0
  %241 = vmatprep.subr.bf16.mxu0 0
  %242 = vmatpush2.bf16.msra.mxu0 0
  %243 = vmatprep.subr.bf16.mxu0 0
  %244 = vmatpush2.bf16.msra.mxu0 0
  %245 = vmatprep.mubr.bf16.mxu0 0
  %246 = vmatmul.mubr.bf16.gmra.mxu0 %v68
  %v247 = vpop.f32.mrf.mxu0
  %v248 = vadd.f32 %v73, %v247
  %v249 = vpop.f32.mrf.mxu0
  %v250 = vadd.f32 %v77, %v249
  %v251 = vpop.f32.mrf.mxu0
  %v252 = vpop.f32.mrf.mxu0
  %253 = vdwg.mxu0
  %254 = vmatprep.subr.bf16.mxu0 0
  %255 = vmatpush1.bf16.msra.mxu0 %v188
  %256 = vmatprep.subr.bf16.mxu0 0
  %257 = vmatpush1.bf16.msra.mxu0 %v185
  %258 = vmatprep.subr.bf16.mxu0 0
  %259 = vmatpush1.bf16.msra.mxu0 %v182
  %260 = vmatprep.subr.bf16.mxu0 0
  %261 = vmatpush1.bf16.msra.mxu0 %v179
  %262 = vmatprep.subr.bf16.mxu0 0
  %263 = vmatpush1.bf16.msra.mxu0 %v176
  %264 = vmatprep.subr.bf16.mxu0 0
  %265 = vmatpush1.bf16.msra.mxu0 %v173
  %266 = vmatprep.subr.bf16.mxu0 0
  %267 = vmatpush1.bf16.msra.mxu0 %v170
  %268 = vmatprep.subr.bf16.mxu0 0
  %269 = vmatpush1.bf16.msra.mxu0 %v167
  %270 = vmatprep.subr.bf16.mxu0 0
  %271 = vmatpush2.bf16.msra.mxu0 0
  %272 = vmatprep.subr.bf16.mxu0 0
  %273 = vmatpush2.bf16.msra.mxu0 0
  %274 = vmatprep.subr.bf16.mxu0 0
  %275 = vmatpush2.bf16.msra.mxu0 0
  %276 = vmatprep.subr.bf16.mxu0 0
  %277 = vmatpush2.bf16.msra.mxu0 0
  %278 = vmatprep.subr.bf16.mxu0 0
  %279 = vmatpush2.bf16.msra.mxu0 0
  %280 = vmatprep.subr.bf16.mxu0 0
  %281 = vmatpush2.bf16.msra.mxu0 0
  %282 = vmatprep.subr.bf16.mxu0 0
  %283 = vmatpush2.bf16.msra.mxu0 0
  %284 = vmatprep.subr.bf16.mxu0 0
  %285 = vmatpush2.bf16.msra.mxu0 0
  %286 = vmatprep.mubr.bf16.mxu0 0
  %287 = vmatmul.mubr.bf16.gmra.mxu0 %v68
  %v288 = vpop.f32.mrf.mxu0
  %v289 = vadd.f32 %v81, %v288
  %v290 = vpop.f32.mrf.mxu0
  %v291 = vpop.f32.mrf.mxu0
  %v292 = vpop.f32.mrf.mxu0
  %293 = vdwg.mxu0
  %v294 = vld [vmem:[%s0] sm:$0xff]
  %v295 = vld [vmem:[%s0 + $0x8] sm:$0xff]
  %v296 = vld [vmem:[%s0 + $0x10] sm:$0xff]
  %v297 = vadd.f32 %v294, %v248
  %v298 = vxor.u32 %v297, 2147483648
  %v299 = vmul.f32 %v298, 1.442695
  %v300 = vpow.pop %v299
  %v301 = vadd.f32 %v300, 1.0
  %v302 = vrcp.pop %v301
  %v303 = vmul.f32 1.0, %v302
  %v304 = vadd.f32 %v295, %v250
  %v305 = vxor.u32 %v304, 2147483648
  %v306 = vmul.f32 %v305, 1.442695
  %v307 = vpow.pop %v306
  %v308 = vadd.f32 %v307, 1.0
  %v309 = vrcp.pop %v308
  %v310 = vmul.f32 1.0, %v309
  %v311 = vmul.f32 %v303, %v289
  %v312 = vadd.f32 %v296, %v311
  %v313 = vtanh.pop %v312
  %v314 = vsub.f32 1.0, %v310
  %v315 = vmul.f32 %v314, %v313
  %v316 = vmul.f32 %v310, %v67
  %v317 = vadd.f32 %v315, %v316
  %318 = vst [vmem:[%s5] sm:$0xff] %v317
  %s319 = scalar_lea.vmem %s1, 8
  %v320 = vld [vmem:[%s319] sm:$0xff]
  %322 = vset.pattern.permute.xlu0 0
  %323 = vperm.xlu0 %322, %v320
  %v324 = vpop.permute.xlu0 %323
  %v326 = vmul.f32 %v317, %v324
  %v327 = vpack.c.bf16 %v326, %v326
  %328 = vmatprep.subr.bf16.mxu0 %v187
  %329 = vmatpush1.bf16.msra.mxu0 %v186
  %330 = vmatprep.subr.bf16.mxu0 %v184
  %331 = vmatpush1.bf16.msra.mxu0 %v183
  %332 = vmatprep.subr.bf16.mxu0 %v181
  %333 = vmatpush1.bf16.msra.mxu0 %v180
  %334 = vmatprep.subr.bf16.mxu0 %v178
  %335 = vmatpush1.bf16.msra.mxu0 %v177
  %336 = vmatprep.subr.bf16.mxu0 %v175
  %337 = vmatpush1.bf16.msra.mxu0 %v174
  %338 = vmatprep.subr.bf16.mxu0 %v172
  %339 = vmatpush1.bf16.msra.mxu0 %v171
  %340 = vmatprep.subr.bf16.mxu0 %v169
  %341 = vmatpush1.bf16.msra.mxu0 %v168
  %342 = vmatprep.subr.bf16.mxu0 %v166
  %343 = vmatpush1.bf16.msra.mxu0 %v165
  %344 = vmatprep.subr.bf16.mxu0 0
  %345 = vmatpush2.bf16.msra.mxu0 0
  %346 = vmatprep.subr.bf16.mxu0 0
  %347 = vmatpush2.bf16.msra.mxu0 0
  %348 = vmatprep.subr.bf16.mxu0 0
  %349 = vmatpush2.bf16.msra.mxu0 0
  %350 = vmatprep.subr.bf16.mxu0 0
  %351 = vmatpush2.bf16.msra.mxu0 0
  %352 = vmatprep.subr.bf16.mxu0 0
  %353 = vmatpush2.bf16.msra.mxu0 0
  %354 = vmatprep.subr.bf16.mxu0 0
  %355 = vmatpush2.bf16.msra.mxu0 0
  %356 = vmatprep.subr.bf16.mxu0 0
  %357 = vmatpush2.bf16.msra.mxu0 0
  %358 = vmatprep.subr.bf16.mxu0 0
  %359 = vmatpush2.bf16.msra.mxu0 0
  %360 = vmatprep.mubr.bf16.mxu0 0
  %361 = vmatmul.mubr.bf16.gmra.mxu0 %v327
  %v362 = vpop.f32.mrf.mxu0
  %v363 = vadd.f32 %v73, %v362
  %v364 = vpop.f32.mrf.mxu0
  %v365 = vadd.f32 %v77, %v364
  %v366 = vpop.f32.mrf.mxu0
  %v367 = vpop.f32.mrf.mxu0
  %368 = vdwg.mxu0
  %369 = vmatprep.subr.bf16.mxu0 0
  %370 = vmatpush1.bf16.msra.mxu0 %v188
  %371 = vmatprep.subr.bf16.mxu0 0
  %372 = vmatpush1.bf16.msra.mxu0 %v185
  %373 = vmatprep.subr.bf16.mxu0 0
  %374 = vmatpush1.bf16.msra.mxu0 %v182
  %375 = vmatprep.subr.bf16.mxu0 0
  %376 = vmatpush1.bf16.msra.mxu0 %v179
  %377 = vmatprep.subr.bf16.mxu0 0
  %378 = vmatpush1.bf16.msra.mxu0 %v176
  %379 = vmatprep.subr.bf16.mxu0 0
  %380 = vmatpush1.bf16.msra.mxu0 %v173
  %381 = vmatprep.subr.bf16.mxu0 0
  %382 = vmatpush1.bf16.msra.mxu0 %v170
  %383 = vmatprep.subr.bf16.mxu0 0
  %384 = vmatpush1.bf16.msra.mxu0 %v167
  %385 = vmatprep.subr.bf16.mxu0 0
  %386 = vmatpush2.bf16.msra.mxu0 0
  %387 = vmatprep.subr.bf16.mxu0 0
  %388 = vmatpush2.bf16.msra.mxu0 0
  %389 = vmatprep.subr.bf16.mxu0 0
  %390 = vmatpush2.bf16.msra.mxu0 0
  %391 = vmatprep.subr.bf16.mxu0 0
  %392 = vmatpush2.bf16.msra.mxu0 0
  %393 = vmatprep.subr.bf16.mxu0 0
  %394 = vmatpush2.bf16.msra.mxu0 0
  %395 = vmatprep.subr.bf16.mxu0 0
  %396 = vmatpush2.bf16.msra.mxu0 0
  %397 = vmatprep.subr.bf16.mxu0 0
  %398 = vmatpush2.bf16.msra.mxu0 0
  %399 = vmatprep.subr.bf16.mxu0 0
  %400 = vmatpush2.bf16.msra.mxu0 0
  %401 = vmatprep.mubr.bf16.mxu0 0
  %402 = vmatmul.mubr.bf16.gmra.mxu0 %v327
  %v403 = vpop.f32.mrf.mxu0
  %v404 = vadd.f32 %v81, %v403
  %v405 = vpop.f32.mrf.mxu0
  %v406 = vpop.f32.mrf.mxu0
  %v407 = vpop.f32.mrf.mxu0
  %408 = vdwg.mxu0
  %s409 = scalar_lea.vmem %s0, 24
  %v410 = vld [vmem:[%s409] sm:$0xff]
  %v411 = vld [vmem:[%s409 + $0x8] sm:$0xff]
  %v412 = vld [vmem:[%s409 + $0x10] sm:$0xff]
  %v413 = vadd.f32 %v410, %v363
  %v414 = vxor.u32 %v413, 2147483648
  %v415 = vmul.f32 %v414, 1.442695
  %v416 = vpow.pop %v415
  %v417 = vadd.f32 %v416, 1.0
  %v418 = vrcp.pop %v417
  %v419 = vmul.f32 1.0, %v418
  %v420 = vadd.f32 %v411, %v365
  %v421 = vxor.u32 %v420, 2147483648
  %v422 = vmul.f32 %v421, 1.442695
  %v423 = vpow.pop %v422
  %v424 = vadd.f32 %v423, 1.0
  %v425 = vrcp.pop %v424
  %v426 = vmul.f32 1.0, %v425
  %v427 = vmul.f32 %v419, %v404
  %v428 = vadd.f32 %v412, %v427
  %v429 = vtanh.pop %v428
  %v430 = vsub.f32 1.0, %v426
  %v431 = vmul.f32 %v430, %v429
  %v432 = vmul.f32 %v426, %v326
  %v433 = vadd.f32 %v431, %v432
  %s434 = scalar_lea.vmem %s5, 8
  %435 = vst [vmem:[%s434] sm:$0xff] %v433
  %s436 = scalar_lea.vmem %s1, 16
  %v437 = vld [vmem:[%s436] sm:$0xff]
  %439 = vset.pattern.permute.xlu0 0
  %440 = vperm.xlu0 %439, %v437
  %v441 = vpop.permute.xlu0 %440
  %v443 = vmul.f32 %v433, %v441
  %v444 = vpack.c.bf16 %v443, %v443
  %445 = vmatprep.subr.bf16.mxu0 %v187
  %446 = vmatpush1.bf16.msra.mxu0 %v186
  %447 = vmatprep.subr.bf16.mxu0 %v184
  %448 = vmatpush1.bf16.msra.mxu0 %v183
  %449 = vmatprep.subr.bf16.mxu0 %v181
  %450 = vmatpush1.bf16.msra.mxu0 %v180
  %451 = vmatprep.subr.bf16.mxu0 %v178
  %452 = vmatpush1.bf16.msra.mxu0 %v177
  %453 = vmatprep.subr.bf16.mxu0 %v175
  %454 = vmatpush1.bf16.msra.mxu0 %v174
  %455 = vmatprep.subr.bf16.mxu0 %v172
  %456 = vmatpush1.bf16.msra.mxu0 %v171
  %457 = vmatprep.subr.bf16.mxu0 %v169
  %458 = vmatpush1.bf16.msra.mxu0 %v168
  %459 = vmatprep.subr.bf16.mxu0 %v166
  %460 = vmatpush1.bf16.msra.mxu0 %v165
  %461 = vmatprep.subr.bf16.mxu0 0
  %462 = vmatpush2.bf16.msra.mxu0 0
  %463 = vmatprep.subr.bf16.mxu0 0
  %464 = vmatpush2.bf16.msra.mxu0 0
  %465 = vmatprep.subr.bf16.mxu0 0
  %466 = vmatpush2.bf16.msra.mxu0 0
  %467 = vmatprep.subr.bf16.mxu0 0
  %468 = vmatpush2.bf16.msra.mxu0 0
  %469 = vmatprep.subr.bf16.mxu0 0
  %470 = vmatpush2.bf16.msra.mxu0 0
  %471 = vmatprep.subr.bf16.mxu0 0
  %472 = vmatpush2.bf16.msra.mxu0 0
  %473 = vmatprep.subr.bf16.mxu0 0
  %474 = vmatpush2.bf16.msra.mxu0 0
  %475 = vmatprep.subr.bf16.mxu0 0
  %476 = vmatpush2.bf16.msra.mxu0 0
  %477 = vmatprep.mubr.bf16.mxu0 0
  %478 = vmatmul.mubr.bf16.gmra.mxu0 %v444
  %v479 = vpop.f32.mrf.mxu0
  %v480 = vadd.f32 %v73, %v479
  %v481 = vpop.f32.mrf.mxu0
  %v482 = vadd.f32 %v77, %v481
  %v483 = vpop.f32.mrf.mxu0
  %v484 = vpop.f32.mrf.mxu0
  %485 = vdwg.mxu0
  %486 = vmatprep.subr.bf16.mxu0 0
  %487 = vmatpush1.bf16.msra.mxu0 %v188
  %488 = vmatprep.subr.bf16.mxu0 0
  %489 = vmatpush1.bf16.msra.mxu0 %v185
  %490 = vmatprep.subr.bf16.mxu0 0
  %491 = vmatpush1.bf16.msra.mxu0 %v182
  %492 = vmatprep.subr.bf16.mxu0 0
  %493 = vmatpush1.bf16.msra.mxu0 %v179
  %494 = vmatprep.subr.bf16.mxu0 0
  %495 = vmatpush1.bf16.msra.mxu0 %v176
  %496 = vmatprep.subr.bf16.mxu0 0
  %497 = vmatpush1.bf16.msra.mxu0 %v173
  %498 = vmatprep.subr.bf16.mxu0 0
  %499 = vmatpush1.bf16.msra.mxu0 %v170
  %500 = vmatprep.subr.bf16.mxu0 0
  %501 = vmatpush1.bf16.msra.mxu0 %v167
  %502 = vmatprep.subr.bf16.mxu0 0
  %503 = vmatpush2.bf16.msra.mxu0 0
  %504 = vmatprep.subr.bf16.mxu0 0
  %505 = vmatpush2.bf16.msra.mxu0 0
  %506 = vmatprep.subr.bf16.mxu0 0
  %507 = vmatpush2.bf16.msra.mxu0 0
  %508 = vmatprep.subr.bf16.mxu0 0
  %509 = vmatpush2.bf16.msra.mxu0 0
  %510 = vmatprep.subr.bf16.mxu0 0
  %511 = vmatpush2.bf16.msra.mxu0 0
  %512 = vmatprep.subr.bf16.mxu0 0
  %513 = vmatpush2.bf16.msra.mxu0 0
  %514 = vmatprep.subr.bf16.mxu0 0
  %515 = vmatpush2.bf16.msra.mxu0 0
  %516 = vmatprep.subr.bf16.mxu0 0
  %517 = vmatpush2.bf16.msra.mxu0 0
  %518 = vmatprep.mubr.bf16.mxu0 0
  %519 = vmatmul.mubr.bf16.gmra.mxu0 %v444
  %v520 = vpop.f32.mrf.mxu0
  %v521 = vadd.f32 %v81, %v520
  %v522 = vpop.f32.mrf.mxu0
  %v523 = vpop.f32.mrf.mxu0
  %v524 = vpop.f32.mrf.mxu0
  %525 = vdwg.mxu0
  %s526 = scalar_lea.vmem %s0, 48
  %v527 = vld [vmem:[%s526] sm:$0xff]
  %v528 = vld [vmem:[%s526 + $0x8] sm:$0xff]
  %v529 = vld [vmem:[%s526 + $0x10] sm:$0xff]
  %v530 = vadd.f32 %v527, %v480
  %v531 = vxor.u32 %v530, 2147483648
  %v532 = vmul.f32 %v531, 1.442695
  %v533 = vpow.pop %v532
  %v534 = vadd.f32 %v533, 1.0
  %v535 = vrcp.pop %v534
  %v536 = vmul.f32 1.0, %v535
  %v537 = vadd.f32 %v528, %v482
  %v538 = vxor.u32 %v537, 2147483648
  %v539 = vmul.f32 %v538, 1.442695
  %v540 = vpow.pop %v539
  %v541 = vadd.f32 %v540, 1.0
  %v542 = vrcp.pop %v541
  %v543 = vmul.f32 1.0, %v542
  %v544 = vmul.f32 %v536, %v521
  %v545 = vadd.f32 %v529, %v544
  %v546 = vtanh.pop %v545
  %v547 = vsub.f32 1.0, %v543
  %v548 = vmul.f32 %v547, %v546
  %v549 = vmul.f32 %v543, %v443
  %v550 = vadd.f32 %v548, %v549
  %s551 = scalar_lea.vmem %s5, 16
  %552 = vst [vmem:[%s551] sm:$0xff] %v550
  %s553 = scalar_lea.vmem %s1, 24
  %v554 = vld [vmem:[%s553] sm:$0xff]
  %556 = vset.pattern.permute.xlu0 0
  %557 = vperm.xlu0 %556, %v554
  %v558 = vpop.permute.xlu0 %557
  %v560 = vmul.f32 %v550, %v558
  %v561 = vpack.c.bf16 %v560, %v560
  %562 = vmatprep.subr.bf16.mxu0 %v187
  %563 = vmatpush1.bf16.msra.mxu0 %v186
  %564 = vmatprep.subr.bf16.mxu0 %v184
  %565 = vmatpush1.bf16.msra.mxu0 %v183
  %566 = vmatprep.subr.bf16.mxu0 %v181
  %567 = vmatpush1.bf16.msra.mxu0 %v180
  %568 = vmatprep.subr.bf16.mxu0 %v178
  %569 = vmatpush1.bf16.msra.mxu0 %v177
  %570 = vmatprep.subr.bf16.mxu0 %v175
  %571 = vmatpush1.bf16.msra.mxu0 %v174
  %572 = vmatprep.subr.bf16.mxu0 %v172
  %573 = vmatpush1.bf16.msra.mxu0 %v171
  %574 = vmatprep.subr.bf16.mxu0 %v169
  %575 = vmatpush1.bf16.msra.mxu0 %v168
  %576 = vmatprep.subr.bf16.mxu0 %v166
  %577 = vmatpush1.bf16.msra.mxu0 %v165
  %578 = vmatprep.subr.bf16.mxu0 0
  %579 = vmatpush2.bf16.msra.mxu0 0
  %580 = vmatprep.subr.bf16.mxu0 0
  %581 = vmatpush2.bf16.msra.mxu0 0
  %582 = vmatprep.subr.bf16.mxu0 0
  %583 = vmatpush2.bf16.msra.mxu0 0
  %584 = vmatprep.subr.bf16.mxu0 0
  %585 = vmatpush2.bf16.msra.mxu0 0
  %586 = vmatprep.subr.bf16.mxu0 0
  %587 = vmatpush2.bf16.msra.mxu0 0
  %588 = vmatprep.subr.bf16.mxu0 0
  %589 = vmatpush2.bf16.msra.mxu0 0
  %590 = vmatprep.subr.bf16.mxu0 0
  %591 = vmatpush2.bf16.msra.mxu0 0
  %592 = vmatprep.subr.bf16.mxu0 0
  %593 = vmatpush2.bf16.msra.mxu0 0
  %594 = vmatprep.mubr.bf16.mxu0 0
  %595 = vmatmul.mubr.bf16.gmra.mxu0 %v561
  %v596 = vpop.f32.mrf.mxu0
  %v597 = vadd.f32 %v73, %v596
  %v598 = vpop.f32.mrf.mxu0
  %v599 = vadd.f32 %v77, %v598
  %v600 = vpop.f32.mrf.mxu0
  %v601 = vpop.f32.mrf.mxu0
  %602 = vdwg.mxu0
  %603 = vmatprep.subr.bf16.mxu0 0
  %604 = vmatpush1.bf16.msra.mxu0 %v188
  %605 = vmatprep.subr.bf16.mxu0 0
  %606 = vmatpush1.bf16.msra.mxu0 %v185
  %607 = vmatprep.subr.bf16.mxu0 0
  %608 = vmatpush1.bf16.msra.mxu0 %v182
  %609 = vmatprep.subr.bf16.mxu0 0
  %610 = vmatpush1.bf16.msra.mxu0 %v179
  %611 = vmatprep.subr.bf16.mxu0 0
  %612 = vmatpush1.bf16.msra.mxu0 %v176
  %613 = vmatprep.subr.bf16.mxu0 0
  %614 = vmatpush1.bf16.msra.mxu0 %v173
  %615 = vmatprep.subr.bf16.mxu0 0
  %616 = vmatpush1.bf16.msra.mxu0 %v170
  %617 = vmatprep.subr.bf16.mxu0 0
  %618 = vmatpush1.bf16.msra.mxu0 %v167
  %619 = vmatprep.subr.bf16.mxu0 0
  %620 = vmatpush2.bf16.msra.mxu0 0
  %621 = vmatprep.subr.bf16.mxu0 0
  %622 = vmatpush2.bf16.msra.mxu0 0
  %623 = vmatprep.subr.bf16.mxu0 0
  %624 = vmatpush2.bf16.msra.mxu0 0
  %625 = vmatprep.subr.bf16.mxu0 0
  %626 = vmatpush2.bf16.msra.mxu0 0
  %627 = vmatprep.subr.bf16.mxu0 0
  %628 = vmatpush2.bf16.msra.mxu0 0
  %629 = vmatprep.subr.bf16.mxu0 0
  %630 = vmatpush2.bf16.msra.mxu0 0
  %631 = vmatprep.subr.bf16.mxu0 0
  %632 = vmatpush2.bf16.msra.mxu0 0
  %633 = vmatprep.subr.bf16.mxu0 0
  %634 = vmatpush2.bf16.msra.mxu0 0
  %635 = vmatprep.mubr.bf16.mxu0 0
  %636 = vmatmul.mubr.bf16.gmra.mxu0 %v561
  %v637 = vpop.f32.mrf.mxu0
  %v638 = vadd.f32 %v81, %v637
  %v639 = vpop.f32.mrf.mxu0
  %v640 = vpop.f32.mrf.mxu0
  %v641 = vpop.f32.mrf.mxu0
  %642 = vdwg.mxu0
  %s643 = scalar_lea.vmem %s0, 72
  %v644 = vld [vmem:[%s643] sm:$0xff]
  %v645 = vld [vmem:[%s643 + $0x8] sm:$0xff]
  %v646 = vld [vmem:[%s643 + $0x10] sm:$0xff]
  %v647 = vadd.f32 %v644, %v597
  %v648 = vxor.u32 %v647, 2147483648
  %v649 = vmul.f32 %v648, 1.442695
  %v650 = vpow.pop %v649
  %v651 = vadd.f32 %v650, 1.0
  %v652 = vrcp.pop %v651
  %v653 = vmul.f32 1.0, %v652
  %v654 = vadd.f32 %v645, %v599
  %v655 = vxor.u32 %v654, 2147483648
  %v656 = vmul.f32 %v655, 1.442695
  %v657 = vpow.pop %v656
  %v658 = vadd.f32 %v657, 1.0
  %v659 = vrcp.pop %v658
  %v660 = vmul.f32 1.0, %v659
  %v661 = vmul.f32 %v653, %v638
  %v662 = vadd.f32 %v646, %v661
  %v663 = vtanh.pop %v662
  %v664 = vsub.f32 1.0, %v660
  %v665 = vmul.f32 %v664, %v663
  %v666 = vmul.f32 %v660, %v560
  %v667 = vadd.f32 %v665, %v666
  %s668 = scalar_lea.vmem %s5, 24
  %669 = vst [vmem:[%s668] sm:$0xff] %v667
  %s670 = scalar_lea.vmem %s1, 32
  %v671 = vld [vmem:[%s670] sm:$0xff]
  %673 = vset.pattern.permute.xlu0 0
  %674 = vperm.xlu0 %673, %v671
  %v675 = vpop.permute.xlu0 %674
  %v677 = vmul.f32 %v667, %v675
  %v678 = vpack.c.bf16 %v677, %v677
  %679 = vmatprep.subr.bf16.mxu0 %v187
  %680 = vmatpush1.bf16.msra.mxu0 %v186
  %681 = vmatprep.subr.bf16.mxu0 %v184
  %682 = vmatpush1.bf16.msra.mxu0 %v183
  %683 = vmatprep.subr.bf16.mxu0 %v181
  %684 = vmatpush1.bf16.msra.mxu0 %v180
  %685 = vmatprep.subr.bf16.mxu0 %v178
  %686 = vmatpush1.bf16.msra.mxu0 %v177
  %687 = vmatprep.subr.bf16.mxu0 %v175
  %688 = vmatpush1.bf16.msra.mxu0 %v174
  %689 = vmatprep.subr.bf16.mxu0 %v172
  %690 = vmatpush1.bf16.msra.mxu0 %v171
  %691 = vmatprep.subr.bf16.mxu0 %v169
  %692 = vmatpush1.bf16.msra.mxu0 %v168
  %693 = vmatprep.subr.bf16.mxu0 %v166
  %694 = vmatpush1.bf16.msra.mxu0 %v165
  %695 = vmatprep.subr.bf16.mxu0 0
  %696 = vmatpush2.bf16.msra.mxu0 0
  %697 = vmatprep.subr.bf16.mxu0 0
  %698 = vmatpush2.bf16.msra.mxu0 0
  %699 = vmatprep.subr.bf16.mxu0 0
  %700 = vmatpush2.bf16.msra.mxu0 0
  %701 = vmatprep.subr.bf16.mxu0 0
  %702 = vmatpush2.bf16.msra.mxu0 0
  %703 = vmatprep.subr.bf16.mxu0 0
  %704 = vmatpush2.bf16.msra.mxu0 0
  %705 = vmatprep.subr.bf16.mxu0 0
  %706 = vmatpush2.bf16.msra.mxu0 0
  %707 = vmatprep.subr.bf16.mxu0 0
  %708 = vmatpush2.bf16.msra.mxu0 0
  %709 = vmatprep.subr.bf16.mxu0 0
  %710 = vmatpush2.bf16.msra.mxu0 0
  %711 = vmatprep.mubr.bf16.mxu0 0
  %712 = vmatmul.mubr.bf16.gmra.mxu0 %v678
  %v713 = vpop.f32.mrf.mxu0
  %v714 = vadd.f32 %v73, %v713
  %v715 = vpop.f32.mrf.mxu0
  %v716 = vadd.f32 %v77, %v715
  %v717 = vpop.f32.mrf.mxu0
  %v718 = vpop.f32.mrf.mxu0
  %719 = vdwg.mxu0
  %720 = vmatprep.subr.bf16.mxu0 0
  %721 = vmatpush1.bf16.msra.mxu0 %v188
  %722 = vmatprep.subr.bf16.mxu0 0
  %723 = vmatpush1.bf16.msra.mxu0 %v185
  %724 = vmatprep.subr.bf16.mxu0 0
  %725 = vmatpush1.bf16.msra.mxu0 %v182
  %726 = vmatprep.subr.bf16.mxu0 0
  %727 = vmatpush1.bf16.msra.mxu0 %v179
  %728 = vmatprep.subr.bf16.mxu0 0
  %729 = vmatpush1.bf16.msra.mxu0 %v176
  %730 = vmatprep.subr.bf16.mxu0 0
  %731 = vmatpush1.bf16.msra.mxu0 %v173
  %732 = vmatprep.subr.bf16.mxu0 0
  %733 = vmatpush1.bf16.msra.mxu0 %v170
  %734 = vmatprep.subr.bf16.mxu0 0
  %735 = vmatpush1.bf16.msra.mxu0 %v167
  %736 = vmatprep.subr.bf16.mxu0 0
  %737 = vmatpush2.bf16.msra.mxu0 0
  %738 = vmatprep.subr.bf16.mxu0 0
  %739 = vmatpush2.bf16.msra.mxu0 0
  %740 = vmatprep.subr.bf16.mxu0 0
  %741 = vmatpush2.bf16.msra.mxu0 0
  %742 = vmatprep.subr.bf16.mxu0 0
  %743 = vmatpush2.bf16.msra.mxu0 0
  %744 = vmatprep.subr.bf16.mxu0 0
  %745 = vmatpush2.bf16.msra.mxu0 0
  %746 = vmatprep.subr.bf16.mxu0 0
  %747 = vmatpush2.bf16.msra.mxu0 0
  %748 = vmatprep.subr.bf16.mxu0 0
  %749 = vmatpush2.bf16.msra.mxu0 0
  %750 = vmatprep.subr.bf16.mxu0 0
  %751 = vmatpush2.bf16.msra.mxu0 0
  %752 = vmatprep.mubr.bf16.mxu0 0
  %753 = vmatmul.mubr.bf16.gmra.mxu0 %v678
  %v754 = vpop.f32.mrf.mxu0
  %v755 = vadd.f32 %v81, %v754
  %v756 = vpop.f32.mrf.mxu0
  %v757 = vpop.f32.mrf.mxu0
  %v758 = vpop.f32.mrf.mxu0
  %759 = vdwg.mxu0
  %s760 = scalar_lea.vmem %s0, 96
  %v761 = vld [vmem:[%s760] sm:$0xff]
  %v762 = vld [vmem:[%s760 + $0x8] sm:$0xff]
  %v763 = vld [vmem:[%s760 + $0x10] sm:$0xff]
  %v764 = vadd.f32 %v761, %v714
  %v765 = vxor.u32 %v764, 2147483648
  %v766 = vmul.f32 %v765, 1.442695
  %v767 = vpow.pop %v766
  %v768 = vadd.f32 %v767, 1.0
  %v769 = vrcp.pop %v768
  %v770 = vmul.f32 1.0, %v769
  %v771 = vadd.f32 %v762, %v716
  %v772 = vxor.u32 %v771, 2147483648
  %v773 = vmul.f32 %v772, 1.442695
  %v774 = vpow.pop %v773
  %v775 = vadd.f32 %v774, 1.0
  %v776 = vrcp.pop %v775
  %v777 = vmul.f32 1.0, %v776
  %v778 = vmul.f32 %v770, %v755
  %v779 = vadd.f32 %v763, %v778
  %v780 = vtanh.pop %v779
  %v781 = vsub.f32 1.0, %v777
  %v782 = vmul.f32 %v781, %v780
  %v783 = vmul.f32 %v777, %v677
  %v784 = vadd.f32 %v782, %v783
  %s785 = scalar_lea.vmem %s5, 32
  %786 = vst [vmem:[%s785] sm:$0xff] %v784
  %s787 = scalar_lea.vmem %s1, 40
  %v788 = vld [vmem:[%s787] sm:$0xff]
  %790 = vset.pattern.permute.xlu0 0
  %791 = vperm.xlu0 %790, %v788
  %v792 = vpop.permute.xlu0 %791
  %v794 = vmul.f32 %v784, %v792
  %v795 = vpack.c.bf16 %v794, %v794
  %796 = vmatprep.subr.bf16.mxu0 %v187
  %797 = vmatpush1.bf16.msra.mxu0 %v186
  %798 = vmatprep.subr.bf16.mxu0 %v184
  %799 = vmatpush1.bf16.msra.mxu0 %v183
  %800 = vmatprep.subr.bf16.mxu0 %v181
  %801 = vmatpush1.bf16.msra.mxu0 %v180
  %802 = vmatprep.subr.bf16.mxu0 %v178
  %803 = vmatpush1.bf16.msra.mxu0 %v177
  %804 = vmatprep.subr.bf16.mxu0 %v175
  %805 = vmatpush1.bf16.msra.mxu0 %v174
  %806 = vmatprep.subr.bf16.mxu0 %v172
  %807 = vmatpush1.bf16.msra.mxu0 %v171
  %808 = vmatprep.subr.bf16.mxu0 %v169
  %809 = vmatpush1.bf16.msra.mxu0 %v168
  %810 = vmatprep.subr.bf16.mxu0 %v166
  %811 = vmatpush1.bf16.msra.mxu0 %v165
  %812 = vmatprep.subr.bf16.mxu0 0
  %813 = vmatpush2.bf16.msra.mxu0 0
  %814 = vmatprep.subr.bf16.mxu0 0
  %815 = vmatpush2.bf16.msra.mxu0 0
  %816 = vmatprep.subr.bf16.mxu0 0
  %817 = vmatpush2.bf16.msra.mxu0 0
  %818 = vmatprep.subr.bf16.mxu0 0
  %819 = vmatpush2.bf16.msra.mxu0 0
  %820 = vmatprep.subr.bf16.mxu0 0
  %821 = vmatpush2.bf16.msra.mxu0 0
  %822 = vmatprep.subr.bf16.mxu0 0
  %823 = vmatpush2.bf16.msra.mxu0 0
  %824 = vmatprep.subr.bf16.mxu0 0
  %825 = vmatpush2.bf16.msra.mxu0 0
  %826 = vmatprep.subr.bf16.mxu0 0
  %827 = vmatpush2.bf16.msra.mxu0 0
  %828 = vmatprep.mubr.bf16.mxu0 0
  %829 = vmatmul.mubr.bf16.gmra.mxu0 %v795
  %v830 = vpop.f32.mrf.mxu0
  %v831 = vadd.f32 %v73, %v830
  %v832 = vpop.f32.mrf.mxu0
  %v833 = vadd.f32 %v77, %v832
  %v834 = vpop.f32.mrf.mxu0
  %v835 = vpop.f32.mrf.mxu0
  %836 = vdwg.mxu0
  %837 = vmatprep.subr.bf16.mxu0 0
  %838 = vmatpush1.bf16.msra.mxu0 %v188
  %839 = vmatprep.subr.bf16.mxu0 0
  %840 = vmatpush1.bf16.msra.mxu0 %v185
  %841 = vmatprep.subr.bf16.mxu0 0
  %842 = vmatpush1.bf16.msra.mxu0 %v182
  %843 = vmatprep.subr.bf16.mxu0 0
  %844 = vmatpush1.bf16.msra.mxu0 %v179
  %845 = vmatprep.subr.bf16.mxu0 0
  %846 = vmatpush1.bf16.msra.mxu0 %v176
  %847 = vmatprep.subr.bf16.mxu0 0
  %848 = vmatpush1.bf16.msra.mxu0 %v173
  %849 = vmatprep.subr.bf16.mxu0 0
  %850 = vmatpush1.bf16.msra.mxu0 %v170
  %851 = vmatprep.subr.bf16.mxu0 0
  %852 = vmatpush1.bf16.msra.mxu0 %v167
  %853 = vmatprep.subr.bf16.mxu0 0
  %854 = vmatpush2.bf16.msra.mxu0 0
  %855 = vmatprep.subr.bf16.mxu0 0
  %856 = vmatpush2.bf16.msra.mxu0 0
  %857 = vmatprep.subr.bf16.mxu0 0
  %858 = vmatpush2.bf16.msra.mxu0 0
  %859 = vmatprep.subr.bf16.mxu0 0
  %860 = vmatpush2.bf16.msra.mxu0 0
  %861 = vmatprep.subr.bf16.mxu0 0
  %862 = vmatpush2.bf16.msra.mxu0 0
  %863 = vmatprep.subr.bf16.mxu0 0
  %864 = vmatpush2.bf16.msra.mxu0 0
  %865 = vmatprep.subr.bf16.mxu0 0
  %866 = vmatpush2.bf16.msra.mxu0 0
  %867 = vmatprep.subr.bf16.mxu0 0
  %868 = vmatpush2.bf16.msra.mxu0 0
  %869 = vmatprep.mubr.bf16.mxu0 0
  %870 = vmatmul.mubr.bf16.gmra.mxu0 %v795
  %v871 = vpop.f32.mrf.mxu0
  %v872 = vadd.f32 %v81, %v871
  %v873 = vpop.f32.mrf.mxu0
  %v874 = vpop.f32.mrf.mxu0
  %v875 = vpop.f32.mrf.mxu0
  %876 = vdwg.mxu0
  %s877 = scalar_lea.vmem %s0, 120
  %v878 = vld [vmem:[%s877] sm:$0xff]
  %v879 = vld [vmem:[%s877 + $0x8] sm:$0xff]
  %v880 = vld [vmem:[%s877 + $0x10] sm:$0xff]
  %v881 = vadd.f32 %v878, %v831
  %v882 = vxor.u32 %v881, 2147483648
  %v883 = vmul.f32 %v882, 1.442695
  %v884 = vpow.pop %v883
  %v885 = vadd.f32 %v884, 1.0
  %v886 = vrcp.pop %v885
  %v887 = vmul.f32 1.0, %v886
  %v888 = vadd.f32 %v879, %v833
  %v889 = vxor.u32 %v888, 2147483648
  %v890 = vmul.f32 %v889, 1.442695
  %v891 = vpow.pop %v890
  %v892 = vadd.f32 %v891, 1.0
  %v893 = vrcp.pop %v892
  %v894 = vmul.f32 1.0, %v893
  %v895 = vmul.f32 %v887, %v872
  %v896 = vadd.f32 %v880, %v895
  %v897 = vtanh.pop %v896
  %v898 = vsub.f32 1.0, %v894
  %v899 = vmul.f32 %v898, %v897
  %v900 = vmul.f32 %v894, %v794
  %v901 = vadd.f32 %v899, %v900
  %s902 = scalar_lea.vmem %s5, 40
  %903 = vst [vmem:[%s902] sm:$0xff] %v901
  %s904 = scalar_lea.vmem %s1, 48
  %v905 = vld [vmem:[%s904] sm:$0xff]
  %907 = vset.pattern.permute.xlu0 0
  %908 = vperm.xlu0 %907, %v905
  %v909 = vpop.permute.xlu0 %908
  %v911 = vmul.f32 %v901, %v909
  %v912 = vpack.c.bf16 %v911, %v911
  %913 = vmatprep.subr.bf16.mxu0 %v187
  %914 = vmatpush1.bf16.msra.mxu0 %v186
  %915 = vmatprep.subr.bf16.mxu0 %v184
  %916 = vmatpush1.bf16.msra.mxu0 %v183
  %917 = vmatprep.subr.bf16.mxu0 %v181
  %918 = vmatpush1.bf16.msra.mxu0 %v180
  %919 = vmatprep.subr.bf16.mxu0 %v178
  %920 = vmatpush1.bf16.msra.mxu0 %v177
  %921 = vmatprep.subr.bf16.mxu0 %v175
  %922 = vmatpush1.bf16.msra.mxu0 %v174
  %923 = vmatprep.subr.bf16.mxu0 %v172
  %924 = vmatpush1.bf16.msra.mxu0 %v171
  %925 = vmatprep.subr.bf16.mxu0 %v169
  %926 = vmatpush1.bf16.msra.mxu0 %v168
  %927 = vmatprep.subr.bf16.mxu0 %v166
  %928 = vmatpush1.bf16.msra.mxu0 %v165
  %929 = vmatprep.subr.bf16.mxu0 0
  %930 = vmatpush2.bf16.msra.mxu0 0
  %931 = vmatprep.subr.bf16.mxu0 0
  %932 = vmatpush2.bf16.msra.mxu0 0
  %933 = vmatprep.subr.bf16.mxu0 0
  %934 = vmatpush2.bf16.msra.mxu0 0
  %935 = vmatprep.subr.bf16.mxu0 0
  %936 = vmatpush2.bf16.msra.mxu0 0
  %937 = vmatprep.subr.bf16.mxu0 0
  %938 = vmatpush2.bf16.msra.mxu0 0
  %939 = vmatprep.subr.bf16.mxu0 0
  %940 = vmatpush2.bf16.msra.mxu0 0
  %941 = vmatprep.subr.bf16.mxu0 0
  %942 = vmatpush2.bf16.msra.mxu0 0
  %943 = vmatprep.subr.bf16.mxu0 0
  %944 = vmatpush2.bf16.msra.mxu0 0
  %945 = vmatprep.mubr.bf16.mxu0 0
  %946 = vmatmul.mubr.bf16.gmra.mxu0 %v912
  %v947 = vpop.f32.mrf.mxu0
  %v948 = vadd.f32 %v73, %v947
  %v949 = vpop.f32.mrf.mxu0
  %v950 = vadd.f32 %v77, %v949
  %v951 = vpop.f32.mrf.mxu0
  %v952 = vpop.f32.mrf.mxu0
  %953 = vdwg.mxu0
  %954 = vmatprep.subr.bf16.mxu0 0
  %955 = vmatpush1.bf16.msra.mxu0 %v188
  %956 = vmatprep.subr.bf16.mxu0 0
  %957 = vmatpush1.bf16.msra.mxu0 %v185
  %958 = vmatprep.subr.bf16.mxu0 0
  %959 = vmatpush1.bf16.msra.mxu0 %v182
  %960 = vmatprep.subr.bf16.mxu0 0
  %961 = vmatpush1.bf16.msra.mxu0 %v179
  %962 = vmatprep.subr.bf16.mxu0 0
  %963 = vmatpush1.bf16.msra.mxu0 %v176
  %964 = vmatprep.subr.bf16.mxu0 0
  %965 = vmatpush1.bf16.msra.mxu0 %v173
  %966 = vmatprep.subr.bf16.mxu0 0
  %967 = vmatpush1.bf16.msra.mxu0 %v170
  %968 = vmatprep.subr.bf16.mxu0 0
  %969 = vmatpush1.bf16.msra.mxu0 %v167
  %970 = vmatprep.subr.bf16.mxu0 0
  %971 = vmatpush2.bf16.msra.mxu0 0
  %972 = vmatprep.subr.bf16.mxu0 0
  %973 = vmatpush2.bf16.msra.mxu0 0
  %974 = vmatprep.subr.bf16.mxu0 0
  %975 = vmatpush2.bf16.msra.mxu0 0
  %976 = vmatprep.subr.bf16.mxu0 0
  %977 = vmatpush2.bf16.msra.mxu0 0
  %978 = vmatprep.subr.bf16.mxu0 0
  %979 = vmatpush2.bf16.msra.mxu0 0
  %980 = vmatprep.subr.bf16.mxu0 0
  %981 = vmatpush2.bf16.msra.mxu0 0
  %982 = vmatprep.subr.bf16.mxu0 0
  %983 = vmatpush2.bf16.msra.mxu0 0
  %984 = vmatprep.subr.bf16.mxu0 0
  %985 = vmatpush2.bf16.msra.mxu0 0
  %986 = vmatprep.mubr.bf16.mxu0 0
  %987 = vmatmul.mubr.bf16.gmra.mxu0 %v912
  %v988 = vpop.f32.mrf.mxu0
  %v989 = vadd.f32 %v81, %v988
  %v990 = vpop.f32.mrf.mxu0
  %v991 = vpop.f32.mrf.mxu0
  %v992 = vpop.f32.mrf.mxu0
  %993 = vdwg.mxu0
  %s994 = scalar_lea.vmem %s0, 144
  %v995 = vld [vmem:[%s994] sm:$0xff]
  %v996 = vld [vmem:[%s994 + $0x8] sm:$0xff]
  %v997 = vld [vmem:[%s994 + $0x10] sm:$0xff]
  %v998 = vadd.f32 %v995, %v948
  %v999 = vxor.u32 %v998, 2147483648
  %v1000 = vmul.f32 %v999, 1.442695
  %v1001 = vpow.pop %v1000
  %v1002 = vadd.f32 %v1001, 1.0
  %v1003 = vrcp.pop %v1002
  %v1004 = vmul.f32 1.0, %v1003
  %v1005 = vadd.f32 %v996, %v950
  %v1006 = vxor.u32 %v1005, 2147483648
  %v1007 = vmul.f32 %v1006, 1.442695
  %v1008 = vpow.pop %v1007
  %v1009 = vadd.f32 %v1008, 1.0
  %v1010 = vrcp.pop %v1009
  %v1011 = vmul.f32 1.0, %v1010
  %v1012 = vmul.f32 %v1004, %v989
  %v1013 = vadd.f32 %v997, %v1012
  %v1014 = vtanh.pop %v1013
  %v1015 = vsub.f32 1.0, %v1011
  %v1016 = vmul.f32 %v1015, %v1014
  %v1017 = vmul.f32 %v1011, %v911
  %v1018 = vadd.f32 %v1016, %v1017
  %s1019 = scalar_lea.vmem %s5, 48
  %1020 = vst [vmem:[%s1019] sm:$0xff] %v1018
  %s1021 = scalar_lea.vmem %s1, 56
  %v1022 = vld [vmem:[%s1021] sm:$0xff]
  %1024 = vset.pattern.permute.xlu0 0
  %1025 = vperm.xlu0 %1024, %v1022
  %v1026 = vpop.permute.xlu0 %1025
  %v1028 = vmul.f32 %v1018, %v1026
  %v1029 = vpack.c.bf16 %v1028, %v1028
  %1030 = vmatprep.subr.bf16.mxu0 %v187
  %1031 = vmatpush1.bf16.msra.mxu0 %v186
  %1032 = vmatprep.subr.bf16.mxu0 %v184
  %1033 = vmatpush1.bf16.msra.mxu0 %v183
  %1034 = vmatprep.subr.bf16.mxu0 %v181
  %1035 = vmatpush1.bf16.msra.mxu0 %v180
  %1036 = vmatprep.subr.bf16.mxu0 %v178
  %1037 = vmatpush1.bf16.msra.mxu0 %v177
  %1038 = vmatprep.subr.bf16.mxu0 %v175
  %1039 = vmatpush1.bf16.msra.mxu0 %v174
  %1040 = vmatprep.subr.bf16.mxu0 %v172
  %1041 = vmatpush1.bf16.msra.mxu0 %v171
  %1042 = vmatprep.subr.bf16.mxu0 %v169
  %1043 = vmatpush1.bf16.msra.mxu0 %v168
  %1044 = vmatprep.subr.bf16.mxu0 %v166
  %1045 = vmatpush1.bf16.msra.mxu0 %v165
  %1046 = vmatprep.subr.bf16.mxu0 0
  %1047 = vmatpush2.bf16.msra.mxu0 0
  %1048 = vmatprep.subr.bf16.mxu0 0
  %1049 = vmatpush2.bf16.msra.mxu0 0
  %1050 = vmatprep.subr.bf16.mxu0 0
  %1051 = vmatpush2.bf16.msra.mxu0 0
  %1052 = vmatprep.subr.bf16.mxu0 0
  %1053 = vmatpush2.bf16.msra.mxu0 0
  %1054 = vmatprep.subr.bf16.mxu0 0
  %1055 = vmatpush2.bf16.msra.mxu0 0
  %1056 = vmatprep.subr.bf16.mxu0 0
  %1057 = vmatpush2.bf16.msra.mxu0 0
  %1058 = vmatprep.subr.bf16.mxu0 0
  %1059 = vmatpush2.bf16.msra.mxu0 0
  %1060 = vmatprep.subr.bf16.mxu0 0
  %1061 = vmatpush2.bf16.msra.mxu0 0
  %1062 = vmatprep.mubr.bf16.mxu0 0
  %1063 = vmatmul.mubr.bf16.gmra.mxu0 %v1029
  %v1064 = vpop.f32.mrf.mxu0
  %v1065 = vadd.f32 %v73, %v1064
  %v1066 = vpop.f32.mrf.mxu0
  %v1067 = vadd.f32 %v77, %v1066
  %v1068 = vpop.f32.mrf.mxu0
  %v1069 = vpop.f32.mrf.mxu0
  %1070 = vdwg.mxu0
  %1071 = vmatprep.subr.bf16.mxu0 0
  %1072 = vmatpush1.bf16.msra.mxu0 %v188
  %1073 = vmatprep.subr.bf16.mxu0 0
  %1074 = vmatpush1.bf16.msra.mxu0 %v185
  %1075 = vmatprep.subr.bf16.mxu0 0
  %1076 = vmatpush1.bf16.msra.mxu0 %v182
  %1077 = vmatprep.subr.bf16.mxu0 0
  %1078 = vmatpush1.bf16.msra.mxu0 %v179
  %1079 = vmatprep.subr.bf16.mxu0 0
  %1080 = vmatpush1.bf16.msra.mxu0 %v176
  %1081 = vmatprep.subr.bf16.mxu0 0
  %1082 = vmatpush1.bf16.msra.mxu0 %v173
  %1083 = vmatprep.subr.bf16.mxu0 0
  %1084 = vmatpush1.bf16.msra.mxu0 %v170
  %1085 = vmatprep.subr.bf16.mxu0 0
  %1086 = vmatpush1.bf16.msra.mxu0 %v167
  %1087 = vmatprep.subr.bf16.mxu0 0
  %1088 = vmatpush2.bf16.msra.mxu0 0
  %1089 = vmatprep.subr.bf16.mxu0 0
  %1090 = vmatpush2.bf16.msra.mxu0 0
  %1091 = vmatprep.subr.bf16.mxu0 0
  %1092 = vmatpush2.bf16.msra.mxu0 0
  %1093 = vmatprep.subr.bf16.mxu0 0
  %1094 = vmatpush2.bf16.msra.mxu0 0
  %1095 = vmatprep.subr.bf16.mxu0 0
  %1096 = vmatpush2.bf16.msra.mxu0 0
  %1097 = vmatprep.subr.bf16.mxu0 0
  %1098 = vmatpush2.bf16.msra.mxu0 0
  %1099 = vmatprep.subr.bf16.mxu0 0
  %1100 = vmatpush2.bf16.msra.mxu0 0
  %1101 = vmatprep.subr.bf16.mxu0 0
  %1102 = vmatpush2.bf16.msra.mxu0 0
  %1103 = vmatprep.mubr.bf16.mxu0 0
  %1104 = vmatmul.mubr.bf16.gmra.mxu0 %v1029
  %v1105 = vpop.f32.mrf.mxu0
  %v1106 = vadd.f32 %v81, %v1105
  %v1107 = vpop.f32.mrf.mxu0
  %v1108 = vpop.f32.mrf.mxu0
  %v1109 = vpop.f32.mrf.mxu0
  %1110 = vdwg.mxu0
  %s1111 = scalar_lea.vmem %s0, 168
  %v1112 = vld [vmem:[%s1111] sm:$0xff]
  %v1113 = vld [vmem:[%s1111 + $0x8] sm:$0xff]
  %v1114 = vld [vmem:[%s1111 + $0x10] sm:$0xff]
  %v1115 = vadd.f32 %v1112, %v1065
  %v1116 = vxor.u32 %v1115, 2147483648
  %v1117 = vmul.f32 %v1116, 1.442695
  %v1118 = vpow.pop %v1117
  %v1119 = vadd.f32 %v1118, 1.0
  %v1120 = vrcp.pop %v1119
  %v1121 = vmul.f32 1.0, %v1120
  %v1122 = vadd.f32 %v1113, %v1067
  %v1123 = vxor.u32 %v1122, 2147483648
  %v1124 = vmul.f32 %v1123, 1.442695
  %v1125 = vpow.pop %v1124
  %v1126 = vadd.f32 %v1125, 1.0
  %v1127 = vrcp.pop %v1126
  %v1128 = vmul.f32 1.0, %v1127
  %v1129 = vmul.f32 %v1121, %v1106
  %v1130 = vadd.f32 %v1114, %v1129
  %v1131 = vtanh.pop %v1130
  %v1132 = vsub.f32 1.0, %v1128
  %v1133 = vmul.f32 %v1132, %v1131
  %v1134 = vmul.f32 %v1128, %v1028
  %v1135 = vadd.f32 %v1133, %v1134
  %s1136 = scalar_lea.vmem %s5, 56
  %1137 = vst [vmem:[%s1136] sm:$0xff] %v1135
  %1138 = vst [vmem:[#allocation2] sm:$0xff] %v1135
  // Predicated region
  $region26: #{agent_forward.3} parent=0 // pred_check
    _
  $region27: #{agent_forward.3} parent=0 // pred_check_branch
    %1140 = sbr.rel (0) target = $region29
  $region28: #{agent_forward.3} parent=0 // pred_region
    _
  $region29: #{agent_forward.3} parent=0 // pred_fallthru
    _
  // Predicated region
  $region30: #{agent_forward.3} parent=0 // pred_check
    _
  $region31: #{agent_forward.3} parent=0 // pred_check_branch
    %1142 = sbr.rel (0) target = $region33
  $region32: #{agent_forward.3} parent=0 // pred_region
    _
  $region33: #{agent_forward.3} parent=0 // pred_fallthru
    _

// kernel: agent_forward.2
$region0: #{agent_forward.2}
  #allocation0 [shape = 'u32[]', space=smem, size = 0x4, offset = 0x4, fixed_abs, tag = 'smem constant byte address 0x4 - core index']
  #allocation1 [shape = 'u32[144,128]{1,0:T(1,128)}', space=vmem, size = 0x12000, scoped, tag = 'internal scratch']
  #allocation2 [shape = 'f32[16,980]{1,0:T(8,128)}', space=vmem, size = 0x10000, scoped, tag = 'scratch operand']
  %s0 = inlined_call_operand.vmem [shape: bf16[49,32,3], index: 0, kind: input, shape index: {}]
  %s1 = inlined_call_operand.vmem [shape: bf16[3,16], index: 1, kind: input, shape index: {}]
  %s2 = inlined_call_operand.vmem [shape: f32[1,16], index: 2, kind: input, shape index: {}]
  %s3 = inlined_call_operand.vmem [shape: bf16[16,20], index: 3, kind: input, shape index: {}]
  %s4 = inlined_call_operand.vmem [shape: f32[1,20], index: 4, kind: input, shape index: {}]
  %s5 = inlined_call_operand.vmem [shape: bf16[980,256], index: 5, kind: input, shape index: {}]
  %s6 = inlined_call_operand.vmem [shape: f32[1,256], index: 6, kind: input, shape index: {}]
  %s7 = inlined_call_operand.vmem [shape: bf16[256,384], index: 7, kind: input, shape index: {}]
  %s8 = inlined_call_operand.vmem [shape: f32[1,384], index: 8, kind: input, shape index: {}]
  %s9 = inlined_call_operand.vmem [shape: f32[32,384], index: 9, kind: output, shape index: {}]
  %s10 = sld [smem:[#allocation0]]
  $region110: #{agent_forward.2} parent=0
    _
  %s12 = ssub.s32 1, %s10
  %s13 = scalar_select 0, %s12, %s10
  $region1: #{agent_forward.2} parent=0
    #allocation3 [shape = 'u8[401408]{0}', space=vmem, size = 0x62000, scoped, tag = 'input window, operand 0']
    loop: start=0, step=1, limit=4
    $region2: #{agent_forward.2} parent=1 // loop_pre_header
      _
    $region3: #{agent_forward.2} parent=1 // loop_header
      %s15 = sphi 0, %s19
      %p16 = scmp.ge.s32.totalorder %s15, 4
      %s25 = sphi 0, %s27
      %s28 = sphi 0, %s25
      %s29 = sphi 0, %s28
      %s45 = sphi 0, %s29
      %s49 = sphi 0, %s49
      %s51 = sphi 0, %s49
      %s52 = sphi 0, %s51
      %s66 = sphi 0, %s52
      %s70 = sphi 0, %s70
      %s72 = sphi 0, %s70
      %s73 = sphi 0, %s72
      %s87 = sphi 0, %s73
      %s91 = sphi 0, %s91
      %s93 = sphi 0, %s91
      %s94 = sphi 0, %s93
      %s108 = sphi 0, %s94
      %s112 = sphi 0, %s112
      %s114 = sphi 0, %s112
      %s115 = sphi 0, %s114
      %s129 = sphi 0, %s115
      %s133 = sphi 0, %s133
      %s135 = sphi 0, %s133
      %s136 = sphi 0, %s135
      %s150 = sphi 0, %s136
      %s154 = sphi 0, %s154
      %s156 = sphi 0, %s154
      %s157 = sphi 0, %s156
      %s171 = sphi 0, %s157
      %s175 = sphi 0, %s175
      %s177 = sphi 0, %s175
      %s178 = sphi 0, %s177
      %s192 = sphi 0, %s178
      %s196 = sphi 0, %s196
      %s198 = sphi 0, %s196
      %s199 = sphi 0, %s198
      %s213 = sphi 0, %s199
      %s219 = sphi 0, %s221
      %s222 = sphi 0, %s219
      %s223 = sphi 0, %s222
      %s239 = sphi 0, %s223
    $region4: #{agent_forward.2} parent=1 // loop_header_branch
      %18 = sbr.rel (%p16) target = $region8
    $region5: #{agent_forward.2} parent=1 // loop_body
      %s20 = ssub.s32 %s15, 1
      %s21 = ssub.s32 %s15, 2
      %s22 = sadd.s32 %s15, 1
      %s23 = ssub.s32 %s15, %s22
      %p24 = scmp.eq.s32.totalorder %s23, 0
      %s26 = sadd.s32 %s25, 1
      %s27 = scalar_select %p24, %s25, %s26
      %p30 = pneg %p24
      %p31 = scmp.eq.s32.totalorder %s15, 1
      %p32 = por %p30, %p31
      %p33 = scmp.ne.s32.totalorder %s25, %s28
      %p34 = scmp.eq.s32.totalorder %s15, 0
      %p35 = por %p33, %p34
      %p36 = scmp.ne.s32.totalorder %s25, %s28
      %p37 = scmp.eq.s32.totalorder %s20, 1
      %p38 = por %p36, %p37
      %p39 = scmp.ne.s32.totalorder %s28, %s29
      %p40 = scmp.eq.s32.totalorder %s20, 0
      %p41 = por %p39, %p40
      %p42 = scmp.ne.s32.totalorder %s28, %s29
      %p43 = scmp.eq.s32.totalorder %s21, 1
      %p44 = por %p42, %p43
      %p46 = scmp.ne.s32.totalorder %s29, %s45
      %p47 = scmp.eq.s32.totalorder %s21, 0
      %p48 = por %p46, %p47
      %s50 = sadd.s32 %s49, 1
      %p53 = scmp.eq.s32.totalorder %s15, 1
      %p54 = scmp.ne.s32.totalorder %s49, %s51
      %p55 = scmp.eq.s32.totalorder %s15, 0
      %p56 = por %p54, %p55
      %p57 = scmp.ne.s32.totalorder %s49, %s51
      %p58 = scmp.eq.s32.totalorder %s20, 1
      %p59 = por %p57, %p58
      %p60 = scmp.ne.s32.totalorder %s51, %s52
      %p61 = scmp.eq.s32.totalorder %s20, 0
      %p62 = por %p60, %p61
      %p63 = scmp.ne.s32.totalorder %s51, %s52
      %p64 = scmp.eq.s32.totalorder %s21, 1
      %p65 = por %p63, %p64
      %p67 = scmp.ne.s32.totalorder %s52, %s66
      %p68 = scmp.eq.s32.totalorder %s21, 0
      %p69 = por %p67, %p68
      %s71 = sadd.s32 %s70, 1
      %p74 = scmp.eq.s32.totalorder %s15, 1
      %p75 = scmp.ne.s32.totalorder %s70, %s72
      %p76 = scmp.eq.s32.totalorder %s15, 0
      %p77 = por %p75, %p76
      %p78 = scmp.ne.s32.totalorder %s70, %s72
      %p79 = scmp.eq.s32.totalorder %s20, 1
      %p80 = por %p78, %p79
      %p81 = scmp.ne.s32.totalorder %s72, %s73
      %p82 = scmp.eq.s32.totalorder %s20, 0
      %p83 = por %p81, %p82
      %p84 = scmp.ne.s32.totalorder %s72, %s73
      %p85 = scmp.eq.s32.totalorder %s21, 1
      %p86 = por %p84, %p85
      %p88 = scmp.ne.s32.totalorder %s73, %s87
      %p89 = scmp.eq.s32.totalorder %s21, 0
      %p90 = por %p88, %p89
      %s92 = sadd.s32 %s91, 1
      %p95 = scmp.eq.s32.totalorder %s15, 1
      %p96 = scmp.ne.s32.totalorder %s91, %s93
      %p97 = scmp.eq.s32.totalorder %s15, 0
      %p98 = por %p96, %p97
      %p99 = scmp.ne.s32.totalorder %s91, %s93
      %p100 = scmp.eq.s32.totalorder %s20, 1
      %p101 = por %p99, %p100
      %p102 = scmp.ne.s32.totalorder %s93, %s94
      %p103 = scmp.eq.s32.totalorder %s20, 0
      %p104 = por %p102, %p103
      %p105 = scmp.ne.s32.totalorder %s93, %s94
      %p106 = scmp.eq.s32.totalorder %s21, 1
      %p107 = por %p105, %p106
      %p109 = scmp.ne.s32.totalorder %s94, %s108
      %p110 = scmp.eq.s32.totalorder %s21, 0
      %p111 = por %p109, %p110
      %s113 = sadd.s32 %s112, 1
      %p116 = scmp.eq.s32.totalorder %s15, 1
      %p117 = scmp.ne.s32.totalorder %s112, %s114
      %p118 = scmp.eq.s32.totalorder %s15, 0
      %p119 = por %p117, %p118
      %p120 = scmp.ne.s32.totalorder %s112, %s114
      %p121 = scmp.eq.s32.totalorder %s20, 1
      %p122 = por %p120, %p121
      %p123 = scmp.ne.s32.totalorder %s114, %s115
      %p124 = scmp.eq.s32.totalorder %s20, 0
      %p125 = por %p123, %p124
      %p126 = scmp.ne.s32.totalorder %s114, %s115
      %p127 = scmp.eq.s32.totalorder %s21, 1
      %p128 = por %p126, %p127
      %p130 = scmp.ne.s32.totalorder %s115, %s129
      %p131 = scmp.eq.s32.totalorder %s21, 0
      %p132 = por %p130, %p131
      %s134 = sadd.s32 %s133, 1
      %p137 = scmp.eq.s32.totalorder %s15, 1
      %p138 = scmp.ne.s32.totalorder %s133, %s135
      %p139 = scmp.eq.s32.totalorder %s15, 0
      %p140 = por %p138, %p139
      %p141 = scmp.ne.s32.totalorder %s133, %s135
      %p142 = scmp.eq.s32.totalorder %s20, 1
      %p143 = por %p141, %p142
      %p144 = scmp.ne.s32.totalorder %s135, %s136
      %p145 = scmp.eq.s32.totalorder %s20, 0
      %p146 = por %p144, %p145
      %p147 = scmp.ne.s32.totalorder %s135, %s136
      %p148 = scmp.eq.s32.totalorder %s21, 1
      %p149 = por %p147, %p148
      %p151 = scmp.ne.s32.totalorder %s136, %s150
      %p152 = scmp.eq.s32.totalorder %s21, 0
      %p153 = por %p151, %p152
      %s155 = sadd.s32 %s154, 1
      %p158 = scmp.eq.s32.totalorder %s15, 1
      %p159 = scmp.ne.s32.totalorder %s154, %s156
      %p160 = scmp.eq.s32.totalorder %s15, 0
      %p161 = por %p159, %p160
      %p162 = scmp.ne.s32.totalorder %s154, %s156
      %p163 = scmp.eq.s32.totalorder %s20, 1
      %p164 = por %p162, %p163
      %p165 = scmp.ne.s32.totalorder %s156, %s157
      %p166 = scmp.eq.s32.totalorder %s20, 0
      %p167 = por %p165, %p166
      %p168 = scmp.ne.s32.totalorder %s156, %s157
      %p169 = scmp.eq.s32.totalorder %s21, 1
      %p170 = por %p168, %p169
      %p172 = scmp.ne.s32.totalorder %s157, %s171
      %p173 = scmp.eq.s32.totalorder %s21, 0
      %p174 = por %p172, %p173
      %s176 = sadd.s32 %s175, 1
      %p179 = scmp.eq.s32.totalorder %s15, 1
      %p180 = scmp.ne.s32.totalorder %s175, %s177
      %p181 = scmp.eq.s32.totalorder %s15, 0
      %p182 = por %p180, %p181
      %p183 = scmp.ne.s32.totalorder %s175, %s177
      %p184 = scmp.eq.s32.totalorder %s20, 1
      %p185 = por %p183, %p184
      %p186 = scmp.ne.s32.totalorder %s177, %s178
      %p187 = scmp.eq.s32.totalorder %s20, 0
      %p188 = por %p186, %p187
      %p189 = scmp.ne.s32.totalorder %s177, %s178
      %p190 = scmp.eq.s32.totalorder %s21, 1
      %p191 = por %p189, %p190
      %p193 = scmp.ne.s32.totalorder %s178, %s192
      %p194 = scmp.eq.s32.totalorder %s21, 0
      %p195 = por %p193, %p194
      %s197 = sadd.s32 %s196, 1
      %p200 = scmp.eq.s32.totalorder %s15, 1
      %p201 = scmp.ne.s32.totalorder %s196, %s198
      %p202 = scmp.eq.s32.totalorder %s15, 0
      %p203 = por %p201, %p202
      %p204 = scmp.ne.s32.totalorder %s196, %s198
      %p205 = scmp.eq.s32.totalorder %s20, 1
      %p206 = por %p204, %p205
      %p207 = scmp.ne.s32.totalorder %s198, %s199
      %p208 = scmp.eq.s32.totalorder %s20, 0
      %p209 = por %p207, %p208
      %p210 = scmp.ne.s32.totalorder %s198, %s199
      %p211 = scmp.eq.s32.totalorder %s21, 1
      %p212 = por %p210, %p211
      %p214 = scmp.ne.s32.totalorder %s199, %s213
      %p215 = scmp.eq.s32.totalorder %s21, 0
      %p216 = por %p214, %p215
      %s217 = ssub.s32 %s15, %s22
      %p218 = scmp.eq.s32.totalorder %s217, 0
      %s220 = sadd.s32 %s219, 1
      %s221 = scalar_select %p218, %s219, %s220
      %p224 = pneg %p218
      %p225 = scmp.eq.s32.totalorder %s15, 1
      %p226 = por %p224, %p225
      %p227 = scmp.ne.s32.totalorder %s219, %s222
      %p228 = scmp.eq.s32.totalorder %s15, 0
      %p229 = por %p227, %p228
      %p230 = scmp.ne.s32.totalorder %s219, %s222
      %p231 = scmp.eq.s32.totalorder %s20, 1
      %p232 = por %p230, %p231
      %p233 = scmp.ne.s32.totalorder %s222, %s223
      %p234 = scmp.eq.s32.totalorder %s20, 0
      %p235 = por %p233, %p234
      %p236 = scmp.ne.s32.totalorder %s222, %s223
      %p237 = scmp.eq.s32.totalorder %s21, 1
      %p238 = por %p236, %p237
      %p240 = scmp.ne.s32.totalorder %s223, %s239
      %p241 = scmp.eq.s32.totalorder %s21, 0
      %p242 = por %p240, %p241
      %p243 = scmp.le.s32.totalorder 1, %s15
      %p244 = scmp.lt.s32.totalorder %s15, 3
      %p245 = pnand %p243, %p244
      %p246 = pneg %p245
      // Predicated region
      $region9: #{agent_forward.2} parent=5 // pred_check
        _
      $region10: #{agent_forward.2} parent=5 // pred_check_branch
        %248 = sbr.rel (%p245) target = $region12
      $region11: #{agent_forward.2} parent=5 // pred_region
        %s249 = ssub.s32 %s15, 1
        // Predicated region
        $region13: #{agent_forward.2} parent=11 // pred_check
          %p250 = pneg %p62
        $region14: #{agent_forward.2} parent=11 // pred_check_branch
          %252 = sbr.rel (%p250) target = $region16
        $region15: #{agent_forward.2} parent=11 // pred_region
          _
        $region16: #{agent_forward.2} parent=11 // pred_fallthru
          _
        // Predicated region
        $region17: #{agent_forward.2} parent=11 // pred_check
          %p253 = pneg %p83
        $region18: #{agent_forward.2} parent=11 // pred_check_branch
          %255 = sbr.rel (%p253) target = $region20
        $region19: #{agent_forward.2} parent=11 // pred_region
          _
        $region20: #{agent_forward.2} parent=11 // pred_fallthru
          _
        // Predicated region
        $region21: #{agent_forward.2} parent=11 // pred_check
          %p256 = pneg %p104
        $region22: #{agent_forward.2} parent=11 // pred_check_branch
          %258 = sbr.rel (%p256) target = $region24
        $region23: #{agent_forward.2} parent=11 // pred_region
          _
        $region24: #{agent_forward.2} parent=11 // pred_fallthru
          _
        // Predicated region
        $region25: #{agent_forward.2} parent=11 // pred_check
          %p259 = pneg %p125
        $region26: #{agent_forward.2} parent=11 // pred_check_branch
          %261 = sbr.rel (%p259) target = $region28
        $region27: #{agent_forward.2} parent=11 // pred_region
          _
        $region28: #{agent_forward.2} parent=11 // pred_fallthru
          _
        // Predicated region
        $region29: #{agent_forward.2} parent=11 // pred_check
          %p262 = pneg %p146
        $region30: #{agent_forward.2} parent=11 // pred_check_branch
          %264 = sbr.rel (%p262) target = $region32
        $region31: #{agent_forward.2} parent=11 // pred_region
          _
        $region32: #{agent_forward.2} parent=11 // pred_fallthru
          _
        // Predicated region
        $region33: #{agent_forward.2} parent=11 // pred_check
          %p265 = pneg %p167
        $region34: #{agent_forward.2} parent=11 // pred_check_branch
          %267 = sbr.rel (%p265) target = $region36
        $region35: #{agent_forward.2} parent=11 // pred_region
          _
        $region36: #{agent_forward.2} parent=11 // pred_fallthru
          _
        // Predicated region
        $region37: #{agent_forward.2} parent=11 // pred_check
          %p268 = pneg %p188
        $region38: #{agent_forward.2} parent=11 // pred_check_branch
          %270 = sbr.rel (%p268) target = $region40
        $region39: #{agent_forward.2} parent=11 // pred_region
          _
        $region40: #{agent_forward.2} parent=11 // pred_fallthru
          _
        // Predicated region
        $region41: #{agent_forward.2} parent=11 // pred_check
          %p271 = pneg %p209
        $region42: #{agent_forward.2} parent=11 // pred_check_branch
          %273 = sbr.rel (%p271) target = $region44
        $region43: #{agent_forward.2} parent=11 // pred_region
          _
        $region44: #{agent_forward.2} parent=11 // pred_fallthru
          _
      $region12: #{agent_forward.2} parent=5 // pred_fallthru
        _
      %p274 = scmp.lt.s32.totalorder %s15, 2
      // Predicated region
      $region45: #{agent_forward.2} parent=5 // pred_check
        %p275 = pneg %p274
      $region46: #{agent_forward.2} parent=5 // pred_check_branch
        %277 = sbr.rel (%p275) target = $region48
      $region47: #{agent_forward.2} parent=5 // pred_region
        // Predicated region
        $region49: #{agent_forward.2} parent=47 // pred_check
          %p278 = pneg %p35
        $region50: #{agent_forward.2} parent=47 // pred_check_branch
          %280 = sbr.rel (%p278) target = $region52
        $region51: #{agent_forward.2} parent=47 // pred_region
          %s281 = sand.u32 %s25, 1
          %s282 = sand.u32 %s25, 1
          %s283 = smul.addr %s282, 392
          %s284 = scalar_lea.vmem [#allocation3], %s283
          %s285 = smul.u32 2, %s15
          %s286 = smul.addr %s285, 4
          %s287 = scalar_lea.vmem %s0, %s286
          // Predicated region
          $region53: #{agent_forward.2} parent=51 // pred_check
            _
          $region54: #{agent_forward.2} parent=51 // pred_check_branch
            %289 = sbr.rel (0) target = $region56
          $region55: #{agent_forward.2} parent=51 // pred_region
            // Predicated region
            $region57: #{agent_forward.2} parent=55 // pred_check
              _
            $region58: #{agent_forward.2} parent=55 // pred_check_branch
              %291 = sbr.rel target = $region60
            $region59: #{agent_forward.2} parent=55 // pred_region
              // Predicated region
              $region72: #{agent_forward.2} parent=59 // pred_check
                _
              $region73: #{agent_forward.2} parent=59 // pred_check_branch
                %501 = sbr.rel (0) target = $region75
              $region74: #{agent_forward.2} parent=59 // pred_region
                loop: start=0, step=1, limit=1
                $region76: #{agent_forward.2} parent=74 // loop_pre_header
                  _
                $region77: #{agent_forward.2} parent=74 // loop_header
                  %s503 = sphi 0, %s507
                  %p504 = scmp.ge.s32.totalorder %s503, 1
                  %s508 = sphi %s287, %s287
                  %s509 = sphi %s284, %s284
                $region78: #{agent_forward.2} parent=74 // loop_header_branch
                  %506 = sbr.rel (%p504) target = $region82
                $region79: #{agent_forward.2} parent=74 // loop_body
                  _
                $region80: #{agent_forward.2} parent=74 // loop_footer
                  %s507 = sadd.s32 1, %s503
                $region81: #{agent_forward.2} parent=74 // loop_footer_branch
                  %502 = sbr.rel target = $region77
                $region82: #{agent_forward.2} parent=74 // loop_exit
                  _
                %s511 = ssub.s32 16, 1
                loop: start=0, step=1, limit=1
                $region83: #{agent_forward.2} parent=74 // loop_pre_header
                  _
                $region84: #{agent_forward.2} parent=74 // loop_header
                  %s513 = sphi 0, %s517
                  %p514 = scmp.ge.s32.totalorder %s513, 1
                  %s518 = sphi %s287, %s287
                  %s519 = sphi %s284, %s284
                $region85: #{agent_forward.2} parent=74 // loop_header_branch
                  %516 = sbr.rel (%p514) target = $region89
                $region86: #{agent_forward.2} parent=74 // loop_body
                  %v520 = vld [vmem:[%s518] sm:%s511]
                  %521 = vst [vmem:[%s519] sm:%s511] %v520
                  %v522 = vld [vmem:[%s518 + $0x4] sm:%s511]
                  %523 = vst [vmem:[%s519 + $0x4] sm:%s511] %v522
                  %v524 = vld [vmem:[%s518 + $0x10] sm:%s511]
                  %525 = vst [vmem:[%s519 + $0x8] sm:%s511] %v524
                  %v526 = vld [vmem:[%s518 + $0x14] sm:%s511]
                  %527 = vst [vmem:[%s519 + $0xc] sm:%s511] %v526
                  %v528 = vld [vmem:[%s518 + $0x20] sm:%s511]
                  %529 = vst [vmem:[%s519 + $0x10] sm:%s511] %v528
                  %v530 = vld [vmem:[%s518 + $0x24] sm:%s511]
                  %531 = vst [vmem:[%s519 + $0x14] sm:%s511] %v530
                  %v532 = vld [vmem:[%s518 + $0x30] sm:%s511]
                  %533 = vst [vmem:[%s519 + $0x18] sm:%s511] %v532
                  %v534 = vld [vmem:[%s518 + $0x34] sm:%s511]
                  %535 = vst [vmem:[%s519 + $0x1c] sm:%s511] %v534
                  %v536 = vld [vmem:[%s518 + $0x40] sm:%s511]
                  %537 = vst [vmem:[%s519 + $0x20] sm:%s511] %v536
                  %v538 = vld [vmem:[%s518 + $0x44] sm:%s511]
                  %539 = vst [vmem:[%s519 + $0x24] sm:%s511] %v538
                  %v540 = vld [vmem:[%s518 + $0x50] sm:%s511]
                  %541 = vst [vmem:[%s519 + $0x28] sm:%s511] %v540
                  %v542 = vld [vmem:[%s518 + $0x54] sm:%s511]
                  %543 = vst [vmem:[%s519 + $0x2c] sm:%s511] %v542
                  %v544 = vld [vmem:[%s518 + $0x60] sm:%s511]
                  %545 = vst [vmem:[%s519 + $0x30] sm:%s511] %v544
                  %v546 = vld [vmem:[%s518 + $0x64] sm:%s511]
                  %547 = vst [vmem:[%s519 + $0x34] sm:%s511] %v546
                  %v548 = vld [vmem:[%s518 + $0x70] sm:%s511]
                  %549 = vst [vmem:[%s519 + $0x38] sm:%s511] %v548
                  %v550 = vld [vmem:[%s518 + $0x74] sm:%s511]
                  %551 = vst [vmem:[%s519 + $0x3c] sm:%s511] %v550
                  %v552 = vld [vmem:[%s518 + $0x80] sm:%s511]
                  %553 = vst [vmem:[%s519 + $0x40] sm:%s511] %v552
                  %v554 = vld [vmem:[%s518 + $0x84] sm:%s511]
                  %555 = vst [vmem:[%s519 + $0x44] sm:%s511] %v554
                  %v556 = vld [vmem:[%s518 + $0x90] sm:%s511]
                  %557 = vst [vmem:[%s519 + $0x48] sm:%s511] %v556
                  %v558 = vld [vmem:[%s518 + $0x94] sm:%s511]
                  %559 = vst [vmem:[%s519 + $0x4c] sm:%s511] %v558
                  %v560 = vld [vmem:[%s518 + $0xa0] sm:%s511]
                  %561 = vst [vmem:[%s519 + $0x50] sm:%s511] %v560
                  %v562 = vld [vmem:[%s518 + $0xa4] sm:%s511]
                  %563 = vst [vmem:[%s519 + $0x54] sm:%s511] %v562
                  %v564 = vld [vmem:[%s518 + $0xb0] sm:%s511]
                  %565 = vst [vmem:[%s519 + $0x58] sm:%s511] %v564
                  %v566 = vld [vmem:[%s518 + $0xb4] sm:%s511]
                  %567 = vst [vmem:[%s519 + $0x5c] sm:%s511] %v566
                  %v568 = vld [vmem:[%s518 + $0xc0] sm:%s511]
                  %569 = vst [vmem:[%s519 + $0x60] sm:%s511] %v568
                  %v570 = vld [vmem:[%s518 + $0xc4] sm:%s511]
                  %571 = vst [vmem:[%s519 + $0x64] sm:%s511] %v570
                  %v572 = vld [vmem:[%s518 + $0xd0] sm:%s511]
                  %573 = vst [vmem:[%s519 + $0x68] sm:%s511] %v572
                  %v574 = vld [vmem:[%s518 + $0xd4] sm:%s511]
                  %575 = vst [vmem:[%s519 + $0x6c] sm:%s511] %v574
                  %v576 = vld [vmem:[%s518 + $0xe0] sm:%s511]
                  %577 = vst [vmem:[%s519 + $0x70] sm:%s511] %v576
                  %v578 = vld [vmem:[%s518 + $0xe4] sm:%s511]
                  %579 = vst [vmem:[%s519 + $0x74] sm:%s511] %v578
                  %v580 = vld [vmem:[%s518 + $0xf0] sm:%s511]
                  %581 = vst [vmem:[%s519 + $0x78] sm:%s511] %v580
                  %v582 = vld [vmem:[%s518 + $0xf4] sm:%s511]
                  %583 = vst [vmem:[%s519 + $0x7c] sm:%s511] %v582
                  %v584 = vld [vmem:[%s518 + $0x100] sm:%s511]
                  %585 = vst [vmem:[%s519 + $0x80] sm:%s511] %v584
                  %v586 = vld [vmem:[%s518 + $0x104] sm:%s511]
                  %587 = vst [vmem:[%s519 + $0x84] sm:%s511] %v586
                  %v588 = vld [vmem:[%s518 + $0x110] sm:%s511]
                  %589 = vst [vmem:[%s519 + $0x88] sm:%s511] %v588
                  %v590 = vld [vmem:[%s518 + $0x114] sm:%s511]
                  %591 = vst [vmem:[%s519 + $0x8c] sm:%s511] %v590
                  %v592 = vld [vmem:[%s518 + $0x120] sm:%s511]
                  %593 = vst [vmem:[%s519 + $0x90] sm:%s511] %v592
                  %v594 = vld [vmem:[%s518 + $0x124] sm:%s511]
                  %595 = vst [vmem:[%s519 + $0x94] sm:%s511] %v594
                  %v596 = vld [vmem:[%s518 + $0x130] sm:%s511]
                  %597 = vst [vmem:[%s519 + $0x98] sm:%s511] %v596
                  %v598 = vld [vmem:[%s518 + $0x134] sm:%s511]
                  %599 = vst [vmem:[%s519 + $0x9c] sm:%s511] %v598
                  %v600 = vld [vmem:[%s518 + $0x140] sm:%s511]
                  %601 = vst [vmem:[%s519 + $0xa0] sm:%s511] %v600
                  %v602 = vld [vmem:[%s518 + $0x144] sm:%s511]
                  %603 = vst [vmem:[%s519 + $0xa4] sm:%s511] %v602
                  %v604 = vld [vmem:[%s518 + $0x150] sm:%s511]
                  %605 = vst [vmem:[%s519 + $0xa8] sm:%s511] %v604
                  %v606 = vld [vmem:[%s518 + $0x154] sm:%s511]
                  %607 = vst [vmem:[%s519 + $0xac] sm:%s511] %v606
                  %v608 = vld [vmem:[%s518 + $0x160] sm:%s511]
                  %609 = vst [vmem:[%s519 + $0xb0] sm:%s511] %v608
                  %v610 = vld [vmem:[%s518 + $0x164] sm:%s511]
                  %611 = vst [vmem:[%s519 + $0xb4] sm:%s511] %v610
                  %v612 = vld [vmem:[%s518 + $0x170] sm:%s511]
                  %613 = vst [vmem:[%s519 + $0xb8] sm:%s511] %v612
                  %v614 = vld [vmem:[%s518 + $0x174] sm:%s511]
                  %615 = vst [vmem:[%s519 + $0xbc] sm:%s511] %v614
                  %v616 = vld [vmem:[%s518 + $0x180] sm:%s511]
                  %617 = vst [vmem:[%s519 + $0xc0] sm:%s511] %v616
                  %v618 = vld [vmem:[%s518 + $0x184] sm:%s511]
                  %619 = vst [vmem:[%s519 + $0xc4] sm:%s511] %v618
                  %v620 = vld [vmem:[%s518 + $0x190] sm:%s511]
                  %621 = vst [vmem:[%s519 + $0xc8] sm:%s511] %v620
                  %v622 = vld [vmem:[%s518 + $0x194] sm:%s511]
                  %623 = vst [vmem:[%s519 + $0xcc] sm:%s511] %v622
                  %v624 = vld [vmem:[%s518 + $0x1a0] sm:%s511]
                  %625 = vst [vmem:[%s519 + $0xd0] sm:%s511] %v624
                  %v626 = vld [vmem:[%s518 + $0x1a4] sm:%s511]
                  %627 = vst [vmem:[%s519 + $0xd4] sm:%s511] %v626
                  %v628 = vld [vmem:[%s518 + $0x1b0] sm:%s511]
                  %629 = vst [vmem:[%s519 + $0xd8] sm:%s511] %v628
                  %v630 = vld [vmem:[%s518 + $0x1b4] sm:%s511]
                  %631 = vst [vmem:[%s519 + $0xdc] sm:%s511] %v630
                  %v632 = vld [vmem:[%s518 + $0x1c0] sm:%s511]
                  %633 = vst [vmem:[%s519 + $0xe0] sm:%s511] %v632
                  %v634 = vld [vmem:[%s518 + $0x1c4] sm:%s511]
                  %635 = vst [vmem:[%s519 + $0xe4] sm:%s511] %v634
                  %v636 = vld [vmem:[%s518 + $0x1d0] sm:%s511]
                  %637 = vst [vmem:[%s519 + $0xe8] sm:%s511] %v636
                  %v638 = vld [vmem:[%s518 + $0x1d4] sm:%s511]
                  %639 = vst [vmem:[%s519 + $0xec] sm:%s511] %v638
                  %v640 = vld [vmem:[%s518 + $0x1e0] sm:%s511]
                  %641 = vst [vmem:[%s519 + $0xf0] sm:%s511] %v640
                  %v642 = vld [vmem:[%s518 + $0x1e4] sm:%s511]
                  %643 = vst [vmem:[%s519 + $0xf4] sm:%s511] %v642
                  %v644 = vld [vmem:[%s518 + $0x1f0] sm:%s511]
                  %645 = vst [vmem:[%s519 + $0xf8] sm:%s511] %v644
                  %v646 = vld [vmem:[%s518 + $0x1f4] sm:%s511]
                  %647 = vst [vmem:[%s519 + $0xfc] sm:%s511] %v646
                  %v648 = vld [vmem:[%s518 + $0x200] sm:%s511]
                  %649 = vst [vmem:[%s519 + $0x100] sm:%s511] %v648
                  %v650 = vld [vmem:[%s518 + $0x204] sm:%s511]
                  %651 = vst [vmem:[%s519 + $0x104] sm:%s511] %v650
                  %v652 = vld [vmem:[%s518 + $0x210] sm:%s511]
                  %653 = vst [vmem:[%s519 + $0x108] sm:%s511] %v652
                  %v654 = vld [vmem:[%s518 + $0x214] sm:%s511]
                  %655 = vst [vmem:[%s519 + $0x10c] sm:%s511] %v654
                  %v656 = vld [vmem:[%s518 + $0x220] sm:%s511]
                  %657 = vst [vmem:[%s519 + $0x110] sm:%s511] %v656
                  %v658 = vld [vmem:[%s518 + $0x224] sm:%s511]
                  %659 = vst [vmem:[%s519 + $0x114] sm:%s511] %v658
                  %v660 = vld [vmem:[%s518 + $0x230] sm:%s511]
                  %661 = vst [vmem:[%s519 + $0x118] sm:%s511] %v660
                  %v662 = vld [vmem:[%s518 + $0x234] sm:%s511]
                  %663 = vst [vmem:[%s519 + $0x11c] sm:%s511] %v662
                  %v664 = vld [vmem:[%s518 + $0x240] sm:%s511]
                  %665 = vst [vmem:[%s519 + $0x120] sm:%s511] %v664
                  %v666 = vld [vmem:[%s518 + $0x244] sm:%s511]
                  %667 = vst [vmem:[%s519 + $0x124] sm:%s511] %v666
                  %v668 = vld [vmem:[%s518 + $0x250] sm:%s511]
                  %669 = vst [vmem:[%s519 + $0x128] sm:%s511] %v668
                  %v670 = vld [vmem:[%s518 + $0x254] sm:%s511]
                  %671 = vst [vmem:[%s519 + $0x12c] sm:%s511] %v670
                  %v672 = vld [vmem:[%s518 + $0x260] sm:%s511]
                  %673 = vst [vmem:[%s519 + $0x130] sm:%s511] %v672
                  %v674 = vld [vmem:[%s518 + $0x264] sm:%s511]
                  %675 = vst [vmem:[%s519 + $0x134] sm:%s511] %v674
                  %v676 = vld [vmem:[%s518 + $0x270] sm:%s511]
                  %677 = vst [vmem:[%s519 + $0x138] sm:%s511] %v676
                  %v678 = vld [vmem:[%s518 + $0x274] sm:%s511]
                  %679 = vst [vmem:[%s519 + $0x13c] sm:%s511] %v678
                  %v680 = vld [vmem:[%s518 + $0x280] sm:%s511]
                  %681 = vst [vmem:[%s519 + $0x140] sm:%s511] %v680
                  %v682 = vld [vmem:[%s518 + $0x284] sm:%s511]
                  %683 = vst [vmem:[%s519 + $0x144] sm:%s511] %v682
                  %v684 = vld [vmem:[%s518 + $0x290] sm:%s511]
                  %685 = vst [vmem:[%s519 + $0x148] sm:%s511] %v684
                  %v686 = vld [vmem:[%s518 + $0x294] sm:%s511]
                  %687 = vst [vmem:[%s519 + $0x14c] sm:%s511] %v686
                  %v688 = vld [vmem:[%s518 + $0x2a0] sm:%s511]
                  %689 = vst [vmem:[%s519 + $0x150] sm:%s511] %v688
                  %v690 = vld [vmem:[%s518 + $0x2a4] sm:%s511]
                  %691 = vst [vmem:[%s519 + $0x154] sm:%s511] %v690
                  %v692 = vld [vmem:[%s518 + $0x2b0] sm:%s511]
                  %693 = vst [vmem:[%s519 + $0x158] sm:%s511] %v692
                  %v694 = vld [vmem:[%s518 + $0x2b4] sm:%s511]
                  %695 = vst [vmem:[%s519 + $0x15c] sm:%s511] %v694
                  %v696 = vld [vmem:[%s518 + $0x2c0] sm:%s511]
                  %697 = vst [vmem:[%s519 + $0x160] sm:%s511] %v696
                  %v698 = vld [vmem:[%s518 + $0x2c4] sm:%s511]
                  %699 = vst [vmem:[%s519 + $0x164] sm:%s511] %v698
                  %v700 = vld [vmem:[%s518 + $0x2d0] sm:%s511]
                  %701 = vst [vmem:[%s519 + $0x168] sm:%s511] %v700
                  %v702 = vld [vmem:[%s518 + $0x2d4] sm:%s511]
                  %703 = vst [vmem:[%s519 + $0x16c] sm:%s511] %v702
                  %v704 = vld [vmem:[%s518 + $0x2e0] sm:%s511]
                  %705 = vst [vmem:[%s519 + $0x170] sm:%s511] %v704
                  %v706 = vld [vmem:[%s518 + $0x2e4] sm:%s511]
                  %707 = vst [vmem:[%s519 + $0x174] sm:%s511] %v706
                  %v708 = vld [vmem:[%s518 + $0x2f0] sm:%s511]
                  %709 = vst [vmem:[%s519 + $0x178] sm:%s511] %v708
                  %v710 = vld [vmem:[%s518 + $0x2f4] sm:%s511]
                  %711 = vst [vmem:[%s519 + $0x17c] sm:%s511] %v710
                  %v712 = vld [vmem:[%s518 + $0x300] sm:%s511]
                  %713 = vst [vmem:[%s519 + $0x180] sm:%s511] %v712
                  %v714 = vld [vmem:[%s518 + $0x304] sm:%s511]
                  %715 = vst [vmem:[%s519 + $0x184] sm:%s511] %v714
                $region87: #{agent_forward.2} parent=74 // loop_footer
                  %s517 = sadd.s32 1, %s513
                $region88: #{agent_forward.2} parent=74 // loop_footer_branch
                  %512 = sbr.rel target = $region84
                $region89: #{agent_forward.2} parent=74 // loop_exit
                  _
              $region75: #{agent_forward.2} parent=59 // pred_fallthru
                _
            $region60: #{agent_forward.2} parent=55 // pred_fallthru
              _
            // Predicated region
            $region61: #{agent_forward.2} parent=55 // pred_check
              _
            $region62: #{agent_forward.2} parent=55 // pred_check_branch
              %293 = sbr.rel (0) target = $region64
            $region63: #{agent_forward.2} parent=55 // pred_region
              %s295 = ssub.s32 16, 1
              loop: start=0, step=1, limit=1
              $region65: #{agent_forward.2} parent=63 // loop_pre_header
                _
              $region66: #{agent_forward.2} parent=63 // loop_header
                %s297 = sphi 0, %s301
                %p298 = scmp.ge.s32.totalorder %s297, 1
                %s302 = sphi %s287, %s287
                %s303 = sphi %s284, %s284
              $region67: #{agent_forward.2} parent=63 // loop_header_branch
                %300 = sbr.rel (%p298) target = $region71
              $region68: #{agent_forward.2} parent=63 // loop_body
                %v304 = vld [vmem:[%s302] sm:%s295]
                %305 = vst [vmem:[%s303] sm:%s295] %v304
                %v306 = vld [vmem:[%s302 + $0x4] sm:%s295]
                %307 = vst [vmem:[%s303 + $0x4] sm:%s295] %v306
                %v308 = vld [vmem:[%s302 + $0x10] sm:%s295]
                %309 = vst [vmem:[%s303 + $0x8] sm:%s295] %v308
                %v310 = vld [vmem:[%s302 + $0x14] sm:%s295]
                %311 = vst [vmem:[%s303 + $0xc] sm:%s295] %v310
                %v312 = vld [vmem:[%s302 + $0x20] sm:%s295]
                %313 = vst [vmem:[%s303 + $0x10] sm:%s295] %v312
                %v314 = vld [vmem:[%s302 + $0x24] sm:%s295]
                %315 = vst [vmem:[%s303 + $0x14] sm:%s295] %v314
                %v316 = vld [vmem:[%s302 + $0x30] sm:%s295]
                %317 = vst [vmem:[%s303 + $0x18] sm:%s295] %v316
                %v318 = vld [vmem:[%s302 + $0x34] sm:%s295]
                %319 = vst [vmem:[%s303 + $0x1c] sm:%s295] %v318
                %v320 = vld [vmem:[%s302 + $0x40] sm:%s295]
                %321 = vst [vmem:[%s303 + $0x20] sm:%s295] %v320
                %v322 = vld [vmem:[%s302 + $0x44] sm:%s295]
                %323 = vst [vmem:[%s303 + $0x24] sm:%s295] %v322
                %v324 = vld [vmem:[%s302 + $0x50] sm:%s295]
                %325 = vst [vmem:[%s303 + $0x28] sm:%s295] %v324
                %v326 = vld [vmem:[%s302 + $0x54] sm:%s295]
                %327 = vst [vmem:[%s303 + $0x2c] sm:%s295] %v326
                %v328 = vld [vmem:[%s302 + $0x60] sm:%s295]
                %329 = vst [vmem:[%s303 + $0x30] sm:%s295] %v328
                %v330 = vld [vmem:[%s302 + $0x64] sm:%s295]
                %331 = vst [vmem:[%s303 + $0x34] sm:%s295] %v330
                %v332 = vld [vmem:[%s302 + $0x70] sm:%s295]
                %333 = vst [vmem:[%s303 + $0x38] sm:%s295] %v332
                %v334 = vld [vmem:[%s302 + $0x74] sm:%s295]
                %335 = vst [vmem:[%s303 + $0x3c] sm:%s295] %v334
                %v336 = vld [vmem:[%s302 + $0x80] sm:%s295]
                %337 = vst [vmem:[%s303 + $0x40] sm:%s295] %v336
                %v338 = vld [vmem:[%s302 + $0x84] sm:%s295]
                %339 = vst [vmem:[%s303 + $0x44] sm:%s295] %v338
                %v340 = vld [vmem:[%s302 + $0x90] sm:%s295]
                %341 = vst [vmem:[%s303 + $0x48] sm:%s295] %v340
                %v342 = vld [vmem:[%s302 + $0x94] sm:%s295]
                %343 = vst [vmem:[%s303 + $0x4c] sm:%s295] %v342
                %v344 = vld [vmem:[%s302 + $0xa0] sm:%s295]
                %345 = vst [vmem:[%s303 + $0x50] sm:%s295] %v344
                %v346 = vld [vmem:[%s302 + $0xa4] sm:%s295]
                %347 = vst [vmem:[%s303 + $0x54] sm:%s295] %v346
                %v348 = vld [vmem:[%s302 + $0xb0] sm:%s295]
                %349 = vst [vmem:[%s303 + $0x58] sm:%s295] %v348
                %v350 = vld [vmem:[%s302 + $0xb4] sm:%s295]
                %351 = vst [vmem:[%s303 + $0x5c] sm:%s295] %v350
                %v352 = vld [vmem:[%s302 + $0xc0] sm:%s295]
                %353 = vst [vmem:[%s303 + $0x60] sm:%s295] %v352
                %v354 = vld [vmem:[%s302 + $0xc4] sm:%s295]
                %355 = vst [vmem:[%s303 + $0x64] sm:%s295] %v354
                %v356 = vld [vmem:[%s302 + $0xd0] sm:%s295]
                %357 = vst [vmem:[%s303 + $0x68] sm:%s295] %v356
                %v358 = vld [vmem:[%s302 + $0xd4] sm:%s295]
                %359 = vst [vmem:[%s303 + $0x6c] sm:%s295] %v358
                %v360 = vld [vmem:[%s302 + $0xe0] sm:%s295]
                %361 = vst [vmem:[%s303 + $0x70] sm:%s295] %v360
                %v362 = vld [vmem:[%s302 + $0xe4] sm:%s295]
                %363 = vst [vmem:[%s303 + $0x74] sm:%s295] %v362
                %v364 = vld [vmem:[%s302 + $0xf0] sm:%s295]
                %365 = vst [vmem:[%s303 + $0x78] sm:%s295] %v364
                %v366 = vld [vmem:[%s302 + $0xf4] sm:%s295]
                %367 = vst [vmem:[%s303 + $0x7c] sm:%s295] %v366
                %v368 = vld [vmem:[%s302 + $0x100] sm:%s295]
                %369 = vst [vmem:[%s303 + $0x80] sm:%s295] %v368
                %v370 = vld [vmem:[%s302 + $0x104] sm:%s295]
                %371 = vst [vmem:[%s303 + $0x84] sm:%s295] %v370
                %v372 = vld [vmem:[%s302 + $0x110] sm:%s295]
                %373 = vst [vmem:[%s303 + $0x88] sm:%s295] %v372
                %v374 = vld [vmem:[%s302 + $0x114] sm:%s295]
                %375 = vst [vmem:[%s303 + $0x8c] sm:%s295] %v374
                %v376 = vld [vmem:[%s302 + $0x120] sm:%s295]
                %377 = vst [vmem:[%s303 + $0x90] sm:%s295] %v376
                %v378 = vld [vmem:[%s302 + $0x124] sm:%s295]
                %379 = vst [vmem:[%s303 + $0x94] sm:%s295] %v378
                %v380 = vld [vmem:[%s302 + $0x130] sm:%s295]
                %381 = vst [vmem:[%s303 + $0x98] sm:%s295] %v380
                %v382 = vld [vmem:[%s302 + $0x134] sm:%s295]
                %383 = vst [vmem:[%s303 + $0x9c] sm:%s295] %v382
                %v384 = vld [vmem:[%s302 + $0x140] sm:%s295]
                %385 = vst [vmem:[%s303 + $0xa0] sm:%s295] %v384
                %v386 = vld [vmem:[%s302 + $0x144] sm:%s295]
                %387 = vst [vmem:[%s303 + $0xa4] sm:%s295] %v386
                %v388 = vld [vmem:[%s302 + $0x150] sm:%s295]
                %389 = vst [vmem:[%s303 + $0xa8] sm:%s295] %v388
                %v390 = vld [vmem:[%s302 + $0x154] sm:%s295]
                %391 = vst [vmem:[%s303 + $0xac] sm:%s295] %v390
                %v392 = vld [vmem:[%s302 + $0x160] sm:%s295]
                %393 = vst [vmem:[%s303 + $0xb0] sm:%s295] %v392
                %v394 = vld [vmem:[%s302 + $0x164] sm:%s295]
                %395 = vst [vmem:[%s303 + $0xb4] sm:%s295] %v394
                %v396 = vld [vmem:[%s302 + $0x170] sm:%s295]
                %397 = vst [vmem:[%s303 + $0xb8] sm:%s295] %v396
                %v398 = vld [vmem:[%s302 + $0x174] sm:%s295]
                %399 = vst [vmem:[%s303 + $0xbc] sm:%s295] %v398
                %v400 = vld [vmem:[%s302 + $0x180] sm:%s295]
                %401 = vst [vmem:[%s303 + $0xc0] sm:%s295] %v400
                %v402 = vld [vmem:[%s302 + $0x184] sm:%s295]
                %403 = vst [vmem:[%s303 + $0xc4] sm:%s295] %v402
                %v404 = vld [vmem:[%s302 + $0x190] sm:%s295]
                %405 = vst [vmem:[%s303 + $0xc8] sm:%s295] %v404
                %v406 = vld [vmem:[%s302 + $0x194] sm:%s295]
                %407 = vst [vmem:[%s303 + $0xcc] sm:%s295] %v406
                %v408 = vld [vmem:[%s302 + $0x1a0] sm:%s295]
                %409 = vst [vmem:[%s303 + $0xd0] sm:%s295] %v408
                %v410 = vld [vmem:[%s302 + $0x1a4] sm:%s295]
                %411 = vst [vmem:[%s303 + $0xd4] sm:%s295] %v410
                %v412 = vld [vmem:[%s302 + $0x1b0] sm:%s295]
                %413 = vst [vmem:[%s303 + $0xd8] sm:%s295] %v412
                %v414 = vld [vmem:[%s302 + $0x1b4] sm:%s295]
                %415 = vst [vmem:[%s303 + $0xdc] sm:%s295] %v414
                %v416 = vld [vmem:[%s302 + $0x1c0] sm:%s295]
                %417 = vst [vmem:[%s303 + $0xe0] sm:%s295] %v416
                %v418 = vld [vmem:[%s302 + $0x1c4] sm:%s295]
                %419 = vst [vmem:[%s303 + $0xe4] sm:%s295] %v418
                %v420 = vld [vmem:[%s302 + $0x1d0] sm:%s295]
                %421 = vst [vmem:[%s303 + $0xe8] sm:%s295] %v420
                %v422 = vld [vmem:[%s302 + $0x1d4] sm:%s295]
                %423 = vst [vmem:[%s303 + $0xec] sm:%s295] %v422
                %v424 = vld [vmem:[%s302 + $0x1e0] sm:%s295]
                %425 = vst [vmem:[%s303 + $0xf0] sm:%s295] %v424
                %v426 = vld [vmem:[%s302 + $0x1e4] sm:%s295]
                %427 = vst [vmem:[%s303 + $0xf4] sm:%s295] %v426
                %v428 = vld [vmem:[%s302 + $0x1f0] sm:%s295]
                %429 = vst [vmem:[%s303 + $0xf8] sm:%s295] %v428
                %v430 = vld [vmem:[%s302 + $0x1f4] sm:%s295]
                %431 = vst [vmem:[%s303 + $0xfc] sm:%s295] %v430
                %v432 = vld [vmem:[%s302 + $0x200] sm:%s295]
                %433 = vst [vmem:[%s303 + $0x100] sm:%s295] %v432
                %v434 = vld [vmem:[%s302 + $0x204] sm:%s295]
                %435 = vst [vmem:[%s303 + $0x104] sm:%s295] %v434
                %v436 = vld [vmem:[%s302 + $0x210] sm:%s295]
                %437 = vst [vmem:[%s303 + $0x108] sm:%s295] %v436
                %v438 = vld [vmem:[%s302 + $0x214] sm:%s295]
                %439 = vst [vmem:[%s303 + $0x10c] sm:%s295] %v438
                %v440 = vld [vmem:[%s302 + $0x220] sm:%s295]
                %441 = vst [vmem:[%s303 + $0x110] sm:%s295] %v440
                %v442 = vld [vmem:[%s302 + $0x224] sm:%s295]
                %443 = vst [vmem:[%s303 + $0x114] sm:%s295] %v442
                %v444 = vld [vmem:[%s302 + $0x230] sm:%s295]
                %445 = vst [vmem:[%s303 + $0x118] sm:%s295] %v444
                %v446 = vld [vmem:[%s302 + $0x234] sm:%s295]
                %447 = vst [vmem:[%s303 + $0x11c] sm:%s295] %v446
                %v448 = vld [vmem:[%s302 + $0x240] sm:%s295]
                %449 = vst [vmem:[%s303 + $0x120] sm:%s295] %v448
                %v450 = vld [vmem:[%s302 + $0x244] sm:%s295]
                %451 = vst [vmem:[%s303 + $0x124] sm:%s295] %v450
                %v452 = vld [vmem:[%s302 + $0x250] sm:%s295]
                %453 = vst [vmem:[%s303 + $0x128] sm:%s295] %v452
                %v454 = vld [vmem:[%s302 + $0x254] sm:%s295]
                %455 = vst [vmem:[%s303 + $0x12c] sm:%s295] %v454
                %v456 = vld [vmem:[%s302 + $0x260] sm:%s295]
                %457 = vst [vmem:[%s303 + $0x130] sm:%s295] %v456
                %v458 = vld [vmem:[%s302 + $0x264] sm:%s295]
                %459 = vst [vmem:[%s303 + $0x134] sm:%s295] %v458
                %v460 = vld [vmem:[%s302 + $0x270] sm:%s295]
                %461 = vst [vmem:[%s303 + $0x138] sm:%s295] %v460
                %v462 = vld [vmem:[%s302 + $0x274] sm:%s295]
                %463 = vst [vmem:[%s303 + $0x13c] sm:%s295] %v462
                %v464 = vld [vmem:[%s302 + $0x280] sm:%s295]
                %465 = vst [vmem:[%s303 + $0x140] sm:%s295] %v464
                %v466 = vld [vmem:[%s302 + $0x284] sm:%s295]
                %467 = vst [vmem:[%s303 + $0x144] sm:%s295] %v466
                %v468 = vld [vmem:[%s302 + $0x290] sm:%s295]
                %469 = vst [vmem:[%s303 + $0x148] sm:%s295] %v468
                %v470 = vld [vmem:[%s302 + $0x294] sm:%s295]
                %471 = vst [vmem:[%s303 + $0x14c] sm:%s295] %v470
                %v472 = vld [vmem:[%s302 + $0x2a0] sm:%s295]
                %473 = vst [vmem:[%s303 + $0x150] sm:%s295] %v472
                %v474 = vld [vmem:[%s302 + $0x2a4] sm:%s295]
                %475 = vst [vmem:[%s303 + $0x154] sm:%s295] %v474
                %v476 = vld [vmem:[%s302 + $0x2b0] sm:%s295]
                %477 = vst [vmem:[%s303 + $0x158] sm:%s295] %v476
                %v478 = vld [vmem:[%s302 + $0x2b4] sm:%s295]
                %479 = vst [vmem:[%s303 + $0x15c] sm:%s295] %v478
                %v480 = vld [vmem:[%s302 + $0x2c0] sm:%s295]
                %481 = vst [vmem:[%s303 + $0x160] sm:%s295] %v480
                %v482 = vld [vmem:[%s302 + $0x2c4] sm:%s295]
                %483 = vst [vmem:[%s303 + $0x164] sm:%s295] %v482
                %v484 = vld [vmem:[%s302 + $0x2d0] sm:%s295]
                %485 = vst [vmem:[%s303 + $0x168] sm:%s295] %v484
                %v486 = vld [vmem:[%s302 + $0x2d4] sm:%s295]
                %487 = vst [vmem:[%s303 + $0x16c] sm:%s295] %v486
                %v488 = vld [vmem:[%s302 + $0x2e0] sm:%s295]
                %489 = vst [vmem:[%s303 + $0x170] sm:%s295] %v488
                %v490 = vld [vmem:[%s302 + $0x2e4] sm:%s295]
                %491 = vst [vmem:[%s303 + $0x174] sm:%s295] %v490
                %v492 = vld [vmem:[%s302 + $0x2f0] sm:%s295]
                %493 = vst [vmem:[%s303 + $0x178] sm:%s295] %v492
                %v494 = vld [vmem:[%s302 + $0x2f4] sm:%s295]
                %495 = vst [vmem:[%s303 + $0x17c] sm:%s295] %v494
                %v496 = vld [vmem:[%s302 + $0x300] sm:%s295]
                %497 = vst [vmem:[%s303 + $0x180] sm:%s295] %v496
                %v498 = vld [vmem:[%s302 + $0x304] sm:%s295]
                %499 = vst [vmem:[%s303 + $0x184] sm:%s295] %v498
              $region69: #{agent_forward.2} parent=63 // loop_footer
                %s301 = sadd.s32 1, %s297
              $region70: #{agent_forward.2} parent=63 // loop_footer_branch
                %296 = sbr.rel target = $region66
              $region71: #{agent_forward.2} parent=63 // loop_exit
                _
            $region64: #{agent_forward.2} parent=55 // pred_fallthru
              _
          $region56: #{agent_forward.2} parent=51 // pred_fallthru
            _
          %716 = vnop
        $region52: #{agent_forward.2} parent=47 // pred_fallthru
          _
      $region48: #{agent_forward.2} parent=5 // pred_fallthru
        _
      %p717 = scmp.le.s32.totalorder 1, %s15
      %p718 = scmp.lt.s32.totalorder %s15, 3
      %p719 = pnand %p717, %p718
      %p720 = pneg %p719
      // Predicated region
      $region90: #{agent_forward.2} parent=5 // pred_check
        _
      $region91: #{agent_forward.2} parent=5 // pred_check_branch
        %722 = sbr.rel (%p719) target = $region93
      $region92: #{agent_forward.2} parent=5 // pred_region
        %s723 = ssub.s32 %s15, 1
        %s724 = sand.u32 %s28, 1
        %s725 = sand.u32 %s28, 1
        %s726 = smul.addr %s725, 392
        %s727 = scalar_lea.vmem [#allocation3], %s726
        // Predicated region
        $region94: #{agent_forward.2} parent=92 // pred_check
          %p728 = pneg %p41
        $region95: #{agent_forward.2} parent=92 // pred_check_branch
          %730 = sbr.rel (%p728) target = $region97
        $region96: #{agent_forward.2} parent=92 // pred_region
          _
        $region97: #{agent_forward.2} parent=92 // pred_fallthru
          _
        %s731 = sand.u32 %s28, 1
        %s732 = sand.u32 %s28, 1
        %s733 = smul.addr %s732, 392
        %s734 = scalar_lea.vmem [#allocation3], %s733
        %p735 = pneg %p41
        %p736 = pneg %p38
        %p737 = pneg %p62
        %p738 = pneg %p59
        %p739 = pneg %p83
        %p740 = pneg %p80
        %p741 = pneg %p104
        %p742 = pneg %p101
        %p743 = pneg %p125
        %p744 = pneg %p122
        %p745 = pneg %p146
        %p746 = pneg %p143
        %p747 = pneg %p167
        %p748 = pneg %p164
        %p749 = pneg %p188
        %p750 = pneg %p185
        %p751 = pneg %p209
        %p752 = pneg %p206
        %p753 = pneg %p235
        %p754 = pneg %p232
        %s755 = smul.u32 2, %s20
        %p756 = scmp.lt.s32.totalorder %s755, 3
        %s757 = scalar_select %p756, %s755, 3
        %s758 = smul.addr %s757, 3
        %s759 = smul.addr %s758, 8
        %s760 = scalar_lea.vmem %s9, %s759
        %s761 = smul.u32 2, %s20
        %s762 = smul.u32 2, %s20
        %p763 = scmp.lt.s32.totalorder %s762, 3
        %s764 = scalar_select %p763, %s762, 3
        %s765 = smul.addr %s764, 3
        %s766 = smul.addr %s765, 8
        %s767 = scalar_lea.vmem %s9, %s766
        %s768 = smul.u32 2, %s20
        %v770 = vld [vmem:[%s727] sm:$0xf]
        %v771 = vld [vmem:[%s727 + $0x4] sm:$0xf]
        %v772 = vld [vmem:[%s727 + $0x8] sm:$0xf]
        %v773 = vld [vmem:[%s727 + $0xc] sm:$0xf]
        %v774 = vld [vmem:[%s727 + $0x10] sm:$0xf]
        %v775 = vld [vmem:[%s727 + $0x14] sm:$0xf]
        %v776 = vld [vmem:[%s727 + $0x18] sm:$0xf]
        %v777 = vld [vmem:[%s727 + $0x1c] sm:$0xf]
        %v778 = vld [vmem:[%s727 + $0x20] sm:$0xf]
        %v779 = vld [vmem:[%s727 + $0x24] sm:$0xf]
        %v780 = vld [vmem:[%s727 + $0x28] sm:$0xf]
        %v781 = vld [vmem:[%s727 + $0x2c] sm:$0xf]
        %v782 = vld [vmem:[%s727 + $0x30] sm:$0xf]
        %v783 = vld [vmem:[%s727 + $0x34] sm:$0xf]
        %v784 = vld [vmem:[%s727 + $0x38] sm:$0xf]
        %v785 = vld [vmem:[%s727 + $0x3c] sm:$0xf]
        %v786 = vld [vmem:[%s727 + $0x40] sm:$0xf]
        %v787 = vld [vmem:[%s727 + $0x44] sm:$0xf]
        %v788 = vld [vmem:[%s727 + $0x48] sm:$0xf]
        %v789 = vld [vmem:[%s727 + $0x4c] sm:$0xf]
        %v790 = vld [vmem:[%s727 + $0x50] sm:$0xf]
        %v791 = vld [vmem:[%s727 + $0x54] sm:$0xf]
        %v792 = vld [vmem:[%s727 + $0x58] sm:$0xf]
        %v793 = vld [vmem:[%s727 + $0x5c] sm:$0xf]
        %v794 = vld [vmem:[%s727 + $0x60] sm:$0xf]
        %v795 = vld [vmem:[%s727 + $0x64] sm:$0xf]
        %v796 = vld [vmem:[%s727 + $0x68] sm:$0xf]
        %v797 = vld [vmem:[%s727 + $0x6c] sm:$0xf]
        %v798 = vld [vmem:[%s727 + $0x70] sm:$0xf]
        %v799 = vld [vmem:[%s727 + $0x74] sm:$0xf]
        %v800 = vld [vmem:[%s727 + $0x78] sm:$0xf]
        %v801 = vld [vmem:[%s727 + $0x7c] sm:$0xf]
        %v802 = vld [vmem:[%s727 + $0x80] sm:$0xf]
        %v803 = vld [vmem:[%s727 + $0x84] sm:$0xf]
        %v804 = vld [vmem:[%s727 + $0x88] sm:$0xf]
        %v805 = vld [vmem:[%s727 + $0x8c] sm:$0xf]
        %v806 = vld [vmem:[%s727 + $0x90] sm:$0xf]
        %v807 = vld [vmem:[%s727 + $0x94] sm:$0xf]
        %v808 = vld [vmem:[%s727 + $0x98] sm:$0xf]
        %v809 = vld [vmem:[%s727 + $0x9c] sm:$0xf]
        %v810 = vld [vmem:[%s727 + $0xa0] sm:$0xf]
        %v811 = vld [vmem:[%s727 + $0xa4] sm:$0xf]
        %v812 = vld [vmem:[%s727 + $0xa8] sm:$0xf]
        %v813 = vld [vmem:[%s727 + $0xac] sm:$0xf]
        %v814 = vld [vmem:[%s727 + $0xb0] sm:$0xf]
        %v815 = vld [vmem:[%s727 + $0xb4] sm:$0xf]
        %v816 = vld [vmem:[%s727 + $0xb8] sm:$0xf]
        %v817 = vld [vmem:[%s727 + $0xbc] sm:$0xf]
        %v818 = vld [vmem:[%s727 + $0xc0] sm:$0xf]
        %v819 = vld [vmem:[%s727 + $0xc4] sm:$0xf]
        %v820 = vld [vmem:[%s727 + $0xc8] sm:$0xf]
        %v821 = vld [vmem:[%s727 + $0xcc] sm:$0xf]
        %v822 = vld [vmem:[%s727 + $0xd0] sm:$0xf]
        %v823 = vld [vmem:[%s727 + $0xd4] sm:$0xf]
        %v824 = vld [vmem:[%s727 + $0xd8] sm:$0xf]
        %v825 = vld [vmem:[%s727 + $0xdc] sm:$0xf]
        %v826 = vld [vmem:[%s727 + $0xe0] sm:$0xf]
        %v827 = vld [vmem:[%s727 + $0xe4] sm:$0xf]
        %v828 = vld [vmem:[%s727 + $0xe8] sm:$0xf]
        %v829 = vld [vmem:[%s727 + $0xec] sm:$0xf]
        %v830 = vld [vmem:[%s727 + $0xf0] sm:$0xf]
        %v831 = vld [vmem:[%s727 + $0xf4] sm:$0xf]
        %v832 = vld [vmem:[%s727 + $0xf8] sm:$0xf]
        %v833 = vld [vmem:[%s727 + $0xfc] sm:$0xf]
        %v834 = vld [vmem:[%s727 + $0x100] sm:$0xf]
        %v835 = vld [vmem:[%s727 + $0x104] sm:$0xf]
        %v836 = vld [vmem:[%s727 + $0x108] sm:$0xf]
        %v837 = vld [vmem:[%s727 + $0x10c] sm:$0xf]
        %v838 = vld [vmem:[%s727 + $0x110] sm:$0xf]
        %v839 = vld [vmem:[%s727 + $0x114] sm:$0xf]
        %v840 = vld [vmem:[%s727 + $0x118] sm:$0xf]
        %v841 = vld [vmem:[%s727 + $0x11c] sm:$0xf]
        %v842 = vld [vmem:[%s727 + $0x120] sm:$0xf]
        %v843 = vld [vmem:[%s727 + $0x124] sm:$0xf]
        %v844 = vld [vmem:[%s727 + $0x128] sm:$0xf]
        %v845 = vld [vmem:[%s727 + $0x12c] sm:$0xf]
        %v846 = vld [vmem:[%s727 + $0x130] sm:$0xf]
        %v847 = vld [vmem:[%s727 + $0x134] sm:$0xf]
        %v848 = vld [vmem:[%s727 + $0x138] sm:$0xf]
        %v849 = vld [vmem:[%s727 + $0x13c] sm:$0xf]
        %v850 = vld [vmem:[%s727 + $0x140] sm:$0xf]
        %v851 = vld [vmem:[%s727 + $0x144] sm:$0xf]
        %v852 = vld [vmem:[%s727 + $0x148] sm:$0xf]
        %v853 = vld [vmem:[%s727 + $0x14c] sm:$0xf]
        %v854 = vld [vmem:[%s727 + $0x150] sm:$0xf]
        %v855 = vld [vmem:[%s727 + $0x154] sm:$0xf]
        %v856 = vld [vmem:[%s727 + $0x158] sm:$0xf]
        %v857 = vld [vmem:[%s727 + $0x15c] sm:$0xf]
        %v858 = vld [vmem:[%s727 + $0x160] sm:$0xf]
        %v859 = vld [vmem:[%s727 + $0x164] sm:$0xf]
        %v860 = vld [vmem:[%s727 + $0x168] sm:$0xf]
        %v861 = vld [vmem:[%s727 + $0x16c] sm:$0xf]
        %v862 = vld [vmem:[%s727 + $0x170] sm:$0xf]
        %v863 = vld [vmem:[%s727 + $0x174] sm:$0xf]
        %v864 = vld [vmem:[%s727 + $0x178] sm:$0xf]
        %v865 = vld [vmem:[%s727 + $0x17c] sm:$0xf]
        %v866 = vld [vmem:[%s727 + $0x180] sm:$0xf]
        %v867 = vld [vmem:[%s727 + $0x184] sm:$0xf]
        %v868 = vld [vmem:[%s1] sm:$0x3]
        %v869 = vld [vmem:[%s2] sm:$0x1]
        %v871 = vlaneseq
        %v872 = vshrl.u32 %v871, 7
        %v873 = vsub.s32 0, %v872
        %v874 = vrot.slane %v869, %v873
        %v974 = vunpack.c.l.b16 %v770
        %v975 = vunpack.c.l.b16 %v771
        %v976 = vunpack.c.l.b16 %v772
        %v977 = vunpack.c.l.b16 %v773
        %v978 = vunpack.c.l.b16 %v774
        %v979 = vunpack.c.l.b16 %v775
        %v980 = vunpack.c.l.b16 %v776
        %v981 = vunpack.c.l.b16 %v777
        %v982 = vunpack.c.l.b16 %v778
        %v983 = vunpack.c.l.b16 %v779
        %v984 = vunpack.c.l.b16 %v780
        %v985 = vunpack.c.l.b16 %v781
        %v986 = vunpack.c.l.b16 %v782
        %v987 = vunpack.c.l.b16 %v783
        %v988 = vunpack.c.l.b16 %v784
        %v989 = vunpack.c.l.b16 %v785
        %v990 = vunpack.c.l.b16 %v786
        %v991 = vunpack.c.l.b16 %v787
        %v992 = vunpack.c.l.b16 %v788
        %v993 = vunpack.c.l.b16 %v789
        %v994 = vunpack.c.l.b16 %v790
        %v995 = vunpack.c.l.b16 %v791
        %v996 = vunpack.c.l.b16 %v792
        %v997 = vunpack.c.l.b16 %v793
        %v998 = vunpack.c.l.b16 %v794
        %v999 = vunpack.c.l.b16 %v795
        %v1000 = vunpack.c.l.b16 %v796
        %v1001 = vunpack.c.l.b16 %v797
        %v1002 = vunpack.c.l.b16 %v798
        %v1003 = vunpack.c.l.b16 %v799
        %v1004 = vunpack.c.l.b16 %v800
        %v1005 = vunpack.c.l.b16 %v801
        %v1006 = vunpack.c.l.b16 %v802
        %v1007 = vunpack.c.l.b16 %v803
        %v1008 = vunpack.c.l.b16 %v804
        %v1009 = vunpack.c.l.b16 %v805
        %v1010 = vunpack.c.l.b16 %v806
        %v1011 = vunpack.c.l.b16 %v807
        %v1012 = vunpack.c.l.b16 %v808
        %v1013 = vunpack.c.l.b16 %v809
        %v1014 = vunpack.c.l.b16 %v810
        %v1015 = vunpack.c.l.b16 %v811
        %v1016 = vunpack.c.l.b16 %v812
        %v1017 = vunpack.c.l.b16 %v813
        %v1018 = vunpack.c.l.b16 %v814
        %v1019 = vunpack.c.l.b16 %v815
        %v1020 = vunpack.c.l.b16 %v816
        %v1021 = vunpack.c.l.b16 %v817
        %v1022 = vunpack.c.l.b16 %v818
        %v1023 = vunpack.c.l.b16 %v819
        %v1024 = vunpack.c.l.b16 %v820
        %v1025 = vunpack.c.l.b16 %v821
        %v1026 = vunpack.c.l.b16 %v822
        %v1027 = vunpack.c.l.b16 %v823
        %v1028 = vunpack.c.l.b16 %v824
        %v1029 = vunpack.c.l.b16 %v825
        %v1030 = vunpack.c.l.b16 %v826
        %v1031 = vunpack.c.l.b16 %v827
        %v1032 = vunpack.c.l.b16 %v828
        %v1033 = vunpack.c.l.b16 %v829
        %v1034 = vunpack.c.l.b16 %v830
        %v1035 = vunpack.c.l.b16 %v831
        %v1036 = vunpack.c.l.b16 %v832
        %v1037 = vunpack.c.l.b16 %v833
        %v1038 = vunpack.c.l.b16 %v834
        %v1039 = vunpack.c.l.b16 %v835
        %v1040 = vunpack.c.l.b16 %v836
        %v1041 = vunpack.c.l.b16 %v837
        %v1042 = vunpack.c.l.b16 %v838
        %v1043 = vunpack.c.l.b16 %v839
        %v1044 = vunpack.c.l.b16 %v840
        %v1045 = vunpack.c.l.b16 %v841
        %v1046 = vunpack.c.l.b16 %v842
        %v1047 = vunpack.c.l.b16 %v843
        %v1048 = vunpack.c.l.b16 %v844
        %v1049 = vunpack.c.l.b16 %v845
        %v1050 = vunpack.c.l.b16 %v846
        %v1051 = vunpack.c.l.b16 %v847
        %v1052 = vunpack.c.l.b16 %v848
        %v1053 = vunpack.c.l.b16 %v849
        %v1054 = vunpack.c.l.b16 %v850
        %v1055 = vunpack.c.l.b16 %v851
        %v1056 = vunpack.c.l.b16 %v852
        %v1057 = vunpack.c.l.b16 %v853
        %v1058 = vunpack.c.l.b16 %v854
        %v1059 = vunpack.c.l.b16 %v855
        %v1060 = vunpack.c.l.b16 %v856
        %v1061 = vunpack.c.l.b16 %v857
        %v1062 = vunpack.c.l.b16 %v858
        %v1063 = vunpack.c.l.b16 %v859
        %v1064 = vunpack.c.l.b16 %v860
        %v1065 = vunpack.c.l.b16 %v861
        %v1066 = vunpack.c.l.b16 %v862
        %v1067 = vunpack.c.l.b16 %v863
        %v1068 = vunpack.c.l.b16 %v864
        %v1069 = vunpack.c.l.b16 %v865
        %v1070 = vunpack.c.l.b16 %v866
        %v1071 = vunpack.c.l.b16 %v867
        %v1072 = vpack.c.b16 %v975, %v974
        %v1073 = vpack.c.b16 %v977, %v976
        %v1074 = vpack.c.b16 %v979, %v978
        %v1075 = vpack.c.b16 %v981, %v980
        %v1076 = vpack.c.b16 %v983, %v982
        %v1077 = vpack.c.b16 %v985, %v984
        %v1078 = vpack.c.b16 %v987, %v986
        %v1079 = vpack.c.b16 %v989, %v988
        %v1080 = vpack.c.b16 %v991, %v990
        %v1081 = vpack.c.b16 %v993, %v992
        %v1082 = vpack.c.b16 %v995, %v994
        %v1083 = vpack.c.b16 %v997, %v996
        %v1084 = vpack.c.b16 %v999, %v998
        %v1085 = vpack.c.b16 %v1001, %v1000
        %v1086 = vpack.c.b16 %v1003, %v1002
        %v1087 = vpack.c.b16 %v1005, %v1004
        %v1088 = vpack.c.b16 %v1007, %v1006
        %v1089 = vpack.c.b16 %v1009, %v1008
        %v1090 = vpack.c.b16 %v1011, %v1010
        %v1091 = vpack.c.b16 %v1013, %v1012
        %v1092 = vpack.c.b16 %v1015, %v1014
        %v1093 = vpack.c.b16 %v1017, %v1016
        %v1094 = vpack.c.b16 %v1019, %v1018
        %v1095 = vpack.c.b16 %v1021, %v1020
        %v1096 = vpack.c.b16 %v1023, %v1022
        %v1097 = vpack.c.b16 %v1025, %v1024
        %v1098 = vpack.c.b16 %v1027, %v1026
        %v1099 = vpack.c.b16 %v1029, %v1028
        %v1100 = vpack.c.b16 %v1031, %v1030
        %v1101 = vpack.c.b16 %v1033, %v1032
        %v1102 = vpack.c.b16 %v1035, %v1034
        %v1103 = vpack.c.b16 %v1037, %v1036
        %v1104 = vpack.c.b16 %v1039, %v1038
        %v1105 = vpack.c.b16 %v1041, %v1040
        %v1106 = vpack.c.b16 %v1043, %v1042
        %v1107 = vpack.c.b16 %v1045, %v1044
        %v1108 = vpack.c.b16 %v1047, %v1046
        %v1109 = vpack.c.b16 %v1049, %v1048
        %v1110 = vpack.c.b16 %v1051, %v1050
        %v1111 = vpack.c.b16 %v1053, %v1052
        %v1112 = vpack.c.b16 %v1055, %v1054
        %v1113 = vpack.c.b16 %v1057, %v1056
        %v1114 = vpack.c.b16 %v1059, %v1058
        %v1115 = vpack.c.b16 %v1061, %v1060
        %v1116 = vpack.c.b16 %v1063, %v1062
        %v1117 = vpack.c.b16 %v1065, %v1064
        %v1118 = vpack.c.b16 %v1067, %v1066
        %v1119 = vpack.c.b16 %v1069, %v1068
        %v1120 = vpack.c.b16 %v1071, %v1070
        %vm1121 = vcmask 23552
        %v1123 = vsel %vm1121, %v1072, 0
        %v1126 = vsel %vm1121, %v1073, 0
        %v1129 = vsel %vm1121, %v1074, 0
        %v1132 = vsel %vm1121, %v1075, 0
        %v1135 = vsel %vm1121, %v1076, 0
        %v1138 = vsel %vm1121, %v1077, 0
        %v1141 = vsel %vm1121, %v1078, 0
        %v1144 = vsel %vm1121, %v1079, 0
        %v1147 = vsel %vm1121, %v1080, 0
        %v1150 = vsel %vm1121, %v1081, 0
        %v1153 = vsel %vm1121, %v1082, 0
        %v1156 = vsel %vm1121, %v1083, 0
        %v1159 = vsel %vm1121, %v1084, 0
        %v1162 = vsel %vm1121, %v1085, 0
        %v1165 = vsel %vm1121, %v1086, 0
        %v1168 = vsel %vm1121, %v1087, 0
        %v1171 = vsel %vm1121, %v1088, 0
        %v1174 = vsel %vm1121, %v1089, 0
        %v1177 = vsel %vm1121, %v1090, 0
        %v1180 = vsel %vm1121, %v1091, 0
        %v1183 = vsel %vm1121, %v1092, 0
        %v1186 = vsel %vm1121, %v1093, 0
        %v1189 = vsel %vm1121, %v1094, 0
        %v1192 = vsel %vm1121, %v1095, 0
        %v1195 = vsel %vm1121, %v1096, 0
        %v1198 = vsel %vm1121, %v1097, 0
        %v1201 = vsel %vm1121, %v1098, 0
        %v1204 = vsel %vm1121, %v1099, 0
        %v1207 = vsel %vm1121, %v1100, 0
        %v1210 = vsel %vm1121, %v1101, 0
        %v1213 = vsel %vm1121, %v1102, 0
        %v1216 = vsel %vm1121, %v1103, 0
        %v1219 = vsel %vm1121, %v1104, 0
        %v1222 = vsel %vm1121, %v1105, 0
        %v1225 = vsel %vm1121, %v1106, 0
        %v1228 = vsel %vm1121, %v1107, 0
        %v1231 = vsel %vm1121, %v1108, 0
        %v1234 = vsel %vm1121, %v1109, 0
        %v1237 = vsel %vm1121, %v1110, 0
        %v1240 = vsel %vm1121, %v1111, 0
        %v1243 = vsel %vm1121, %v1112, 0
        %v1246 = vsel %vm1121, %v1113, 0
        %v1249 = vsel %vm1121, %v1114, 0
        %v1252 = vsel %vm1121, %v1115, 0
        %v1255 = vsel %vm1121, %v1116, 0
        %v1258 = vsel %vm1121, %v1117, 0
        %v1261 = vsel %vm1121, %v1118, 0
        %v1264 = vsel %vm1121, %v1119, 0
        %v1267 = vsel %vm1121, %v1120, 0
        %vm1269 = vcmask 1040384
        %vm1270 = vcmask 1041408
        %v1271 = vsel %vm1269, 4294967295, 65535
        %v1272 = vsel %vm1270, %v1271, 0
        %v1274 = vand.u32 %v868, %v1272
        %1276 = vmatprep.subr.bf16.mxu0 0
        %1277 = vmatpush1.bf16.msra.mxu0 0
        %1278 = vmatprep.subr.bf16.mxu0 0
        %1279 = vmatpush1.bf16.msra.mxu0 0
        %1280 = vmatprep.subr.bf16.mxu0 0
        %1281 = vmatpush1.bf16.msra.mxu0 0
        %1282 = vmatprep.subr.bf16.mxu0 0
        %1283 = vmatpush1.bf16.msra.mxu0 0
        %1284 = vmatprep.subr.bf16.mxu0 0
        %1285 = vmatpush1.bf16.msra.mxu0 0
        %1286 = vmatprep.subr.bf16.mxu0 0
        %1287 = vmatpush1.bf16.msra.mxu0 0
        %1288 = vmatprep.subr.bf16.mxu0 0
        %1289 = vmatpush1.bf16.msra.mxu0 0
        %1290 = vmatprep.subr.bf16.mxu0 0
        %1291 = vmatpush1.bf16.msra.mxu0 %v1274
        %1292 = vmatprep.subr.bf16.mxu0 0
        %1293 = vmatpush2.bf16.msra.mxu0 0
        %1294 = vmatprep.subr.bf16.mxu0 0
        %1295 = vmatpush2.bf16.msra.mxu0 0
        %1296 = vmatprep.subr.bf16.mxu0 0
        %1297 = vmatpush2.bf16.msra.mxu0 0
        %1298 = vmatprep.subr.bf16.mxu0 0
        %1299 = vmatpush2.bf16.msra.mxu0 0
        %1300 = vmatprep.subr.bf16.mxu0 0
        %1301 = vmatpush2.bf16.msra.mxu0 0
        %1302 = vmatprep.subr.bf16.mxu0 0
        %1303 = vmatpush2.bf16.msra.mxu0 0
        %1304 = vmatprep.subr.bf16.mxu0 0
        %1305 = vmatpush2.bf16.msra.mxu0 0
        %1306 = vmatprep.subr.bf16.mxu0 0
        %1307 = vmatpush2.bf16.msra.mxu0 0
        %1308 = vmatprep.mubr.bf16.mxu0 0
        %1309 = vmatmul.mubr.bf16.gmra.mxu0 %v1123
        %v1310 = vpop.f32.mrf.mxu0
        %v1311 = vadd.f32 %v874, %v1310
        %v1312 = vpop.f32.mrf.mxu0
        %v1313 = vpop.f32.mrf.mxu0
        %v1314 = vadd.f32 %v874, %v1313
        %v1315 = vpop.f32.mrf.mxu0
        %1316 = vmatprep.mubr.bf16.mxu0 0
        %1317 = vmatmul.mubr.bf16.gmra.mxu0 %v1126
        %v1318 = vpop.f32.mrf.mxu0
        %v1319 = vadd.f32 %v874, %v1318
        %v1320 = vpop.f32.mrf.mxu0
        %v1321 = vpop.f32.mrf.mxu0
        %v1322 = vadd.f32 %v874, %v1321
        %v1323 = vpop.f32.mrf.mxu0
        %1324 = vmatprep.mubr.bf16.mxu0 0
        %1325 = vmatmul.mubr.bf16.gmra.mxu0 %v1129
        %v1326 = vpop.f32.mrf.mxu0
        %v1327 = vadd.f32 %v874, %v1326
        %v1328 = vpop.f32.mrf.mxu0
        %v1329 = vpop.f32.mrf.mxu0
        %v1330 = vadd.f32 %v874, %v1329
        %v1331 = vpop.f32.mrf.mxu0
        %1332 = vmatprep.mubr.bf16.mxu0 0
        %1333 = vmatmul.mubr.bf16.gmra.mxu0 %v1132
        %v1334 = vpop.f32.mrf.mxu0
        %v1335 = vadd.f32 %v874, %v1334
        %v1336 = vpop.f32.mrf.mxu0
        %v1337 = vpop.f32.mrf.mxu0
        %v1338 = vadd.f32 %v874, %v1337
        %v1339 = vpop.f32.mrf.mxu0
        %1340 = vmatprep.mubr.bf16.mxu0 0
        %1341 = vmatmul.mubr.bf16.gmra.mxu0 %v1135
        %v1342 = vpop.f32.mrf.mxu0
        %v1343 = vadd.f32 %v874, %v1342
        %v1344 = vpop.f32.mrf.mxu0
        %v1345 = vpop.f32.mrf.mxu0
        %v1346 = vadd.f32 %v874, %v1345
        %v1347 = vpop.f32.mrf.mxu0
        %1348 = vmatprep.mubr.bf16.mxu0 0
        %1349 = vmatmul.mubr.bf16.gmra.mxu0 %v1138
        %v1350 = vpop.f32.mrf.mxu0
        %v1351 = vadd.f32 %v874, %v1350
        %v1352 = vpop.f32.mrf.mxu0
        %v1353 = vpop.f32.mrf.mxu0
        %v1354 = vadd.f32 %v874, %v1353
        %v1355 = vpop.f32.mrf.mxu0
        %1356 = vmatprep.mubr.bf16.mxu0 0
        %1357 = vmatmul.mubr.bf16.gmra.mxu0 %v1141
        %v1358 = vpop.f32.mrf.mxu0
        %v1359 = vadd.f32 %v874, %v1358
        %v1360 = vpop.f32.mrf.mxu0
        %v1361 = vpop.f32.mrf.mxu0
        %v1362 = vadd.f32 %v874, %v1361
        %v1363 = vpop.f32.mrf.mxu0
        %1364 = vmatprep.mubr.bf16.mxu0 0
        %1365 = vmatmul.mubr.bf16.gmra.mxu0 %v1144
        %v1366 = vpop.f32.mrf.mxu0
        %v1367 = vadd.f32 %v874, %v1366
        %v1368 = vpop.f32.mrf.mxu0
        %v1369 = vpop.f32.mrf.mxu0
        %v1370 = vadd.f32 %v874, %v1369
        %v1371 = vpop.f32.mrf.mxu0
        %1372 = vmatprep.mubr.bf16.mxu0 0
        %1373 = vmatmul.mubr.bf16.gmra.mxu0 %v1147
        %v1374 = vpop.f32.mrf.mxu0
        %v1375 = vadd.f32 %v874, %v1374
        %v1376 = vpop.f32.mrf.mxu0
        %v1377 = vpop.f32.mrf.mxu0
        %v1378 = vadd.f32 %v874, %v1377
        %v1379 = vpop.f32.mrf.mxu0
        %1380 = vmatprep.mubr.bf16.mxu0 0
        %1381 = vmatmul.mubr.bf16.gmra.mxu0 %v1150
        %v1382 = vpop.f32.mrf.mxu0
        %v1383 = vadd.f32 %v874, %v1382
        %v1384 = vpop.f32.mrf.mxu0
        %v1385 = vpop.f32.mrf.mxu0
        %v1386 = vadd.f32 %v874, %v1385
        %v1387 = vpop.f32.mrf.mxu0
        %1388 = vmatprep.mubr.bf16.mxu0 0
        %1389 = vmatmul.mubr.bf16.gmra.mxu0 %v1153
        %v1390 = vpop.f32.mrf.mxu0
        %v1391 = vadd.f32 %v874, %v1390
        %v1392 = vpop.f32.mrf.mxu0
        %v1393 = vpop.f32.mrf.mxu0
        %v1394 = vadd.f32 %v874, %v1393
        %v1395 = vpop.f32.mrf.mxu0
        %1396 = vmatprep.mubr.bf16.mxu0 0
        %1397 = vmatmul.mubr.bf16.gmra.mxu0 %v1156
        %v1398 = vpop.f32.mrf.mxu0
        %v1399 = vadd.f32 %v874, %v1398
        %v1400 = vpop.f32.mrf.mxu0
        %v1401 = vpop.f32.mrf.mxu0
        %v1402 = vadd.f32 %v874, %v1401
        %v1403 = vpop.f32.mrf.mxu0
        %1404 = vmatprep.mubr.bf16.mxu0 0
        %1405 = vmatmul.mubr.bf16.gmra.mxu0 %v1159
        %v1406 = vpop.f32.mrf.mxu0
        %v1407 = vadd.f32 %v874, %v1406
        %v1408 = vpop.f32.mrf.mxu0
        %v1409 = vpop.f32.mrf.mxu0
        %v1410 = vadd.f32 %v874, %v1409
        %v1411 = vpop.f32.mrf.mxu0
        %1412 = vmatprep.mubr.bf16.mxu0 0
        %1413 = vmatmul.mubr.bf16.gmra.mxu0 %v1162
        %v1414 = vpop.f32.mrf.mxu0
        %v1415 = vadd.f32 %v874, %v1414
        %v1416 = vpop.f32.mrf.mxu0
        %v1417 = vpop.f32.mrf.mxu0
        %v1418 = vadd.f32 %v874, %v1417
        %v1419 = vpop.f32.mrf.mxu0
        %1420 = vmatprep.mubr.bf16.mxu0 0
        %1421 = vmatmul.mubr.bf16.gmra.mxu0 %v1165
        %v1422 = vpop.f32.mrf.mxu0
        %v1423 = vadd.f32 %v874, %v1422
        %v1424 = vpop.f32.mrf.mxu0
        %v1425 = vpop.f32.mrf.mxu0
        %v1426 = vadd.f32 %v874, %v1425
        %v1427 = vpop.f32.mrf.mxu0
        %1428 = vmatprep.mubr.bf16.mxu0 0
        %1429 = vmatmul.mubr.bf16.gmra.mxu0 %v1168
        %v1430 = vpop.f32.mrf.mxu0
        %v1431 = vadd.f32 %v874, %v1430
        %v1432 = vpop.f32.mrf.mxu0
        %v1433 = vpop.f32.mrf.mxu0
        %v1434 = vadd.f32 %v874, %v1433
        %v1435 = vpop.f32.mrf.mxu0
        %1436 = vmatprep.mubr.bf16.mxu0 0
        %1437 = vmatmul.mubr.bf16.gmra.mxu0 %v1171
        %v1438 = vpop.f32.mrf.mxu0
        %v1439 = vadd.f32 %v874, %v1438
        %v1440 = vpop.f32.mrf.mxu0
        %v1441 = vpop.f32.mrf.mxu0
        %v1442 = vadd.f32 %v874, %v1441
        %v1443 = vpop.f32.mrf.mxu0
        %1444 = vmatprep.mubr.bf16.mxu0 0
        %1445 = vmatmul.mubr.bf16.gmra.mxu0 %v1174
        %v1446 = vpop.f32.mrf.mxu0
        %v1447 = vadd.f32 %v874, %v1446
        %v1448 = vpop.f32.mrf.mxu0
        %v1449 = vpop.f32.mrf.mxu0
        %v1450 = vadd.f32 %v874, %v1449
        %v1451 = vpop.f32.mrf.mxu0
        %1452 = vmatprep.mubr.bf16.mxu0 0
        %1453 = vmatmul.mubr.bf16.gmra.mxu0 %v1177
        %v1454 = vpop.f32.mrf.mxu0
        %v1455 = vadd.f32 %v874, %v1454
        %v1456 = vpop.f32.mrf.mxu0
        %v1457 = vpop.f32.mrf.mxu0
        %v1458 = vadd.f32 %v874, %v1457
        %v1459 = vpop.f32.mrf.mxu0
        %1460 = vmatprep.mubr.bf16.mxu0 0
        %1461 = vmatmul.mubr.bf16.gmra.mxu0 %v1180
        %v1462 = vpop.f32.mrf.mxu0
        %v1463 = vadd.f32 %v874, %v1462
        %v1464 = vpop.f32.mrf.mxu0
        %v1465 = vpop.f32.mrf.mxu0
        %v1466 = vadd.f32 %v874, %v1465
        %v1467 = vpop.f32.mrf.mxu0
        %1468 = vmatprep.mubr.bf16.mxu0 0
        %1469 = vmatmul.mubr.bf16.gmra.mxu0 %v1183
        %v1470 = vpop.f32.mrf.mxu0
        %v1471 = vadd.f32 %v874, %v1470
        %v1472 = vpop.f32.mrf.mxu0
        %v1473 = vpop.f32.mrf.mxu0
        %v1474 = vadd.f32 %v874, %v1473
        %v1475 = vpop.f32.mrf.mxu0
        %1476 = vmatprep.mubr.bf16.mxu0 0
        %1477 = vmatmul.mubr.bf16.gmra.mxu0 %v1186
        %v1478 = vpop.f32.mrf.mxu0
        %v1479 = vadd.f32 %v874, %v1478
        %v1480 = vpop.f32.mrf.mxu0
        %v1481 = vpop.f32.mrf.mxu0
        %v1482 = vadd.f32 %v874, %v1481
        %v1483 = vpop.f32.mrf.mxu0
        %1484 = vmatprep.mubr.bf16.mxu0 0
        %1485 = vmatmul.mubr.bf16.gmra.mxu0 %v1189
        %v1486 = vpop.f32.mrf.mxu0
        %v1487 = vadd.f32 %v874, %v1486
        %v1488 = vpop.f32.mrf.mxu0
        %v1489 = vpop.f32.mrf.mxu0
        %v1490 = vadd.f32 %v874, %v1489
        %v1491 = vpop.f32.mrf.mxu0
        %1492 = vmatprep.mubr.bf16.mxu0 0
        %1493 = vmatmul.mubr.bf16.gmra.mxu0 %v1192
        %v1494 = vpop.f32.mrf.mxu0
        %v1495 = vadd.f32 %v874, %v1494
        %v1496 = vpop.f32.mrf.mxu0
        %v1497 = vpop.f32.mrf.mxu0
        %v1498 = vadd.f32 %v874, %v1497
        %v1499 = vpop.f32.mrf.mxu0
        %1500 = vmatprep.mubr.bf16.mxu0 0
        %1501 = vmatmul.mubr.bf16.gmra.mxu0 %v1195
        %v1502 = vpop.f32.mrf.mxu0
        %v1503 = vadd.f32 %v874, %v1502
        %v1504 = vpop.f32.mrf.mxu0
        %v1505 = vpop.f32.mrf.mxu0
        %v1506 = vadd.f32 %v874, %v1505
        %v1507 = vpop.f32.mrf.mxu0
        %1508 = vmatprep.mubr.bf16.mxu0 0
        %1509 = vmatmul.mubr.bf16.gmra.mxu0 %v1198
        %v1510 = vpop.f32.mrf.mxu0
        %v1511 = vadd.f32 %v874, %v1510
        %v1512 = vpop.f32.mrf.mxu0
        %v1513 = vpop.f32.mrf.mxu0
        %v1514 = vadd.f32 %v874, %v1513
        %v1515 = vpop.f32.mrf.mxu0
        %1516 = vmatprep.mubr.bf16.mxu0 0
        %1517 = vmatmul.mubr.bf16.gmra.mxu0 %v1201
        %v1518 = vpop.f32.mrf.mxu0
        %v1519 = vadd.f32 %v874, %v1518
        %v1520 = vpop.f32.mrf.mxu0
        %v1521 = vpop.f32.mrf.mxu0
        %v1522 = vadd.f32 %v874, %v1521
        %v1523 = vpop.f32.mrf.mxu0
        %1524 = vmatprep.mubr.bf16.mxu0 0
        %1525 = vmatmul.mubr.bf16.gmra.mxu0 %v1204
        %v1526 = vpop.f32.mrf.mxu0
        %v1527 = vadd.f32 %v874, %v1526
        %v1528 = vpop.f32.mrf.mxu0
        %v1529 = vpop.f32.mrf.mxu0
        %v1530 = vadd.f32 %v874, %v1529
        %v1531 = vpop.f32.mrf.mxu0
        %1532 = vmatprep.mubr.bf16.mxu0 0
        %1533 = vmatmul.mubr.bf16.gmra.mxu0 %v1207
        %v1534 = vpop.f32.mrf.mxu0
        %v1535 = vadd.f32 %v874, %v1534
        %v1536 = vpop.f32.mrf.mxu0
        %v1537 = vpop.f32.mrf.mxu0
        %v1538 = vadd.f32 %v874, %v1537
        %v1539 = vpop.f32.mrf.mxu0
        %1540 = vmatprep.mubr.bf16.mxu0 0
        %1541 = vmatmul.mubr.bf16.gmra.mxu0 %v1210
        %v1542 = vpop.f32.mrf.mxu0
        %v1543 = vadd.f32 %v874, %v1542
        %v1544 = vpop.f32.mrf.mxu0
        %v1545 = vpop.f32.mrf.mxu0
        %v1546 = vadd.f32 %v874, %v1545
        %v1547 = vpop.f32.mrf.mxu0
        %1548 = vmatprep.mubr.bf16.mxu0 0
        %1549 = vmatmul.mubr.bf16.gmra.mxu0 %v1213
        %v1550 = vpop.f32.mrf.mxu0
        %v1551 = vadd.f32 %v874, %v1550
        %v1552 = vpop.f32.mrf.mxu0
        %v1553 = vpop.f32.mrf.mxu0
        %v1554 = vadd.f32 %v874, %v1553
        %v1555 = vpop.f32.mrf.mxu0
        %1556 = vmatprep.mubr.bf16.mxu0 0
        %1557 = vmatmul.mubr.bf16.gmra.mxu0 %v1216
        %v1558 = vpop.f32.mrf.mxu0
        %v1559 = vadd.f32 %v874, %v1558
        %v1560 = vpop.f32.mrf.mxu0
        %v1561 = vpop.f32.mrf.mxu0
        %v1562 = vadd.f32 %v874, %v1561
        %v1563 = vpop.f32.mrf.mxu0
        %1564 = vmatprep.mubr.bf16.mxu0 0
        %1565 = vmatmul.mubr.bf16.gmra.mxu0 %v1219
        %v1566 = vpop.f32.mrf.mxu0
        %v1567 = vadd.f32 %v874, %v1566
        %v1568 = vpop.f32.mrf.mxu0
        %v1569 = vpop.f32.mrf.mxu0
        %v1570 = vadd.f32 %v874, %v1569
        %v1571 = vpop.f32.mrf.mxu0
        %1572 = vmatprep.mubr.bf16.mxu0 0
        %1573 = vmatmul.mubr.bf16.gmra.mxu0 %v1222
        %v1574 = vpop.f32.mrf.mxu0
        %v1575 = vadd.f32 %v874, %v1574
        %v1576 = vpop.f32.mrf.mxu0
        %v1577 = vpop.f32.mrf.mxu0
        %v1578 = vadd.f32 %v874, %v1577
        %v1579 = vpop.f32.mrf.mxu0
        %1580 = vmatprep.mubr.bf16.mxu0 0
        %1581 = vmatmul.mubr.bf16.gmra.mxu0 %v1225
        %v1582 = vpop.f32.mrf.mxu0
        %v1583 = vadd.f32 %v874, %v1582
        %v1584 = vpop.f32.mrf.mxu0
        %v1585 = vpop.f32.mrf.mxu0
        %v1586 = vadd.f32 %v874, %v1585
        %v1587 = vpop.f32.mrf.mxu0
        %1588 = vmatprep.mubr.bf16.mxu0 0
        %1589 = vmatmul.mubr.bf16.gmra.mxu0 %v1228
        %v1590 = vpop.f32.mrf.mxu0
        %v1591 = vadd.f32 %v874, %v1590
        %v1592 = vpop.f32.mrf.mxu0
        %v1593 = vpop.f32.mrf.mxu0
        %v1594 = vadd.f32 %v874, %v1593
        %v1595 = vpop.f32.mrf.mxu0
        %1596 = vmatprep.mubr.bf16.mxu0 0
        %1597 = vmatmul.mubr.bf16.gmra.mxu0 %v1231
        %v1598 = vpop.f32.mrf.mxu0
        %v1599 = vadd.f32 %v874, %v1598
        %v1600 = vpop.f32.mrf.mxu0
        %v1601 = vpop.f32.mrf.mxu0
        %v1602 = vadd.f32 %v874, %v1601
        %v1603 = vpop.f32.mrf.mxu0
        %1604 = vmatprep.mubr.bf16.mxu0 0
        %1605 = vmatmul.mubr.bf16.gmra.mxu0 %v1234
        %v1606 = vpop.f32.mrf.mxu0
        %v1607 = vadd.f32 %v874, %v1606
        %v1608 = vpop.f32.mrf.mxu0
        %v1609 = vpop.f32.mrf.mxu0
        %v1610 = vadd.f32 %v874, %v1609
        %v1611 = vpop.f32.mrf.mxu0
        %1612 = vmatprep.mubr.bf16.mxu0 0
        %1613 = vmatmul.mubr.bf16.gmra.mxu0 %v1237
        %v1614 = vpop.f32.mrf.mxu0
        %v1615 = vadd.f32 %v874, %v1614
        %v1616 = vpop.f32.mrf.mxu0
        %v1617 = vpop.f32.mrf.mxu0
        %v1618 = vadd.f32 %v874, %v1617
        %v1619 = vpop.f32.mrf.mxu0
        %1620 = vmatprep.mubr.bf16.mxu0 0
        %1621 = vmatmul.mubr.bf16.gmra.mxu0 %v1240
        %v1622 = vpop.f32.mrf.mxu0
        %v1623 = vadd.f32 %v874, %v1622
        %v1624 = vpop.f32.mrf.mxu0
        %v1625 = vpop.f32.mrf.mxu0
        %v1626 = vadd.f32 %v874, %v1625
        %v1627 = vpop.f32.mrf.mxu0
        %1628 = vmatprep.mubr.bf16.mxu0 0
        %1629 = vmatmul.mubr.bf16.gmra.mxu0 %v1243
        %v1630 = vpop.f32.mrf.mxu0
        %v1631 = vadd.f32 %v874, %v1630
        %v1632 = vpop.f32.mrf.mxu0
        %v1633 = vpop.f32.mrf.mxu0
        %v1634 = vadd.f32 %v874, %v1633
        %v1635 = vpop.f32.mrf.mxu0
        %1636 = vmatprep.mubr.bf16.mxu0 0
        %1637 = vmatmul.mubr.bf16.gmra.mxu0 %v1246
        %v1638 = vpop.f32.mrf.mxu0
        %v1639 = vadd.f32 %v874, %v1638
        %v1640 = vpop.f32.mrf.mxu0
        %v1641 = vpop.f32.mrf.mxu0
        %v1642 = vadd.f32 %v874, %v1641
        %v1643 = vpop.f32.mrf.mxu0
        %1644 = vmatprep.mubr.bf16.mxu0 0
        %1645 = vmatmul.mubr.bf16.gmra.mxu0 %v1249
        %v1646 = vpop.f32.mrf.mxu0
        %v1647 = vadd.f32 %v874, %v1646
        %v1648 = vpop.f32.mrf.mxu0
        %v1649 = vpop.f32.mrf.mxu0
        %v1650 = vadd.f32 %v874, %v1649
        %v1651 = vpop.f32.mrf.mxu0
        %1652 = vmatprep.mubr.bf16.mxu0 0
        %1653 = vmatmul.mubr.bf16.gmra.mxu0 %v1252
        %v1654 = vpop.f32.mrf.mxu0
        %v1655 = vadd.f32 %v874, %v1654
        %v1656 = vpop.f32.mrf.mxu0
        %v1657 = vpop.f32.mrf.mxu0
        %v1658 = vadd.f32 %v874, %v1657
        %v1659 = vpop.f32.mrf.mxu0
        %1660 = vmatprep.mubr.bf16.mxu0 0
        %1661 = vmatmul.mubr.bf16.gmra.mxu0 %v1255
        %v1662 = vpop.f32.mrf.mxu0
        %v1663 = vadd.f32 %v874, %v1662
        %v1664 = vpop.f32.mrf.mxu0
        %v1665 = vpop.f32.mrf.mxu0
        %v1666 = vadd.f32 %v874, %v1665
        %v1667 = vpop.f32.mrf.mxu0
        %1668 = vmatprep.mubr.bf16.mxu0 0
        %1669 = vmatmul.mubr.bf16.gmra.mxu0 %v1258
        %v1670 = vpop.f32.mrf.mxu0
        %v1671 = vadd.f32 %v874, %v1670
        %v1672 = vpop.f32.mrf.mxu0
        %v1673 = vpop.f32.mrf.mxu0
        %v1674 = vadd.f32 %v874, %v1673
        %v1675 = vpop.f32.mrf.mxu0
        %1676 = vmatprep.mubr.bf16.mxu0 0
        %1677 = vmatmul.mubr.bf16.gmra.mxu0 %v1261
        %v1678 = vpop.f32.mrf.mxu0
        %v1679 = vadd.f32 %v874, %v1678
        %v1680 = vpop.f32.mrf.mxu0
        %v1681 = vpop.f32.mrf.mxu0
        %v1682 = vadd.f32 %v874, %v1681
        %v1683 = vpop.f32.mrf.mxu0
        %1684 = vmatprep.mubr.bf16.mxu0 0
        %1685 = vmatmul.mubr.bf16.gmra.mxu0 %v1264
        %v1686 = vpop.f32.mrf.mxu0
        %v1687 = vadd.f32 %v874, %v1686
        %v1688 = vpop.f32.mrf.mxu0
        %v1689 = vpop.f32.mrf.mxu0
        %v1690 = vadd.f32 %v874, %v1689
        %v1691 = vpop.f32.mrf.mxu0
        %1692 = vmatprep.mubr.bf16.mxu0 0
        %1693 = vmatmul.mubr.bf16.gmra.mxu0 %v1267
        %v1694 = vpop.f32.mrf.mxu0
        %v1695 = vadd.f32 %v874, %v1694
        %v1696 = vpop.f32.mrf.mxu0
        %v1697 = vpop.f32.mrf.mxu0
        %v1698 = vadd.f32 %v874, %v1697
        %v1699 = vpop.f32.mrf.mxu0
        %1700 = vdwg.mxu0
        %v1701 = vmax.f32 %v1311, 0.0
        %v1702 = vmax.f32 %v1314, 0.0
        %v1703 = vmax.f32 %v1319, 0.0
        %v1704 = vmax.f32 %v1322, 0.0
        %v1705 = vmax.f32 %v1327, 0.0
        %v1706 = vmax.f32 %v1330, 0.0
        %v1707 = vmax.f32 %v1335, 0.0
        %v1708 = vmax.f32 %v1338, 0.0
        %v1709 = vmax.f32 %v1343, 0.0
        %v1710 = vmax.f32 %v1346, 0.0
        %v1711 = vmax.f32 %v1351, 0.0
        %v1712 = vmax.f32 %v1354, 0.0
        %v1713 = vmax.f32 %v1359, 0.0
        %v1714 = vmax.f32 %v1362, 0.0
        %v1715 = vmax.f32 %v1367, 0.0
        %v1716 = vmax.f32 %v1370, 0.0
        %v1717 = vmax.f32 %v1375, 0.0
        %v1718 = vmax.f32 %v1378, 0.0
        %v1719 = vmax.f32 %v1383, 0.0
        %v1720 = vmax.f32 %v1386, 0.0
        %v1721 = vmax.f32 %v1391, 0.0
        %v1722 = vmax.f32 %v1394, 0.0
        %v1723 = vmax.f32 %v1399, 0.0
        %v1724 = vmax.f32 %v1402, 0.0
        %v1725 = vmax.f32 %v1407, 0.0
        %v1726 = vmax.f32 %v1410, 0.0
        %v1727 = vmax.f32 %v1415, 0.0
        %v1728 = vmax.f32 %v1418, 0.0
        %v1729 = vmax.f32 %v1423, 0.0
        %v1730 = vmax.f32 %v1426, 0.0
        %v1731 = vmax.f32 %v1431, 0.0
        %v1732 = vmax.f32 %v1434, 0.0
        %v1733 = vmax.f32 %v1439, 0.0
        %v1734 = vmax.f32 %v1442, 0.0
        %v1735 = vmax.f32 %v1447, 0.0
        %v1736 = vmax.f32 %v1450, 0.0
        %v1737 = vmax.f32 %v1455, 0.0
        %v1738 = vmax.f32 %v1458, 0.0
        %v1739 = vmax.f32 %v1463, 0.0
        %v1740 = vmax.f32 %v1466, 0.0
        %v1741 = vmax.f32 %v1471, 0.0
        %v1742 = vmax.f32 %v1474, 0.0
        %v1743 = vmax.f32 %v1479, 0.0
        %v1744 = vmax.f32 %v1482, 0.0
        %v1745 = vmax.f32 %v1487, 0.0
        %v1746 = vmax.f32 %v1490, 0.0
        %v1747 = vmax.f32 %v1495, 0.0
        %v1748 = vmax.f32 %v1498, 0.0
        %v1749 = vmax.f32 %v1503, 0.0
        %v1750 = vmax.f32 %v1506, 0.0
        %v1751 = vmax.f32 %v1511, 0.0
        %v1752 = vmax.f32 %v1514, 0.0
        %v1753 = vmax.f32 %v1519, 0.0
        %v1754 = vmax.f32 %v1522, 0.0
        %v1755 = vmax.f32 %v1527, 0.0
        %v1756 = vmax.f32 %v1530, 0.0
        %v1757 = vmax.f32 %v1535, 0.0
        %v1758 = vmax.f32 %v1538, 0.0
        %v1759 = vmax.f32 %v1543, 0.0
        %v1760 = vmax.f32 %v1546, 0.0
        %v1761 = vmax.f32 %v1551, 0.0
        %v1762 = vmax.f32 %v1554, 0.0
        %v1763 = vmax.f32 %v1559, 0.0
        %v1764 = vmax.f32 %v1562, 0.0
        %v1765 = vmax.f32 %v1567, 0.0
        %v1766 = vmax.f32 %v1570, 0.0
        %v1767 = vmax.f32 %v1575, 0.0
        %v1768 = vmax.f32 %v1578, 0.0
        %v1769 = vmax.f32 %v1583, 0.0
        %v1770 = vmax.f32 %v1586, 0.0
        %v1771 = vmax.f32 %v1591, 0.0
        %v1772 = vmax.f32 %v1594, 0.0
        %v1773 = vmax.f32 %v1599, 0.0
        %v1774 = vmax.f32 %v1602, 0.0
        %v1775 = vmax.f32 %v1607, 0.0
        %v1776 = vmax.f32 %v1610, 0.0
        %v1777 = vmax.f32 %v1615, 0.0
        %v1778 = vmax.f32 %v1618, 0.0
        %v1779 = vmax.f32 %v1623, 0.0
        %v1780 = vmax.f32 %v1626, 0.0
        %v1781 = vmax.f32 %v1631, 0.0
        %v1782 = vmax.f32 %v1634, 0.0
        %v1783 = vmax.f32 %v1639, 0.0
        %v1784 = vmax.f32 %v1642, 0.0
        %v1785 = vmax.f32 %v1647, 0.0
        %v1786 = vmax.f32 %v1650, 0.0
        %v1787 = vmax.f32 %v1655, 0.0
        %v1788 = vmax.f32 %v1658, 0.0
        %v1789 = vmax.f32 %v1663, 0.0
        %v1790 = vmax.f32 %v1666, 0.0
        %v1791 = vmax.f32 %v1671, 0.0
        %v1792 = vmax.f32 %v1674, 0.0
        %v1793 = vmax.f32 %v1679, 0.0
        %v1794 = vmax.f32 %v1682, 0.0
        %v1795 = vmax.f32 %v1687, 0.0
        %v1796 = vmax.f32 %v1690, 0.0
        %v1797 = vmax.f32 %v1695, 0.0
        %v1798 = vmax.f32 %v1698, 0.0
        %v1799 = vpack.c.bf16 %v1702, %v1701
        %v1800 = vpack.c.bf16 %v1704, %v1703
        %v1801 = vpack.c.bf16 %v1706, %v1705
        %v1802 = vpack.c.bf16 %v1708, %v1707
        %v1803 = vpack.c.bf16 %v1710, %v1709
        %v1804 = vpack.c.bf16 %v1712, %v1711
        %v1805 = vpack.c.bf16 %v1714, %v1713
        %v1806 = vpack.c.bf16 %v1716, %v1715
        %v1807 = vpack.c.bf16 %v1718, %v1717
        %v1808 = vpack.c.bf16 %v1720, %v1719
        %v1809 = vpack.c.bf16 %v1722, %v1721
        %v1810 = vpack.c.bf16 %v1724, %v1723
        %v1811 = vpack.c.bf16 %v1726, %v1725
        %v1812 = vpack.c.bf16 %v1728, %v1727
        %v1813 = vpack.c.bf16 %v1730, %v1729
        %v1814 = vpack.c.bf16 %v1732, %v1731
        %v1815 = vpack.c.bf16 %v1734, %v1733
        %v1816 = vpack.c.bf16 %v1736, %v1735
        %v1817 = vpack.c.bf16 %v1738, %v1737
        %v1818 = vpack.c.bf16 %v1740, %v1739
        %v1819 = vpack.c.bf16 %v1742, %v1741
        %v1820 = vpack.c.bf16 %v1744, %v1743
        %v1821 = vpack.c.bf16 %v1746, %v1745
        %v1822 = vpack.c.bf16 %v1748, %v1747
        %v1823 = vpack.c.bf16 %v1750, %v1749
        %v1824 = vpack.c.bf16 %v1752, %v1751
        %v1825 = vpack.c.bf16 %v1754, %v1753
        %v1826 = vpack.c.bf16 %v1756, %v1755
        %v1827 = vpack.c.bf16 %v1758, %v1757
        %v1828 = vpack.c.bf16 %v1760, %v1759
        %v1829 = vpack.c.bf16 %v1762, %v1761
        %v1830 = vpack.c.bf16 %v1764, %v1763
        %v1831 = vpack.c.bf16 %v1766, %v1765
        %v1832 = vpack.c.bf16 %v1768, %v1767
        %v1833 = vpack.c.bf16 %v1770, %v1769
        %v1834 = vpack.c.bf16 %v1772, %v1771
        %v1835 = vpack.c.bf16 %v1774, %v1773
        %v1836 = vpack.c.bf16 %v1776, %v1775
        %v1837 = vpack.c.bf16 %v1778, %v1777
        %v1838 = vpack.c.bf16 %v1780, %v1779
        %v1839 = vpack.c.bf16 %v1782, %v1781
        %v1840 = vpack.c.bf16 %v1784, %v1783
        %v1841 = vpack.c.bf16 %v1786, %v1785
        %v1842 = vpack.c.bf16 %v1788, %v1787
        %v1843 = vpack.c.bf16 %v1790, %v1789
        %v1844 = vpack.c.bf16 %v1792, %v1791
        %v1845 = vpack.c.bf16 %v1794, %v1793
        %v1846 = vpack.c.bf16 %v1796, %v1795
        %v1847 = vpack.c.bf16 %v1798, %v1797
        %v1848 = vld [vmem:[%s3] sm:$0xf]
        %v1849 = vld [vmem:[%s3 + $0x4] sm:$0xf]
        %v1850 = vld [vmem:[%s4] sm:$0x1]
        %v1852 = vlaneseq
        %v1853 = vshrl.u32 %v1852, 7
        %v1854 = vsub.s32 0, %v1853
        %v1855 = vrot.slane %v1850, %v1854
        %v1859 = vunpack.c.l.b16 %v1848
        %v1860 = vunpack.c.l.b16 %v1849
        %v1861 = vpack.c.b16 %v1860, %v1859
        %vm1863 = vcmask 130048
        %v1865 = vsel %vm1863, %v1799, 0
        %v1868 = vsel %vm1863, %v1800, 0
        %v1871 = vsel %vm1863, %v1801, 0
        %v1874 = vsel %vm1863, %v1802, 0
        %v1877 = vsel %vm1863, %v1803, 0
        %v1880 = vsel %vm1863, %v1804, 0
        %v1883 = vsel %vm1863, %v1805, 0
        %v1886 = vsel %vm1863, %v1806, 0
        %v1889 = vsel %vm1863, %v1807, 0
        %v1892 = vsel %vm1863, %v1808, 0
        %v1895 = vsel %vm1863, %v1809, 0
        %v1898 = vsel %vm1863, %v1810, 0
        %v1901 = vsel %vm1863, %v1811, 0
        %v1904 = vsel %vm1863, %v1812, 0
        %v1907 = vsel %vm1863, %v1813, 0
        %v1910 = vsel %vm1863, %v1814, 0
        %v1913 = vsel %vm1863, %v1815, 0
        %v1916 = vsel %vm1863, %v1816, 0
        %v1919 = vsel %vm1863, %v1817, 0
        %v1922 = vsel %vm1863, %v1818, 0
        %v1925 = vsel %vm1863, %v1819, 0
        %v1928 = vsel %vm1863, %v1820, 0
        %v1931 = vsel %vm1863, %v1821, 0
        %v1934 = vsel %vm1863, %v1822, 0
        %v1937 = vsel %vm1863, %v1823, 0
        %v1940 = vsel %vm1863, %v1824, 0
        %v1943 = vsel %vm1863, %v1825, 0
        %v1946 = vsel %vm1863, %v1826, 0
        %v1949 = vsel %vm1863, %v1827, 0
        %v1952 = vsel %vm1863, %v1828, 0
        %v1955 = vsel %vm1863, %v1829, 0
        %v1958 = vsel %vm1863, %v1830, 0
        %v1961 = vsel %vm1863, %v1831, 0
        %v1964 = vsel %vm1863, %v1832, 0
        %v1967 = vsel %vm1863, %v1833, 0
        %v1970 = vsel %vm1863, %v1834, 0
        %v1973 = vsel %vm1863, %v1835, 0
        %v1976 = vsel %vm1863, %v1836, 0
        %v1979 = vsel %vm1863, %v1837, 0
        %v1982 = vsel %vm1863, %v1838, 0
        %v1985 = vsel %vm1863, %v1839, 0
        %v1988 = vsel %vm1863, %v1840, 0
        %v1991 = vsel %vm1863, %v1841, 0
        %v1994 = vsel %vm1863, %v1842, 0
        %v1997 = vsel %vm1863, %v1843, 0
        %v2000 = vsel %vm1863, %v1844, 0
        %v2003 = vsel %vm1863, %v1845, 0
        %v2006 = vsel %vm1863, %v1846, 0
        %v2009 = vsel %vm1863, %v1847, 0
        %2011 = vmatprep.subr.bf16.mxu0 0
        %2012 = vmatpush1.bf16.msra.mxu0 0
        %2013 = vmatprep.subr.bf16.mxu0 0
        %2014 = vmatpush1.bf16.msra.mxu0 0
        %2015 = vmatprep.subr.bf16.mxu0 0
        %2016 = vmatpush1.bf16.msra.mxu0 0
        %2017 = vmatprep.subr.bf16.mxu0 0
        %2018 = vmatpush1.bf16.msra.mxu0 0
        %2019 = vmatprep.subr.bf16.mxu0 0
        %2020 = vmatpush1.bf16.msra.mxu0 0
        %2021 = vmatprep.subr.bf16.mxu0 0
        %2022 = vmatpush1.bf16.msra.mxu0 0
        %2023 = vmatprep.subr.bf16.mxu0 0
        %2024 = vmatpush1.bf16.msra.mxu0 0
        %2025 = vmatprep.subr.bf16.mxu0 0
        %2026 = vmatpush1.bf16.msra.mxu0 %v1861
        %2027 = vmatprep.subr.bf16.mxu0 0
        %2028 = vmatpush2.bf16.msra.mxu0 0
        %2029 = vmatprep.subr.bf16.mxu0 0
        %2030 = vmatpush2.bf16.msra.mxu0 0
        %2031 = vmatprep.subr.bf16.mxu0 0
        %2032 = vmatpush2.bf16.msra.mxu0 0
        %2033 = vmatprep.subr.bf16.mxu0 0
        %2034 = vmatpush2.bf16.msra.mxu0 0
        %2035 = vmatprep.subr.bf16.mxu0 0
        %2036 = vmatpush2.bf16.msra.mxu0 0
        %2037 = vmatprep.subr.bf16.mxu0 0
        %2038 = vmatpush2.bf16.msra.mxu0 0
        %2039 = vmatprep.subr.bf16.mxu0 0
        %2040 = vmatpush2.bf16.msra.mxu0 0
        %2041 = vmatprep.subr.bf16.mxu0 0
        %2042 = vmatpush2.bf16.msra.mxu0 0
        %2043 = vmatprep.mubr.bf16.mxu0 0
        %2044 = vmatmul.mubr.bf16.gmra.mxu0 %v1865
        %v2045 = vpop.f32.mrf.mxu0
        %v2046 = vadd.f32 %v1855, %v2045
        %v2047 = vpop.f32.mrf.mxu0
        %v2048 = vpop.f32.mrf.mxu0
        %v2049 = vadd.f32 %v1855, %v2048
        %v2050 = vpop.f32.mrf.mxu0
        %2051 = vmatprep.mubr.bf16.mxu0 0
        %2052 = vmatmul.mubr.bf16.gmra.mxu0 %v1868
        %v2053 = vpop.f32.mrf.mxu0
        %v2054 = vadd.f32 %v1855, %v2053
        %v2055 = vpop.f32.mrf.mxu0
        %v2056 = vpop.f32.mrf.mxu0
        %v2057 = vadd.f32 %v1855, %v2056
        %v2058 = vpop.f32.mrf.mxu0
        %2059 = vmatprep.mubr.bf16.mxu0 0
        %2060 = vmatmul.mubr.bf16.gmra.mxu0 %v1871
        %v2061 = vpop.f32.mrf.mxu0
        %v2062 = vadd.f32 %v1855, %v2061
        %v2063 = vpop.f32.mrf.mxu0
        %v2064 = vpop.f32.mrf.mxu0
        %v2065 = vadd.f32 %v1855, %v2064
        %v2066 = vpop.f32.mrf.mxu0
        %2067 = vmatprep.mubr.bf16.mxu0 0
        %2068 = vmatmul.mubr.bf16.gmra.mxu0 %v1874
        %v2069 = vpop.f32.mrf.mxu0
        %v2070 = vadd.f32 %v1855, %v2069
        %v2071 = vpop.f32.mrf.mxu0
        %v2072 = vpop.f32.mrf.mxu0
        %v2073 = vadd.f32 %v1855, %v2072
        %v2074 = vpop.f32.mrf.mxu0
        %2075 = vmatprep.mubr.bf16.mxu0 0
        %2076 = vmatmul.mubr.bf16.gmra.mxu0 %v1877
        %v2077 = vpop.f32.mrf.mxu0
        %v2078 = vadd.f32 %v1855, %v2077
        %v2079 = vpop.f32.mrf.mxu0
        %v2080 = vpop.f32.mrf.mxu0
        %v2081 = vadd.f32 %v1855, %v2080
        %v2082 = vpop.f32.mrf.mxu0
        %2083 = vmatprep.mubr.bf16.mxu0 0
        %2084 = vmatmul.mubr.bf16.gmra.mxu0 %v1880
        %v2085 = vpop.f32.mrf.mxu0
        %v2086 = vadd.f32 %v1855, %v2085
        %v2087 = vpop.f32.mrf.mxu0
        %v2088 = vpop.f32.mrf.mxu0
        %v2089 = vadd.f32 %v1855, %v2088
        %v2090 = vpop.f32.mrf.mxu0
        %2091 = vmatprep.mubr.bf16.mxu0 0
        %2092 = vmatmul.mubr.bf16.gmra.mxu0 %v1883
        %v2093 = vpop.f32.mrf.mxu0
        %v2094 = vadd.f32 %v1855, %v2093
        %v2095 = vpop.f32.mrf.mxu0
        %v2096 = vpop.f32.mrf.mxu0
        %v2097 = vadd.f32 %v1855, %v2096
        %v2098 = vpop.f32.mrf.mxu0
        %2099 = vmatprep.mubr.bf16.mxu0 0
        %2100 = vmatmul.mubr.bf16.gmra.mxu0 %v1886
        %v2101 = vpop.f32.mrf.mxu0
        %v2102 = vadd.f32 %v1855, %v2101
        %v2103 = vpop.f32.mrf.mxu0
        %v2104 = vpop.f32.mrf.mxu0
        %v2105 = vadd.f32 %v1855, %v2104
        %v2106 = vpop.f32.mrf.mxu0
        %2107 = vmatprep.mubr.bf16.mxu0 0
        %2108 = vmatmul.mubr.bf16.gmra.mxu0 %v1889
        %v2109 = vpop.f32.mrf.mxu0
        %v2110 = vadd.f32 %v1855, %v2109
        %v2111 = vpop.f32.mrf.mxu0
        %v2112 = vpop.f32.mrf.mxu0
        %v2113 = vadd.f32 %v1855, %v2112
        %v2114 = vpop.f32.mrf.mxu0
        %2115 = vmatprep.mubr.bf16.mxu0 0
        %2116 = vmatmul.mubr.bf16.gmra.mxu0 %v1892
        %v2117 = vpop.f32.mrf.mxu0
        %v2118 = vadd.f32 %v1855, %v2117
        %v2119 = vpop.f32.mrf.mxu0
        %v2120 = vpop.f32.mrf.mxu0
        %v2121 = vadd.f32 %v1855, %v2120
        %v2122 = vpop.f32.mrf.mxu0
        %2123 = vmatprep.mubr.bf16.mxu0 0
        %2124 = vmatmul.mubr.bf16.gmra.mxu0 %v1895
        %v2125 = vpop.f32.mrf.mxu0
        %v2126 = vadd.f32 %v1855, %v2125
        %v2127 = vpop.f32.mrf.mxu0
        %v2128 = vpop.f32.mrf.mxu0
        %v2129 = vadd.f32 %v1855, %v2128
        %v2130 = vpop.f32.mrf.mxu0
        %2131 = vmatprep.mubr.bf16.mxu0 0
        %2132 = vmatmul.mubr.bf16.gmra.mxu0 %v1898
        %v2133 = vpop.f32.mrf.mxu0
        %v2134 = vadd.f32 %v1855, %v2133
        %v2135 = vpop.f32.mrf.mxu0
        %v2136 = vpop.f32.mrf.mxu0
        %v2137 = vadd.f32 %v1855, %v2136
        %v2138 = vpop.f32.mrf.mxu0
        %2139 = vmatprep.mubr.bf16.mxu0 0
        %2140 = vmatmul.mubr.bf16.gmra.mxu0 %v1901
        %v2141 = vpop.f32.mrf.mxu0
        %v2142 = vadd.f32 %v1855, %v2141
        %v2143 = vpop.f32.mrf.mxu0
        %v2144 = vpop.f32.mrf.mxu0
        %v2145 = vadd.f32 %v1855, %v2144
        %v2146 = vpop.f32.mrf.mxu0
        %2147 = vmatprep.mubr.bf16.mxu0 0
        %2148 = vmatmul.mubr.bf16.gmra.mxu0 %v1904
        %v2149 = vpop.f32.mrf.mxu0
        %v2150 = vadd.f32 %v1855, %v2149
        %v2151 = vpop.f32.mrf.mxu0
        %v2152 = vpop.f32.mrf.mxu0
        %v2153 = vadd.f32 %v1855, %v2152
        %v2154 = vpop.f32.mrf.mxu0
        %2155 = vmatprep.mubr.bf16.mxu0 0
        %2156 = vmatmul.mubr.bf16.gmra.mxu0 %v1907
        %v2157 = vpop.f32.mrf.mxu0
        %v2158 = vadd.f32 %v1855, %v2157
        %v2159 = vpop.f32.mrf.mxu0
        %v2160 = vpop.f32.mrf.mxu0
        %v2161 = vadd.f32 %v1855, %v2160
        %v2162 = vpop.f32.mrf.mxu0
        %2163 = vmatprep.mubr.bf16.mxu0 0
        %2164 = vmatmul.mubr.bf16.gmra.mxu0 %v1910
        %v2165 = vpop.f32.mrf.mxu0
        %v2166 = vadd.f32 %v1855, %v2165
        %v2167 = vpop.f32.mrf.mxu0
        %v2168 = vpop.f32.mrf.mxu0
        %v2169 = vadd.f32 %v1855, %v2168
        %v2170 = vpop.f32.mrf.mxu0
        %2171 = vmatprep.mubr.bf16.mxu0 0
        %2172 = vmatmul.mubr.bf16.gmra.mxu0 %v1913
        %v2173 = vpop.f32.mrf.mxu0
        %v2174 = vadd.f32 %v1855, %v2173
        %v2175 = vpop.f32.mrf.mxu0
        %v2176 = vpop.f32.mrf.mxu0
        %v2177 = vadd.f32 %v1855, %v2176
        %v2178 = vpop.f32.mrf.mxu0
        %2179 = vmatprep.mubr.bf16.mxu0 0
        %2180 = vmatmul.mubr.bf16.gmra.mxu0 %v1916
        %v2181 = vpop.f32.mrf.mxu0
        %v2182 = vadd.f32 %v1855, %v2181
        %v2183 = vpop.f32.mrf.mxu0
        %v2184 = vpop.f32.mrf.mxu0
        %v2185 = vadd.f32 %v1855, %v2184
        %v2186 = vpop.f32.mrf.mxu0
        %2187 = vmatprep.mubr.bf16.mxu0 0
        %2188 = vmatmul.mubr.bf16.gmra.mxu0 %v1919
        %v2189 = vpop.f32.mrf.mxu0
        %v2190 = vadd.f32 %v1855, %v2189
        %v2191 = vpop.f32.mrf.mxu0
        %v2192 = vpop.f32.mrf.mxu0
        %v2193 = vadd.f32 %v1855, %v2192
        %v2194 = vpop.f32.mrf.mxu0
        %2195 = vmatprep.mubr.bf16.mxu0 0
        %2196 = vmatmul.mubr.bf16.gmra.mxu0 %v1922
        %v2197 = vpop.f32.mrf.mxu0
        %v2198 = vadd.f32 %v1855, %v2197
        %v2199 = vpop.f32.mrf.mxu0
        %v2200 = vpop.f32.mrf.mxu0
        %v2201 = vadd.f32 %v1855, %v2200
        %v2202 = vpop.f32.mrf.mxu0
        %2203 = vmatprep.mubr.bf16.mxu0 0
        %2204 = vmatmul.mubr.bf16.gmra.mxu0 %v1925
        %v2205 = vpop.f32.mrf.mxu0
        %v2206 = vadd.f32 %v1855, %v2205
        %v2207 = vpop.f32.mrf.mxu0
        %v2208 = vpop.f32.mrf.mxu0
        %v2209 = vadd.f32 %v1855, %v2208
        %v2210 = vpop.f32.mrf.mxu0
        %2211 = vmatprep.mubr.bf16.mxu0 0
        %2212 = vmatmul.mubr.bf16.gmra.mxu0 %v1928
        %v2213 = vpop.f32.mrf.mxu0
        %v2214 = vadd.f32 %v1855, %v2213
        %v2215 = vpop.f32.mrf.mxu0
        %v2216 = vpop.f32.mrf.mxu0
        %v2217 = vadd.f32 %v1855, %v2216
        %v2218 = vpop.f32.mrf.mxu0
        %2219 = vmatprep.mubr.bf16.mxu0 0
        %2220 = vmatmul.mubr.bf16.gmra.mxu0 %v1931
        %v2221 = vpop.f32.mrf.mxu0
        %v2222 = vadd.f32 %v1855, %v2221
        %v2223 = vpop.f32.mrf.mxu0
        %v2224 = vpop.f32.mrf.mxu0
        %v2225 = vadd.f32 %v1855, %v2224
        %v2226 = vpop.f32.mrf.mxu0
        %2227 = vmatprep.mubr.bf16.mxu0 0
        %2228 = vmatmul.mubr.bf16.gmra.mxu0 %v1934
        %v2229 = vpop.f32.mrf.mxu0
        %v2230 = vadd.f32 %v1855, %v2229
        %v2231 = vpop.f32.mrf.mxu0
        %v2232 = vpop.f32.mrf.mxu0
        %v2233 = vadd.f32 %v1855, %v2232
        %v2234 = vpop.f32.mrf.mxu0
        %2235 = vmatprep.mubr.bf16.mxu0 0
        %2236 = vmatmul.mubr.bf16.gmra.mxu0 %v1937
        %v2237 = vpop.f32.mrf.mxu0
        %v2238 = vadd.f32 %v1855, %v2237
        %v2239 = vpop.f32.mrf.mxu0
        %v2240 = vpop.f32.mrf.mxu0
        %v2241 = vadd.f32 %v1855, %v2240
        %v2242 = vpop.f32.mrf.mxu0
        %2243 = vmatprep.mubr.bf16.mxu0 0
        %2244 = vmatmul.mubr.bf16.gmra.mxu0 %v1940
        %v2245 = vpop.f32.mrf.mxu0
        %v2246 = vadd.f32 %v1855, %v2245
        %v2247 = vpop.f32.mrf.mxu0
        %v2248 = vpop.f32.mrf.mxu0
        %v2249 = vadd.f32 %v1855, %v2248
        %v2250 = vpop.f32.mrf.mxu0
        %2251 = vmatprep.mubr.bf16.mxu0 0
        %2252 = vmatmul.mubr.bf16.gmra.mxu0 %v1943
        %v2253 = vpop.f32.mrf.mxu0
        %v2254 = vadd.f32 %v1855, %v2253
        %v2255 = vpop.f32.mrf.mxu0
        %v2256 = vpop.f32.mrf.mxu0
        %v2257 = vadd.f32 %v1855, %v2256
        %v2258 = vpop.f32.mrf.mxu0
        %2259 = vmatprep.mubr.bf16.mxu0 0
        %2260 = vmatmul.mubr.bf16.gmra.mxu0 %v1946
        %v2261 = vpop.f32.mrf.mxu0
        %v2262 = vadd.f32 %v1855, %v2261
        %v2263 = vpop.f32.mrf.mxu0
        %v2264 = vpop.f32.mrf.mxu0
        %v2265 = vadd.f32 %v1855, %v2264
        %v2266 = vpop.f32.mrf.mxu0
        %2267 = vmatprep.mubr.bf16.mxu0 0
        %2268 = vmatmul.mubr.bf16.gmra.mxu0 %v1949
        %v2269 = vpop.f32.mrf.mxu0
        %v2270 = vadd.f32 %v1855, %v2269
        %v2271 = vpop.f32.mrf.mxu0
        %v2272 = vpop.f32.mrf.mxu0
        %v2273 = vadd.f32 %v1855, %v2272
        %v2274 = vpop.f32.mrf.mxu0
        %2275 = vmatprep.mubr.bf16.mxu0 0
        %2276 = vmatmul.mubr.bf16.gmra.mxu0 %v1952
        %v2277 = vpop.f32.mrf.mxu0
        %v2278 = vadd.f32 %v1855, %v2277
        %v2279 = vpop.f32.mrf.mxu0
        %v2280 = vpop.f32.mrf.mxu0
        %v2281 = vadd.f32 %v1855, %v2280
        %v2282 = vpop.f32.mrf.mxu0
        %2283 = vmatprep.mubr.bf16.mxu0 0
        %2284 = vmatmul.mubr.bf16.gmra.mxu0 %v1955
        %v2285 = vpop.f32.mrf.mxu0
        %v2286 = vadd.f32 %v1855, %v2285
        %v2287 = vpop.f32.mrf.mxu0
        %v2288 = vpop.f32.mrf.mxu0
        %v2289 = vadd.f32 %v1855, %v2288
        %v2290 = vpop.f32.mrf.mxu0
        %2291 = vmatprep.mubr.bf16.mxu0 0
        %2292 = vmatmul.mubr.bf16.gmra.mxu0 %v1958
        %v2293 = vpop.f32.mrf.mxu0
        %v2294 = vadd.f32 %v1855, %v2293
        %v2295 = vpop.f32.mrf.mxu0
        %v2296 = vpop.f32.mrf.mxu0
        %v2297 = vadd.f32 %v1855, %v2296
        %v2298 = vpop.f32.mrf.mxu0
        %2299 = vmatprep.mubr.bf16.mxu0 0
        %2300 = vmatmul.mubr.bf16.gmra.mxu0 %v1961
        %v2301 = vpop.f32.mrf.mxu0
        %v2302 = vadd.f32 %v1855, %v2301
        %v2303 = vpop.f32.mrf.mxu0
        %v2304 = vpop.f32.mrf.mxu0
        %v2305 = vadd.f32 %v1855, %v2304
        %v2306 = vpop.f32.mrf.mxu0
        %2307 = vmatprep.mubr.bf16.mxu0 0
        %2308 = vmatmul.mubr.bf16.gmra.mxu0 %v1964
        %v2309 = vpop.f32.mrf.mxu0
        %v2310 = vadd.f32 %v1855, %v2309
        %v2311 = vpop.f32.mrf.mxu0
        %v2312 = vpop.f32.mrf.mxu0
        %v2313 = vadd.f32 %v1855, %v2312
        %v2314 = vpop.f32.mrf.mxu0
        %2315 = vmatprep.mubr.bf16.mxu0 0
        %2316 = vmatmul.mubr.bf16.gmra.mxu0 %v1967
        %v2317 = vpop.f32.mrf.mxu0
        %v2318 = vadd.f32 %v1855, %v2317
        %v2319 = vpop.f32.mrf.mxu0
        %v2320 = vpop.f32.mrf.mxu0
        %v2321 = vadd.f32 %v1855, %v2320
        %v2322 = vpop.f32.mrf.mxu0
        %2323 = vmatprep.mubr.bf16.mxu0 0
        %2324 = vmatmul.mubr.bf16.gmra.mxu0 %v1970
        %v2325 = vpop.f32.mrf.mxu0
        %v2326 = vadd.f32 %v1855, %v2325
        %v2327 = vpop.f32.mrf.mxu0
        %v2328 = vpop.f32.mrf.mxu0
        %v2329 = vadd.f32 %v1855, %v2328
        %v2330 = vpop.f32.mrf.mxu0
        %2331 = vmatprep.mubr.bf16.mxu0 0
        %2332 = vmatmul.mubr.bf16.gmra.mxu0 %v1973
        %v2333 = vpop.f32.mrf.mxu0
        %v2334 = vadd.f32 %v1855, %v2333
        %v2335 = vpop.f32.mrf.mxu0
        %v2336 = vpop.f32.mrf.mxu0
        %v2337 = vadd.f32 %v1855, %v2336
        %v2338 = vpop.f32.mrf.mxu0
        %2339 = vmatprep.mubr.bf16.mxu0 0
        %2340 = vmatmul.mubr.bf16.gmra.mxu0 %v1976
        %v2341 = vpop.f32.mrf.mxu0
        %v2342 = vadd.f32 %v1855, %v2341
        %v2343 = vpop.f32.mrf.mxu0
        %v2344 = vpop.f32.mrf.mxu0
        %v2345 = vadd.f32 %v1855, %v2344
        %v2346 = vpop.f32.mrf.mxu0
        %2347 = vmatprep.mubr.bf16.mxu0 0
        %2348 = vmatmul.mubr.bf16.gmra.mxu0 %v1979
        %v2349 = vpop.f32.mrf.mxu0
        %v2350 = vadd.f32 %v1855, %v2349
        %v2351 = vpop.f32.mrf.mxu0
        %v2352 = vpop.f32.mrf.mxu0
        %v2353 = vadd.f32 %v1855, %v2352
        %v2354 = vpop.f32.mrf.mxu0
        %2355 = vmatprep.mubr.bf16.mxu0 0
        %2356 = vmatmul.mubr.bf16.gmra.mxu0 %v1982
        %v2357 = vpop.f32.mrf.mxu0
        %v2358 = vadd.f32 %v1855, %v2357
        %v2359 = vpop.f32.mrf.mxu0
        %v2360 = vpop.f32.mrf.mxu0
        %v2361 = vadd.f32 %v1855, %v2360
        %v2362 = vpop.f32.mrf.mxu0
        %2363 = vmatprep.mubr.bf16.mxu0 0
        %2364 = vmatmul.mubr.bf16.gmra.mxu0 %v1985
        %v2365 = vpop.f32.mrf.mxu0
        %v2366 = vadd.f32 %v1855, %v2365
        %v2367 = vpop.f32.mrf.mxu0
        %v2368 = vpop.f32.mrf.mxu0
        %v2369 = vadd.f32 %v1855, %v2368
        %v2370 = vpop.f32.mrf.mxu0
        %2371 = vmatprep.mubr.bf16.mxu0 0
        %2372 = vmatmul.mubr.bf16.gmra.mxu0 %v1988
        %v2373 = vpop.f32.mrf.mxu0
        %v2374 = vadd.f32 %v1855, %v2373
        %v2375 = vpop.f32.mrf.mxu0
        %v2376 = vpop.f32.mrf.mxu0
        %v2377 = vadd.f32 %v1855, %v2376
        %v2378 = vpop.f32.mrf.mxu0
        %2379 = vmatprep.mubr.bf16.mxu0 0
        %2380 = vmatmul.mubr.bf16.gmra.mxu0 %v1991
        %v2381 = vpop.f32.mrf.mxu0
        %v2382 = vadd.f32 %v1855, %v2381
        %v2383 = vpop.f32.mrf.mxu0
        %v2384 = vpop.f32.mrf.mxu0
        %v2385 = vadd.f32 %v1855, %v2384
        %v2386 = vpop.f32.mrf.mxu0
        %2387 = vmatprep.mubr.bf16.mxu0 0
        %2388 = vmatmul.mubr.bf16.gmra.mxu0 %v1994
        %v2389 = vpop.f32.mrf.mxu0
        %v2390 = vadd.f32 %v1855, %v2389
        %v2391 = vpop.f32.mrf.mxu0
        %v2392 = vpop.f32.mrf.mxu0
        %v2393 = vadd.f32 %v1855, %v2392
        %v2394 = vpop.f32.mrf.mxu0
        %2395 = vmatprep.mubr.bf16.mxu0 0
        %2396 = vmatmul.mubr.bf16.gmra.mxu0 %v1997
        %v2397 = vpop.f32.mrf.mxu0
        %v2398 = vadd.f32 %v1855, %v2397
        %v2399 = vpop.f32.mrf.mxu0
        %v2400 = vpop.f32.mrf.mxu0
        %v2401 = vadd.f32 %v1855, %v2400
        %v2402 = vpop.f32.mrf.mxu0
        %2403 = vmatprep.mubr.bf16.mxu0 0
        %2404 = vmatmul.mubr.bf16.gmra.mxu0 %v2000
        %v2405 = vpop.f32.mrf.mxu0
        %v2406 = vadd.f32 %v1855, %v2405
        %v2407 = vpop.f32.mrf.mxu0
        %v2408 = vpop.f32.mrf.mxu0
        %v2409 = vadd.f32 %v1855, %v2408
        %v2410 = vpop.f32.mrf.mxu0
        %2411 = vmatprep.mubr.bf16.mxu0 0
        %2412 = vmatmul.mubr.bf16.gmra.mxu0 %v2003
        %v2413 = vpop.f32.mrf.mxu0
        %v2414 = vadd.f32 %v1855, %v2413
        %v2415 = vpop.f32.mrf.mxu0
        %v2416 = vpop.f32.mrf.mxu0
        %v2417 = vadd.f32 %v1855, %v2416
        %v2418 = vpop.f32.mrf.mxu0
        %2419 = vmatprep.mubr.bf16.mxu0 0
        %2420 = vmatmul.mubr.bf16.gmra.mxu0 %v2006
        %v2421 = vpop.f32.mrf.mxu0
        %v2422 = vadd.f32 %v1855, %v2421
        %v2423 = vpop.f32.mrf.mxu0
        %v2424 = vpop.f32.mrf.mxu0
        %v2425 = vadd.f32 %v1855, %v2424
        %v2426 = vpop.f32.mrf.mxu0
        %2427 = vmatprep.mubr.bf16.mxu0 0
        %2428 = vmatmul.mubr.bf16.gmra.mxu0 %v2009
        %v2429 = vpop.f32.mrf.mxu0
        %v2430 = vadd.f32 %v1855, %v2429
        %v2431 = vpop.f32.mrf.mxu0
        %v2432 = vpop.f32.mrf.mxu0
        %v2433 = vadd.f32 %v1855, %v2432
        %v2434 = vpop.f32.mrf.mxu0
        %2435 = vdwg.mxu0
        %v2436 = vmax.f32 %v2046, 0.0
        %v2437 = vmax.f32 %v2049, 0.0
        %v2438 = vmax.f32 %v2054, 0.0
        %v2439 = vmax.f32 %v2057, 0.0
        %v2440 = vmax.f32 %v2062, 0.0
        %v2441 = vmax.f32 %v2065, 0.0
        %v2442 = vmax.f32 %v2070, 0.0
        %v2443 = vmax.f32 %v2073, 0.0
        %v2444 = vmax.f32 %v2078, 0.0
        %v2445 = vmax.f32 %v2081, 0.0
        %v2446 = vmax.f32 %v2086, 0.0
        %v2447 = vmax.f32 %v2089, 0.0
        %v2448 = vmax.f32 %v2094, 0.0
        %v2449 = vmax.f32 %v2097, 0.0
        %v2450 = vmax.f32 %v2102, 0.0
        %v2451 = vmax.f32 %v2105, 0.0
        %v2452 = vmax.f32 %v2110, 0.0
        %v2453 = vmax.f32 %v2113, 0.0
        %v2454 = vmax.f32 %v2118, 0.0
        %v2455 = vmax.f32 %v2121, 0.0
        %v2456 = vmax.f32 %v2126, 0.0
        %v2457 = vmax.f32 %v2129, 0.0
        %v2458 = vmax.f32 %v2134, 0.0
        %v2459 = vmax.f32 %v2137, 0.0
        %v2460 = vmax.f32 %v2142, 0.0
        %v2461 = vmax.f32 %v2145, 0.0
        %v2462 = vmax.f32 %v2150, 0.0
        %v2463 = vmax.f32 %v2153, 0.0
        %v2464 = vmax.f32 %v2158, 0.0
        %v2465 = vmax.f32 %v2161, 0.0
        %v2466 = vmax.f32 %v2166, 0.0
        %v2467 = vmax.f32 %v2169, 0.0
        %v2468 = vmax.f32 %v2174, 0.0
        %v2469 = vmax.f32 %v2177, 0.0
        %v2470 = vmax.f32 %v2182, 0.0
        %v2471 = vmax.f32 %v2185, 0.0
        %v2472 = vmax.f32 %v2190, 0.0
        %v2473 = vmax.f32 %v2193, 0.0
        %v2474 = vmax.f32 %v2198, 0.0
        %v2475 = vmax.f32 %v2201, 0.0
        %v2476 = vmax.f32 %v2206, 0.0
        %v2477 = vmax.f32 %v2209, 0.0
        %v2478 = vmax.f32 %v2214, 0.0
        %v2479 = vmax.f32 %v2217, 0.0
        %v2480 = vmax.f32 %v2222, 0.0
        %v2481 = vmax.f32 %v2225, 0.0
        %v2482 = vmax.f32 %v2230, 0.0
        %v2483 = vmax.f32 %v2233, 0.0
        %v2484 = vmax.f32 %v2238, 0.0
        %v2485 = vmax.f32 %v2241, 0.0
        %v2486 = vmax.f32 %v2246, 0.0
        %v2487 = vmax.f32 %v2249, 0.0
        %v2488 = vmax.f32 %v2254, 0.0
        %v2489 = vmax.f32 %v2257, 0.0
        %v2490 = vmax.f32 %v2262, 0.0
        %v2491 = vmax.f32 %v2265, 0.0
        %v2492 = vmax.f32 %v2270, 0.0
        %v2493 = vmax.f32 %v2273, 0.0
        %v2494 = vmax.f32 %v2278, 0.0
        %v2495 = vmax.f32 %v2281, 0.0
        %v2496 = vmax.f32 %v2286, 0.0
        %v2497 = vmax.f32 %v2289, 0.0
        %v2498 = vmax.f32 %v2294, 0.0
        %v2499 = vmax.f32 %v2297, 0.0
        %v2500 = vmax.f32 %v2302, 0.0
        %v2501 = vmax.f32 %v2305, 0.0
        %v2502 = vmax.f32 %v2310, 0.0
        %v2503 = vmax.f32 %v2313, 0.0
        %v2504 = vmax.f32 %v2318, 0.0
        %v2505 = vmax.f32 %v2321, 0.0
        %v2506 = vmax.f32 %v2326, 0.0
        %v2507 = vmax.f32 %v2329, 0.0
        %v2508 = vmax.f32 %v2334, 0.0
        %v2509 = vmax.f32 %v2337, 0.0
        %v2510 = vmax.f32 %v2342, 0.0
        %v2511 = vmax.f32 %v2345, 0.0
        %v2512 = vmax.f32 %v2350, 0.0
        %v2513 = vmax.f32 %v2353, 0.0
        %v2514 = vmax.f32 %v2358, 0.0
        %v2515 = vmax.f32 %v2361, 0.0
        %v2516 = vmax.f32 %v2366, 0.0
        %v2517 = vmax.f32 %v2369, 0.0
        %v2518 = vmax.f32 %v2374, 0.0
        %v2519 = vmax.f32 %v2377, 0.0
        %v2520 = vmax.f32 %v2382, 0.0
        %v2521 = vmax.f32 %v2385, 0.0
        %v2522 = vmax.f32 %v2390, 0.0
        %v2523 = vmax.f32 %v2393, 0.0
        %v2524 = vmax.f32 %v2398, 0.0
        %v2525 = vmax.f32 %v2401, 0.0
        %v2526 = vmax.f32 %v2406, 0.0
        %v2527 = vmax.f32 %v2409, 0.0
        %v2528 = vmax.f32 %v2414, 0.0
        %v2529 = vmax.f32 %v2417, 0.0
        %v2530 = vmax.f32 %v2422, 0.0
        %v2531 = vmax.f32 %v2425, 0.0
        %v2532 = vmax.f32 %v2430, 0.0
        %v2533 = vmax.f32 %v2433, 0.0
        %vm2534 = vcmask 162816
        %2535 = vst.msk [vmem:[#allocation2] sm:$0xff] %vm2534, %v2436
        %2536 = vst.msk [vmem:[#allocation2 + $0x40] sm:$0xff] %vm2534, %v2437
        %2539 = vrot.lane.b32.xlu0 %v2438, 20
        %v2540 = vpop.permute.xlu0 %2539
        %2541 = vrot.lane.b32.xlu0 %v2439, 20
        %v2542 = vpop.permute.xlu0 %2541
        %vm2545 = vcmask 326816
        %2546 = vst.msk [vmem:[#allocation2] sm:$0xff] %vm2545, %v2540
        %2547 = vst.msk [vmem:[#allocation2 + $0x40] sm:$0xff] %vm2545, %v2542
        %2550 = vrot.lane.b32.xlu0 %v2440, 40
        %v2551 = vpop.permute.xlu0 %2550
        %2552 = vrot.lane.b32.xlu0 %v2441, 40
        %v2553 = vpop.permute.xlu0 %2552
        %vm2556 = vcmask 490816
        %2557 = vst.msk [vmem:[#allocation2] sm:$0xff] %vm2556, %v2551
        %2558 = vst.msk [vmem:[#allocation2 + $0x40] sm:$0xff] %vm2556, %v2553
        %2561 = vrot.lane.b32.xlu0 %v2442, 60
        %v2562 = vpop.permute.xlu0 %2561
        %2563 = vrot.lane.b32.xlu0 %v2443, 60
        %v2564 = vpop.permute.xlu0 %2563
        %vm2567 = vcmask 654816
        %2568 = vst.msk [vmem:[#allocation2] sm:$0xff] %vm2567, %v2562
        %2569 = vst.msk [vmem:[#allocation2 + $0x40] sm:$0xff] %vm2567, %v2564
        %2572 = vrot.lane.b32.xlu0 %v2444, 80
        %v2573 = vpop.permute.xlu0 %2572
        %2574 = vrot.lane.b32.xlu0 %v2445, 80
        %v2575 = vpop.permute.xlu0 %2574
        %vm2578 = vcmask 818816
        %2579 = vst.msk [vmem:[#allocation2] sm:$0xff] %vm2578, %v2573
        %2580 = vst.msk [vmem:[#allocation2 + $0x40] sm:$0xff] %vm2578, %v2575
        %2583 = vrot.lane.b32.xlu0 %v2446, 100
        %v2584 = vpop.permute.xlu0 %2583
        %2585 = vrot.lane.b32.xlu0 %v2447, 100
        %v2586 = vpop.permute.xlu0 %2585
        %vm2589 = vcmask 982816
        %2590 = vst.msk [vmem:[#allocation2] sm:$0xff] %vm2589, %v2584
        %2591 = vst.msk [vmem:[#allocation2 + $0x40] sm:$0xff] %vm2589, %v2586
        %2594 = vrot.lane.b32.xlu0 %v2448, 120
        %v2595 = vpop.permute.xlu0 %2594
        %2596 = vrot.lane.b32.xlu0 %v2449, 120
        %v2597 = vpop.permute.xlu0 %2596
        %vm2600 = vcmask 1048512
        %2601 = vst.msk [vmem:[#allocation2] sm:$0xff] %vm2600, %v2595
        %vm2602 = vcmask 97280
        %2603 = vst.msk [vmem:[#allocation2 + $0x8] sm:$0xff] %vm2602, %v2595
        %2604 = vst.msk [vmem:[#allocation2 + $0x40] sm:$0xff] %vm2600, %v2597
        %2605 = vst.msk [vmem:[#allocation2 + $0x48] sm:$0xff] %vm2602, %v2597
        %2608 = vrot.lane.b32.xlu0 %v2450, 12
        %v2609 = vpop.permute.xlu0 %2608
        %2610 = vrot.lane.b32.xlu0 %v2451, 12
        %v2611 = vpop.permute.xlu0 %2610
        %vm2614 = vcmask 261216
        %2615 = vst.msk [vmem:[#allocation2 + $0x8] sm:$0xff] %vm2614, %v2609
        %2616 = vst.msk [vmem:[#allocation2 + $0x48] sm:$0xff] %vm2614, %v2611
        %2619 = vrot.lane.b32.xlu0 %v2452, 32
        %v2620 = vpop.permute.xlu0 %2619
        %2621 = vrot.lane.b32.xlu0 %v2453, 32
        %v2622 = vpop.permute.xlu0 %2621
        %vm2625 = vcmask 425216
        %2626 = vst.msk [vmem:[#allocation2 + $0x8] sm:$0xff] %vm2625, %v2620
        %2627 = vst.msk [vmem:[#allocation2 + $0x48] sm:$0xff] %vm2625, %v2622
        %2630 = vrot.lane.b32.xlu0 %v2454, 52
        %v2631 = vpop.permute.xlu0 %2630
        %2632 = vrot.lane.b32.xlu0 %v2455, 52
        %v2633 = vpop.permute.xlu0 %2632
        %vm2636 = vcmask 589216
        %2637 = vst.msk [vmem:[#allocation2 + $0x8] sm:$0xff] %vm2636, %v2631
        %2638 = vst.msk [vmem:[#allocation2 + $0x48] sm:$0xff] %vm2636, %v2633
        %2641 = vrot.lane.b32.xlu0 %v2456, 72
        %v2642 = vpop.permute.xlu0 %2641
        %2643 = vrot.lane.b32.xlu0 %v2457, 72
        %v2644 = vpop.permute.xlu0 %2643
        %vm2647 = vcmask 753216
        %2648 = vst.msk [vmem:[#allocation2 + $0x8] sm:$0xff] %vm2647, %v2642
        %2649 = vst.msk [vmem:[#allocation2 + $0x48] sm:$0xff] %vm2647, %v2644
        %2652 = vrot.lane.b32.xlu0 %v2458, 92
        %v2653 = vpop.permute.xlu0 %2652
        %2654 = vrot.lane.b32.xlu0 %v2459, 92
        %v2655 = vpop.permute.xlu0 %2654
        %vm2658 = vcmask 917216
        %2659 = vst.msk [vmem:[#allocation2 + $0x8] sm:$0xff] %vm2658, %v2653
        %2660 = vst.msk [vmem:[#allocation2 + $0x48] sm:$0xff] %vm2658, %v2655
        %2663 = vrot.lane.b32.xlu0 %v2460, 112
        %v2664 = vpop.permute.xlu0 %2663
        %2665 = vrot.lane.b32.xlu0 %v2461, 112
        %v2666 = vpop.permute.xlu0 %2665
        %vm2669 = vcmask 1048448
        %2670 = vst.msk [vmem:[#allocation2 + $0x8] sm:$0xff] %vm2669, %v2664
        %vm2671 = vcmask 31744
        %2672 = vst.msk [vmem:[#allocation2 + $0x10] sm:$0xff] %vm2671, %v2664
        %2673 = vst.msk [vmem:[#allocation2 + $0x48] sm:$0xff] %vm2669, %v2666
        %2674 = vst.msk [vmem:[#allocation2 + $0x50] sm:$0xff] %vm2671, %v2666
        %2677 = vrot.lane.b32.xlu0 %v2462, 4
        %v2678 = vpop.permute.xlu0 %2677
        %2679 = vrot.lane.b32.xlu0 %v2463, 4
        %v2680 = vpop.permute.xlu0 %2679
        %vm2683 = vcmask 195616
        %2684 = vst.msk [vmem:[#allocation2 + $0x10] sm:$0xff] %vm2683, %v2678
        %2685 = vst.msk [vmem:[#allocation2 + $0x50] sm:$0xff] %vm2683, %v2680
        %2688 = vrot.lane.b32.xlu0 %v2464, 24
        %v2689 = vpop.permute.xlu0 %2688
        %2690 = vrot.lane.b32.xlu0 %v2465, 24
        %v2691 = vpop.permute.xlu0 %2690
        %vm2694 = vcmask 359616
        %2695 = vst.msk [vmem:[#allocation2 + $0x10] sm:$0xff] %vm2694, %v2689
        %2696 = vst.msk [vmem:[#allocation2 + $0x50] sm:$0xff] %vm2694, %v2691
        %2699 = vrot.lane.b32.xlu0 %v2466, 44
        %v2700 = vpop.permute.xlu0 %2699
        %2701 = vrot.lane.b32.xlu0 %v2467, 44
        %v2702 = vpop.permute.xlu0 %2701
        %vm2705 = vcmask 523616
        %2706 = vst.msk [vmem:[#allocation2 + $0x10] sm:$0xff] %vm2705, %v2700
        %2707 = vst.msk [vmem:[#allocation2 + $0x50] sm:$0xff] %vm2705, %v2702
        %2710 = vrot.lane.b32.xlu0 %v2468, 64
        %v2711 = vpop.permute.xlu0 %2710
        %2712 = vrot.lane.b32.xlu0 %v2469, 64
        %v2713 = vpop.permute.xlu0 %2712
        %vm2716 = vcmask 687616
        %2717 = vst.msk [vmem:[#allocation2 + $0x10] sm:$0xff] %vm2716, %v2711
        %2718 = vst.msk [vmem:[#allocation2 + $0x50] sm:$0xff] %vm2716, %v2713
        %2721 = vrot.lane.b32.xlu0 %v2470, 84
        %v2722 = vpop.permute.xlu0 %2721
        %2723 = vrot.lane.b32.xlu0 %v2471, 84
        %v2724 = vpop.permute.xlu0 %2723
        %vm2727 = vcmask 851616
        %2728 = vst.msk [vmem:[#allocation2 + $0x10] sm:$0xff] %vm2727, %v2722
        %2729 = vst.msk [vmem:[#allocation2 + $0x50] sm:$0xff] %vm2727, %v2724
        %2732 = vrot.lane.b32.xlu0 %v2472, 104
        %v2733 = vpop.permute.xlu0 %2732
        %2734 = vrot.lane.b32.xlu0 %v2473, 104
        %v2735 = vpop.permute.xlu0 %2734
        %vm2738 = vcmask 1015616
        %2739 = vst.msk [vmem:[#allocation2 + $0x10] sm:$0xff] %vm2738, %v2733
        %2740 = vst.msk [vmem:[#allocation2 + $0x50] sm:$0xff] %vm2738, %v2735
        %2743 = vrot.lane.b32.xlu0 %v2474, 124
        %v2744 = vpop.permute.xlu0 %2743
        %2745 = vrot.lane.b32.xlu0 %v2475, 124
        %v2746 = vpop.permute.xlu0 %2745
        %vm2749 = vcmask 1048544
        %2750 = vst.msk [vmem:[#allocation2 + $0x10] sm:$0xff] %vm2749, %v2744
        %2751 = vst.msk [vmem:[#allocation2 + $0x18] sm:$0xff] %vm1863, %v2744
        %2752 = vst.msk [vmem:[#allocation2 + $0x50] sm:$0xff] %vm2749, %v2746
        %2753 = vst.msk [vmem:[#allocation2 + $0x58] sm:$0xff] %vm1863, %v2746
        %2756 = vrot.lane.b32.xlu0 %v2476, 16
        %v2757 = vpop.permute.xlu0 %2756
        %2758 = vrot.lane.b32.xlu0 %v2477, 16
        %v2759 = vpop.permute.xlu0 %2758
        %vm2762 = vcmask 294016
        %2763 = vst.msk [vmem:[#allocation2 + $0x18] sm:$0xff] %vm2762, %v2757
        %2764 = vst.msk [vmem:[#allocation2 + $0x58] sm:$0xff] %vm2762, %v2759
        %2767 = vrot.lane.b32.xlu0 %v2478, 36
        %v2768 = vpop.permute.xlu0 %2767
        %2769 = vrot.lane.b32.xlu0 %v2479, 36
        %v2770 = vpop.permute.xlu0 %2769
        %vm2773 = vcmask 458016
        %2774 = vst.msk [vmem:[#allocation2 + $0x18] sm:$0xff] %vm2773, %v2768
        %2775 = vst.msk [vmem:[#allocation2 + $0x58] sm:$0xff] %vm2773, %v2770
        %2778 = vrot.lane.b32.xlu0 %v2480, 56
        %v2779 = vpop.permute.xlu0 %2778
        %2780 = vrot.lane.b32.xlu0 %v2481, 56
        %v2781 = vpop.permute.xlu0 %2780
        %vm2784 = vcmask 622016
        %2785 = vst.msk [vmem:[#allocation2 + $0x18] sm:$0xff] %vm2784, %v2779
        %2786 = vst.msk [vmem:[#allocation2 + $0x58] sm:$0xff] %vm2784, %v2781
        %2789 = vrot.lane.b32.xlu0 %v2482, 76
        %v2790 = vpop.permute.xlu0 %2789
        %2791 = vrot.lane.b32.xlu0 %v2483, 76
        %v2792 = vpop.permute.xlu0 %2791
        %vm2795 = vcmask 786016
        %2796 = vst.msk [vmem:[#allocation2 + $0x18] sm:$0xff] %vm2795, %v2790
        %2797 = vst.msk [vmem:[#allocation2 + $0x58] sm:$0xff] %vm2795, %v2792
        %2800 = vrot.lane.b32.xlu0 %v2484, 96
        %v2801 = vpop.permute.xlu0 %2800
        %2802 = vrot.lane.b32.xlu0 %v2485, 96
        %v2803 = vpop.permute.xlu0 %2802
        %vm2806 = vcmask 950016
        %2807 = vst.msk [vmem:[#allocation2 + $0x18] sm:$0xff] %vm2806, %v2801
        %2808 = vst.msk [vmem:[#allocation2 + $0x58] sm:$0xff] %vm2806, %v2803
        %2811 = vrot.lane.b32.xlu0 %v2486, 116
        %v2812 = vpop.permute.xlu0 %2811
        %2813 = vrot.lane.b32.xlu0 %v2487, 116
        %v2814 = vpop.permute.xlu0 %2813
        %vm2817 = vcmask 1048480
        %2818 = vst.msk [vmem:[#allocation2 + $0x18] sm:$0xff] %vm2817, %v2812
        %vm2819 = vcmask 64512
        %2820 = vst.msk [vmem:[#allocation2 + $0x20] sm:$0xff] %vm2819, %v2812
        %2821 = vst.msk [vmem:[#allocation2 + $0x58] sm:$0xff] %vm2817, %v2814
        %2822 = vst.msk [vmem:[#allocation2 + $0x60] sm:$0xff] %vm2819, %v2814
        %2825 = vrot.lane.b32.xlu0 %v2488, 8
        %v2826 = vpop.permute.xlu0 %2825
        %2827 = vrot.lane.b32.xlu0 %v2489, 8
        %v2828 = vpop.permute.xlu0 %2827
        %vm2831 = vcmask 228416
        %2832 = vst.msk [vmem:[#allocation2 + $0x20] sm:$0xff] %vm2831, %v2826
        %2833 = vst.msk [vmem:[#allocation2 + $0x60] sm:$0xff] %vm2831, %v2828
        %2836 = vrot.lane.b32.xlu0 %v2490, 28
        %v2837 = vpop.permute.xlu0 %2836
        %2838 = vrot.lane.b32.xlu0 %v2491, 28
        %v2839 = vpop.permute.xlu0 %2838
        %vm2842 = vcmask 392416
        %2843 = vst.msk [vmem:[#allocation2 + $0x20] sm:$0xff] %vm2842, %v2837
        %2844 = vst.msk [vmem:[#allocation2 + $0x60] sm:$0xff] %vm2842, %v2839
        %2847 = vrot.lane.b32.xlu0 %v2492, 48
        %v2848 = vpop.permute.xlu0 %2847
        %2849 = vrot.lane.b32.xlu0 %v2493, 48
        %v2850 = vpop.permute.xlu0 %2849
        %vm2853 = vcmask 556416
        %2854 = vst.msk [vmem:[#allocation2 + $0x20] sm:$0xff] %vm2853, %v2848
        %2855 = vst.msk [vmem:[#allocation2 + $0x60] sm:$0xff] %vm2853, %v2850
        %2858 = vrot.lane.b32.xlu0 %v2494, 68
        %v2859 = vpop.permute.xlu0 %2858
        %2860 = vrot.lane.b32.xlu0 %v2495, 68
        %v2861 = vpop.permute.xlu0 %2860
        %vm2864 = vcmask 720416
        %2865 = vst.msk [vmem:[#allocation2 + $0x20] sm:$0xff] %vm2864, %v2859
        %2866 = vst.msk [vmem:[#allocation2 + $0x60] sm:$0xff] %vm2864, %v2861
        %2869 = vrot.lane.b32.xlu0 %v2496, 88
        %v2870 = vpop.permute.xlu0 %2869
        %2871 = vrot.lane.b32.xlu0 %v2497, 88
        %v2872 = vpop.permute.xlu0 %2871
        %vm2875 = vcmask 884416
        %2876 = vst.msk [vmem:[#allocation2 + $0x20] sm:$0xff] %vm2875, %v2870
        %2877 = vst.msk [vmem:[#allocation2 + $0x60] sm:$0xff] %vm2875, %v2872
        %2880 = vrot.lane.b32.xlu0 %v2498, 108
        %v2881 = vpop.permute.xlu0 %2880
        %2882 = vrot.lane.b32.xlu0 %v2499, 108
        %v2883 = vpop.permute.xlu0 %2882
        %vm2886 = vcmask 1048416
        %2887 = vst.msk [vmem:[#allocation2 + $0x20] sm:$0xff] %vm2886, %v2881
        %2888 = vst.msk [vmem:[#allocation2 + $0x60] sm:$0xff] %vm2886, %v2883
        %2889 = vst.msk [vmem:[#allocation2 + $0x28] sm:$0xff] %vm2534, %v2500
        %2890 = vst.msk [vmem:[#allocation2 + $0x68] sm:$0xff] %vm2534, %v2501
        %2893 = vrot.lane.b32.xlu0 %v2502, 20
        %v2894 = vpop.permute.xlu0 %2893
        %2895 = vrot.lane.b32.xlu0 %v2503, 20
        %v2896 = vpop.permute.xlu0 %2895
        %2899 = vst.msk [vmem:[#allocation2 + $0x28] sm:$0xff] %vm2545, %v2894
        %2900 = vst.msk [vmem:[#allocation2 + $0x68] sm:$0xff] %vm2545, %v2896
        %2903 = vrot.lane.b32.xlu0 %v2504, 40
        %v2904 = vpop.permute.xlu0 %2903
        %2905 = vrot.lane.b32.xlu0 %v2505, 40
        %v2906 = vpop.permute.xlu0 %2905
        %2909 = vst.msk [vmem:[#allocation2 + $0x28] sm:$0xff] %vm2556, %v2904
        %2910 = vst.msk [vmem:[#allocation2 + $0x68] sm:$0xff] %vm2556, %v2906
        %2913 = vrot.lane.b32.xlu0 %v2506, 60
        %v2914 = vpop.permute.xlu0 %2913
        %2915 = vrot.lane.b32.xlu0 %v2507, 60
        %v2916 = vpop.permute.xlu0 %2915
        %2919 = vst.msk [vmem:[#allocation2 + $0x28] sm:$0xff] %vm2567, %v2914
        %2920 = vst.msk [vmem:[#allocation2 + $0x68] sm:$0xff] %vm2567, %v2916
        %2923 = vrot.lane.b32.xlu0 %v2508, 80
        %v2924 = vpop.permute.xlu0 %2923
        %2925 = vrot.lane.b32.xlu0 %v2509, 80
        %v2926 = vpop.permute.xlu0 %2925
        %2929 = vst.msk [vmem:[#allocation2 + $0x28] sm:$0xff] %vm2578, %v2924
        %2930 = vst.msk [vmem:[#allocation2 + $0x68] sm:$0xff] %vm2578, %v2926
        %2933 = vrot.lane.b32.xlu0 %v2510, 100
        %v2934 = vpop.permute.xlu0 %2933
        %2935 = vrot.lane.b32.xlu0 %v2511, 100
        %v2936 = vpop.permute.xlu0 %2935
        %2939 = vst.msk [vmem:[#allocation2 + $0x28] sm:$0xff] %vm2589, %v2934
        %2940 = vst.msk [vmem:[#allocation2 + $0x68] sm:$0xff] %vm2589, %v2936
        %2943 = vrot.lane.b32.xlu0 %v2512, 120
        %v2944 = vpop.permute.xlu0 %2943
        %2945 = vrot.lane.b32.xlu0 %v2513, 120
        %v2946 = vpop.permute.xlu0 %2945
        %2949 = vst.msk [vmem:[#allocation2 + $0x28] sm:$0xff] %vm2600, %v2944
        %2950 = vst.msk [vmem:[#allocation2 + $0x30] sm:$0xff] %vm2602, %v2944
        %2951 = vst.msk [vmem:[#allocation2 + $0x68] sm:$0xff] %vm2600, %v2946
        %2952 = vst.msk [vmem:[#allocation2 + $0x70] sm:$0xff] %vm2602, %v2946
        %2955 = vrot.lane.b32.xlu0 %v2514, 12
        %v2956 = vpop.permute.xlu0 %2955
        %2957 = vrot.lane.b32.xlu0 %v2515, 12
        %v2958 = vpop.permute.xlu0 %2957
        %2961 = vst.msk [vmem:[#allocation2 + $0x30] sm:$0xff] %vm2614, %v2956
        %2962 = vst.msk [vmem:[#allocation2 + $0x70] sm:$0xff] %vm2614, %v2958
        %2965 = vrot.lane.b32.xlu0 %v2516, 32
        %v2966 = vpop.permute.xlu0 %2965
        %2967 = vrot.lane.b32.xlu0 %v2517, 32
        %v2968 = vpop.permute.xlu0 %2967
        %2971 = vst.msk [vmem:[#allocation2 + $0x30] sm:$0xff] %vm2625, %v2966
        %2972 = vst.msk [vmem:[#allocation2 + $0x70] sm:$0xff] %vm2625, %v2968
        %2975 = vrot.lane.b32.xlu0 %v2518, 52
        %v2976 = vpop.permute.xlu0 %2975
        %2977 = vrot.lane.b32.xlu0 %v2519, 52
        %v2978 = vpop.permute.xlu0 %2977
        %2981 = vst.msk [vmem:[#allocation2 + $0x30] sm:$0xff] %vm2636, %v2976
        %2982 = vst.msk [vmem:[#allocation2 + $0x70] sm:$0xff] %vm2636, %v2978
        %2985 = vrot.lane.b32.xlu0 %v2520, 72
        %v2986 = vpop.permute.xlu0 %2985
        %2987 = vrot.lane.b32.xlu0 %v2521, 72
        %v2988 = vpop.permute.xlu0 %2987
        %2991 = vst.msk [vmem:[#allocation2 + $0x30] sm:$0xff] %vm2647, %v2986
        %2992 = vst.msk [vmem:[#allocation2 + $0x70] sm:$0xff] %vm2647, %v2988
        %2995 = vrot.lane.b32.xlu0 %v2522, 92
        %v2996 = vpop.permute.xlu0 %2995
        %2997 = vrot.lane.b32.xlu0 %v2523, 92
        %v2998 = vpop.permute.xlu0 %2997
        %3001 = vst.msk [vmem:[#allocation2 + $0x30] sm:$0xff] %vm2658, %v2996
        %3002 = vst.msk [vmem:[#allocation2 + $0x70] sm:$0xff] %vm2658, %v2998
        %3005 = vrot.lane.b32.xlu0 %v2524, 112
        %v3006 = vpop.permute.xlu0 %3005
        %3007 = vrot.lane.b32.xlu0 %v2525, 112
        %v3008 = vpop.permute.xlu0 %3007
        %3011 = vst.msk [vmem:[#allocation2 + $0x30] sm:$0xff] %vm2669, %v3006
        %3012 = vst.msk [vmem:[#allocation2 + $0x38] sm:$0xff] %vm2671, %v3006
        %3013 = vst.msk [vmem:[#allocation2 + $0x70] sm:$0xff] %vm2669, %v3008
        %3014 = vst.msk [vmem:[#allocation2 + $0x78] sm:$0xff] %vm2671, %v3008
        %3017 = vrot.lane.b32.xlu0 %v2526, 4
        %v3018 = vpop.permute.xlu0 %3017
        %3019 = vrot.lane.b32.xlu0 %v2527, 4
        %v3020 = vpop.permute.xlu0 %3019
        %3023 = vst.msk [vmem:[#allocation2 + $0x38] sm:$0xff] %vm2683, %v3018
        %3024 = vst.msk [vmem:[#allocation2 + $0x78] sm:$0xff] %vm2683, %v3020
        %3027 = vrot.lane.b32.xlu0 %v2528, 24
        %v3028 = vpop.permute.xlu0 %3027
        %3029 = vrot.lane.b32.xlu0 %v2529, 24
        %v3030 = vpop.permute.xlu0 %3029
        %3033 = vst.msk [vmem:[#allocation2 + $0x38] sm:$0xff] %vm2694, %v3028
        %3034 = vst.msk [vmem:[#allocation2 + $0x78] sm:$0xff] %vm2694, %v3030
        %3037 = vrot.lane.b32.xlu0 %v2530, 44
        %v3038 = vpop.permute.xlu0 %3037
        %3039 = vrot.lane.b32.xlu0 %v2531, 44
        %v3040 = vpop.permute.xlu0 %3039
        %3043 = vst.msk [vmem:[#allocation2 + $0x38] sm:$0xff] %vm2705, %v3038
        %3044 = vst.msk [vmem:[#allocation2 + $0x78] sm:$0xff] %vm2705, %v3040
        %3047 = vrot.lane.b32.xlu0 %v2532, 64
        %v3048 = vpop.permute.xlu0 %3047
        %3049 = vrot.lane.b32.xlu0 %v2533, 64
        %v3050 = vpop.permute.xlu0 %3049
        %3053 = vst.msk [vmem:[#allocation2 + $0x38] sm:$0xff] %vm2716, %v3048
        %3054 = vst.msk [vmem:[#allocation2 + $0x78] sm:$0xff] %vm2716, %v3050
        %v3055 = vld [vmem:[#allocation2] sm:$0xff]
        %v3056 = vld [vmem:[#allocation2 + $0x8] sm:$0xff]
        %v3057 = vld [vmem:[#allocation2 + $0x10] sm:$0xff]
        %v3058 = vld [vmem:[#allocation2 + $0x18] sm:$0xff]
        %v3059 = vld [vmem:[#allocation2 + $0x20] sm:$0xff]
        %v3060 = vld [vmem:[#allocation2 + $0x28] sm:$0xff]
        %v3061 = vld [vmem:[#allocation2 + $0x30] sm:$0xff]
        %v3062 = vld [vmem:[#allocation2 + $0x38] sm:$0xff]
        %v3063 = vld [vmem:[#allocation2 + $0x40] sm:$0xff]
        %v3064 = vld [vmem:[#allocation2 + $0x48] sm:$0xff]
        %v3065 = vld [vmem:[#allocation2 + $0x50] sm:$0xff]
        %v3066 = vld [vmem:[#allocation2 + $0x58] sm:$0xff]
        %v3067 = vld [vmem:[#allocation2 + $0x60] sm:$0xff]
        %v3068 = vld [vmem:[#allocation2 + $0x68] sm:$0xff]
        %v3069 = vld [vmem:[#allocation2 + $0x70] sm:$0xff]
        %v3070 = vld [vmem:[#allocation2 + $0x78] sm:$0xff]
        %v3071 = vpack.c.bf16 %v3063, %v3055
        %v3072 = vpack.c.bf16 %v3064, %v3056
        %v3073 = vpack.c.bf16 %v3065, %v3057
        %v3074 = vpack.c.bf16 %v3066, %v3058
        %v3075 = vpack.c.bf16 %v3067, %v3059
        %v3076 = vpack.c.bf16 %v3068, %v3060
        %v3077 = vpack.c.bf16 %v3069, %v3061
        %v3078 = vpack.c.bf16 %v3070, %v3062
        %v3079 = vld [vmem:[%s5] sm:$0xff]
        %v3080 = vld [vmem:[%s5 + $0x8] sm:$0xff]
        %v3081 = vld [vmem:[%s5 + $0x10] sm:$0xff]
        %v3082 = vld [vmem:[%s5 + $0x18] sm:$0xff]
        %v3083 = vld [vmem:[%s5 + $0x20] sm:$0xff]
        %v3084 = vld [vmem:[%s5 + $0x28] sm:$0xff]
        %v3085 = vld [vmem:[%s5 + $0x30] sm:$0xff]
        %v3086 = vld [vmem:[%s5 + $0x38] sm:$0xff]
        %v3087 = vld [vmem:[%s5 + $0x40] sm:$0xff]
        %v3088 = vld [vmem:[%s5 + $0x48] sm:$0xff]
        %v3089 = vld [vmem:[%s5 + $0x50] sm:$0xff]
        %v3090 = vld [vmem:[%s5 + $0x58] sm:$0xff]
        %v3091 = vld [vmem:[%s5 + $0x60] sm:$0xff]
        %v3092 = vld [vmem:[%s5 + $0x68] sm:$0xff]
        %v3093 = vld [vmem:[%s5 + $0x70] sm:$0xff]
        %v3094 = vld [vmem:[%s5 + $0x78] sm:$0xff]
        %v3095 = vld [vmem:[%s5 + $0x80] sm:$0xff]
        %v3096 = vld [vmem:[%s5 + $0x88] sm:$0xff]
        %v3097 = vld [vmem:[%s5 + $0x90] sm:$0xff]
        %v3098 = vld [vmem:[%s5 + $0x98] sm:$0xff]
        %v3099 = vld [vmem:[%s5 + $0xa0] sm:$0xff]
        %v3100 = vld [vmem:[%s5 + $0xa8] sm:$0xff]
        %v3101 = vld [vmem:[%s5 + $0xb0] sm:$0xff]
        %v3102 = vld [vmem:[%s5 + $0xb8] sm:$0xff]
        %v3103 = vld [vmem:[%s5 + $0xc0] sm:$0xff]
        %v3104 = vld [vmem:[%s5 + $0xc8] sm:$0xff]
        %v3105 = vld [vmem:[%s5 + $0xd0] sm:$0xff]
        %v3106 = vld [vmem:[%s5 + $0xd8] sm:$0xff]
        %v3107 = vld [vmem:[%s5 + $0xe0] sm:$0xff]
        %v3108 = vld [vmem:[%s5 + $0xe8] sm:$0xff]
        %v3109 = vld [vmem:[%s5 + $0xf0] sm:$0xff]
        %v3110 = vld [vmem:[%s5 + $0xf8] sm:$0xff]
        %v3111 = vld [vmem:[%s5 + $0x100] sm:$0xff]
        %v3112 = vld [vmem:[%s5 + $0x108] sm:$0xff]
        %v3113 = vld [vmem:[%s5 + $0x110] sm:$0xff]
        %v3114 = vld [vmem:[%s5 + $0x118] sm:$0xff]
        %v3115 = vld [vmem:[%s5 + $0x120] sm:$0xff]
        %v3116 = vld [vmem:[%s5 + $0x128] sm:$0xff]
        %v3117 = vld [vmem:[%s5 + $0x130] sm:$0xff]
        %v3118 = vld [vmem:[%s5 + $0x138] sm:$0xff]
        %v3119 = vld [vmem:[%s5 + $0x140] sm:$0xff]
        %v3120 = vld [vmem:[%s5 + $0x148] sm:$0xff]
        %v3121 = vld [vmem:[%s5 + $0x150] sm:$0xff]
        %v3122 = vld [vmem:[%s5 + $0x158] sm:$0xff]
        %v3123 = vld [vmem:[%s5 + $0x160] sm:$0xff]
        %v3124 = vld [vmem:[%s5 + $0x168] sm:$0xff]
        %v3125 = vld [vmem:[%s5 + $0x170] sm:$0xff]
        %v3126 = vld [vmem:[%s5 + $0x178] sm:$0xff]
        %v3127 = vld [vmem:[%s5 + $0x180] sm:$0xff]
        %v3128 = vld [vmem:[%s5 + $0x188] sm:$0xff]
        %v3129 = vld [vmem:[%s5 + $0x190] sm:$0xff]
        %v3130 = vld [vmem:[%s5 + $0x198] sm:$0xff]
        %v3131 = vld [vmem:[%s5 + $0x1a0] sm:$0xff]
        %v3132 = vld [vmem:[%s5 + $0x1a8] sm:$0xff]
        %v3133 = vld [vmem:[%s5 + $0x1b0] sm:$0xff]
        %v3134 = vld [vmem:[%s5 + $0x1b8] sm:$0xff]
        %v3135 = vld [vmem:[%s5 + $0x1c0] sm:$0xff]
        %v3136 = vld [vmem:[%s5 + $0x1c8] sm:$0xff]
        %v3137 = vld [vmem:[%s5 + $0x1d0] sm:$0xff]
        %v3138 = vld [vmem:[%s5 + $0x1d8] sm:$0xff]
        %v3139 = vld [vmem:[%s5 + $0x1e0] sm:$0xff]
        %v3140 = vld [vmem:[%s5 + $0x1e8] sm:$0xff]
        %v3141 = vld [vmem:[%s5 + $0x1f0] sm:$0xff]
        %v3142 = vld [vmem:[%s5 + $0x1f8] sm:$0xff]
        %v3143 = vld [vmem:[%s5 + $0x200] sm:$0xff]
        %v3144 = vld [vmem:[%s5 + $0x208] sm:$0xff]
        %v3145 = vld [vmem:[%s5 + $0x210] sm:$0xff]
        %v3146 = vld [vmem:[%s5 + $0x218] sm:$0xff]
        %v3147 = vld [vmem:[%s5 + $0x220] sm:$0xff]
        %v3148 = vld [vmem:[%s5 + $0x228] sm:$0xff]
        %v3149 = vld [vmem:[%s5 + $0x230] sm:$0xff]
        %v3150 = vld [vmem:[%s5 + $0x238] sm:$0xff]
        %v3151 = vld [vmem:[%s5 + $0x240] sm:$0xff]
        %v3152 = vld [vmem:[%s5 + $0x248] sm:$0xff]
        %v3153 = vld [vmem:[%s5 + $0x250] sm:$0xff]
        %v3154 = vld [vmem:[%s5 + $0x258] sm:$0xff]
        %v3155 = vld [vmem:[%s5 + $0x260] sm:$0xff]
        %v3156 = vld [vmem:[%s5 + $0x268] sm:$0xff]
        %v3157 = vld [vmem:[%s5 + $0x270] sm:$0xff]
        %v3158 = vld [vmem:[%s5 + $0x278] sm:$0xff]
        %v3159 = vld [vmem:[%s5 + $0x280] sm:$0xff]
        %v3160 = vld [vmem:[%s5 + $0x288] sm:$0xff]
        %v3161 = vld [vmem:[%s5 + $0x290] sm:$0xff]
        %v3162 = vld [vmem:[%s5 + $0x298] sm:$0xff]
        %v3163 = vld [vmem:[%s5 + $0x2a0] sm:$0xff]
        %v3164 = vld [vmem:[%s5 + $0x2a8] sm:$0xff]
        %v3165 = vld [vmem:[%s5 + $0x2b0] sm:$0xff]
        %v3166 = vld [vmem:[%s5 + $0x2b8] sm:$0xff]
        %v3167 = vld [vmem:[%s5 + $0x2c0] sm:$0xff]
        %v3168 = vld [vmem:[%s5 + $0x2c8] sm:$0xff]
        %v3169 = vld [vmem:[%s5 + $0x2d0] sm:$0xff]
        %v3170 = vld [vmem:[%s5 + $0x2d8] sm:$0xff]
        %v3171 = vld [vmem:[%s5 + $0x2e0] sm:$0xff]
        %v3172 = vld [vmem:[%s5 + $0x2e8] sm:$0xff]
        %v3173 = vld [vmem:[%s5 + $0x2f0] sm:$0xff]
        %v3174 = vld [vmem:[%s5 + $0x2f8] sm:$0xff]
        %v3175 = vld [vmem:[%s5 + $0x300] sm:$0xff]
        %v3176 = vld [vmem:[%s5 + $0x308] sm:$0xff]
        %v3177 = vld [vmem:[%s5 + $0x310] sm:$0xff]
        %v3178 = vld [vmem:[%s5 + $0x318] sm:$0xff]
        %v3179 = vld [vmem:[%s5 + $0x320] sm:$0xff]
        %v3180 = vld [vmem:[%s5 + $0x328] sm:$0xff]
        %v3181 = vld [vmem:[%s5 + $0x330] sm:$0xff]
        %v3182 = vld [vmem:[%s5 + $0x338] sm:$0xff]
        %v3183 = vld [vmem:[%s5 + $0x340] sm:$0xff]
        %v3184 = vld [vmem:[%s5 + $0x348] sm:$0xff]
        %v3185 = vld [vmem:[%s5 + $0x350] sm:$0xff]
        %v3186 = vld [vmem:[%s5 + $0x358] sm:$0xff]
        %v3187 = vld [vmem:[%s5 + $0x360] sm:$0xff]
        %v3188 = vld [vmem:[%s5 + $0x368] sm:$0xff]
        %v3189 = vld [vmem:[%s5 + $0x370] sm:$0xff]
        %v3190 = vld [vmem:[%s5 + $0x378] sm:$0xff]
        %v3191 = vld [vmem:[%s5 + $0x380] sm:$0xff]
        %v3192 = vld [vmem:[%s5 + $0x388] sm:$0xff]
        %v3193 = vld [vmem:[%s5 + $0x390] sm:$0xff]
        %v3194 = vld [vmem:[%s5 + $0x398] sm:$0xff]
        %v3195 = vld [vmem:[%s5 + $0x3a0] sm:$0xff]
        %v3196 = vld [vmem:[%s5 + $0x3a8] sm:$0xff]
        %v3197 = vld [vmem:[%s5 + $0x3b0] sm:$0xff]
        %v3198 = vld [vmem:[%s5 + $0x3b8] sm:$0xff]
        %v3199 = vld [vmem:[%s5 + $0x3c0] sm:$0xff]
        %v3200 = vld [vmem:[%s5 + $0x3c8] sm:$0xff]
        %v3201 = vld [vmem:[%s5 + $0x3d0] sm:$0x33]
        %v3202 = vld [vmem:[%s6] sm:$0x3]
        %v3204 = vlaneseq
        %v3205 = vshrl.u32 %v3204, 7
        %v3206 = vsub.s32 0, %v3205
        %v3207 = vrot.slane %v3202, %v3206
        %v3208 = vlaneseq
        %v3209 = vshrl.u32 %v3208, 7
        %v3210 = vsub.s32 1, %v3209
        %v3211 = vrot.slane %v3202, %v3210
        %v3337 = vunpack.c.l.b16 %v3079
        %v3338 = vunpack.c.h.b16 %v3079
        %v3339 = vunpack.c.l.b16 %v3080
        %v3340 = vunpack.c.h.b16 %v3080
        %v3341 = vunpack.c.l.b16 %v3081
        %v3342 = vunpack.c.h.b16 %v3081
        %v3343 = vunpack.c.l.b16 %v3082
        %v3344 = vunpack.c.h.b16 %v3082
        %v3345 = vunpack.c.l.b16 %v3083
        %v3346 = vunpack.c.h.b16 %v3083
        %v3347 = vunpack.c.l.b16 %v3084
        %v3348 = vunpack.c.h.b16 %v3084
        %v3349 = vunpack.c.l.b16 %v3085
        %v3350 = vunpack.c.h.b16 %v3085
        %v3351 = vunpack.c.l.b16 %v3086
        %v3352 = vunpack.c.h.b16 %v3086
        %v3353 = vunpack.c.l.b16 %v3087
        %v3354 = vunpack.c.h.b16 %v3087
        %v3355 = vunpack.c.l.b16 %v3088
        %v3356 = vunpack.c.h.b16 %v3088
        %v3357 = vunpack.c.l.b16 %v3089
        %v3358 = vunpack.c.h.b16 %v3089
        %v3359 = vunpack.c.l.b16 %v3090
        %v3360 = vunpack.c.h.b16 %v3090
        %v3361 = vunpack.c.l.b16 %v3091
        %v3362 = vunpack.c.h.b16 %v3091
        %v3363 = vunpack.c.l.b16 %v3092
        %v3364 = vunpack.c.h.b16 %v3092
        %v3365 = vunpack.c.l.b16 %v3093
        %v3366 = vunpack.c.h.b16 %v3093
        %v3367 = vunpack.c.l.b16 %v3094
        %v3368 = vunpack.c.h.b16 %v3094
        %v3369 = vunpack.c.l.b16 %v3095
        %v3370 = vunpack.c.h.b16 %v3095
        %v3371 = vunpack.c.l.b16 %v3096
        %v3372 = vunpack.c.h.b16 %v3096
        %v3373 = vunpack.c.l.b16 %v3097
        %v3374 = vunpack.c.h.b16 %v3097
        %v3375 = vunpack.c.l.b16 %v3098
        %v3376 = vunpack.c.h.b16 %v3098
        %v3377 = vunpack.c.l.b16 %v3099
        %v3378 = vunpack.c.h.b16 %v3099
        %v3379 = vunpack.c.l.b16 %v3100
        %v3380 = vunpack.c.h.b16 %v3100
        %v3381 = vunpack.c.l.b16 %v3101
        %v3382 = vunpack.c.h.b16 %v3101
        %v3383 = vunpack.c.l.b16 %v3102
        %v3384 = vunpack.c.h.b16 %v3102
        %v3385 = vunpack.c.l.b16 %v3103
        %v3386 = vunpack.c.h.b16 %v3103
        %v3387 = vunpack.c.l.b16 %v3104
        %v3388 = vunpack.c.h.b16 %v3104
        %v3389 = vunpack.c.l.b16 %v3105
        %v3390 = vunpack.c.h.b16 %v3105
        %v3391 = vunpack.c.l.b16 %v3106
        %v3392 = vunpack.c.h.b16 %v3106
        %v3393 = vunpack.c.l.b16 %v3107
        %v3394 = vunpack.c.h.b16 %v3107
        %v3395 = vunpack.c.l.b16 %v3108
        %v3396 = vunpack.c.h.b16 %v3108
        %v3397 = vunpack.c.l.b16 %v3109
        %v3398 = vunpack.c.h.b16 %v3109
        %v3399 = vunpack.c.l.b16 %v3110
        %v3400 = vunpack.c.h.b16 %v3110
        %v3401 = vunpack.c.l.b16 %v3111
        %v3402 = vunpack.c.h.b16 %v3111
        %v3403 = vunpack.c.l.b16 %v3112
        %v3404 = vunpack.c.h.b16 %v3112
        %v3405 = vunpack.c.l.b16 %v3113
        %v3406 = vunpack.c.h.b16 %v3113
        %v3407 = vunpack.c.l.b16 %v3114
        %v3408 = vunpack.c.h.b16 %v3114
        %v3409 = vunpack.c.l.b16 %v3115
        %v3410 = vunpack.c.h.b16 %v3115
        %v3411 = vunpack.c.l.b16 %v3116
        %v3412 = vunpack.c.h.b16 %v3116
        %v3413 = vunpack.c.l.b16 %v3117
        %v3414 = vunpack.c.h.b16 %v3117
        %v3415 = vunpack.c.l.b16 %v3118
        %v3416 = vunpack.c.h.b16 %v3118
        %v3417 = vunpack.c.l.b16 %v3119
        %v3418 = vunpack.c.h.b16 %v3119
        %v3419 = vunpack.c.l.b16 %v3120
        %v3420 = vunpack.c.h.b16 %v3120
        %v3421 = vunpack.c.l.b16 %v3121
        %v3422 = vunpack.c.h.b16 %v3121
        %v3423 = vunpack.c.l.b16 %v3122
        %v3424 = vunpack.c.h.b16 %v3122
        %v3425 = vunpack.c.l.b16 %v3123
        %v3426 = vunpack.c.h.b16 %v3123
        %v3427 = vunpack.c.l.b16 %v3124
        %v3428 = vunpack.c.h.b16 %v3124
        %v3429 = vunpack.c.l.b16 %v3125
        %v3430 = vunpack.c.h.b16 %v3125
        %v3431 = vunpack.c.l.b16 %v3126
        %v3432 = vunpack.c.h.b16 %v3126
        %v3433 = vunpack.c.l.b16 %v3127
        %v3434 = vunpack.c.h.b16 %v3127
        %v3435 = vunpack.c.l.b16 %v3128
        %v3436 = vunpack.c.h.b16 %v3128
        %v3437 = vunpack.c.l.b16 %v3129
        %v3438 = vunpack.c.h.b16 %v3129
        %v3439 = vunpack.c.l.b16 %v3130
        %v3440 = vunpack.c.h.b16 %v3130
        %v3441 = vunpack.c.l.b16 %v3131
        %v3442 = vunpack.c.h.b16 %v3131
        %v3443 = vunpack.c.l.b16 %v3132
        %v3444 = vunpack.c.h.b16 %v3132
        %v3445 = vunpack.c.l.b16 %v3133
        %v3446 = vunpack.c.h.b16 %v3133
        %v3447 = vunpack.c.l.b16 %v3134
        %v3448 = vunpack.c.h.b16 %v3134
        %v3449 = vunpack.c.l.b16 %v3135
        %v3450 = vunpack.c.h.b16 %v3135
        %v3451 = vunpack.c.l.b16 %v3136
        %v3452 = vunpack.c.h.b16 %v3136
        %v3453 = vunpack.c.l.b16 %v3137
        %v3454 = vunpack.c.h.b16 %v3137
        %v3455 = vunpack.c.l.b16 %v3138
        %v3456 = vunpack.c.h.b16 %v3138
        %v3457 = vunpack.c.l.b16 %v3139
        %v3458 = vunpack.c.h.b16 %v3139
        %v3459 = vunpack.c.l.b16 %v3140
        %v3460 = vunpack.c.h.b16 %v3140
        %v3461 = vunpack.c.l.b16 %v3141
        %v3462 = vunpack.c.h.b16 %v3141
        %v3463 = vunpack.c.l.b16 %v3142
        %v3464 = vunpack.c.h.b16 %v3142
        %v3465 = vunpack.c.l.b16 %v3143
        %v3466 = vunpack.c.h.b16 %v3143
        %v3467 = vunpack.c.l.b16 %v3144
        %v3468 = vunpack.c.h.b16 %v3144
        %v3469 = vunpack.c.l.b16 %v3145
        %v3470 = vunpack.c.h.b16 %v3145
        %v3471 = vunpack.c.l.b16 %v3146
        %v3472 = vunpack.c.h.b16 %v3146
        %v3473 = vunpack.c.l.b16 %v3147
        %v3474 = vunpack.c.h.b16 %v3147
        %v3475 = vunpack.c.l.b16 %v3148
        %v3476 = vunpack.c.h.b16 %v3148
        %v3477 = vunpack.c.l.b16 %v3149
        %v3478 = vunpack.c.h.b16 %v3149
        %v3479 = vunpack.c.l.b16 %v3150
        %v3480 = vunpack.c.h.b16 %v3150
        %v3481 = vunpack.c.l.b16 %v3151
        %v3482 = vunpack.c.h.b16 %v3151
        %v3483 = vunpack.c.l.b16 %v3152
        %v3484 = vunpack.c.h.b16 %v3152
        %v3485 = vunpack.c.l.b16 %v3153
        %v3486 = vunpack.c.h.b16 %v3153
        %v3487 = vunpack.c.l.b16 %v3154
        %v3488 = vunpack.c.h.b16 %v3154
        %v3489 = vunpack.c.l.b16 %v3155
        %v3490 = vunpack.c.h.b16 %v3155
        %v3491 = vunpack.c.l.b16 %v3156
        %v3492 = vunpack.c.h.b16 %v3156
        %v3493 = vunpack.c.l.b16 %v3157
        %v3494 = vunpack.c.h.b16 %v3157
        %v3495 = vunpack.c.l.b16 %v3158
        %v3496 = vunpack.c.h.b16 %v3158
        %v3497 = vunpack.c.l.b16 %v3159
        %v3498 = vunpack.c.h.b16 %v3159
        %v3499 = vunpack.c.l.b16 %v3160
        %v3500 = vunpack.c.h.b16 %v3160
        %v3501 = vunpack.c.l.b16 %v3161
        %v3502 = vunpack.c.h.b16 %v3161
        %v3503 = vunpack.c.l.b16 %v3162
        %v3504 = vunpack.c.h.b16 %v3162
        %v3505 = vunpack.c.l.b16 %v3163
        %v3506 = vunpack.c.h.b16 %v3163
        %v3507 = vunpack.c.l.b16 %v3164
        %v3508 = vunpack.c.h.b16 %v3164
        %v3509 = vunpack.c.l.b16 %v3165
        %v3510 = vunpack.c.h.b16 %v3165
        %v3511 = vunpack.c.l.b16 %v3166
        %v3512 = vunpack.c.h.b16 %v3166
        %v3513 = vunpack.c.l.b16 %v3167
        %v3514 = vunpack.c.h.b16 %v3167
        %v3515 = vunpack.c.l.b16 %v3168
        %v3516 = vunpack.c.h.b16 %v3168
        %v3517 = vunpack.c.l.b16 %v3169
        %v3518 = vunpack.c.h.b16 %v3169
        %v3519 = vunpack.c.l.b16 %v3170
        %v3520 = vunpack.c.h.b16 %v3170
        %v3521 = vunpack.c.l.b16 %v3171
        %v3522 = vunpack.c.h.b16 %v3171
        %v3523 = vunpack.c.l.b16 %v3172
        %v3524 = vunpack.c.h.b16 %v3172
        %v3525 = vunpack.c.l.b16 %v3173
        %v3526 = vunpack.c.h.b16 %v3173
        %v3527 = vunpack.c.l.b16 %v3174
        %v3528 = vunpack.c.h.b16 %v3174
        %v3529 = vunpack.c.l.b16 %v3175
        %v3530 = vunpack.c.h.b16 %v3175
        %v3531 = vunpack.c.l.b16 %v3176
        %v3532 = vunpack.c.h.b16 %v3176
        %v3533 = vunpack.c.l.b16 %v3177
        %v3534 = vunpack.c.h.b16 %v3177
        %v3535 = vunpack.c.l.b16 %v3178
        %v3536 = vunpack.c.h.b16 %v3178
        %v3537 = vunpack.c.l.b16 %v3179
        %v3538 = vunpack.c.h.b16 %v3179
        %v3539 = vunpack.c.l.b16 %v3180
        %v3540 = vunpack.c.h.b16 %v3180
        %v3541 = vunpack.c.l.b16 %v3181
        %v3542 = vunpack.c.h.b16 %v3181
        %v3543 = vunpack.c.l.b16 %v3182
        %v3544 = vunpack.c.h.b16 %v3182
        %v3545 = vunpack.c.l.b16 %v3183
        %v3546 = vunpack.c.h.b16 %v3183
        %v3547 = vunpack.c.l.b16 %v3184
        %v3548 = vunpack.c.h.b16 %v3184
        %v3549 = vunpack.c.l.b16 %v3185
        %v3550 = vunpack.c.h.b16 %v3185
        %v3551 = vunpack.c.l.b16 %v3186
        %v3552 = vunpack.c.h.b16 %v3186
        %v3553 = vunpack.c.l.b16 %v3187
        %v3554 = vunpack.c.h.b16 %v3187
        %v3555 = vunpack.c.l.b16 %v3188
        %v3556 = vunpack.c.h.b16 %v3188
        %v3557 = vunpack.c.l.b16 %v3189
        %v3558 = vunpack.c.h.b16 %v3189
        %v3559 = vunpack.c.l.b16 %v3190
        %v3560 = vunpack.c.h.b16 %v3190
        %v3561 = vunpack.c.l.b16 %v3191
        %v3562 = vunpack.c.h.b16 %v3191
        %v3563 = vunpack.c.l.b16 %v3192
        %v3564 = vunpack.c.h.b16 %v3192
        %v3565 = vunpack.c.l.b16 %v3193
        %v3566 = vunpack.c.h.b16 %v3193
        %v3567 = vunpack.c.l.b16 %v3194
        %v3568 = vunpack.c.h.b16 %v3194
        %v3569 = vunpack.c.l.b16 %v3195
        %v3570 = vunpack.c.h.b16 %v3195
        %v3571 = vunpack.c.l.b16 %v3196
        %v3572 = vunpack.c.h.b16 %v3196
        %v3573 = vunpack.c.l.b16 %v3197
        %v3574 = vunpack.c.h.b16 %v3197
        %v3575 = vunpack.c.l.b16 %v3198
        %v3576 = vunpack.c.h.b16 %v3198
        %v3577 = vunpack.c.l.b16 %v3199
        %v3578 = vunpack.c.h.b16 %v3199
        %v3579 = vunpack.c.l.b16 %v3200
        %v3580 = vunpack.c.h.b16 %v3200
        %v3581 = vunpack.c.l.b16 %v3201
        %v3582 = vunpack.c.h.b16 %v3201
        %v3583 = vpack.c.b16 %v3339, %v3337
        %v3584 = vpack.c.b16 %v3340, %v3338
        %v3585 = vpack.c.b16 %v3343, %v3341
        %v3586 = vpack.c.b16 %v3344, %v3342
        %v3587 = vpack.c.b16 %v3347, %v3345
        %v3588 = vpack.c.b16 %v3348, %v3346
        %v3589 = vpack.c.b16 %v3351, %v3349
        %v3590 = vpack.c.b16 %v3352, %v3350
        %v3591 = vpack.c.b16 %v3355, %v3353
        %v3592 = vpack.c.b16 %v3356, %v3354
        %v3593 = vpack.c.b16 %v3359, %v3357
        %v3594 = vpack.c.b16 %v3360, %v3358
        %v3595 = vpack.c.b16 %v3363, %v3361
        %v3596 = vpack.c.b16 %v3364, %v3362
        %v3597 = vpack.c.b16 %v3367, %v3365
        %v3598 = vpack.c.b16 %v3368, %v3366
        %v3599 = vpack.c.b16 %v3371, %v3369
        %v3600 = vpack.c.b16 %v3372, %v3370
        %v3601 = vpack.c.b16 %v3375, %v3373
        %v3602 = vpack.c.b16 %v3376, %v3374
        %v3603 = vpack.c.b16 %v3379, %v3377
        %v3604 = vpack.c.b16 %v3380, %v3378
        %v3605 = vpack.c.b16 %v3383, %v3381
        %v3606 = vpack.c.b16 %v3384, %v3382
        %v3607 = vpack.c.b16 %v3387, %v3385
        %v3608 = vpack.c.b16 %v3388, %v3386
        %v3609 = vpack.c.b16 %v3391, %v3389
        %v3610 = vpack.c.b16 %v3392, %v3390
        %v3611 = vpack.c.b16 %v3395, %v3393
        %v3612 = vpack.c.b16 %v3396, %v3394
        %v3613 = vpack.c.b16 %v3399, %v3397
        %v3614 = vpack.c.b16 %v3400, %v3398
        %v3615 = vpack.c.b16 %v3403, %v3401
        %v3616 = vpack.c.b16 %v3404, %v3402
        %v3617 = vpack.c.b16 %v3407, %v3405
        %v3618 = vpack.c.b16 %v3408, %v3406
        %v3619 = vpack.c.b16 %v3411, %v3409
        %v3620 = vpack.c.b16 %v3412, %v3410
        %v3621 = vpack.c.b16 %v3415, %v3413
        %v3622 = vpack.c.b16 %v3416, %v3414
        %v3623 = vpack.c.b16 %v3419, %v3417
        %v3624 = vpack.c.b16 %v3420, %v3418
        %v3625 = vpack.c.b16 %v3423, %v3421
        %v3626 = vpack.c.b16 %v3424, %v3422
        %v3627 = vpack.c.b16 %v3427, %v3425
        %v3628 = vpack.c.b16 %v3428, %v3426
        %v3629 = vpack.c.b16 %v3431, %v3429
        %v3630 = vpack.c.b16 %v3432, %v3430
        %v3631 = vpack.c.b16 %v3435, %v3433
        %v3632 = vpack.c.b16 %v3436, %v3434
        %v3633 = vpack.c.b16 %v3439, %v3437
        %v3634 = vpack.c.b16 %v3440, %v3438
        %v3635 = vpack.c.b16 %v3443, %v3441
        %v3636 = vpack.c.b16 %v3444, %v3442
        %v3637 = vpack.c.b16 %v3447, %v3445
        %v3638 = vpack.c.b16 %v3448, %v3446
        %v3639 = vpack.c.b16 %v3451, %v3449
        %v3640 = vpack.c.b16 %v3452, %v3450
        %v3641 = vpack.c.b16 %v3455, %v3453
        %v3642 = vpack.c.b16 %v3456, %v3454
        %v3643 = vpack.c.b16 %v3459, %v3457
        %v3644 = vpack.c.b16 %v3460, %v3458
        %v3645 = vpack.c.b16 %v3463, %v3461
        %v3646 = vpack.c.b16 %v3464, %v3462
        %v3647 = vpack.c.b16 %v3467, %v3465
        %v3648 = vpack.c.b16 %v3468, %v3466
        %v3649 = vpack.c.b16 %v3471, %v3469
        %v3650 = vpack.c.b16 %v3472, %v3470
        %v3651 = vpack.c.b16 %v3475, %v3473
        %v3652 = vpack.c.b16 %v3476, %v3474
        %v3653 = vpack.c.b16 %v3479, %v3477
        %v3654 = vpack.c.b16 %v3480, %v3478
        %v3655 = vpack.c.b16 %v3483, %v3481
        %v3656 = vpack.c.b16 %v3484, %v3482
        %v3657 = vpack.c.b16 %v3487, %v3485
        %v3658 = vpack.c.b16 %v3488, %v3486
        %v3659 = vpack.c.b16 %v3491, %v3489
        %v3660 = vpack.c.b16 %v3492, %v3490
        %v3661 = vpack.c.b16 %v3495, %v3493
        %v3662 = vpack.c.b16 %v3496, %v3494
        %v3663 = vpack.c.b16 %v3499, %v3497
        %v3664 = vpack.c.b16 %v3500, %v3498
        %v3665 = vpack.c.b16 %v3503, %v3501
        %v3666 = vpack.c.b16 %v3504, %v3502
        %v3667 = vpack.c.b16 %v3507, %v3505
        %v3668 = vpack.c.b16 %v3508, %v3506
        %v3669 = vpack.c.b16 %v3511, %v3509
        %v3670 = vpack.c.b16 %v3512, %v3510
        %v3671 = vpack.c.b16 %v3515, %v3513
        %v3672 = vpack.c.b16 %v3516, %v3514
        %v3673 = vpack.c.b16 %v3519, %v3517
        %v3674 = vpack.c.b16 %v3520, %v3518
        %v3675 = vpack.c.b16 %v3523, %v3521
        %v3676 = vpack.c.b16 %v3524, %v3522
        %v3677 = vpack.c.b16 %v3527, %v3525
        %v3678 = vpack.c.b16 %v3528, %v3526
        %v3679 = vpack.c.b16 %v3531, %v3529
        %v3680 = vpack.c.b16 %v3532, %v3530
        %v3681 = vpack.c.b16 %v3535, %v3533
        %v3682 = vpack.c.b16 %v3536, %v3534
        %v3683 = vpack.c.b16 %v3539, %v3537
        %v3684 = vpack.c.b16 %v3540, %v3538
        %v3685 = vpack.c.b16 %v3543, %v3541
        %v3686 = vpack.c.b16 %v3544, %v3542
        %v3687 = vpack.c.b16 %v3547, %v3545
        %v3688 = vpack.c.b16 %v3548, %v3546
        %v3689 = vpack.c.b16 %v3551, %v3549
        %v3690 = vpack.c.b16 %v3552, %v3550
        %v3691 = vpack.c.b16 %v3555, %v3553
        %v3692 = vpack.c.b16 %v3556, %v3554
        %v3693 = vpack.c.b16 %v3559, %v3557
        %v3694 = vpack.c.b16 %v3560, %v3558
        %v3695 = vpack.c.b16 %v3563, %v3561
        %v3696 = vpack.c.b16 %v3564, %v3562
        %v3697 = vpack.c.b16 %v3567, %v3565
        %v3698 = vpack.c.b16 %v3568, %v3566
        %v3699 = vpack.c.b16 %v3571, %v3569
        %v3700 = vpack.c.b16 %v3572, %v3570
        %v3701 = vpack.c.b16 %v3575, %v3573
        %v3702 = vpack.c.b16 %v3576, %v3574
        %v3703 = vpack.c.b16 %v3579, %v3577
        %v3704 = vpack.c.b16 %v3580, %v3578
        %v3705 = vpack.c.b16 %v3581, %v3581
        %v3706 = vpack.c.b16 %v3582, %v3582
        %vm3829 = vcmask 687104
        %v3831 = vsel %vm3829, %v3078, 0
        %v3834 = vsel %vm1270, %v3705, 0
        %v3837 = vsel %vm1270, %v3706, 0
        %3839 = vmatprep.subr.bf16.mxu0 %v3598
        %3840 = vmatpush1.bf16.msra.mxu0 %v3597
        %3841 = vmatprep.subr.bf16.mxu0 %v3596
        %3842 = vmatpush1.bf16.msra.mxu0 %v3595
        %3843 = vmatprep.subr.bf16.mxu0 %v3594
        %3844 = vmatpush1.bf16.msra.mxu0 %v3593
        %3845 = vmatprep.subr.bf16.mxu0 %v3592
        %3846 = vmatpush1.bf16.msra.mxu0 %v3591
        %3847 = vmatprep.subr.bf16.mxu0 %v3590
        %3848 = vmatpush1.bf16.msra.mxu0 %v3589
        %3849 = vmatprep.subr.bf16.mxu0 %v3588
        %3850 = vmatpush1.bf16.msra.mxu0 %v3587
        %3851 = vmatprep.subr.bf16.mxu0 %v3586
        %3852 = vmatpush1.bf16.msra.mxu0 %v3585
        %3853 = vmatprep.subr.bf16.mxu0 %v3584
        %3854 = vmatpush1.bf16.msra.mxu0 %v3583
        %3855 = vmatprep.subr.bf16.mxu0 %v3614
        %3856 = vmatpush2.bf16.msra.mxu0 %v3613
        %3857 = vmatprep.subr.bf16.mxu0 %v3612
        %3858 = vmatpush2.bf16.msra.mxu0 %v3611
        %3859 = vmatprep.subr.bf16.mxu0 %v3610
        %3860 = vmatpush2.bf16.msra.mxu0 %v3609
        %3861 = vmatprep.subr.bf16.mxu0 %v3608
        %3862 = vmatpush2.bf16.msra.mxu0 %v3607
        %3863 = vmatprep.subr.bf16.mxu0 %v3606
        %3864 = vmatpush2.bf16.msra.mxu0 %v3605
        %3865 = vmatprep.subr.bf16.mxu0 %v3604
        %3866 = vmatpush2.bf16.msra.mxu0 %v3603
        %3867 = vmatprep.subr.bf16.mxu0 %v3602
        %3868 = vmatpush2.bf16.msra.mxu0 %v3601
        %3869 = vmatprep.subr.bf16.mxu0 %v3600
        %3870 = vmatpush2.bf16.msra.mxu0 %v3599
        %3871 = vmatprep.mubr.bf16.mxu0 %v3072
        %3872 = vmatmul.mubr.bf16.gmra.mxu0 %v3071
        %v3873 = vpop.f32.mrf.mxu0
        %v3874 = vadd.f32 %v3207, %v3873
        %v3875 = vpop.f32.mrf.mxu0
        %v3876 = vadd.f32 %v3211, %v3875
        %v3877 = vpop.f32.mrf.mxu0
        %v3878 = vadd.f32 %v3207, %v3877
        %v3879 = vpop.f32.mrf.mxu0
        %v3880 = vadd.f32 %v3211, %v3879
        %3881 = vdwg.mxu0
        %3882 = vmatprep.subr.bf16.mxu0 %v3630
        %3883 = vmatpush1.bf16.msra.mxu0 %v3629
        %3884 = vmatprep.subr.bf16.mxu0 %v3628
        %3885 = vmatpush1.bf16.msra.mxu0 %v3627
        %3886 = vmatprep.subr.bf16.mxu0 %v3626
        %3887 = vmatpush1.bf16.msra.mxu0 %v3625
        %3888 = vmatprep.subr.bf16.mxu0 %v3624
        %3889 = vmatpush1.bf16.msra.mxu0 %v3623
        %3890 = vmatprep.subr.bf16.mxu0 %v3622
        %3891 = vmatpush1.bf16.msra.mxu0 %v3621
        %3892 = vmatprep.subr.bf16.mxu0 %v3620
        %3893 = vmatpush1.bf16.msra.mxu0 %v3619
        %3894 = vmatprep.subr.bf16.mxu0 %v3618
        %3895 = vmatpush1.bf16.msra.mxu0 %v3617
        %3896 = vmatprep.subr.bf16.mxu0 %v3616
        %3897 = vmatpush1.bf16.msra.mxu0 %v3615
        %3898 = vmatprep.subr.bf16.mxu0 %v3646
        %3899 = vmatpush2.bf16.msra.mxu0 %v3645
        %3900 = vmatprep.subr.bf16.mxu0 %v3644
        %3901 = vmatpush2.bf16.msra.mxu0 %v3643
        %3902 = vmatprep.subr.bf16.mxu0 %v3642
        %3903 = vmatpush2.bf16.msra.mxu0 %v3641
        %3904 = vmatprep.subr.bf16.mxu0 %v3640
        %3905 = vmatpush2.bf16.msra.mxu0 %v3639
        %3906 = vmatprep.subr.bf16.mxu0 %v3638
        %3907 = vmatpush2.bf16.msra.mxu0 %v3637
        %3908 = vmatprep.subr.bf16.mxu0 %v3636
        %3909 = vmatpush2.bf16.msra.mxu0 %v3635
        %3910 = vmatprep.subr.bf16.mxu0 %v3634
        %3911 = vmatpush2.bf16.msra.mxu0 %v3633
        %3912 = vmatprep.subr.bf16.mxu0 %v3632
        %3913 = vmatpush2.bf16.msra.mxu0 %v3631
        %3914 = vmatprep.mubr.bf16.mxu0 %v3074
        %3915 = vmatmul.mubr.bf16.gmra.mxu0 %v3073
        %v3916 = vpop.f32.mrf.mxu0
        %v3917 = vadd.f32 %v3874, %v3916
        %v3918 = vpop.f32.mrf.mxu0
        %v3919 = vadd.f32 %v3876, %v3918
        %v3920 = vpop.f32.mrf.mxu0
        %v3921 = vadd.f32 %v3878, %v3920
        %v3922 = vpop.f32.mrf.mxu0
        %v3923 = vadd.f32 %v3880, %v3922
        %3924 = vdwg.mxu0
        %3925 = vmatprep.subr.bf16.mxu0 %v3662
        %3926 = vmatpush1.bf16.msra.mxu0 %v3661
        %3927 = vmatprep.subr.bf16.mxu0 %v3660
        %3928 = vmatpush1.bf16.msra.mxu0 %v3659
        %3929 = vmatprep.subr.bf16.mxu0 %v3658
        %3930 = vmatpush1.bf16.msra.mxu0 %v3657
        %3931 = vmatprep.subr.bf16.mxu0 %v3656
        %3932 = vmatpush1.bf16.msra.mxu0 %v3655
        %3933 = vmatprep.subr.bf16.mxu0 %v3654
        %3934 = vmatpush1.bf16.msra.mxu0 %v3653
        %3935 = vmatprep.subr.bf16.mxu0 %v3652
        %3936 = vmatpush1.bf16.msra.mxu0 %v3651
        %3937 = vmatprep.subr.bf16.mxu0 %v3650
        %3938 = vmatpush1.bf16.msra.mxu0 %v3649
        %3939 = vmatprep.subr.bf16.mxu0 %v3648
        %3940 = vmatpush1.bf16.msra.mxu0 %v3647
        %3941 = vmatprep.subr.bf16.mxu0 %v3678
        %3942 = vmatpush2.bf16.msra.mxu0 %v3677
        %3943 = vmatprep.subr.bf16.mxu0 %v3676
        %3944 = vmatpush2.bf16.msra.mxu0 %v3675
        %3945 = vmatprep.subr.bf16.mxu0 %v3674
        %3946 = vmatpush2.bf16.msra.mxu0 %v3673
        %3947 = vmatprep.subr.bf16.mxu0 %v3672
        %3948 = vmatpush2.bf16.msra.mxu0 %v3671
        %3949 = vmatprep.subr.bf16.mxu0 %v3670
        %3950 = vmatpush2.bf16.msra.mxu0 %v3669
        %3951 = vmatprep.subr.bf16.mxu0 %v3668
        %3952 = vmatpush2.bf16.msra.mxu0 %v3667
        %3953 = vmatprep.subr.bf16.mxu0 %v3666
        %3954 = vmatpush2.bf16.msra.mxu0 %v3665
        %3955 = vmatprep.subr.bf16.mxu0 %v3664
        %3956 = vmatpush2.bf16.msra.mxu0 %v3663
        %3957 = vmatprep.mubr.bf16.mxu0 %v3076
        %3958 = vmatmul.mubr.bf16.gmra.mxu0 %v3075
        %v3959 = vpop.f32.mrf.mxu0
        %v3960 = vadd.f32 %v3917, %v3959
        %v3961 = vpop.f32.mrf.mxu0
        %v3962 = vadd.f32 %v3919, %v3961
        %v3963 = vpop.f32.mrf.mxu0
        %v3964 = vadd.f32 %v3921, %v3963
        %v3965 = vpop.f32.mrf.mxu0
        %v3966 = vadd.f32 %v3923, %v3965
        %3967 = vdwg.mxu0
        %3968 = vmatprep.subr.bf16.mxu0 %v3694
        %3969 = vmatpush1.bf16.msra.mxu0 %v3693
        %3970 = vmatprep.subr.bf16.mxu0 %v3692
        %3971 = vmatpush1.bf16.msra.mxu0 %v3691
        %3972 = vmatprep.subr.bf16.mxu0 %v3690
        %3973 = vmatpush1.bf16.msra.mxu0 %v3689
        %3974 = vmatprep.subr.bf16.mxu0 %v3688
        %3975 = vmatpush1.bf16.msra.mxu0 %v3687
        %3976 = vmatprep.subr.bf16.mxu0 %v3686
        %3977 = vmatpush1.bf16.msra.mxu0 %v3685
        %3978 = vmatprep.subr.bf16.mxu0 %v3684
        %3979 = vmatpush1.bf16.msra.mxu0 %v3683
        %3980 = vmatprep.subr.bf16.mxu0 %v3682
        %3981 = vmatpush1.bf16.msra.mxu0 %v3681
        %3982 = vmatprep.subr.bf16.mxu0 %v3680
        %3983 = vmatpush1.bf16.msra.mxu0 %v3679
        %3984 = vmatprep.subr.bf16.mxu0 0
        %3985 = vmatpush2.bf16.msra.mxu0 0
        %3986 = vmatprep.subr.bf16.mxu0 0
        %3987 = vmatpush2.bf16.msra.mxu0 0
        %3988 = vmatprep.subr.bf16.mxu0 %v3837
        %3989 = vmatpush2.bf16.msra.mxu0 %v3834
        %3990 = vmatprep.subr.bf16.mxu0 %v3704
        %3991 = vmatpush2.bf16.msra.mxu0 %v3703
        %3992 = vmatprep.subr.bf16.mxu0 %v3702
        %3993 = vmatpush2.bf16.msra.mxu0 %v3701
        %3994 = vmatprep.subr.bf16.mxu0 %v3700
        %3995 = vmatpush2.bf16.msra.mxu0 %v3699
        %3996 = vmatprep.subr.bf16.mxu0 %v3698
        %3997 = vmatpush2.bf16.msra.mxu0 %v3697
        %3998 = vmatprep.subr.bf16.mxu0 %v3696
        %3999 = vmatpush2.bf16.msra.mxu0 %v3695
        %4000 = vmatprep.mubr.bf16.mxu0 %v3831
        %4001 = vmatmul.mubr.bf16.gmra.mxu0 %v3077
        %v4002 = vpop.f32.mrf.mxu0
        %v4003 = vadd.f32 %v3960, %v4002
        %v4004 = vpop.f32.mrf.mxu0
        %v4005 = vadd.f32 %v3962, %v4004
        %v4006 = vpop.f32.mrf.mxu0
        %v4007 = vadd.f32 %v3964, %v4006
        %v4008 = vpop.f32.mrf.mxu0
        %v4009 = vadd.f32 %v3966, %v4008
        %4010 = vdwg.mxu0
        %v4011 = vmax.f32 %v4003, 0.0
        %v4012 = vmax.f32 %v4005, 0.0
        %v4013 = vmax.f32 %v4007, 0.0
        %v4014 = vmax.f32 %v4009, 0.0
        %v4015 = vpack.c.bf16 %v4013, %v4011
        %v4016 = vpack.c.bf16 %v4014, %v4012
        %v4017 = vld [vmem:[%s7] sm:$0xff]
        %v4018 = vld [vmem:[%s7 + $0x8] sm:$0xf]
        %v4019 = vld [vmem:[%s7 + $0xc] sm:$0xff]
        %v4020 = vld [vmem:[%s7 + $0x14] sm:$0xf]
        %v4021 = vld [vmem:[%s7 + $0x18] sm:$0xff]
        %v4022 = vld [vmem:[%s7 + $0x20] sm:$0xf]
        %v4023 = vld [vmem:[%s7 + $0x24] sm:$0xff]
        %v4024 = vld [vmem:[%s7 + $0x2c] sm:$0xf]
        %v4025 = vld [vmem:[%s7 + $0x30] sm:$0xff]
        %v4026 = vld [vmem:[%s7 + $0x38] sm:$0xf]
        %v4027 = vld [vmem:[%s7 + $0x3c] sm:$0xff]
        %v4028 = vld [vmem:[%s7 + $0x44] sm:$0xf]
        %v4029 = vld [vmem:[%s7 + $0x48] sm:$0xff]
        %v4030 = vld [vmem:[%s7 + $0x50] sm:$0xf]
        %v4031 = vld [vmem:[%s7 + $0x54] sm:$0xff]
        %v4032 = vld [vmem:[%s7 + $0x5c] sm:$0xf]
        %v4033 = vld [vmem:[%s7 + $0x60] sm:$0xff]
        %v4034 = vld [vmem:[%s7 + $0x68] sm:$0xf]
        %v4035 = vld [vmem:[%s7 + $0x6c] sm:$0xff]
        %v4036 = vld [vmem:[%s7 + $0x74] sm:$0xf]
        %v4037 = vld [vmem:[%s7 + $0x78] sm:$0xff]
        %v4038 = vld [vmem:[%s7 + $0x80] sm:$0xf]
        %v4039 = vld [vmem:[%s7 + $0x84] sm:$0xff]
        %v4040 = vld [vmem:[%s7 + $0x8c] sm:$0xf]
        %v4041 = vld [vmem:[%s7 + $0x90] sm:$0xff]
        %v4042 = vld [vmem:[%s7 + $0x98] sm:$0xf]
        %v4043 = vld [vmem:[%s7 + $0x9c] sm:$0xff]
        %v4044 = vld [vmem:[%s7 + $0xa4] sm:$0xf]
        %v4045 = vld [vmem:[%s7 + $0xa8] sm:$0xff]
        %v4046 = vld [vmem:[%s7 + $0xb0] sm:$0xf]
        %v4047 = vld [vmem:[%s7 + $0xb4] sm:$0xff]
        %v4048 = vld [vmem:[%s7 + $0xbc] sm:$0xf]
        %v4049 = vld [vmem:[%s7 + $0xc0] sm:$0xff]
        %v4050 = vld [vmem:[%s7 + $0xc8] sm:$0xf]
        %v4051 = vld [vmem:[%s7 + $0xcc] sm:$0xff]
        %v4052 = vld [vmem:[%s7 + $0xd4] sm:$0xf]
        %v4053 = vld [vmem:[%s7 + $0xd8] sm:$0xff]
        %v4054 = vld [vmem:[%s7 + $0xe0] sm:$0xf]
        %v4055 = vld [vmem:[%s7 + $0xe4] sm:$0xff]
        %v4056 = vld [vmem:[%s7 + $0xec] sm:$0xf]
        %v4057 = vld [vmem:[%s7 + $0xf0] sm:$0xff]
        %v4058 = vld [vmem:[%s7 + $0xf8] sm:$0xf]
        %v4059 = vld [vmem:[%s7 + $0xfc] sm:$0xff]
        %v4060 = vld [vmem:[%s7 + $0x104] sm:$0xf]
        %v4061 = vld [vmem:[%s7 + $0x108] sm:$0xff]
        %v4062 = vld [vmem:[%s7 + $0x110] sm:$0xf]
        %v4063 = vld [vmem:[%s7 + $0x114] sm:$0xff]
        %v4064 = vld [vmem:[%s7 + $0x11c] sm:$0xf]
        %v4065 = vld [vmem:[%s7 + $0x120] sm:$0xff]
        %v4066 = vld [vmem:[%s7 + $0x128] sm:$0xf]
        %v4067 = vld [vmem:[%s7 + $0x12c] sm:$0xff]
        %v4068 = vld [vmem:[%s7 + $0x134] sm:$0xf]
        %v4069 = vld [vmem:[%s7 + $0x138] sm:$0xff]
        %v4070 = vld [vmem:[%s7 + $0x140] sm:$0xf]
        %v4071 = vld [vmem:[%s7 + $0x144] sm:$0xff]
        %v4072 = vld [vmem:[%s7 + $0x14c] sm:$0xf]
        %v4073 = vld [vmem:[%s7 + $0x150] sm:$0xff]
        %v4074 = vld [vmem:[%s7 + $0x158] sm:$0xf]
        %v4075 = vld [vmem:[%s7 + $0x15c] sm:$0xff]
        %v4076 = vld [vmem:[%s7 + $0x164] sm:$0xf]
        %v4077 = vld [vmem:[%s7 + $0x168] sm:$0xff]
        %v4078 = vld [vmem:[%s7 + $0x170] sm:$0xf]
        %v4079 = vld [vmem:[%s7 + $0x174] sm:$0xff]
        %v4080 = vld [vmem:[%s7 + $0x17c] sm:$0xf]
        %v4081 = vld [vmem:[%s8] sm:$0x7]
        %v4083 = vlaneseq
        %v4084 = vshrl.u32 %v4083, 7
        %v4085 = vsub.s32 0, %v4084
        %v4086 = vrot.slane %v4081, %v4085
        %v4087 = vlaneseq
        %v4088 = vshrl.u32 %v4087, 7
        %v4089 = vsub.s32 1, %v4088
        %v4090 = vrot.slane %v4081, %v4089
        %v4091 = vlaneseq
        %v4092 = vshrl.u32 %v4091, 7
        %v4093 = vsub.s32 2, %v4092
        %v4094 = vrot.slane %v4081, %v4093
        %v4162 = vunpack.c.l.b16 %v4017
        %v4163 = vunpack.c.h.b16 %v4017
        %v4164 = vunpack.c.l.b16 %v4018
        %v4165 = vunpack.c.l.b16 %v4019
        %v4166 = vunpack.c.h.b16 %v4019
        %v4167 = vunpack.c.l.b16 %v4020
        %v4168 = vunpack.c.l.b16 %v4021
        %v4169 = vunpack.c.h.b16 %v4021
        %v4170 = vunpack.c.l.b16 %v4022
        %v4171 = vunpack.c.l.b16 %v4023
        %v4172 = vunpack.c.h.b16 %v4023
        %v4173 = vunpack.c.l.b16 %v4024
        %v4174 = vunpack.c.l.b16 %v4025
        %v4175 = vunpack.c.h.b16 %v4025
        %v4176 = vunpack.c.l.b16 %v4026
        %v4177 = vunpack.c.l.b16 %v4027
        %v4178 = vunpack.c.h.b16 %v4027
        %v4179 = vunpack.c.l.b16 %v4028
        %v4180 = vunpack.c.l.b16 %v4029
        %v4181 = vunpack.c.h.b16 %v4029
        %v4182 = vunpack.c.l.b16 %v4030
        %v4183 = vunpack.c.l.b16 %v4031
        %v4184 = vunpack.c.h.b16 %v4031
        %v4185 = vunpack.c.l.b16 %v4032
        %v4186 = vunpack.c.l.b16 %v4033
        %v4187 = vunpack.c.h.b16 %v4033
        %v4188 = vunpack.c.l.b16 %v4034
        %v4189 = vunpack.c.l.b16 %v4035
        %v4190 = vunpack.c.h.b16 %v4035
        %v4191 = vunpack.c.l.b16 %v4036
        %v4192 = vunpack.c.l.b16 %v4037
        %v4193 = vunpack.c.h.b16 %v4037
        %v4194 = vunpack.c.l.b16 %v4038
        %v4195 = vunpack.c.l.b16 %v4039
        %v4196 = vunpack.c.h.b16 %v4039
        %v4197 = vunpack.c.l.b16 %v4040
        %v4198 = vunpack.c.l.b16 %v4041
        %v4199 = vunpack.c.h.b16 %v4041
        %v4200 = vunpack.c.l.b16 %v4042
        %v4201 = vunpack.c.l.b16 %v4043
        %v4202 = vunpack.c.h.b16 %v4043
        %v4203 = vunpack.c.l.b16 %v4044
        %v4204 = vunpack.c.l.b16 %v4045
        %v4205 = vunpack.c.h.b16 %v4045
        %v4206 = vunpack.c.l.b16 %v4046
        %v4207 = vunpack.c.l.b16 %v4047
        %v4208 = vunpack.c.h.b16 %v4047
        %v4209 = vunpack.c.l.b16 %v4048
        %v4210 = vunpack.c.l.b16 %v4049
        %v4211 = vunpack.c.h.b16 %v4049
        %v4212 = vunpack.c.l.b16 %v4050
        %v4213 = vunpack.c.l.b16 %v4051
        %v4214 = vunpack.c.h.b16 %v4051
        %v4215 = vunpack.c.l.b16 %v4052
        %v4216 = vunpack.c.l.b16 %v4053
        %v4217 = vunpack.c.h.b16 %v4053
        %v4218 = vunpack.c.l.b16 %v4054
        %v4219 = vunpack.c.l.b16 %v4055
        %v4220 = vunpack.c.h.b16 %v4055
        %v4221 = vunpack.c.l.b16 %v4056
        %v4222 = vunpack.c.l.b16 %v4057
        %v4223 = vunpack.c.h.b16 %v4057
        %v4224 = vunpack.c.l.b16 %v4058
        %v4225 = vunpack.c.l.b16 %v4059
        %v4226 = vunpack.c.h.b16 %v4059
        %v4227 = vunpack.c.l.b16 %v4060
        %v4228 = vunpack.c.l.b16 %v4061
        %v4229 = vunpack.c.h.b16 %v4061
        %v4230 = vunpack.c.l.b16 %v4062
        %v4231 = vunpack.c.l.b16 %v4063
        %v4232 = vunpack.c.h.b16 %v4063
        %v4233 = vunpack.c.l.b16 %v4064
        %v4234 = vunpack.c.l.b16 %v4065
        %v4235 = vunpack.c.h.b16 %v4065
        %v4236 = vunpack.c.l.b16 %v4066
        %v4237 = vunpack.c.l.b16 %v4067
        %v4238 = vunpack.c.h.b16 %v4067
        %v4239 = vunpack.c.l.b16 %v4068
        %v4240 = vunpack.c.l.b16 %v4069
        %v4241 = vunpack.c.h.b16 %v4069
        %v4242 = vunpack.c.l.b16 %v4070
        %v4243 = vunpack.c.l.b16 %v4071
        %v4244 = vunpack.c.h.b16 %v4071
        %v4245 = vunpack.c.l.b16 %v4072
        %v4246 = vunpack.c.l.b16 %v4073
        %v4247 = vunpack.c.h.b16 %v4073
        %v4248 = vunpack.c.l.b16 %v4074
        %v4249 = vunpack.c.l.b16 %v4075
        %v4250 = vunpack.c.h.b16 %v4075
        %v4251 = vunpack.c.l.b16 %v4076
        %v4252 = vunpack.c.l.b16 %v4077
        %v4253 = vunpack.c.h.b16 %v4077
        %v4254 = vunpack.c.l.b16 %v4078
        %v4255 = vunpack.c.l.b16 %v4079
        %v4256 = vunpack.c.h.b16 %v4079
        %v4257 = vunpack.c.l.b16 %v4080
        %v4258 = vpack.c.b16 %v4165, %v4162
        %v4259 = vpack.c.b16 %v4166, %v4163
        %v4260 = vpack.c.b16 %v4167, %v4164
        %v4261 = vpack.c.b16 %v4171, %v4168
        %v4262 = vpack.c.b16 %v4172, %v4169
        %v4263 = vpack.c.b16 %v4173, %v4170
        %v4264 = vpack.c.b16 %v4177, %v4174
        %v4265 = vpack.c.b16 %v4178, %v4175
        %v4266 = vpack.c.b16 %v4179, %v4176
        %v4267 = vpack.c.b16 %v4183, %v4180
        %v4268 = vpack.c.b16 %v4184, %v4181
        %v4269 = vpack.c.b16 %v4185, %v4182
        %v4270 = vpack.c.b16 %v4189, %v4186
        %v4271 = vpack.c.b16 %v4190, %v4187
        %v4272 = vpack.c.b16 %v4191, %v4188
        %v4273 = vpack.c.b16 %v4195, %v4192
        %v4274 = vpack.c.b16 %v4196, %v4193
        %v4275 = vpack.c.b16 %v4197, %v4194
        %v4276 = vpack.c.b16 %v4201, %v4198
        %v4277 = vpack.c.b16 %v4202, %v4199
        %v4278 = vpack.c.b16 %v4203, %v4200
        %v4279 = vpack.c.b16 %v4207, %v4204
        %v4280 = vpack.c.b16 %v4208, %v4205
        %v4281 = vpack.c.b16 %v4209, %v4206
        %v4282 = vpack.c.b16 %v4213, %v4210
        %v4283 = vpack.c.b16 %v4214, %v4211
        %v4284 = vpack.c.b16 %v4215, %v4212
        %v4285 = vpack.c.b16 %v4219, %v4216
        %v4286 = vpack.c.b16 %v4220, %v4217
        %v4287 = vpack.c.b16 %v4221, %v4218
        %v4288 = vpack.c.b16 %v4225, %v4222
        %v4289 = vpack.c.b16 %v4226, %v4223
        %v4290 = vpack.c.b16 %v4227, %v4224
        %v4291 = vpack.c.b16 %v4231, %v4228
        %v4292 = vpack.c.b16 %v4232, %v4229
        %v4293 = vpack.c.b16 %v4233, %v4230
        %v4294 = vpack.c.b16 %v4237, %v4234
        %v4295 = vpack.c.b16 %v4238, %v4235
        %v4296 = vpack.c.b16 %v4239, %v4236
        %v4297 = vpack.c.b16 %v4243, %v4240
        %v4298 = vpack.c.b16 %v4244, %v4241
        %v4299 = vpack.c.b16 %v4245, %v4242
        %v4300 = vpack.c.b16 %v4249, %v4246
        %v4301 = vpack.c.b16 %v4250, %v4247
        %v4302 = vpack.c.b16 %v4251, %v4248
        %v4303 = vpack.c.b16 %v4255, %v4252
        %v4304 = vpack.c.b16 %v4256, %v4253
        %v4305 = vpack.c.b16 %v4257, %v4254
        %4354 = vmatprep.subr.bf16.mxu0 %v4280
        %4355 = vmatpush1.bf16.msra.mxu0 %v4279
        %4356 = vmatprep.subr.bf16.mxu0 %v4277
        %4357 = vmatpush1.bf16.msra.mxu0 %v4276
        %4358 = vmatprep.subr.bf16.mxu0 %v4274
        %4359 = vmatpush1.bf16.msra.mxu0 %v4273
        %4360 = vmatprep.subr.bf16.mxu0 %v4271
        %4361 = vmatpush1.bf16.msra.mxu0 %v4270
        %4362 = vmatprep.subr.bf16.mxu0 %v4268
        %4363 = vmatpush1.bf16.msra.mxu0 %v4267
        %4364 = vmatprep.subr.bf16.mxu0 %v4265
        %4365 = vmatpush1.bf16.msra.mxu0 %v4264
        %4366 = vmatprep.subr.bf16.mxu0 %v4262
        %4367 = vmatpush1.bf16.msra.mxu0 %v4261
        %4368 = vmatprep.subr.bf16.mxu0 %v4259
        %4369 = vmatpush1.bf16.msra.mxu0 %v4258
        %4370 = vmatprep.subr.bf16.mxu0 %v4304
        %4371 = vmatpush2.bf16.msra.mxu0 %v4303
        %4372 = vmatprep.subr.bf16.mxu0 %v4301
        %4373 = vmatpush2.bf16.msra.mxu0 %v4300
        %4374 = vmatprep.subr.bf16.mxu0 %v4298
        %4375 = vmatpush2.bf16.msra.mxu0 %v4297
        %4376 = vmatprep.subr.bf16.mxu0 %v4295
        %4377 = vmatpush2.bf16.msra.mxu0 %v4294
        %4378 = vmatprep.subr.bf16.mxu0 %v4292
        %4379 = vmatpush2.bf16.msra.mxu0 %v4291
        %4380 = vmatprep.subr.bf16.mxu0 %v4289
        %4381 = vmatpush2.bf16.msra.mxu0 %v4288
        %4382 = vmatprep.subr.bf16.mxu0 %v4286
        %4383 = vmatpush2.bf16.msra.mxu0 %v4285
        %4384 = vmatprep.subr.bf16.mxu0 %v4283
        %4385 = vmatpush2.bf16.msra.mxu0 %v4282
        %4386 = vmatprep.mubr.bf16.mxu0 %v4016
        %4387 = vmatmul.mubr.bf16.gmra.mxu0 %v4015
        %v4388 = vpop.f32.mrf.mxu0
        %v4389 = vadd.f32 %v4086, %v4388
        %v4390 = vpop.f32.mrf.mxu0
        %v4391 = vadd.f32 %v4090, %v4390
        %v4392 = vpop.f32.mrf.mxu0
        %v4393 = vadd.f32 %v4086, %v4392
        %v4394 = vpop.f32.mrf.mxu0
        %v4395 = vadd.f32 %v4090, %v4394
        %4396 = vdwg.mxu0
        %4397 = vmatprep.subr.bf16.mxu0 0
        %4398 = vmatpush1.bf16.msra.mxu0 %v4281
        %4399 = vmatprep.subr.bf16.mxu0 0
        %4400 = vmatpush1.bf16.msra.mxu0 %v4278
        %4401 = vmatprep.subr.bf16.mxu0 0
        %4402 = vmatpush1.bf16.msra.mxu0 %v4275
        %4403 = vmatprep.subr.bf16.mxu0 0
        %4404 = vmatpush1.bf16.msra.mxu0 %v4272
        %4405 = vmatprep.subr.bf16.mxu0 0
        %4406 = vmatpush1.bf16.msra.mxu0 %v4269
        %4407 = vmatprep.subr.bf16.mxu0 0
        %4408 = vmatpush1.bf16.msra.mxu0 %v4266
        %4409 = vmatprep.subr.bf16.mxu0 0
        %4410 = vmatpush1.bf16.msra.mxu0 %v4263
        %4411 = vmatprep.subr.bf16.mxu0 0
        %4412 = vmatpush1.bf16.msra.mxu0 %v4260
        %4413 = vmatprep.subr.bf16.mxu0 0
        %4414 = vmatpush2.bf16.msra.mxu0 %v4305
        %4415 = vmatprep.subr.bf16.mxu0 0
        %4416 = vmatpush2.bf16.msra.mxu0 %v4302
        %4417 = vmatprep.subr.bf16.mxu0 0
        %4418 = vmatpush2.bf16.msra.mxu0 %v4299
        %4419 = vmatprep.subr.bf16.mxu0 0
        %4420 = vmatpush2.bf16.msra.mxu0 %v4296
        %4421 = vmatprep.subr.bf16.mxu0 0
        %4422 = vmatpush2.bf16.msra.mxu0 %v4293
        %4423 = vmatprep.subr.bf16.mxu0 0
        %4424 = vmatpush2.bf16.msra.mxu0 %v4290
        %4425 = vmatprep.subr.bf16.mxu0 0
        %4426 = vmatpush2.bf16.msra.mxu0 %v4287
        %4427 = vmatprep.subr.bf16.mxu0 0
        %4428 = vmatpush2.bf16.msra.mxu0 %v4284
        %4429 = vmatprep.mubr.bf16.mxu0 %v4016
        %4430 = vmatmul.mubr.bf16.gmra.mxu0 %v4015
        %v4431 = vpop.f32.mrf.mxu0
        %v4432 = vadd.f32 %v4094, %v4431
        %v4433 = vpop.f32.mrf.mxu0
        %v4434 = vpop.f32.mrf.mxu0
        %v4435 = vadd.f32 %v4094, %v4434
        %v4436 = vpop.f32.mrf.mxu0
        %4437 = vdwg.mxu0
        %4438 = vst [vmem:[%s767] sm:$0xff] %v4389
        %4439 = vst [vmem:[%s767 + $0x8] sm:$0xff] %v4391
        %4440 = vst [vmem:[%s767 + $0x10] sm:$0xff] %v4432
        %4441 = vst [vmem:[%s767 + $0x18] sm:$0xff] %v4393
        %4442 = vst [vmem:[%s767 + $0x20] sm:$0xff] %v4395
        %4443 = vst [vmem:[%s767 + $0x28] sm:$0xff] %v4435
        %s4444 = smul.u32 2, %s20
        %p4445 = scmp.lt.s32.totalorder %s4444, 3
        %s4446 = scalar_select %p4445, %s4444, 3
        %s4447 = smul.addr %s4446, 3
        %s4448 = smul.addr %s4447, 8
        %s4449 = scalar_lea.vmem %s9, %s4448
        // Predicated region
        $region98: #{agent_forward.2} parent=92 // pred_check
          %p4450 = pneg %p232
        $region99: #{agent_forward.2} parent=92 // pred_check_branch
          %4452 = sbr.rel (%p4450) target = $region101
        $region100: #{agent_forward.2} parent=92 // pred_region
          %s4453 = smul.u32 2, %s20
        $region101: #{agent_forward.2} parent=92 // pred_fallthru
          _
      $region93: #{agent_forward.2} parent=5 // pred_fallthru
        _
      %p4454 = scmp.le.s32.totalorder 2, %s15
      // Predicated region
      $region102: #{agent_forward.2} parent=5 // pred_check
        %p4455 = pneg %p4454
      $region103: #{agent_forward.2} parent=5 // pred_check_branch
        %4457 = sbr.rel (%p4455) target = $region105
      $region104: #{agent_forward.2} parent=5 // pred_region
        %s4458 = ssub.s32 %s15, 2
        // Predicated region
        $region106: #{agent_forward.2} parent=104 // pred_check
          %p4459 = pneg %p238
        $region107: #{agent_forward.2} parent=104 // pred_check_branch
          %4461 = sbr.rel (%p4459) target = $region109
        $region108: #{agent_forward.2} parent=104 // pred_region
          %s4462 = smul.u32 2, %s21
          %p4463 = scmp.lt.s32.totalorder %s4462, 3
          %s4464 = scalar_select %p4463, %s4462, 3
          %s4465 = smul.addr %s4464, 3
          %s4466 = smul.addr %s4465, 8
          %s4467 = scalar_lea.vmem %s9, %s4466
        $region109: #{agent_forward.2} parent=104 // pred_fallthru
          _
      $region105: #{agent_forward.2} parent=5 // pred_fallthru
        _
    $region6: #{agent_forward.2} parent=1 // loop_footer
      %s19 = sadd.s32 1, %s15
    $region7: #{agent_forward.2} parent=1 // loop_footer_branch
      %14 = sbr.rel target = $region3
    $region8: #{agent_forward.2} parent=1 // loop_exit
      _

</llo_original>
